<compile_context>
chip_gen: v7x
topology: tpu7x:2x2x1
jax: 0.10.0
libtpu: 0.0.40
codegen_flags: <defaults>
</compile_context>

<pallas_src>
import functools

import numpy as np
import jax
import jax.numpy as jnp
from jax import lax
from jax.experimental import pallas as pl
from jax.experimental.pallas import tpu as pltpu


# ----------------------------------------------------------------------------
# Fused kernel: the whole 7-layer BiFPN stack in a single pallas_call.
# ----------------------------------------------------------------------------

def _fused_stack_kernel(
    pin_ref,                                   # (C, n3+n4+n5) packed activations
    w3_0_ref, b3_0_ref, w4_0_ref, b4_0_ref,    # layer-0 conv3 / conv4
    w34_ref, b34_ref,                          # (L-1,2C,2C)/(L-1,2C,1) blockdiag convs
    win_ref, bin_ref, wout_ref, bout_ref,      # folded MHA params, stacked over L
    k3dT_ref, k5uT_ref, mask_ref,              # resize operators + attention mask
    o_ref,                                     # (C, pad128(2*n4+n5)) packed outputs
    *, num_layers, num_heads, n3, n4, n5,
):
    C = w3_0_ref.shape[0]
    d = C // num_heads

    mask = mask_ref[...]                       # (n5, n5) block-diag additive mask
    k5uT = k5uT_ref[...]                       # (n5, n4) P5 -> P4-size upsample

    def mha(x, w_in, b_in, w_out, b_out):
        # x: (C, n5) channel-major.  conv5 and the 1/sqrt(d) q-scale are already
        # folded into (w_in, b_in) on the host.
        qkv = jnp.dot(w_in, x, preferred_element_type=jnp.float32) + b_in   # (3C, n5)
        heads = []
        for h in range(num_heads):
            qh = qkv[h * d:(h + 1) * d, :]                     # (d, n5) channel-major
            kh = qkv[C + h * d:C + (h + 1) * d, :]             # (d, n5)
            vh = qkv[2 * C + h * d:2 * C + (h + 1) * d, :]     # (d, n5)
            # scores[i, j] = q_i . k_j   (no transpose, contract dim0 with dim0)
            s = lax.dot_general(qh, kh, (((0,), (0,)), ((), ())),
                                preferred_element_type=jnp.float32) + mask  # (n5, n5)
            s = s - jnp.max(s, axis=-1, keepdims=True)
            e = jnp.exp(s)
            p = e * pl.reciprocal(jnp.sum(e, axis=-1, keepdims=True), approx=True)
            # head output (d, n5) = V_h @ P^T
            heads.append(lax.dot_general(vh, p, (((1,), (1,)), ((), ())),
                                         preferred_element_type=jnp.float32))
        heads = jnp.concatenate(heads, axis=0)                 # (C, n5) sublane stack
        # single output projection for all heads
        return jnp.dot(w_out, heads, preferred_element_type=jnp.float32) + b_out

    # -------- layer 0: P3 enters at its native (larger) resolution ----------
    p3 = jnp.dot(w3_0_ref[...], pin_ref[:, 0:n3],
                 preferred_element_type=jnp.float32) + b3_0_ref[...]        # conv3
    p3 = jnp.dot(p3, k3dT_ref[...], preferred_element_type=jnp.float32)     # P3_down
    p4 = jnp.dot(w4_0_ref[...], pin_ref[:, n3:n3 + n4],
                 preferred_element_type=jnp.float32) + b4_0_ref[...]        # conv4
    p5 = mha(pin_ref[:, n3 + n4:n3 + n4 + n5],
             win_ref[0], bin_ref[0], wout_ref[0], bout_ref[0])              # P5_attn
    p4 = p4 + jnp.dot(p5, k5uT, preferred_element_type=jnp.float32)         # P4_td
    p3 = p3 + p4                           # P3_td  (same-size P4_up == identity)
    # dropout(0.3): identity (eval semantics)

    # -------- layers 1..L-1: P3 and P4 both live at P4's resolution ---------
    # Fully unrolled; activations stay in VMEM/vregs.
    for l in range(1, num_layers):
        # fused conv3 + conv4: block-diagonal (2C,2C) matmul on [P3; P4]
        p34 = jnp.dot(w34_ref[l - 1], jnp.concatenate([p3, p4], axis=0),
                      preferred_element_type=jnp.float32) + b34_ref[l - 1]  # (2C, n4)
        p5 = mha(p5, win_ref[l], bin_ref[l], wout_ref[l], bout_ref[l])
        p4 = p34[C:2 * C] + jnp.dot(p5, k5uT, preferred_element_type=jnp.float32)
        p3 = p34[0:C] + p4             # same-size bilinear resizes == identity

    # Lane-dense packed output slab [P3 | P4 | P5 | zero-pad].
    pad = o_ref.shape[1] - (2 * n4 + n5)
    pieces = [p3, p4, p5]
    if pad:
        pieces.append(jnp.zeros((C, pad), jnp.float32))
    o_ref[...] = jnp.concatenate(pieces, axis=1)


# ----------------------------------------------------------------------------
# Host-side helpers (layout plumbing, exact param folds, resize operators)
# ----------------------------------------------------------------------------

def _bilinear_matrix(in_size, out_size):
    """Row operator R (out, in) s.t. R @ x == F.interpolate(..., align_corners=False)."""
    scale = in_size / out_size
    dst = np.arange(out_size)
    src = np.maximum(scale * (dst + 0.5) - 0.5, 0.0)
    i0 = np.minimum(np.floor(src).astype(np.int64), in_size - 1)
    i1 = np.minimum(i0 + 1, in_size - 1)
    l1 = (src - i0).astype(np.float32)
    l0 = (1.0 - l1).astype(np.float32)
    R = np.zeros((out_size, in_size), np.float32)
    R[np.arange(out_size), i0] += l0
    R[np.arange(out_size), i1] += l1
    return R


def _resize_operator_t(in_hw, out_hw, batch):
    """Transposed operator so that, on channel-major (C, B*Hin*Win) maps,
    out_cm = x_cm @ op_t reproduces bilinear(align_corners=False) resize."""
    rh = _bilinear_matrix(in_hw[0], out_hw[0])
    rw = _bilinear_matrix(in_hw[1], out_hw[1])
    op = np.kron(np.eye(batch, dtype=np.float32), np.kron(rh, rw))
    return jnp.asarray(op.T)                  # (B*Hin*Win, B*Hout*Wout)


def _block_diag_mask(batch, seq_len):
    """Additive mask: tokens of different batch elements never attend to each
    other, so one masked (B*L, B*L) softmax == per-batch attention exactly."""
    n = batch * seq_len
    b = np.arange(n) // seq_len
    m = np.where(b[:, None] == b[None, :], 0.0, -1e30).astype(np.float32)
    return jnp.asarray(m)


def _to_cm(x):                                 # (B, C, H, W) -> (C, B*H*W)
    b, c, h, w = x.shape
    return jnp.transpose(x, (1, 0, 2, 3)).reshape(c, b * h * w)


def _from_cm(x_cm, b, h, w):                   # (C, B*H*W) -> (B, C, H, W)
    c = x_cm.shape[0]
    return jnp.transpose(x_cm.reshape(c, b, h, w), (1, 0, 2, 3))


def _fold_params(params, num_heads):
    """Exact host-side folds:
      * conv5 into the MHA in-projection:  W_in_f = W_in @ W5, b_in_f = W_in @ b5 + b_in
      * 1/sqrt(head_dim) query scale into the first C rows of (W_in_f, b_in_f)
      * layers 1..L-1: block-diagonal conv weight blockdiag(W3, W4) + stacked bias
    """
    C = params["w3"].shape[1]
    d = C // num_heads
    scale = 1.0 / float(d) ** 0.5

    w_in_f = jnp.einsum("lij,ljk->lik", params["w_in"], params["w5"])
    b_in_f = jnp.einsum("lij,ljk->lik", params["w_in"], params["b5"]) + params["b_in"]
    row_scale = jnp.concatenate(
        [jnp.full((C, 1), scale, jnp.float32), jnp.ones((2 * C, 1), jnp.float32)],
        axis=0)                                # scale only the q rows
    w_in_f = w_in_f * row_scale[None]
    b_in_f = b_in_f * row_scale[None]

    w3r, w4r = params["w3"][1:], params["w4"][1:]
    z = jnp.zeros_like(w3r)
    w34 = jnp.concatenate(
        [jnp.concatenate([w3r, z], axis=2),
         jnp.concatenate([z, w4r], axis=2)], axis=1)            # (L-1, 2C, 2C)
    b34 = jnp.concatenate([params["b3"][1:], params["b4"][1:]], axis=1)  # (L-1, 2C, 1)

    return (params["w3"][0], params["b3"][0], params["w4"][0], params["b4"][0],
            w34, b34, w_in_f, b_in_f, params["w_out"], params["b_out"])


def stacked_bifpn(P3, P4, P5, params, num_heads=4):
    """Forward pass of StackedBiFPN (all layers fused in one Pallas kernel)."""
    B, C, H3, W3 = P3.shape
    _, _, H4, W4 = P4.shape
    _, _, H5, W5 = P5.shape
    num_layers = params["w3"].shape[0]
    n3, n4, n5 = B * H3 * W3, B * H4 * W4, B * H5 * W5
    out_w = ((2 * n4 + n5 + 127) // 128) * 128        # lane-dense output slab

    # Precomputed bilinear operators (layer-0 P3 downsample; P5 upsample every
    # layer).  Same-size resizes are exact identities and are folded away.
    # TODO(synk): at production FPN resolutions switch the dense Kron operator to
    # separable Rh/Rw application (it grows quadratically with token count and
    # would pressure v7x's 64 MiB VMEM); fine at these shapes (~256 KiB).
    k3d_t = _resize_operator_t((H3, W3), (H4, W4), B)
    k5u_t = _resize_operator_t((H5, W5), (H4, W4), B)
    mask = _block_diag_mask(B, H5 * W5)

    folded = _fold_params(params, num_heads)
    pin = jnp.concatenate([_to_cm(P3), _to_cm(P4), _to_cm(P5)], axis=1)   # (C, n3+n4+n5)

    kernel = functools.partial(
        _fused_stack_kernel,
        num_layers=num_layers, num_heads=num_heads, n3=n3, n4=n4, n5=n5)

    n_inputs = 1 + len(folded) + 3
    vmem = pltpu.MemorySpace.VMEM
    # No grid: single invocation, whole arrays VMEM-resident (~300 KiB total).
    # (For batched / multi-instance workloads on v7x, add a leading "parallel"
    # grid axis over independent instances to use the second TensorCore.)
    packed = pl.pallas_call(
        kernel,
        out_shape=jax.ShapeDtypeStruct((C, out_w), jnp.float32),
        in_specs=[pl.BlockSpec(memory_space=vmem)] * n_inputs,
        out_specs=pl.BlockSpec(memory_space=vmem),
        cost_estimate=pl.CostEstimate(
            flops=2_500_000, transcendentals=30_000, bytes_accessed=360_000),
    )(pin, *folded, k3d_t, k5u_t, mask)

    o3 = _from_cm(packed[:, 0:n4], B, H4, W4)           # P3_td (at P4 size)
    o4 = _from_cm(packed[:, n4:2 * n4], B, H4, W4)      # P4_td
    o5 = _from_cm(packed[:, 2 * n4:2 * n4 + n5], B, H5, W5)   # P5_attn
    return o3, o4, o5


def init_params(key, channels, num_layers):
    """Per-layer params stacked along a leading (num_layers, ...) axis
    (PyTorch parameterization: 1x1 conv weights (C,C), in_proj (3C,C), out_proj (C,C))."""
    C = channels
    ks = jax.random.split(key, 10)
    f = lambda k, s, sc=0.1: sc * jax.random.normal(k, (num_layers,) + s, jnp.float32)
    return {
        "w3": f(ks[0], (C, C)), "b3": f(ks[1], (C, 1), 0.01),
        "w4": f(ks[2], (C, C)), "b4": f(ks[3], (C, 1), 0.01),
        "w5": f(ks[4], (C, C)), "b5": f(ks[5], (C, 1), 0.01),
        "w_in": f(ks[6], (3 * C, C)), "b_in": f(ks[7], (3 * C, 1), 0.01),
        "w_out": f(ks[8], (C, C)), "b_out": f(ks[9], (C, 1), 0.01),
    }


if __name__ == "__main__":
    key = jax.random.PRNGKey(0)
    k3, k4, k5, kp = jax.random.split(key, 4)

    B, C = 2, 8   # input_channels == num_channels (required for the stack), heads=4
    P3 = jax.random.normal(k3, (B, C, 16, 16), jnp.float32)
    P4 = jax.random.normal(k4, (B, C, 8, 8), jnp.float32)
    P5 = jax.random.normal(k5, (B, C, 4, 4), jnp.float32)

    params = init_params(kp, C, num_layers=7)

    fwd = jax.jit(stacked_bifpn)
    out3, out4, out5 = fwd(P3, P4, P5, params)
    jax.block_until_ready((out3, out4, out5))

    assert out3.shape == (B, C, 8, 8)   # P3 takes P4's spatial size after layer 1
    assert out4.shape == (B, C, 8, 8)
    assert out5.shape == (B, C, 4, 4)
    assert all(bool(jnp.isfinite(o).all()) for o in (out3, out4, out5))
    print("KERNEL_OK")
</pallas_src>

<mosaic_0001>
module attributes {stable_mosaic.version = 11 : i64} {
  func.func @_fused_stack_kernel(%arg0: memref<8x672xf32, #tpu.memory_space<vmem>>, %arg1: memref<8x8xf32, #tpu.memory_space<vmem>>, %arg2: memref<8x1xf32, #tpu.memory_space<vmem>>, %arg3: memref<8x8xf32, #tpu.memory_space<vmem>>, %arg4: memref<8x1xf32, #tpu.memory_space<vmem>>, %arg5: memref<6x16x16xf32, #tpu.memory_space<vmem>>, %arg6: memref<6x16x1xf32, #tpu.memory_space<vmem>>, %arg7: memref<7x24x8xf32, #tpu.memory_space<vmem>>, %arg8: memref<7x24x1xf32, #tpu.memory_space<vmem>>, %arg9: memref<7x8x8xf32, #tpu.memory_space<vmem>>, %arg10: memref<7x8x1xf32, #tpu.memory_space<vmem>>, %arg11: memref<512x128xf32, #tpu.memory_space<vmem>>, %arg12: memref<32x128xf32, #tpu.memory_space<vmem>>, %arg13: memref<32x32xf32, #tpu.memory_space<vmem>>, %arg14: memref<8x384xf32, #tpu.memory_space<vmem>>) attributes {dimension_semantics = [], scalar_prefetch = 0 : i64, scratch_operands = 0 : i64, tpu.core_type = #tpu.core_type<tc>} {
    %c0 = arith.constant 0 : index
    %c0_0 = arith.constant 0 : index
    %0 = vector.load %arg13[%c0, %c0_0] : memref<32x32xf32, #tpu.memory_space<vmem>>, vector<32x32xf32>
    %c0_1 = arith.constant 0 : index
    %c0_2 = arith.constant 0 : index
    %1 = vector.load %arg12[%c0_1, %c0_2] : memref<32x128xf32, #tpu.memory_space<vmem>>, vector<32x128xf32>
    %c0_3 = arith.constant 0 : index
    %c0_4 = arith.constant 0 : index
    %2 = vector.load %arg1[%c0_3, %c0_4] : memref<8x8xf32, #tpu.memory_space<vmem>>, vector<8x8xf32>
    %c0_5 = arith.constant 0 : index
    %c0_6 = arith.constant 0 : index
    %3 = vector.load %arg0[%c0_5, %c0_6] : memref<8x672xf32, #tpu.memory_space<vmem>>, vector<8x512xf32>
    %cst = arith.constant dense<0.000000e+00> : vector<8x512xf32>
    %4 = tpu.matmul %2, %3, %cst {dimension_numbers = #tpu.dot_dimension_numbers<[1], [0], [0], [1], [0, 0, 1, 1], [], []>} : vector<8x8xf32>, vector<8x512xf32>, vector<8x512xf32> -> vector<8x512xf32>
    %c0_7 = arith.constant 0 : index
    %c0_8 = arith.constant 0 : index
    %5 = vector.load %arg2[%c0_7, %c0_8] : memref<8x1xf32, #tpu.memory_space<vmem>>, vector<8x1xf32>
    %6 = vector.broadcast %5 : vector<8x1xf32> to vector<8x512xf32>
    %7 = arith.addf %4, %6 : vector<8x512xf32>
    %c0_9 = arith.constant 0 : index
    %c0_10 = arith.constant 0 : index
    %8 = vector.load %arg11[%c0_9, %c0_10] : memref<512x128xf32, #tpu.memory_space<vmem>>, vector<512x128xf32>
    %cst_11 = arith.constant dense<0.000000e+00> : vector<8x128xf32>
    %9 = tpu.matmul %7, %8, %cst_11 {dimension_numbers = #tpu.dot_dimension_numbers<[1], [0], [0], [1], [0, 0, 1, 1], [], []>} : vector<8x512xf32>, vector<512x128xf32>, vector<8x128xf32> -> vector<8x128xf32>
    %c0_12 = arith.constant 0 : index
    %c0_13 = arith.constant 0 : index
    %10 = vector.load %arg3[%c0_12, %c0_13] : memref<8x8xf32, #tpu.memory_space<vmem>>, vector<8x8xf32>
    %c0_14 = arith.constant 0 : index
    %c512 = arith.constant 512 : index
    %11 = vector.load %arg0[%c0_14, %c512] : memref<8x672xf32, #tpu.memory_space<vmem>>, vector<8x128xf32>
    %cst_15 = arith.constant dense<0.000000e+00> : vector<8x128xf32>
    %12 = tpu.matmul %10, %11, %cst_15 {dimension_numbers = #tpu.dot_dimension_numbers<[1], [0], [0], [1], [0, 0, 1, 1], [], []>} : vector<8x8xf32>, vector<8x128xf32>, vector<8x128xf32> -> vector<8x128xf32>
    %c0_16 = arith.constant 0 : index
    %c0_17 = arith.constant 0 : index
    %13 = vector.load %arg4[%c0_16, %c0_17] : memref<8x1xf32, #tpu.memory_space<vmem>>, vector<8x1xf32>
    %14 = vector.broadcast %13 : vector<8x1xf32> to vector<8x128xf32>
    %15 = arith.addf %12, %14 : vector<8x128xf32>
    %c0_18 = arith.constant 0 : index
    %c640 = arith.constant 640 : index
    %16 = vector.load %arg0[%c0_18, %c640] : memref<8x672xf32, #tpu.memory_space<vmem>>, vector<8x32xf32>
    %c0_19 = arith.constant 0 : index
    %c0_20 = arith.constant 0 : index
    %c0_21 = arith.constant 0 : index
    %17 = vector.load %arg7[%c0_19, %c0_20, %c0_21] : memref<7x24x8xf32, #tpu.memory_space<vmem>>, vector<1x24x8xf32>
    %18 = vector.shape_cast %17 : vector<1x24x8xf32> to vector<24x8xf32>
    %c0_22 = arith.constant 0 : index
    %c0_23 = arith.constant 0 : index
    %c0_24 = arith.constant 0 : index
    %19 = vector.load %arg8[%c0_22, %c0_23, %c0_24] : memref<7x24x1xf32, #tpu.memory_space<vmem>>, vector<1x24x1xf32>
    %20 = vector.shape_cast %19 : vector<1x24x1xf32> to vector<24x1xf32>
    %c0_25 = arith.constant 0 : index
    %c0_26 = arith.constant 0 : index
    %c0_27 = arith.constant 0 : index
    %21 = vector.load %arg9[%c0_25, %c0_26, %c0_27] : memref<7x8x8xf32, #tpu.memory_space<vmem>>, vector<1x8x8xf32>
    %22 = vector.shape_cast %21 : vector<1x8x8xf32> to vector<8x8xf32>
    %c0_28 = arith.constant 0 : index
    %c0_29 = arith.constant 0 : index
    %c0_30 = arith.constant 0 : index
    %23 = vector.load %arg10[%c0_28, %c0_29, %c0_30] : memref<7x8x1xf32, #tpu.memory_space<vmem>>, vector<1x8x1xf32>
    %24 = vector.shape_cast %23 : vector<1x8x1xf32> to vector<8x1xf32>
    %cst_31 = arith.constant dense<0.000000e+00> : vector<24x32xf32>
    %25 = tpu.matmul %18, %16, %cst_31 {dimension_numbers = #tpu.dot_dimension_numbers<[1], [0], [0], [1], [0, 0, 1, 1], [], []>} : vector<24x8xf32>, vector<8x32xf32>, vector<24x32xf32> -> vector<24x32xf32>
    %26 = vector.broadcast %20 : vector<24x1xf32> to vector<24x32xf32>
    %27 = arith.addf %25, %26 : vector<24x32xf32>
    %28 = vector.extract_strided_slice %27 {offsets = [0, 0], sizes = [2, 32], strides = [1, 1]} : vector<24x32xf32> to vector<2x32xf32>
    %29 = vector.extract_strided_slice %27 {offsets = [8, 0], sizes = [2, 32], strides = [1, 1]} : vector<24x32xf32> to vector<2x32xf32>
    %30 = vector.extract_strided_slice %27 {offsets = [16, 0], sizes = [2, 32], strides = [1, 1]} : vector<24x32xf32> to vector<2x32xf32>
    %cst_32 = arith.constant dense<0.000000e+00> : vector<32x32xf32>
    %31 = tpu.matmul %28, %29, %cst_32 {dimension_numbers = #tpu.dot_dimension_numbers<[0], [0], [1], [1], [0, 1, 1, 1], [], []>} : vector<2x32xf32>, vector<2x32xf32>, vector<32x32xf32> -> vector<32x32xf32>
    %32 = arith.addf %31, %0 : vector<32x32xf32>
    %cst_33 = arith.constant dense<0xFF800000> : vector<32xf32>
    %33 = vector.multi_reduction <maximumf>, %32, %cst_33 [1] : vector<32x32xf32> to vector<32xf32>
    %34 = vector.shape_cast %33 : vector<32xf32> to vector<32x1xf32>
    %35 = vector.broadcast %34 : vector<32x1xf32> to vector<32x32xf32>
    %36 = arith.subf %32, %35 : vector<32x32xf32>
    %37 = math.exp %36 : vector<32x32xf32>
    %cst_34 = arith.constant dense<0.000000e+00> : vector<32xf32>
    %38 = vector.multi_reduction <add>, %37, %cst_34 [1] : vector<32x32xf32> to vector<32xf32>
    %39 = vector.shape_cast %38 : vector<32xf32> to vector<32x1xf32>
    %40 = tpu.reciprocal %39 {approx = true} : vector<32x1xf32> -> vector<32x1xf32>
    %41 = vector.broadcast %40 : vector<32x1xf32> to vector<32x32xf32>
    %42 = arith.mulf %37, %41 : vector<32x32xf32>
    %cst_35 = arith.constant dense<0.000000e+00> : vector<2x32xf32>
    %43 = tpu.matmul %30, %42, %cst_35 {dimension_numbers = #tpu.dot_dimension_numbers<[1], [1], [0], [0], [0, 0, 1, 0], [], []>} : vector<2x32xf32>, vector<32x32xf32>, vector<2x32xf32> -> vector<2x32xf32>
    %44 = vector.extract_strided_slice %27 {offsets = [2, 0], sizes = [2, 32], strides = [1, 1]} : vector<24x32xf32> to vector<2x32xf32>
    %45 = vector.extract_strided_slice %27 {offsets = [10, 0], sizes = [2, 32], strides = [1, 1]} : vector<24x32xf32> to vector<2x32xf32>
    %46 = vector.extract_strided_slice %27 {offsets = [18, 0], sizes = [2, 32], strides = [1, 1]} : vector<24x32xf32> to vector<2x32xf32>
    %cst_36 = arith.constant dense<0.000000e+00> : vector<32x32xf32>
    %47 = tpu.matmul %44, %45, %cst_36 {dimension_numbers = #tpu.dot_dimension_numbers<[0], [0], [1], [1], [0, 1, 1, 1], [], []>} : vector<2x32xf32>, vector<2x32xf32>, vector<32x32xf32> -> vector<32x32xf32>
    %48 = arith.addf %47, %0 : vector<32x32xf32>
    %cst_37 = arith.constant dense<0xFF800000> : vector<32xf32>
    %49 = vector.multi_reduction <maximumf>, %48, %cst_37 [1] : vector<32x32xf32> to vector<32xf32>
    %50 = vector.shape_cast %49 : vector<32xf32> to vector<32x1xf32>
    %51 = vector.broadcast %50 : vector<32x1xf32> to vector<32x32xf32>
    %52 = arith.subf %48, %51 : vector<32x32xf32>
    %53 = math.exp %52 : vector<32x32xf32>
    %cst_38 = arith.constant dense<0.000000e+00> : vector<32xf32>
    %54 = vector.multi_reduction <add>, %53, %cst_38 [1] : vector<32x32xf32> to vector<32xf32>
    %55 = vector.shape_cast %54 : vector<32xf32> to vector<32x1xf32>
    %56 = tpu.reciprocal %55 {approx = true} : vector<32x1xf32> -> vector<32x1xf32>
    %57 = vector.broadcast %56 : vector<32x1xf32> to vector<32x32xf32>
    %58 = arith.mulf %53, %57 : vector<32x32xf32>
    %cst_39 = arith.constant dense<0.000000e+00> : vector<2x32xf32>
    %59 = tpu.matmul %46, %58, %cst_39 {dimension_numbers = #tpu.dot_dimension_numbers<[1], [1], [0], [0], [0, 0, 1, 0], [], []>} : vector<2x32xf32>, vector<32x32xf32>, vector<2x32xf32> -> vector<2x32xf32>
    %60 = vector.extract_strided_slice %27 {offsets = [4, 0], sizes = [2, 32], strides = [1, 1]} : vector<24x32xf32> to vector<2x32xf32>
    %61 = vector.extract_strided_slice %27 {offsets = [12, 0], sizes = [2, 32], strides = [1, 1]} : vector<24x32xf32> to vector<2x32xf32>
    %62 = vector.extract_strided_slice %27 {offsets = [20, 0], sizes = [2, 32], strides = [1, 1]} : vector<24x32xf32> to vector<2x32xf32>
    %cst_40 = arith.constant dense<0.000000e+00> : vector<32x32xf32>
    %63 = tpu.matmul %60, %61, %cst_40 {dimension_numbers = #tpu.dot_dimension_numbers<[0], [0], [1], [1], [0, 1, 1, 1], [], []>} : vector<2x32xf32>, vector<2x32xf32>, vector<32x32xf32> -> vector<32x32xf32>
    %64 = arith.addf %63, %0 : vector<32x32xf32>
    %cst_41 = arith.constant dense<0xFF800000> : vector<32xf32>
    %65 = vector.multi_reduction <maximumf>, %64, %cst_41 [1] : vector<32x32xf32> to vector<32xf32>
    %66 = vector.shape_cast %65 : vector<32xf32> to vector<32x1xf32>
    %67 = vector.broadcast %66 : vector<32x1xf32> to vector<32x32xf32>
    %68 = arith.subf %64, %67 : vector<32x32xf32>
    %69 = math.exp %68 : vector<32x32xf32>
    %cst_42 = arith.constant dense<0.000000e+00> : vector<32xf32>
    %70 = vector.multi_reduction <add>, %69, %cst_42 [1] : vector<32x32xf32> to vector<32xf32>
    %71 = vector.shape_cast %70 : vector<32xf32> to vector<32x1xf32>
    %72 = tpu.reciprocal %71 {approx = true} : vector<32x1xf32> -> vector<32x1xf32>
    %73 = vector.broadcast %72 : vector<32x1xf32> to vector<32x32xf32>
    %74 = arith.mulf %69, %73 : vector<32x32xf32>
    %cst_43 = arith.constant dense<0.000000e+00> : vector<2x32xf32>
    %75 = tpu.matmul %62, %74, %cst_43 {dimension_numbers = #tpu.dot_dimension_numbers<[1], [1], [0], [0], [0, 0, 1, 0], [], []>} : vector<2x32xf32>, vector<32x32xf32>, vector<2x32xf32> -> vector<2x32xf32>
    %76 = vector.extract_strided_slice %27 {offsets = [6, 0], sizes = [2, 32], strides = [1, 1]} : vector<24x32xf32> to vector<2x32xf32>
    %77 = vector.extract_strided_slice %27 {offsets = [14, 0], sizes = [2, 32], strides = [1, 1]} : vector<24x32xf32> to vector<2x32xf32>
    %78 = vector.extract_strided_slice %27 {offsets = [22, 0], sizes = [2, 32], strides = [1, 1]} : vector<24x32xf32> to vector<2x32xf32>
    %cst_44 = arith.constant dense<0.000000e+00> : vector<32x32xf32>
    %79 = tpu.matmul %76, %77, %cst_44 {dimension_numbers = #tpu.dot_dimension_numbers<[0], [0], [1], [1], [0, 1, 1, 1], [], []>} : vector<2x32xf32>, vector<2x32xf32>, vector<32x32xf32> -> vector<32x32xf32>
    %80 = arith.addf %79, %0 : vector<32x32xf32>
    %cst_45 = arith.constant dense<0xFF800000> : vector<32xf32>
    %81 = vector.multi_reduction <maximumf>, %80, %cst_45 [1] : vector<32x32xf32> to vector<32xf32>
    %82 = vector.shape_cast %81 : vector<32xf32> to vector<32x1xf32>
    %83 = vector.broadcast %82 : vector<32x1xf32> to vector<32x32xf32>
    %84 = arith.subf %80, %83 : vector<32x32xf32>
    %85 = math.exp %84 : vector<32x32xf32>
    %cst_46 = arith.constant dense<0.000000e+00> : vector<32xf32>
    %86 = vector.multi_reduction <add>, %85, %cst_46 [1] : vector<32x32xf32> to vector<32xf32>
    %87 = vector.shape_cast %86 : vector<32xf32> to vector<32x1xf32>
    %88 = tpu.reciprocal %87 {approx = true} : vector<32x1xf32> -> vector<32x1xf32>
    %89 = vector.broadcast %88 : vector<32x1xf32> to vector<32x32xf32>
    %90 = arith.mulf %85, %89 : vector<32x32xf32>
    %cst_47 = arith.constant dense<0.000000e+00> : vector<2x32xf32>
    %91 = tpu.matmul %78, %90, %cst_47 {dimension_numbers = #tpu.dot_dimension_numbers<[1], [1], [0], [0], [0, 0, 1, 0], [], []>} : vector<2x32xf32>, vector<32x32xf32>, vector<2x32xf32> -> vector<2x32xf32>
    %92 = tpu.concatenate %43, %59, %75, %91 in 0 : vector<2x32xf32>, vector<2x32xf32>, vector<2x32xf32>, vector<2x32xf32> -> vector<8x32xf32>
    %cst_48 = arith.constant dense<0.000000e+00> : vector<8x32xf32>
    %93 = tpu.matmul %22, %92, %cst_48 {dimension_numbers = #tpu.dot_dimension_numbers<[1], [0], [0], [1], [0, 0, 1, 1], [], []>} : vector<8x8xf32>, vector<8x32xf32>, vector<8x32xf32> -> vector<8x32xf32>
    %94 = vector.broadcast %24 : vector<8x1xf32> to vector<8x32xf32>
    %95 = arith.addf %93, %94 : vector<8x32xf32>
    %cst_49 = arith.constant dense<0.000000e+00> : vector<8x128xf32>
    %96 = tpu.matmul %95, %1, %cst_49 {dimension_numbers = #tpu.dot_dimension_numbers<[1], [0], [0], [1], [0, 0, 1, 1], [], []>} : vector<8x32xf32>, vector<32x128xf32>, vector<8x128xf32> -> vector<8x128xf32>
    %97 = arith.addf %15, %96 : vector<8x128xf32>
    %98 = arith.addf %9, %97 : vector<8x128xf32>
    %c0_50 = arith.constant 0 : index
    %c0_51 = arith.constant 0 : index
    %c0_52 = arith.constant 0 : index
    %99 = vector.load %arg5[%c0_50, %c0_51, %c0_52] : memref<6x16x16xf32, #tpu.memory_space<vmem>>, vector<1x16x16xf32>
    %100 = vector.shape_cast %99 : vector<1x16x16xf32> to vector<16x16xf32>
    %101 = tpu.concatenate %98, %97 in 0 : vector<8x128xf32>, vector<8x128xf32> -> vector<16x128xf32>
    %cst_53 = arith.constant dense<0.000000e+00> : vector<16x128xf32>
    %102 = tpu.matmul %100, %101, %cst_53 {dimension_numbers = #tpu.dot_dimension_numbers<[1], [0], [0], [1], [0, 0, 1, 1], [], []>} : vector<16x16xf32>, vector<16x128xf32>, vector<16x128xf32> -> vector<16x128xf32>
    %c0_54 = arith.constant 0 : index
    %c0_55 = arith.constant 0 : index
    %c0_56 = arith.constant 0 : index
    %103 = vector.load %arg6[%c0_54, %c0_55, %c0_56] : memref<6x16x1xf32, #tpu.memory_space<vmem>>, vector<1x16x1xf32>
    %104 = vector.shape_cast %103 : vector<1x16x1xf32> to vector<16x1xf32>
    %105 = vector.broadcast %104 : vector<16x1xf32> to vector<16x128xf32>
    %106 = arith.addf %102, %105 : vector<16x128xf32>
    %c1 = arith.constant 1 : index
    %c0_57 = arith.constant 0 : index
    %c0_58 = arith.constant 0 : index
    %107 = vector.load %arg7[%c1, %c0_57, %c0_58] : memref<7x24x8xf32, #tpu.memory_space<vmem>>, vector<1x24x8xf32>
    %108 = vector.shape_cast %107 : vector<1x24x8xf32> to vector<24x8xf32>
    %c1_59 = arith.constant 1 : index
    %c0_60 = arith.constant 0 : index
    %c0_61 = arith.constant 0 : index
    %109 = vector.load %arg8[%c1_59, %c0_60, %c0_61] : memref<7x24x1xf32, #tpu.memory_space<vmem>>, vector<1x24x1xf32>
    %110 = vector.shape_cast %109 : vector<1x24x1xf32> to vector<24x1xf32>
    %c1_62 = arith.constant 1 : index
    %c0_63 = arith.constant 0 : index
    %c0_64 = arith.constant 0 : index
    %111 = vector.load %arg9[%c1_62, %c0_63, %c0_64] : memref<7x8x8xf32, #tpu.memory_space<vmem>>, vector<1x8x8xf32>
    %112 = vector.shape_cast %111 : vector<1x8x8xf32> to vector<8x8xf32>
    %c1_65 = arith.constant 1 : index
    %c0_66 = arith.constant 0 : index
    %c0_67 = arith.constant 0 : index
    %113 = vector.load %arg10[%c1_65, %c0_66, %c0_67] : memref<7x8x1xf32, #tpu.memory_space<vmem>>, vector<1x8x1xf32>
    %114 = vector.shape_cast %113 : vector<1x8x1xf32> to vector<8x1xf32>
    %cst_68 = arith.constant dense<0.000000e+00> : vector<24x32xf32>
    %115 = tpu.matmul %108, %95, %cst_68 {dimension_numbers = #tpu.dot_dimension_numbers<[1], [0], [0], [1], [0, 0, 1, 1], [], []>} : vector<24x8xf32>, vector<8x32xf32>, vector<24x32xf32> -> vector<24x32xf32>
    %116 = vector.broadcast %110 : vector<24x1xf32> to vector<24x32xf32>
    %117 = arith.addf %115, %116 : vector<24x32xf32>
    %118 = vector.extract_strided_slice %117 {offsets = [0, 0], sizes = [2, 32], strides = [1, 1]} : vector<24x32xf32> to vector<2x32xf32>
    %119 = vector.extract_strided_slice %117 {offsets = [8, 0], sizes = [2, 32], strides = [1, 1]} : vector<24x32xf32> to vector<2x32xf32>
    %120 = vector.extract_strided_slice %117 {offsets = [16, 0], sizes = [2, 32], strides = [1, 1]} : vector<24x32xf32> to vector<2x32xf32>
    %cst_69 = arith.constant dense<0.000000e+00> : vector<32x32xf32>
    %121 = tpu.matmul %118, %119, %cst_69 {dimension_numbers = #tpu.dot_dimension_numbers<[0], [0], [1], [1], [0, 1, 1, 1], [], []>} : vector<2x32xf32>, vector<2x32xf32>, vector<32x32xf32> -> vector<32x32xf32>
    %122 = arith.addf %121, %0 : vector<32x32xf32>
    %cst_70 = arith.constant dense<0xFF800000> : vector<32xf32>
    %123 = vector.multi_reduction <maximumf>, %122, %cst_70 [1] : vector<32x32xf32> to vector<32xf32>
    %124 = vector.shape_cast %123 : vector<32xf32> to vector<32x1xf32>
    %125 = vector.broadcast %124 : vector<32x1xf32> to vector<32x32xf32>
    %126 = arith.subf %122, %125 : vector<32x32xf32>
    %127 = math.exp %126 : vector<32x32xf32>
    %cst_71 = arith.constant dense<0.000000e+00> : vector<32xf32>
    %128 = vector.multi_reduction <add>, %127, %cst_71 [1] : vector<32x32xf32> to vector<32xf32>
    %129 = vector.shape_cast %128 : vector<32xf32> to vector<32x1xf32>
    %130 = tpu.reciprocal %129 {approx = true} : vector<32x1xf32> -> vector<32x1xf32>
    %131 = vector.broadcast %130 : vector<32x1xf32> to vector<32x32xf32>
    %132 = arith.mulf %127, %131 : vector<32x32xf32>
    %cst_72 = arith.constant dense<0.000000e+00> : vector<2x32xf32>
    %133 = tpu.matmul %120, %132, %cst_72 {dimension_numbers = #tpu.dot_dimension_numbers<[1], [1], [0], [0], [0, 0, 1, 0], [], []>} : vector<2x32xf32>, vector<32x32xf32>, vector<2x32xf32> -> vector<2x32xf32>
    %134 = vector.extract_strided_slice %117 {offsets = [2, 0], sizes = [2, 32], strides = [1, 1]} : vector<24x32xf32> to vector<2x32xf32>
    %135 = vector.extract_strided_slice %117 {offsets = [10, 0], sizes = [2, 32], strides = [1, 1]} : vector<24x32xf32> to vector<2x32xf32>
    %136 = vector.extract_strided_slice %117 {offsets = [18, 0], sizes = [2, 32], strides = [1, 1]} : vector<24x32xf32> to vector<2x32xf32>
    %cst_73 = arith.constant dense<0.000000e+00> : vector<32x32xf32>
    %137 = tpu.matmul %134, %135, %cst_73 {dimension_numbers = #tpu.dot_dimension_numbers<[0], [0], [1], [1], [0, 1, 1, 1], [], []>} : vector<2x32xf32>, vector<2x32xf32>, vector<32x32xf32> -> vector<32x32xf32>
    %138 = arith.addf %137, %0 : vector<32x32xf32>
    %cst_74 = arith.constant dense<0xFF800000> : vector<32xf32>
    %139 = vector.multi_reduction <maximumf>, %138, %cst_74 [1] : vector<32x32xf32> to vector<32xf32>
    %140 = vector.shape_cast %139 : vector<32xf32> to vector<32x1xf32>
    %141 = vector.broadcast %140 : vector<32x1xf32> to vector<32x32xf32>
    %142 = arith.subf %138, %141 : vector<32x32xf32>
    %143 = math.exp %142 : vector<32x32xf32>
    %cst_75 = arith.constant dense<0.000000e+00> : vector<32xf32>
    %144 = vector.multi_reduction <add>, %143, %cst_75 [1] : vector<32x32xf32> to vector<32xf32>
    %145 = vector.shape_cast %144 : vector<32xf32> to vector<32x1xf32>
    %146 = tpu.reciprocal %145 {approx = true} : vector<32x1xf32> -> vector<32x1xf32>
    %147 = vector.broadcast %146 : vector<32x1xf32> to vector<32x32xf32>
    %148 = arith.mulf %143, %147 : vector<32x32xf32>
    %cst_76 = arith.constant dense<0.000000e+00> : vector<2x32xf32>
    %149 = tpu.matmul %136, %148, %cst_76 {dimension_numbers = #tpu.dot_dimension_numbers<[1], [1], [0], [0], [0, 0, 1, 0], [], []>} : vector<2x32xf32>, vector<32x32xf32>, vector<2x32xf32> -> vector<2x32xf32>
    %150 = vector.extract_strided_slice %117 {offsets = [4, 0], sizes = [2, 32], strides = [1, 1]} : vector<24x32xf32> to vector<2x32xf32>
    %151 = vector.extract_strided_slice %117 {offsets = [12, 0], sizes = [2, 32], strides = [1, 1]} : vector<24x32xf32> to vector<2x32xf32>
    %152 = vector.extract_strided_slice %117 {offsets = [20, 0], sizes = [2, 32], strides = [1, 1]} : vector<24x32xf32> to vector<2x32xf32>
    %cst_77 = arith.constant dense<0.000000e+00> : vector<32x32xf32>
    %153 = tpu.matmul %150, %151, %cst_77 {dimension_numbers = #tpu.dot_dimension_numbers<[0], [0], [1], [1], [0, 1, 1, 1], [], []>} : vector<2x32xf32>, vector<2x32xf32>, vector<32x32xf32> -> vector<32x32xf32>
    %154 = arith.addf %153, %0 : vector<32x32xf32>
    %cst_78 = arith.constant dense<0xFF800000> : vector<32xf32>
    %155 = vector.multi_reduction <maximumf>, %154, %cst_78 [1] : vector<32x32xf32> to vector<32xf32>
    %156 = vector.shape_cast %155 : vector<32xf32> to vector<32x1xf32>
    %157 = vector.broadcast %156 : vector<32x1xf32> to vector<32x32xf32>
    %158 = arith.subf %154, %157 : vector<32x32xf32>
    %159 = math.exp %158 : vector<32x32xf32>
    %cst_79 = arith.constant dense<0.000000e+00> : vector<32xf32>
    %160 = vector.multi_reduction <add>, %159, %cst_79 [1] : vector<32x32xf32> to vector<32xf32>
    %161 = vector.shape_cast %160 : vector<32xf32> to vector<32x1xf32>
    %162 = tpu.reciprocal %161 {approx = true} : vector<32x1xf32> -> vector<32x1xf32>
    %163 = vector.broadcast %162 : vector<32x1xf32> to vector<32x32xf32>
    %164 = arith.mulf %159, %163 : vector<32x32xf32>
    %cst_80 = arith.constant dense<0.000000e+00> : vector<2x32xf32>
    %165 = tpu.matmul %152, %164, %cst_80 {dimension_numbers = #tpu.dot_dimension_numbers<[1], [1], [0], [0], [0, 0, 1, 0], [], []>} : vector<2x32xf32>, vector<32x32xf32>, vector<2x32xf32> -> vector<2x32xf32>
    %166 = vector.extract_strided_slice %117 {offsets = [6, 0], sizes = [2, 32], strides = [1, 1]} : vector<24x32xf32> to vector<2x32xf32>
    %167 = vector.extract_strided_slice %117 {offsets = [14, 0], sizes = [2, 32], strides = [1, 1]} : vector<24x32xf32> to vector<2x32xf32>
    %168 = vector.extract_strided_slice %117 {offsets = [22, 0], sizes = [2, 32], strides = [1, 1]} : vector<24x32xf32> to vector<2x32xf32>
    %cst_81 = arith.constant dense<0.000000e+00> : vector<32x32xf32>
    %169 = tpu.matmul %166, %167, %cst_81 {dimension_numbers = #tpu.dot_dimension_numbers<[0], [0], [1], [1], [0, 1, 1, 1], [], []>} : vector<2x32xf32>, vector<2x32xf32>, vector<32x32xf32> -> vector<32x32xf32>
    %170 = arith.addf %169, %0 : vector<32x32xf32>
    %cst_82 = arith.constant dense<0xFF800000> : vector<32xf32>
    %171 = vector.multi_reduction <maximumf>, %170, %cst_82 [1] : vector<32x32xf32> to vector<32xf32>
    %172 = vector.shape_cast %171 : vector<32xf32> to vector<32x1xf32>
    %173 = vector.broadcast %172 : vector<32x1xf32> to vector<32x32xf32>
    %174 = arith.subf %170, %173 : vector<32x32xf32>
    %175 = math.exp %174 : vector<32x32xf32>
    %cst_83 = arith.constant dense<0.000000e+00> : vector<32xf32>
    %176 = vector.multi_reduction <add>, %175, %cst_83 [1] : vector<32x32xf32> to vector<32xf32>
    %177 = vector.shape_cast %176 : vector<32xf32> to vector<32x1xf32>
    %178 = tpu.reciprocal %177 {approx = true} : vector<32x1xf32> -> vector<32x1xf32>
    %179 = vector.broadcast %178 : vector<32x1xf32> to vector<32x32xf32>
    %180 = arith.mulf %175, %179 : vector<32x32xf32>
    %cst_84 = arith.constant dense<0.000000e+00> : vector<2x32xf32>
    %181 = tpu.matmul %168, %180, %cst_84 {dimension_numbers = #tpu.dot_dimension_numbers<[1], [1], [0], [0], [0, 0, 1, 0], [], []>} : vector<2x32xf32>, vector<32x32xf32>, vector<2x32xf32> -> vector<2x32xf32>
    %182 = tpu.concatenate %133, %149, %165, %181 in 0 : vector<2x32xf32>, vector<2x32xf32>, vector<2x32xf32>, vector<2x32xf32> -> vector<8x32xf32>
    %cst_85 = arith.constant dense<0.000000e+00> : vector<8x32xf32>
    %183 = tpu.matmul %112, %182, %cst_85 {dimension_numbers = #tpu.dot_dimension_numbers<[1], [0], [0], [1], [0, 0, 1, 1], [], []>} : vector<8x8xf32>, vector<8x32xf32>, vector<8x32xf32> -> vector<8x32xf32>
    %184 = vector.broadcast %114 : vector<8x1xf32> to vector<8x32xf32>
    %185 = arith.addf %183, %184 : vector<8x32xf32>
    %186 = vector.extract_strided_slice %106 {offsets = [8, 0], sizes = [8, 128], strides = [1, 1]} : vector<16x128xf32> to vector<8x128xf32>
    %cst_86 = arith.constant dense<0.000000e+00> : vector<8x128xf32>
    %187 = tpu.matmul %185, %1, %cst_86 {dimension_numbers = #tpu.dot_dimension_numbers<[1], [0], [0], [1], [0, 0, 1, 1], [], []>} : vector<8x32xf32>, vector<32x128xf32>, vector<8x128xf32> -> vector<8x128xf32>
    %188 = arith.addf %186, %187 : vector<8x128xf32>
    %189 = vector.extract_strided_slice %106 {offsets = [0, 0], sizes = [8, 128], strides = [1, 1]} : vector<16x128xf32> to vector<8x128xf32>
    %190 = arith.addf %189, %188 : vector<8x128xf32>
    %c1_87 = arith.constant 1 : index
    %c0_88 = arith.constant 0 : index
    %c0_89 = arith.constant 0 : index
    %191 = vector.load %arg5[%c1_87, %c0_88, %c0_89] : memref<6x16x16xf32, #tpu.memory_space<vmem>>, vector<1x16x16xf32>
    %192 = vector.shape_cast %191 : vector<1x16x16xf32> to vector<16x16xf32>
    %193 = tpu.concatenate %190, %188 in 0 : vector<8x128xf32>, vector<8x128xf32> -> vector<16x128xf32>
    %cst_90 = arith.constant dense<0.000000e+00> : vector<16x128xf32>
    %194 = tpu.matmul %192, %193, %cst_90 {dimension_numbers = #tpu.dot_dimension_numbers<[1], [0], [0], [1], [0, 0, 1, 1], [], []>} : vector<16x16xf32>, vector<16x128xf32>, vector<16x128xf32> -> vector<16x128xf32>
    %c1_91 = arith.constant 1 : index
    %c0_92 = arith.constant 0 : index
    %c0_93 = arith.constant 0 : index
    %195 = vector.load %arg6[%c1_91, %c0_92, %c0_93] : memref<6x16x1xf32, #tpu.memory_space<vmem>>, vector<1x16x1xf32>
    %196 = vector.shape_cast %195 : vector<1x16x1xf32> to vector<16x1xf32>
    %197 = vector.broadcast %196 : vector<16x1xf32> to vector<16x128xf32>
    %198 = arith.addf %194, %197 : vector<16x128xf32>
    %c2 = arith.constant 2 : index
    %c0_94 = arith.constant 0 : index
    %c0_95 = arith.constant 0 : index
    %199 = vector.load %arg7[%c2, %c0_94, %c0_95] : memref<7x24x8xf32, #tpu.memory_space<vmem>>, vector<1x24x8xf32>
    %200 = vector.shape_cast %199 : vector<1x24x8xf32> to vector<24x8xf32>
    %c2_96 = arith.constant 2 : index
    %c0_97 = arith.constant 0 : index
    %c0_98 = arith.constant 0 : index
    %201 = vector.load %arg8[%c2_96, %c0_97, %c0_98] : memref<7x24x1xf32, #tpu.memory_space<vmem>>, vector<1x24x1xf32>
    %202 = vector.shape_cast %201 : vector<1x24x1xf32> to vector<24x1xf32>
    %c2_99 = arith.constant 2 : index
    %c0_100 = arith.constant 0 : index
    %c0_101 = arith.constant 0 : index
    %203 = vector.load %arg9[%c2_99, %c0_100, %c0_101] : memref<7x8x8xf32, #tpu.memory_space<vmem>>, vector<1x8x8xf32>
    %204 = vector.shape_cast %203 : vector<1x8x8xf32> to vector<8x8xf32>
    %c2_102 = arith.constant 2 : index
    %c0_103 = arith.constant 0 : index
    %c0_104 = arith.constant 0 : index
    %205 = vector.load %arg10[%c2_102, %c0_103, %c0_104] : memref<7x8x1xf32, #tpu.memory_space<vmem>>, vector<1x8x1xf32>
    %206 = vector.shape_cast %205 : vector<1x8x1xf32> to vector<8x1xf32>
    %cst_105 = arith.constant dense<0.000000e+00> : vector<24x32xf32>
    %207 = tpu.matmul %200, %185, %cst_105 {dimension_numbers = #tpu.dot_dimension_numbers<[1], [0], [0], [1], [0, 0, 1, 1], [], []>} : vector<24x8xf32>, vector<8x32xf32>, vector<24x32xf32> -> vector<24x32xf32>
    %208 = vector.broadcast %202 : vector<24x1xf32> to vector<24x32xf32>
    %209 = arith.addf %207, %208 : vector<24x32xf32>
    %210 = vector.extract_strided_slice %209 {offsets = [0, 0], sizes = [2, 32], strides = [1, 1]} : vector<24x32xf32> to vector<2x32xf32>
    %211 = vector.extract_strided_slice %209 {offsets = [8, 0], sizes = [2, 32], strides = [1, 1]} : vector<24x32xf32> to vector<2x32xf32>
    %212 = vector.extract_strided_slice %209 {offsets = [16, 0], sizes = [2, 32], strides = [1, 1]} : vector<24x32xf32> to vector<2x32xf32>
    %cst_106 = arith.constant dense<0.000000e+00> : vector<32x32xf32>
    %213 = tpu.matmul %210, %211, %cst_106 {dimension_numbers = #tpu.dot_dimension_numbers<[0], [0], [1], [1], [0, 1, 1, 1], [], []>} : vector<2x32xf32>, vector<2x32xf32>, vector<32x32xf32> -> vector<32x32xf32>
    %214 = arith.addf %213, %0 : vector<32x32xf32>
    %cst_107 = arith.constant dense<0xFF800000> : vector<32xf32>
    %215 = vector.multi_reduction <maximumf>, %214, %cst_107 [1] : vector<32x32xf32> to vector<32xf32>
    %216 = vector.shape_cast %215 : vector<32xf32> to vector<32x1xf32>
    %217 = vector.broadcast %216 : vector<32x1xf32> to vector<32x32xf32>
    %218 = arith.subf %214, %217 : vector<32x32xf32>
    %219 = math.exp %218 : vector<32x32xf32>
    %cst_108 = arith.constant dense<0.000000e+00> : vector<32xf32>
    %220 = vector.multi_reduction <add>, %219, %cst_108 [1] : vector<32x32xf32> to vector<32xf32>
    %221 = vector.shape_cast %220 : vector<32xf32> to vector<32x1xf32>
    %222 = tpu.reciprocal %221 {approx = true} : vector<32x1xf32> -> vector<32x1xf32>
    %223 = vector.broadcast %222 : vector<32x1xf32> to vector<32x32xf32>
    %224 = arith.mulf %219, %223 : vector<32x32xf32>
    %cst_109 = arith.constant dense<0.000000e+00> : vector<2x32xf32>
    %225 = tpu.matmul %212, %224, %cst_109 {dimension_numbers = #tpu.dot_dimension_numbers<[1], [1], [0], [0], [0, 0, 1, 0], [], []>} : vector<2x32xf32>, vector<32x32xf32>, vector<2x32xf32> -> vector<2x32xf32>
    %226 = vector.extract_strided_slice %209 {offsets = [2, 0], sizes = [2, 32], strides = [1, 1]} : vector<24x32xf32> to vector<2x32xf32>
    %227 = vector.extract_strided_slice %209 {offsets = [10, 0], sizes = [2, 32], strides = [1, 1]} : vector<24x32xf32> to vector<2x32xf32>
    %228 = vector.extract_strided_slice %209 {offsets = [18, 0], sizes = [2, 32], strides = [1, 1]} : vector<24x32xf32> to vector<2x32xf32>
    %cst_110 = arith.constant dense<0.000000e+00> : vector<32x32xf32>
    %229 = tpu.matmul %226, %227, %cst_110 {dimension_numbers = #tpu.dot_dimension_numbers<[0], [0], [1], [1], [0, 1, 1, 1], [], []>} : vector<2x32xf32>, vector<2x32xf32>, vector<32x32xf32> -> vector<32x32xf32>
    %230 = arith.addf %229, %0 : vector<32x32xf32>
    %cst_111 = arith.constant dense<0xFF800000> : vector<32xf32>
    %231 = vector.multi_reduction <maximumf>, %230, %cst_111 [1] : vector<32x32xf32> to vector<32xf32>
    %232 = vector.shape_cast %231 : vector<32xf32> to vector<32x1xf32>
    %233 = vector.broadcast %232 : vector<32x1xf32> to vector<32x32xf32>
    %234 = arith.subf %230, %233 : vector<32x32xf32>
    %235 = math.exp %234 : vector<32x32xf32>
    %cst_112 = arith.constant dense<0.000000e+00> : vector<32xf32>
    %236 = vector.multi_reduction <add>, %235, %cst_112 [1] : vector<32x32xf32> to vector<32xf32>
    %237 = vector.shape_cast %236 : vector<32xf32> to vector<32x1xf32>
    %238 = tpu.reciprocal %237 {approx = true} : vector<32x1xf32> -> vector<32x1xf32>
    %239 = vector.broadcast %238 : vector<32x1xf32> to vector<32x32xf32>
    %240 = arith.mulf %235, %239 : vector<32x32xf32>
    %cst_113 = arith.constant dense<0.000000e+00> : vector<2x32xf32>
    %241 = tpu.matmul %228, %240, %cst_113 {dimension_numbers = #tpu.dot_dimension_numbers<[1], [1], [0], [0], [0, 0, 1, 0], [], []>} : vector<2x32xf32>, vector<32x32xf32>, vector<2x32xf32> -> vector<2x32xf32>
    %242 = vector.extract_strided_slice %209 {offsets = [4, 0], sizes = [2, 32], strides = [1, 1]} : vector<24x32xf32> to vector<2x32xf32>
    %243 = vector.extract_strided_slice %209 {offsets = [12, 0], sizes = [2, 32], strides = [1, 1]} : vector<24x32xf32> to vector<2x32xf32>
    %244 = vector.extract_strided_slice %209 {offsets = [20, 0], sizes = [2, 32], strides = [1, 1]} : vector<24x32xf32> to vector<2x32xf32>
    %cst_114 = arith.constant dense<0.000000e+00> : vector<32x32xf32>
    %245 = tpu.matmul %242, %243, %cst_114 {dimension_numbers = #tpu.dot_dimension_numbers<[0], [0], [1], [1], [0, 1, 1, 1], [], []>} : vector<2x32xf32>, vector<2x32xf32>, vector<32x32xf32> -> vector<32x32xf32>
    %246 = arith.addf %245, %0 : vector<32x32xf32>
    %cst_115 = arith.constant dense<0xFF800000> : vector<32xf32>
    %247 = vector.multi_reduction <maximumf>, %246, %cst_115 [1] : vector<32x32xf32> to vector<32xf32>
    %248 = vector.shape_cast %247 : vector<32xf32> to vector<32x1xf32>
    %249 = vector.broadcast %248 : vector<32x1xf32> to vector<32x32xf32>
    %250 = arith.subf %246, %249 : vector<32x32xf32>
    %251 = math.exp %250 : vector<32x32xf32>
    %cst_116 = arith.constant dense<0.000000e+00> : vector<32xf32>
    %252 = vector.multi_reduction <add>, %251, %cst_116 [1] : vector<32x32xf32> to vector<32xf32>
    %253 = vector.shape_cast %252 : vector<32xf32> to vector<32x1xf32>
    %254 = tpu.reciprocal %253 {approx = true} : vector<32x1xf32> -> vector<32x1xf32>
    %255 = vector.broadcast %254 : vector<32x1xf32> to vector<32x32xf32>
    %256 = arith.mulf %251, %255 : vector<32x32xf32>
    %cst_117 = arith.constant dense<0.000000e+00> : vector<2x32xf32>
    %257 = tpu.matmul %244, %256, %cst_117 {dimension_numbers = #tpu.dot_dimension_numbers<[1], [1], [0], [0], [0, 0, 1, 0], [], []>} : vector<2x32xf32>, vector<32x32xf32>, vector<2x32xf32> -> vector<2x32xf32>
    %258 = vector.extract_strided_slice %209 {offsets = [6, 0], sizes = [2, 32], strides = [1, 1]} : vector<24x32xf32> to vector<2x32xf32>
    %259 = vector.extract_strided_slice %209 {offsets = [14, 0], sizes = [2, 32], strides = [1, 1]} : vector<24x32xf32> to vector<2x32xf32>
    %260 = vector.extract_strided_slice %209 {offsets = [22, 0], sizes = [2, 32], strides = [1, 1]} : vector<24x32xf32> to vector<2x32xf32>
    %cst_118 = arith.constant dense<0.000000e+00> : vector<32x32xf32>
    %261 = tpu.matmul %258, %259, %cst_118 {dimension_numbers = #tpu.dot_dimension_numbers<[0], [0], [1], [1], [0, 1, 1, 1], [], []>} : vector<2x32xf32>, vector<2x32xf32>, vector<32x32xf32> -> vector<32x32xf32>
    %262 = arith.addf %261, %0 : vector<32x32xf32>
    %cst_119 = arith.constant dense<0xFF800000> : vector<32xf32>
    %263 = vector.multi_reduction <maximumf>, %262, %cst_119 [1] : vector<32x32xf32> to vector<32xf32>
    %264 = vector.shape_cast %263 : vector<32xf32> to vector<32x1xf32>
    %265 = vector.broadcast %264 : vector<32x1xf32> to vector<32x32xf32>
    %266 = arith.subf %262, %265 : vector<32x32xf32>
    %267 = math.exp %266 : vector<32x32xf32>
    %cst_120 = arith.constant dense<0.000000e+00> : vector<32xf32>
    %268 = vector.multi_reduction <add>, %267, %cst_120 [1] : vector<32x32xf32> to vector<32xf32>
    %269 = vector.shape_cast %268 : vector<32xf32> to vector<32x1xf32>
    %270 = tpu.reciprocal %269 {approx = true} : vector<32x1xf32> -> vector<32x1xf32>
    %271 = vector.broadcast %270 : vector<32x1xf32> to vector<32x32xf32>
    %272 = arith.mulf %267, %271 : vector<32x32xf32>
    %cst_121 = arith.constant dense<0.000000e+00> : vector<2x32xf32>
    %273 = tpu.matmul %260, %272, %cst_121 {dimension_numbers = #tpu.dot_dimension_numbers<[1], [1], [0], [0], [0, 0, 1, 0], [], []>} : vector<2x32xf32>, vector<32x32xf32>, vector<2x32xf32> -> vector<2x32xf32>
    %274 = tpu.concatenate %225, %241, %257, %273 in 0 : vector<2x32xf32>, vector<2x32xf32>, vector<2x32xf32>, vector<2x32xf32> -> vector<8x32xf32>
    %cst_122 = arith.constant dense<0.000000e+00> : vector<8x32xf32>
    %275 = tpu.matmul %204, %274, %cst_122 {dimension_numbers = #tpu.dot_dimension_numbers<[1], [0], [0], [1], [0, 0, 1, 1], [], []>} : vector<8x8xf32>, vector<8x32xf32>, vector<8x32xf32> -> vector<8x32xf32>
    %276 = vector.broadcast %206 : vector<8x1xf32> to vector<8x32xf32>
    %277 = arith.addf %275, %276 : vector<8x32xf32>
    %278 = vector.extract_strided_slice %198 {offsets = [8, 0], sizes = [8, 128], strides = [1, 1]} : vector<16x128xf32> to vector<8x128xf32>
    %cst_123 = arith.constant dense<0.000000e+00> : vector<8x128xf32>
    %279 = tpu.matmul %277, %1, %cst_123 {dimension_numbers = #tpu.dot_dimension_numbers<[1], [0], [0], [1], [0, 0, 1, 1], [], []>} : vector<8x32xf32>, vector<32x128xf32>, vector<8x128xf32> -> vector<8x128xf32>
    %280 = arith.addf %278, %279 : vector<8x128xf32>
    %281 = vector.extract_strided_slice %198 {offsets = [0, 0], sizes = [8, 128], strides = [1, 1]} : vector<16x128xf32> to vector<8x128xf32>
    %282 = arith.addf %281, %280 : vector<8x128xf32>
    %c2_124 = arith.constant 2 : index
    %c0_125 = arith.constant 0 : index
    %c0_126 = arith.constant 0 : index
    %283 = vector.load %arg5[%c2_124, %c0_125, %c0_126] : memref<6x16x16xf32, #tpu.memory_space<vmem>>, vector<1x16x16xf32>
    %284 = vector.shape_cast %283 : vector<1x16x16xf32> to vector<16x16xf32>
    %285 = tpu.concatenate %282, %280 in 0 : vector<8x128xf32>, vector<8x128xf32> -> vector<16x128xf32>
    %cst_127 = arith.constant dense<0.000000e+00> : vector<16x128xf32>
    %286 = tpu.matmul %284, %285, %cst_127 {dimension_numbers = #tpu.dot_dimension_numbers<[1], [0], [0], [1], [0, 0, 1, 1], [], []>} : vector<16x16xf32>, vector<16x128xf32>, vector<16x128xf32> -> vector<16x128xf32>
    %c2_128 = arith.constant 2 : index
    %c0_129 = arith.constant 0 : index
    %c0_130 = arith.constant 0 : index
    %287 = vector.load %arg6[%c2_128, %c0_129, %c0_130] : memref<6x16x1xf32, #tpu.memory_space<vmem>>, vector<1x16x1xf32>
    %288 = vector.shape_cast %287 : vector<1x16x1xf32> to vector<16x1xf32>
    %289 = vector.broadcast %288 : vector<16x1xf32> to vector<16x128xf32>
    %290 = arith.addf %286, %289 : vector<16x128xf32>
    %c3 = arith.constant 3 : index
    %c0_131 = arith.constant 0 : index
    %c0_132 = arith.constant 0 : index
    %291 = vector.load %arg7[%c3, %c0_131, %c0_132] : memref<7x24x8xf32, #tpu.memory_space<vmem>>, vector<1x24x8xf32>
    %292 = vector.shape_cast %291 : vector<1x24x8xf32> to vector<24x8xf32>
    %c3_133 = arith.constant 3 : index
    %c0_134 = arith.constant 0 : index
    %c0_135 = arith.constant 0 : index
    %293 = vector.load %arg8[%c3_133, %c0_134, %c0_135] : memref<7x24x1xf32, #tpu.memory_space<vmem>>, vector<1x24x1xf32>
    %294 = vector.shape_cast %293 : vector<1x24x1xf32> to vector<24x1xf32>
    %c3_136 = arith.constant 3 : index
    %c0_137 = arith.constant 0 : index
    %c0_138 = arith.constant 0 : index
    %295 = vector.load %arg9[%c3_136, %c0_137, %c0_138] : memref<7x8x8xf32, #tpu.memory_space<vmem>>, vector<1x8x8xf32>
    %296 = vector.shape_cast %295 : vector<1x8x8xf32> to vector<8x8xf32>
    %c3_139 = arith.constant 3 : index
    %c0_140 = arith.constant 0 : index
    %c0_141 = arith.constant 0 : index
    %297 = vector.load %arg10[%c3_139, %c0_140, %c0_141] : memref<7x8x1xf32, #tpu.memory_space<vmem>>, vector<1x8x1xf32>
    %298 = vector.shape_cast %297 : vector<1x8x1xf32> to vector<8x1xf32>
    %cst_142 = arith.constant dense<0.000000e+00> : vector<24x32xf32>
    %299 = tpu.matmul %292, %277, %cst_142 {dimension_numbers = #tpu.dot_dimension_numbers<[1], [0], [0], [1], [0, 0, 1, 1], [], []>} : vector<24x8xf32>, vector<8x32xf32>, vector<24x32xf32> -> vector<24x32xf32>
    %300 = vector.broadcast %294 : vector<24x1xf32> to vector<24x32xf32>
    %301 = arith.addf %299, %300 : vector<24x32xf32>
    %302 = vector.extract_strided_slice %301 {offsets = [0, 0], sizes = [2, 32], strides = [1, 1]} : vector<24x32xf32> to vector<2x32xf32>
    %303 = vector.extract_strided_slice %301 {offsets = [8, 0], sizes = [2, 32], strides = [1, 1]} : vector<24x32xf32> to vector<2x32xf32>
    %304 = vector.extract_strided_slice %301 {offsets = [16, 0], sizes = [2, 32], strides = [1, 1]} : vector<24x32xf32> to vector<2x32xf32>
    %cst_143 = arith.constant dense<0.000000e+00> : vector<32x32xf32>
    %305 = tpu.matmul %302, %303, %cst_143 {dimension_numbers = #tpu.dot_dimension_numbers<[0], [0], [1], [1], [0, 1, 1, 1], [], []>} : vector<2x32xf32>, vector<2x32xf32>, vector<32x32xf32> -> vector<32x32xf32>
    %306 = arith.addf %305, %0 : vector<32x32xf32>
    %cst_144 = arith.constant dense<0xFF800000> : vector<32xf32>
    %307 = vector.multi_reduction <maximumf>, %306, %cst_144 [1] : vector<32x32xf32> to vector<32xf32>
    %308 = vector.shape_cast %307 : vector<32xf32> to vector<32x1xf32>
    %309 = vector.broadcast %308 : vector<32x1xf32> to vector<32x32xf32>
    %310 = arith.subf %306, %309 : vector<32x32xf32>
    %311 = math.exp %310 : vector<32x32xf32>
    %cst_145 = arith.constant dense<0.000000e+00> : vector<32xf32>
    %312 = vector.multi_reduction <add>, %311, %cst_145 [1] : vector<32x32xf32> to vector<32xf32>
    %313 = vector.shape_cast %312 : vector<32xf32> to vector<32x1xf32>
    %314 = tpu.reciprocal %313 {approx = true} : vector<32x1xf32> -> vector<32x1xf32>
    %315 = vector.broadcast %314 : vector<32x1xf32> to vector<32x32xf32>
    %316 = arith.mulf %311, %315 : vector<32x32xf32>
    %cst_146 = arith.constant dense<0.000000e+00> : vector<2x32xf32>
    %317 = tpu.matmul %304, %316, %cst_146 {dimension_numbers = #tpu.dot_dimension_numbers<[1], [1], [0], [0], [0, 0, 1, 0], [], []>} : vector<2x32xf32>, vector<32x32xf32>, vector<2x32xf32> -> vector<2x32xf32>
    %318 = vector.extract_strided_slice %301 {offsets = [2, 0], sizes = [2, 32], strides = [1, 1]} : vector<24x32xf32> to vector<2x32xf32>
    %319 = vector.extract_strided_slice %301 {offsets = [10, 0], sizes = [2, 32], strides = [1, 1]} : vector<24x32xf32> to vector<2x32xf32>
    %320 = vector.extract_strided_slice %301 {offsets = [18, 0], sizes = [2, 32], strides = [1, 1]} : vector<24x32xf32> to vector<2x32xf32>
    %cst_147 = arith.constant dense<0.000000e+00> : vector<32x32xf32>
    %321 = tpu.matmul %318, %319, %cst_147 {dimension_numbers = #tpu.dot_dimension_numbers<[0], [0], [1], [1], [0, 1, 1, 1], [], []>} : vector<2x32xf32>, vector<2x32xf32>, vector<32x32xf32> -> vector<32x32xf32>
    %322 = arith.addf %321, %0 : vector<32x32xf32>
    %cst_148 = arith.constant dense<0xFF800000> : vector<32xf32>
    %323 = vector.multi_reduction <maximumf>, %322, %cst_148 [1] : vector<32x32xf32> to vector<32xf32>
    %324 = vector.shape_cast %323 : vector<32xf32> to vector<32x1xf32>
    %325 = vector.broadcast %324 : vector<32x1xf32> to vector<32x32xf32>
    %326 = arith.subf %322, %325 : vector<32x32xf32>
    %327 = math.exp %326 : vector<32x32xf32>
    %cst_149 = arith.constant dense<0.000000e+00> : vector<32xf32>
    %328 = vector.multi_reduction <add>, %327, %cst_149 [1] : vector<32x32xf32> to vector<32xf32>
    %329 = vector.shape_cast %328 : vector<32xf32> to vector<32x1xf32>
    %330 = tpu.reciprocal %329 {approx = true} : vector<32x1xf32> -> vector<32x1xf32>
    %331 = vector.broadcast %330 : vector<32x1xf32> to vector<32x32xf32>
    %332 = arith.mulf %327, %331 : vector<32x32xf32>
    %cst_150 = arith.constant dense<0.000000e+00> : vector<2x32xf32>
    %333 = tpu.matmul %320, %332, %cst_150 {dimension_numbers = #tpu.dot_dimension_numbers<[1], [1], [0], [0], [0, 0, 1, 0], [], []>} : vector<2x32xf32>, vector<32x32xf32>, vector<2x32xf32> -> vector<2x32xf32>
    %334 = vector.extract_strided_slice %301 {offsets = [4, 0], sizes = [2, 32], strides = [1, 1]} : vector<24x32xf32> to vector<2x32xf32>
    %335 = vector.extract_strided_slice %301 {offsets = [12, 0], sizes = [2, 32], strides = [1, 1]} : vector<24x32xf32> to vector<2x32xf32>
    %336 = vector.extract_strided_slice %301 {offsets = [20, 0], sizes = [2, 32], strides = [1, 1]} : vector<24x32xf32> to vector<2x32xf32>
    %cst_151 = arith.constant dense<0.000000e+00> : vector<32x32xf32>
    %337 = tpu.matmul %334, %335, %cst_151 {dimension_numbers = #tpu.dot_dimension_numbers<[0], [0], [1], [1], [0, 1, 1, 1], [], []>} : vector<2x32xf32>, vector<2x32xf32>, vector<32x32xf32> -> vector<32x32xf32>
    %338 = arith.addf %337, %0 : vector<32x32xf32>
    %cst_152 = arith.constant dense<0xFF800000> : vector<32xf32>
    %339 = vector.multi_reduction <maximumf>, %338, %cst_152 [1] : vector<32x32xf32> to vector<32xf32>
    %340 = vector.shape_cast %339 : vector<32xf32> to vector<32x1xf32>
    %341 = vector.broadcast %340 : vector<32x1xf32> to vector<32x32xf32>
    %342 = arith.subf %338, %341 : vector<32x32xf32>
    %343 = math.exp %342 : vector<32x32xf32>
    %cst_153 = arith.constant dense<0.000000e+00> : vector<32xf32>
    %344 = vector.multi_reduction <add>, %343, %cst_153 [1] : vector<32x32xf32> to vector<32xf32>
    %345 = vector.shape_cast %344 : vector<32xf32> to vector<32x1xf32>
    %346 = tpu.reciprocal %345 {approx = true} : vector<32x1xf32> -> vector<32x1xf32>
    %347 = vector.broadcast %346 : vector<32x1xf32> to vector<32x32xf32>
    %348 = arith.mulf %343, %347 : vector<32x32xf32>
    %cst_154 = arith.constant dense<0.000000e+00> : vector<2x32xf32>
    %349 = tpu.matmul %336, %348, %cst_154 {dimension_numbers = #tpu.dot_dimension_numbers<[1], [1], [0], [0], [0, 0, 1, 0], [], []>} : vector<2x32xf32>, vector<32x32xf32>, vector<2x32xf32> -> vector<2x32xf32>
    %350 = vector.extract_strided_slice %301 {offsets = [6, 0], sizes = [2, 32], strides = [1, 1]} : vector<24x32xf32> to vector<2x32xf32>
    %351 = vector.extract_strided_slice %301 {offsets = [14, 0], sizes = [2, 32], strides = [1, 1]} : vector<24x32xf32> to vector<2x32xf32>
    %352 = vector.extract_strided_slice %301 {offsets = [22, 0], sizes = [2, 32], strides = [1, 1]} : vector<24x32xf32> to vector<2x32xf32>
    %cst_155 = arith.constant dense<0.000000e+00> : vector<32x32xf32>
    %353 = tpu.matmul %350, %351, %cst_155 {dimension_numbers = #tpu.dot_dimension_numbers<[0], [0], [1], [1], [0, 1, 1, 1], [], []>} : vector<2x32xf32>, vector<2x32xf32>, vector<32x32xf32> -> vector<32x32xf32>
    %354 = arith.addf %353, %0 : vector<32x32xf32>
    %cst_156 = arith.constant dense<0xFF800000> : vector<32xf32>
    %355 = vector.multi_reduction <maximumf>, %354, %cst_156 [1] : vector<32x32xf32> to vector<32xf32>
    %356 = vector.shape_cast %355 : vector<32xf32> to vector<32x1xf32>
    %357 = vector.broadcast %356 : vector<32x1xf32> to vector<32x32xf32>
    %358 = arith.subf %354, %357 : vector<32x32xf32>
    %359 = math.exp %358 : vector<32x32xf32>
    %cst_157 = arith.constant dense<0.000000e+00> : vector<32xf32>
    %360 = vector.multi_reduction <add>, %359, %cst_157 [1] : vector<32x32xf32> to vector<32xf32>
    %361 = vector.shape_cast %360 : vector<32xf32> to vector<32x1xf32>
    %362 = tpu.reciprocal %361 {approx = true} : vector<32x1xf32> -> vector<32x1xf32>
    %363 = vector.broadcast %362 : vector<32x1xf32> to vector<32x32xf32>
    %364 = arith.mulf %359, %363 : vector<32x32xf32>
    %cst_158 = arith.constant dense<0.000000e+00> : vector<2x32xf32>
    %365 = tpu.matmul %352, %364, %cst_158 {dimension_numbers = #tpu.dot_dimension_numbers<[1], [1], [0], [0], [0, 0, 1, 0], [], []>} : vector<2x32xf32>, vector<32x32xf32>, vector<2x32xf32> -> vector<2x32xf32>
    %366 = tpu.concatenate %317, %333, %349, %365 in 0 : vector<2x32xf32>, vector<2x32xf32>, vector<2x32xf32>, vector<2x32xf32> -> vector<8x32xf32>
    %cst_159 = arith.constant dense<0.000000e+00> : vector<8x32xf32>
    %367 = tpu.matmul %296, %366, %cst_159 {dimension_numbers = #tpu.dot_dimension_numbers<[1], [0], [0], [1], [0, 0, 1, 1], [], []>} : vector<8x8xf32>, vector<8x32xf32>, vector<8x32xf32> -> vector<8x32xf32>
    %368 = vector.broadcast %298 : vector<8x1xf32> to vector<8x32xf32>
    %369 = arith.addf %367, %368 : vector<8x32xf32>
    %370 = vector.extract_strided_slice %290 {offsets = [8, 0], sizes = [8, 128], strides = [1, 1]} : vector<16x128xf32> to vector<8x128xf32>
    %cst_160 = arith.constant dense<0.000000e+00> : vector<8x128xf32>
    %371 = tpu.matmul %369, %1, %cst_160 {dimension_numbers = #tpu.dot_dimension_numbers<[1], [0], [0], [1], [0, 0, 1, 1], [], []>} : vector<8x32xf32>, vector<32x128xf32>, vector<8x128xf32> -> vector<8x128xf32>
    %372 = arith.addf %370, %371 : vector<8x128xf32>
    %373 = vector.extract_strided_slice %290 {offsets = [0, 0], sizes = [8, 128], strides = [1, 1]} : vector<16x128xf32> to vector<8x128xf32>
    %374 = arith.addf %373, %372 : vector<8x128xf32>
    %c3_161 = arith.constant 3 : index
    %c0_162 = arith.constant 0 : index
    %c0_163 = arith.constant 0 : index
    %375 = vector.load %arg5[%c3_161, %c0_162, %c0_163] : memref<6x16x16xf32, #tpu.memory_space<vmem>>, vector<1x16x16xf32>
    %376 = vector.shape_cast %375 : vector<1x16x16xf32> to vector<16x16xf32>
    %377 = tpu.concatenate %374, %372 in 0 : vector<8x128xf32>, vector<8x128xf32> -> vector<16x128xf32>
    %cst_164 = arith.constant dense<0.000000e+00> : vector<16x128xf32>
    %378 = tpu.matmul %376, %377, %cst_164 {dimension_numbers = #tpu.dot_dimension_numbers<[1], [0], [0], [1], [0, 0, 1, 1], [], []>} : vector<16x16xf32>, vector<16x128xf32>, vector<16x128xf32> -> vector<16x128xf32>
    %c3_165 = arith.constant 3 : index
    %c0_166 = arith.constant 0 : index
    %c0_167 = arith.constant 0 : index
    %379 = vector.load %arg6[%c3_165, %c0_166, %c0_167] : memref<6x16x1xf32, #tpu.memory_space<vmem>>, vector<1x16x1xf32>
    %380 = vector.shape_cast %379 : vector<1x16x1xf32> to vector<16x1xf32>
    %381 = vector.broadcast %380 : vector<16x1xf32> to vector<16x128xf32>
    %382 = arith.addf %378, %381 : vector<16x128xf32>
    %c4 = arith.constant 4 : index
    %c0_168 = arith.constant 0 : index
    %c0_169 = arith.constant 0 : index
    %383 = vector.load %arg7[%c4, %c0_168, %c0_169] : memref<7x24x8xf32, #tpu.memory_space<vmem>>, vector<1x24x8xf32>
    %384 = vector.shape_cast %383 : vector<1x24x8xf32> to vector<24x8xf32>
    %c4_170 = arith.constant 4 : index
    %c0_171 = arith.constant 0 : index
    %c0_172 = arith.constant 0 : index
    %385 = vector.load %arg8[%c4_170, %c0_171, %c0_172] : memref<7x24x1xf32, #tpu.memory_space<vmem>>, vector<1x24x1xf32>
    %386 = vector.shape_cast %385 : vector<1x24x1xf32> to vector<24x1xf32>
    %c4_173 = arith.constant 4 : index
    %c0_174 = arith.constant 0 : index
    %c0_175 = arith.constant 0 : index
    %387 = vector.load %arg9[%c4_173, %c0_174, %c0_175] : memref<7x8x8xf32, #tpu.memory_space<vmem>>, vector<1x8x8xf32>
    %388 = vector.shape_cast %387 : vector<1x8x8xf32> to vector<8x8xf32>
    %c4_176 = arith.constant 4 : index
    %c0_177 = arith.constant 0 : index
    %c0_178 = arith.constant 0 : index
    %389 = vector.load %arg10[%c4_176, %c0_177, %c0_178] : memref<7x8x1xf32, #tpu.memory_space<vmem>>, vector<1x8x1xf32>
    %390 = vector.shape_cast %389 : vector<1x8x1xf32> to vector<8x1xf32>
    %cst_179 = arith.constant dense<0.000000e+00> : vector<24x32xf32>
    %391 = tpu.matmul %384, %369, %cst_179 {dimension_numbers = #tpu.dot_dimension_numbers<[1], [0], [0], [1], [0, 0, 1, 1], [], []>} : vector<24x8xf32>, vector<8x32xf32>, vector<24x32xf32> -> vector<24x32xf32>
    %392 = vector.broadcast %386 : vector<24x1xf32> to vector<24x32xf32>
    %393 = arith.addf %391, %392 : vector<24x32xf32>
    %394 = vector.extract_strided_slice %393 {offsets = [0, 0], sizes = [2, 32], strides = [1, 1]} : vector<24x32xf32> to vector<2x32xf32>
    %395 = vector.extract_strided_slice %393 {offsets = [8, 0], sizes = [2, 32], strides = [1, 1]} : vector<24x32xf32> to vector<2x32xf32>
    %396 = vector.extract_strided_slice %393 {offsets = [16, 0], sizes = [2, 32], strides = [1, 1]} : vector<24x32xf32> to vector<2x32xf32>
    %cst_180 = arith.constant dense<0.000000e+00> : vector<32x32xf32>
    %397 = tpu.matmul %394, %395, %cst_180 {dimension_numbers = #tpu.dot_dimension_numbers<[0], [0], [1], [1], [0, 1, 1, 1], [], []>} : vector<2x32xf32>, vector<2x32xf32>, vector<32x32xf32> -> vector<32x32xf32>
    %398 = arith.addf %397, %0 : vector<32x32xf32>
    %cst_181 = arith.constant dense<0xFF800000> : vector<32xf32>
    %399 = vector.multi_reduction <maximumf>, %398, %cst_181 [1] : vector<32x32xf32> to vector<32xf32>
    %400 = vector.shape_cast %399 : vector<32xf32> to vector<32x1xf32>
    %401 = vector.broadcast %400 : vector<32x1xf32> to vector<32x32xf32>
    %402 = arith.subf %398, %401 : vector<32x32xf32>
    %403 = math.exp %402 : vector<32x32xf32>
    %cst_182 = arith.constant dense<0.000000e+00> : vector<32xf32>
    %404 = vector.multi_reduction <add>, %403, %cst_182 [1] : vector<32x32xf32> to vector<32xf32>
    %405 = vector.shape_cast %404 : vector<32xf32> to vector<32x1xf32>
    %406 = tpu.reciprocal %405 {approx = true} : vector<32x1xf32> -> vector<32x1xf32>
    %407 = vector.broadcast %406 : vector<32x1xf32> to vector<32x32xf32>
    %408 = arith.mulf %403, %407 : vector<32x32xf32>
    %cst_183 = arith.constant dense<0.000000e+00> : vector<2x32xf32>
    %409 = tpu.matmul %396, %408, %cst_183 {dimension_numbers = #tpu.dot_dimension_numbers<[1], [1], [0], [0], [0, 0, 1, 0], [], []>} : vector<2x32xf32>, vector<32x32xf32>, vector<2x32xf32> -> vector<2x32xf32>
    %410 = vector.extract_strided_slice %393 {offsets = [2, 0], sizes = [2, 32], strides = [1, 1]} : vector<24x32xf32> to vector<2x32xf32>
    %411 = vector.extract_strided_slice %393 {offsets = [10, 0], sizes = [2, 32], strides = [1, 1]} : vector<24x32xf32> to vector<2x32xf32>
    %412 = vector.extract_strided_slice %393 {offsets = [18, 0], sizes = [2, 32], strides = [1, 1]} : vector<24x32xf32> to vector<2x32xf32>
    %cst_184 = arith.constant dense<0.000000e+00> : vector<32x32xf32>
    %413 = tpu.matmul %410, %411, %cst_184 {dimension_numbers = #tpu.dot_dimension_numbers<[0], [0], [1], [1], [0, 1, 1, 1], [], []>} : vector<2x32xf32>, vector<2x32xf32>, vector<32x32xf32> -> vector<32x32xf32>
    %414 = arith.addf %413, %0 : vector<32x32xf32>
    %cst_185 = arith.constant dense<0xFF800000> : vector<32xf32>
    %415 = vector.multi_reduction <maximumf>, %414, %cst_185 [1] : vector<32x32xf32> to vector<32xf32>
    %416 = vector.shape_cast %415 : vector<32xf32> to vector<32x1xf32>
    %417 = vector.broadcast %416 : vector<32x1xf32> to vector<32x32xf32>
    %418 = arith.subf %414, %417 : vector<32x32xf32>
    %419 = math.exp %418 : vector<32x32xf32>
    %cst_186 = arith.constant dense<0.000000e+00> : vector<32xf32>
    %420 = vector.multi_reduction <add>, %419, %cst_186 [1] : vector<32x32xf32> to vector<32xf32>
    %421 = vector.shape_cast %420 : vector<32xf32> to vector<32x1xf32>
    %422 = tpu.reciprocal %421 {approx = true} : vector<32x1xf32> -> vector<32x1xf32>
    %423 = vector.broadcast %422 : vector<32x1xf32> to vector<32x32xf32>
    %424 = arith.mulf %419, %423 : vector<32x32xf32>
    %cst_187 = arith.constant dense<0.000000e+00> : vector<2x32xf32>
    %425 = tpu.matmul %412, %424, %cst_187 {dimension_numbers = #tpu.dot_dimension_numbers<[1], [1], [0], [0], [0, 0, 1, 0], [], []>} : vector<2x32xf32>, vector<32x32xf32>, vector<2x32xf32> -> vector<2x32xf32>
    %426 = vector.extract_strided_slice %393 {offsets = [4, 0], sizes = [2, 32], strides = [1, 1]} : vector<24x32xf32> to vector<2x32xf32>
    %427 = vector.extract_strided_slice %393 {offsets = [12, 0], sizes = [2, 32], strides = [1, 1]} : vector<24x32xf32> to vector<2x32xf32>
    %428 = vector.extract_strided_slice %393 {offsets = [20, 0], sizes = [2, 32], strides = [1, 1]} : vector<24x32xf32> to vector<2x32xf32>
    %cst_188 = arith.constant dense<0.000000e+00> : vector<32x32xf32>
    %429 = tpu.matmul %426, %427, %cst_188 {dimension_numbers = #tpu.dot_dimension_numbers<[0], [0], [1], [1], [0, 1, 1, 1], [], []>} : vector<2x32xf32>, vector<2x32xf32>, vector<32x32xf32> -> vector<32x32xf32>
    %430 = arith.addf %429, %0 : vector<32x32xf32>
    %cst_189 = arith.constant dense<0xFF800000> : vector<32xf32>
    %431 = vector.multi_reduction <maximumf>, %430, %cst_189 [1] : vector<32x32xf32> to vector<32xf32>
    %432 = vector.shape_cast %431 : vector<32xf32> to vector<32x1xf32>
    %433 = vector.broadcast %432 : vector<32x1xf32> to vector<32x32xf32>
    %434 = arith.subf %430, %433 : vector<32x32xf32>
    %435 = math.exp %434 : vector<32x32xf32>
    %cst_190 = arith.constant dense<0.000000e+00> : vector<32xf32>
    %436 = vector.multi_reduction <add>, %435, %cst_190 [1] : vector<32x32xf32> to vector<32xf32>
    %437 = vector.shape_cast %436 : vector<32xf32> to vector<32x1xf32>
    %438 = tpu.reciprocal %437 {approx = true} : vector<32x1xf32> -> vector<32x1xf32>
    %439 = vector.broadcast %438 : vector<32x1xf32> to vector<32x32xf32>
    %440 = arith.mulf %435, %439 : vector<32x32xf32>
    %cst_191 = arith.constant dense<0.000000e+00> : vector<2x32xf32>
    %441 = tpu.matmul %428, %440, %cst_191 {dimension_numbers = #tpu.dot_dimension_numbers<[1], [1], [0], [0], [0, 0, 1, 0], [], []>} : vector<2x32xf32>, vector<32x32xf32>, vector<2x32xf32> -> vector<2x32xf32>
    %442 = vector.extract_strided_slice %393 {offsets = [6, 0], sizes = [2, 32], strides = [1, 1]} : vector<24x32xf32> to vector<2x32xf32>
    %443 = vector.extract_strided_slice %393 {offsets = [14, 0], sizes = [2, 32], strides = [1, 1]} : vector<24x32xf32> to vector<2x32xf32>
    %444 = vector.extract_strided_slice %393 {offsets = [22, 0], sizes = [2, 32], strides = [1, 1]} : vector<24x32xf32> to vector<2x32xf32>
    %cst_192 = arith.constant dense<0.000000e+00> : vector<32x32xf32>
    %445 = tpu.matmul %442, %443, %cst_192 {dimension_numbers = #tpu.dot_dimension_numbers<[0], [0], [1], [1], [0, 1, 1, 1], [], []>} : vector<2x32xf32>, vector<2x32xf32>, vector<32x32xf32> -> vector<32x32xf32>
    %446 = arith.addf %445, %0 : vector<32x32xf32>
    %cst_193 = arith.constant dense<0xFF800000> : vector<32xf32>
    %447 = vector.multi_reduction <maximumf>, %446, %cst_193 [1] : vector<32x32xf32> to vector<32xf32>
    %448 = vector.shape_cast %447 : vector<32xf32> to vector<32x1xf32>
    %449 = vector.broadcast %448 : vector<32x1xf32> to vector<32x32xf32>
    %450 = arith.subf %446, %449 : vector<32x32xf32>
    %451 = math.exp %450 : vector<32x32xf32>
    %cst_194 = arith.constant dense<0.000000e+00> : vector<32xf32>
    %452 = vector.multi_reduction <add>, %451, %cst_194 [1] : vector<32x32xf32> to vector<32xf32>
    %453 = vector.shape_cast %452 : vector<32xf32> to vector<32x1xf32>
    %454 = tpu.reciprocal %453 {approx = true} : vector<32x1xf32> -> vector<32x1xf32>
    %455 = vector.broadcast %454 : vector<32x1xf32> to vector<32x32xf32>
    %456 = arith.mulf %451, %455 : vector<32x32xf32>
    %cst_195 = arith.constant dense<0.000000e+00> : vector<2x32xf32>
    %457 = tpu.matmul %444, %456, %cst_195 {dimension_numbers = #tpu.dot_dimension_numbers<[1], [1], [0], [0], [0, 0, 1, 0], [], []>} : vector<2x32xf32>, vector<32x32xf32>, vector<2x32xf32> -> vector<2x32xf32>
    %458 = tpu.concatenate %409, %425, %441, %457 in 0 : vector<2x32xf32>, vector<2x32xf32>, vector<2x32xf32>, vector<2x32xf32> -> vector<8x32xf32>
    %cst_196 = arith.constant dense<0.000000e+00> : vector<8x32xf32>
    %459 = tpu.matmul %388, %458, %cst_196 {dimension_numbers = #tpu.dot_dimension_numbers<[1], [0], [0], [1], [0, 0, 1, 1], [], []>} : vector<8x8xf32>, vector<8x32xf32>, vector<8x32xf32> -> vector<8x32xf32>
    %460 = vector.broadcast %390 : vector<8x1xf32> to vector<8x32xf32>
    %461 = arith.addf %459, %460 : vector<8x32xf32>
    %462 = vector.extract_strided_slice %382 {offsets = [8, 0], sizes = [8, 128], strides = [1, 1]} : vector<16x128xf32> to vector<8x128xf32>
    %cst_197 = arith.constant dense<0.000000e+00> : vector<8x128xf32>
    %463 = tpu.matmul %461, %1, %cst_197 {dimension_numbers = #tpu.dot_dimension_numbers<[1], [0], [0], [1], [0, 0, 1, 1], [], []>} : vector<8x32xf32>, vector<32x128xf32>, vector<8x128xf32> -> vector<8x128xf32>
    %464 = arith.addf %462, %463 : vector<8x128xf32>
    %465 = vector.extract_strided_slice %382 {offsets = [0, 0], sizes = [8, 128], strides = [1, 1]} : vector<16x128xf32> to vector<8x128xf32>
    %466 = arith.addf %465, %464 : vector<8x128xf32>
    %c4_198 = arith.constant 4 : index
    %c0_199 = arith.constant 0 : index
    %c0_200 = arith.constant 0 : index
    %467 = vector.load %arg5[%c4_198, %c0_199, %c0_200] : memref<6x16x16xf32, #tpu.memory_space<vmem>>, vector<1x16x16xf32>
    %468 = vector.shape_cast %467 : vector<1x16x16xf32> to vector<16x16xf32>
    %469 = tpu.concatenate %466, %464 in 0 : vector<8x128xf32>, vector<8x128xf32> -> vector<16x128xf32>
    %cst_201 = arith.constant dense<0.000000e+00> : vector<16x128xf32>
    %470 = tpu.matmul %468, %469, %cst_201 {dimension_numbers = #tpu.dot_dimension_numbers<[1], [0], [0], [1], [0, 0, 1, 1], [], []>} : vector<16x16xf32>, vector<16x128xf32>, vector<16x128xf32> -> vector<16x128xf32>
    %c4_202 = arith.constant 4 : index
    %c0_203 = arith.constant 0 : index
    %c0_204 = arith.constant 0 : index
    %471 = vector.load %arg6[%c4_202, %c0_203, %c0_204] : memref<6x16x1xf32, #tpu.memory_space<vmem>>, vector<1x16x1xf32>
    %472 = vector.shape_cast %471 : vector<1x16x1xf32> to vector<16x1xf32>
    %473 = vector.broadcast %472 : vector<16x1xf32> to vector<16x128xf32>
    %474 = arith.addf %470, %473 : vector<16x128xf32>
    %c5 = arith.constant 5 : index
    %c0_205 = arith.constant 0 : index
    %c0_206 = arith.constant 0 : index
    %475 = vector.load %arg7[%c5, %c0_205, %c0_206] : memref<7x24x8xf32, #tpu.memory_space<vmem>>, vector<1x24x8xf32>
    %476 = vector.shape_cast %475 : vector<1x24x8xf32> to vector<24x8xf32>
    %c5_207 = arith.constant 5 : index
    %c0_208 = arith.constant 0 : index
    %c0_209 = arith.constant 0 : index
    %477 = vector.load %arg8[%c5_207, %c0_208, %c0_209] : memref<7x24x1xf32, #tpu.memory_space<vmem>>, vector<1x24x1xf32>
    %478 = vector.shape_cast %477 : vector<1x24x1xf32> to vector<24x1xf32>
    %c5_210 = arith.constant 5 : index
    %c0_211 = arith.constant 0 : index
    %c0_212 = arith.constant 0 : index
    %479 = vector.load %arg9[%c5_210, %c0_211, %c0_212] : memref<7x8x8xf32, #tpu.memory_space<vmem>>, vector<1x8x8xf32>
    %480 = vector.shape_cast %479 : vector<1x8x8xf32> to vector<8x8xf32>
    %c5_213 = arith.constant 5 : index
    %c0_214 = arith.constant 0 : index
    %c0_215 = arith.constant 0 : index
    %481 = vector.load %arg10[%c5_213, %c0_214, %c0_215] : memref<7x8x1xf32, #tpu.memory_space<vmem>>, vector<1x8x1xf32>
    %482 = vector.shape_cast %481 : vector<1x8x1xf32> to vector<8x1xf32>
    %cst_216 = arith.constant dense<0.000000e+00> : vector<24x32xf32>
    %483 = tpu.matmul %476, %461, %cst_216 {dimension_numbers = #tpu.dot_dimension_numbers<[1], [0], [0], [1], [0, 0, 1, 1], [], []>} : vector<24x8xf32>, vector<8x32xf32>, vector<24x32xf32> -> vector<24x32xf32>
    %484 = vector.broadcast %478 : vector<24x1xf32> to vector<24x32xf32>
    %485 = arith.addf %483, %484 : vector<24x32xf32>
    %486 = vector.extract_strided_slice %485 {offsets = [0, 0], sizes = [2, 32], strides = [1, 1]} : vector<24x32xf32> to vector<2x32xf32>
    %487 = vector.extract_strided_slice %485 {offsets = [8, 0], sizes = [2, 32], strides = [1, 1]} : vector<24x32xf32> to vector<2x32xf32>
    %488 = vector.extract_strided_slice %485 {offsets = [16, 0], sizes = [2, 32], strides = [1, 1]} : vector<24x32xf32> to vector<2x32xf32>
    %cst_217 = arith.constant dense<0.000000e+00> : vector<32x32xf32>
    %489 = tpu.matmul %486, %487, %cst_217 {dimension_numbers = #tpu.dot_dimension_numbers<[0], [0], [1], [1], [0, 1, 1, 1], [], []>} : vector<2x32xf32>, vector<2x32xf32>, vector<32x32xf32> -> vector<32x32xf32>
    %490 = arith.addf %489, %0 : vector<32x32xf32>
    %cst_218 = arith.constant dense<0xFF800000> : vector<32xf32>
    %491 = vector.multi_reduction <maximumf>, %490, %cst_218 [1] : vector<32x32xf32> to vector<32xf32>
    %492 = vector.shape_cast %491 : vector<32xf32> to vector<32x1xf32>
    %493 = vector.broadcast %492 : vector<32x1xf32> to vector<32x32xf32>
    %494 = arith.subf %490, %493 : vector<32x32xf32>
    %495 = math.exp %494 : vector<32x32xf32>
    %cst_219 = arith.constant dense<0.000000e+00> : vector<32xf32>
    %496 = vector.multi_reduction <add>, %495, %cst_219 [1] : vector<32x32xf32> to vector<32xf32>
    %497 = vector.shape_cast %496 : vector<32xf32> to vector<32x1xf32>
    %498 = tpu.reciprocal %497 {approx = true} : vector<32x1xf32> -> vector<32x1xf32>
    %499 = vector.broadcast %498 : vector<32x1xf32> to vector<32x32xf32>
    %500 = arith.mulf %495, %499 : vector<32x32xf32>
    %cst_220 = arith.constant dense<0.000000e+00> : vector<2x32xf32>
    %501 = tpu.matmul %488, %500, %cst_220 {dimension_numbers = #tpu.dot_dimension_numbers<[1], [1], [0], [0], [0, 0, 1, 0], [], []>} : vector<2x32xf32>, vector<32x32xf32>, vector<2x32xf32> -> vector<2x32xf32>
    %502 = vector.extract_strided_slice %485 {offsets = [2, 0], sizes = [2, 32], strides = [1, 1]} : vector<24x32xf32> to vector<2x32xf32>
    %503 = vector.extract_strided_slice %485 {offsets = [10, 0], sizes = [2, 32], strides = [1, 1]} : vector<24x32xf32> to vector<2x32xf32>
    %504 = vector.extract_strided_slice %485 {offsets = [18, 0], sizes = [2, 32], strides = [1, 1]} : vector<24x32xf32> to vector<2x32xf32>
    %cst_221 = arith.constant dense<0.000000e+00> : vector<32x32xf32>
    %505 = tpu.matmul %502, %503, %cst_221 {dimension_numbers = #tpu.dot_dimension_numbers<[0], [0], [1], [1], [0, 1, 1, 1], [], []>} : vector<2x32xf32>, vector<2x32xf32>, vector<32x32xf32> -> vector<32x32xf32>
    %506 = arith.addf %505, %0 : vector<32x32xf32>
    %cst_222 = arith.constant dense<0xFF800000> : vector<32xf32>
    %507 = vector.multi_reduction <maximumf>, %506, %cst_222 [1] : vector<32x32xf32> to vector<32xf32>
    %508 = vector.shape_cast %507 : vector<32xf32> to vector<32x1xf32>
    %509 = vector.broadcast %508 : vector<32x1xf32> to vector<32x32xf32>
    %510 = arith.subf %506, %509 : vector<32x32xf32>
    %511 = math.exp %510 : vector<32x32xf32>
    %cst_223 = arith.constant dense<0.000000e+00> : vector<32xf32>
    %512 = vector.multi_reduction <add>, %511, %cst_223 [1] : vector<32x32xf32> to vector<32xf32>
    %513 = vector.shape_cast %512 : vector<32xf32> to vector<32x1xf32>
    %514 = tpu.reciprocal %513 {approx = true} : vector<32x1xf32> -> vector<32x1xf32>
    %515 = vector.broadcast %514 : vector<32x1xf32> to vector<32x32xf32>
    %516 = arith.mulf %511, %515 : vector<32x32xf32>
    %cst_224 = arith.constant dense<0.000000e+00> : vector<2x32xf32>
    %517 = tpu.matmul %504, %516, %cst_224 {dimension_numbers = #tpu.dot_dimension_numbers<[1], [1], [0], [0], [0, 0, 1, 0], [], []>} : vector<2x32xf32>, vector<32x32xf32>, vector<2x32xf32> -> vector<2x32xf32>
    %518 = vector.extract_strided_slice %485 {offsets = [4, 0], sizes = [2, 32], strides = [1, 1]} : vector<24x32xf32> to vector<2x32xf32>
    %519 = vector.extract_strided_slice %485 {offsets = [12, 0], sizes = [2, 32], strides = [1, 1]} : vector<24x32xf32> to vector<2x32xf32>
    %520 = vector.extract_strided_slice %485 {offsets = [20, 0], sizes = [2, 32], strides = [1, 1]} : vector<24x32xf32> to vector<2x32xf32>
    %cst_225 = arith.constant dense<0.000000e+00> : vector<32x32xf32>
    %521 = tpu.matmul %518, %519, %cst_225 {dimension_numbers = #tpu.dot_dimension_numbers<[0], [0], [1], [1], [0, 1, 1, 1], [], []>} : vector<2x32xf32>, vector<2x32xf32>, vector<32x32xf32> -> vector<32x32xf32>
    %522 = arith.addf %521, %0 : vector<32x32xf32>
    %cst_226 = arith.constant dense<0xFF800000> : vector<32xf32>
    %523 = vector.multi_reduction <maximumf>, %522, %cst_226 [1] : vector<32x32xf32> to vector<32xf32>
    %524 = vector.shape_cast %523 : vector<32xf32> to vector<32x1xf32>
    %525 = vector.broadcast %524 : vector<32x1xf32> to vector<32x32xf32>
    %526 = arith.subf %522, %525 : vector<32x32xf32>
    %527 = math.exp %526 : vector<32x32xf32>
    %cst_227 = arith.constant dense<0.000000e+00> : vector<32xf32>
    %528 = vector.multi_reduction <add>, %527, %cst_227 [1] : vector<32x32xf32> to vector<32xf32>
    %529 = vector.shape_cast %528 : vector<32xf32> to vector<32x1xf32>
    %530 = tpu.reciprocal %529 {approx = true} : vector<32x1xf32> -> vector<32x1xf32>
    %531 = vector.broadcast %530 : vector<32x1xf32> to vector<32x32xf32>
    %532 = arith.mulf %527, %531 : vector<32x32xf32>
    %cst_228 = arith.constant dense<0.000000e+00> : vector<2x32xf32>
    %533 = tpu.matmul %520, %532, %cst_228 {dimension_numbers = #tpu.dot_dimension_numbers<[1], [1], [0], [0], [0, 0, 1, 0], [], []>} : vector<2x32xf32>, vector<32x32xf32>, vector<2x32xf32> -> vector<2x32xf32>
    %534 = vector.extract_strided_slice %485 {offsets = [6, 0], sizes = [2, 32], strides = [1, 1]} : vector<24x32xf32> to vector<2x32xf32>
    %535 = vector.extract_strided_slice %485 {offsets = [14, 0], sizes = [2, 32], strides = [1, 1]} : vector<24x32xf32> to vector<2x32xf32>
    %536 = vector.extract_strided_slice %485 {offsets = [22, 0], sizes = [2, 32], strides = [1, 1]} : vector<24x32xf32> to vector<2x32xf32>
    %cst_229 = arith.constant dense<0.000000e+00> : vector<32x32xf32>
    %537 = tpu.matmul %534, %535, %cst_229 {dimension_numbers = #tpu.dot_dimension_numbers<[0], [0], [1], [1], [0, 1, 1, 1], [], []>} : vector<2x32xf32>, vector<2x32xf32>, vector<32x32xf32> -> vector<32x32xf32>
    %538 = arith.addf %537, %0 : vector<32x32xf32>
    %cst_230 = arith.constant dense<0xFF800000> : vector<32xf32>
    %539 = vector.multi_reduction <maximumf>, %538, %cst_230 [1] : vector<32x32xf32> to vector<32xf32>
    %540 = vector.shape_cast %539 : vector<32xf32> to vector<32x1xf32>
    %541 = vector.broadcast %540 : vector<32x1xf32> to vector<32x32xf32>
    %542 = arith.subf %538, %541 : vector<32x32xf32>
    %543 = math.exp %542 : vector<32x32xf32>
    %cst_231 = arith.constant dense<0.000000e+00> : vector<32xf32>
    %544 = vector.multi_reduction <add>, %543, %cst_231 [1] : vector<32x32xf32> to vector<32xf32>
    %545 = vector.shape_cast %544 : vector<32xf32> to vector<32x1xf32>
    %546 = tpu.reciprocal %545 {approx = true} : vector<32x1xf32> -> vector<32x1xf32>
    %547 = vector.broadcast %546 : vector<32x1xf32> to vector<32x32xf32>
    %548 = arith.mulf %543, %547 : vector<32x32xf32>
    %cst_232 = arith.constant dense<0.000000e+00> : vector<2x32xf32>
    %549 = tpu.matmul %536, %548, %cst_232 {dimension_numbers = #tpu.dot_dimension_numbers<[1], [1], [0], [0], [0, 0, 1, 0], [], []>} : vector<2x32xf32>, vector<32x32xf32>, vector<2x32xf32> -> vector<2x32xf32>
    %550 = tpu.concatenate %501, %517, %533, %549 in 0 : vector<2x32xf32>, vector<2x32xf32>, vector<2x32xf32>, vector<2x32xf32> -> vector<8x32xf32>
    %cst_233 = arith.constant dense<0.000000e+00> : vector<8x32xf32>
    %551 = tpu.matmul %480, %550, %cst_233 {dimension_numbers = #tpu.dot_dimension_numbers<[1], [0], [0], [1], [0, 0, 1, 1], [], []>} : vector<8x8xf32>, vector<8x32xf32>, vector<8x32xf32> -> vector<8x32xf32>
    %552 = vector.broadcast %482 : vector<8x1xf32> to vector<8x32xf32>
    %553 = arith.addf %551, %552 : vector<8x32xf32>
    %554 = vector.extract_strided_slice %474 {offsets = [8, 0], sizes = [8, 128], strides = [1, 1]} : vector<16x128xf32> to vector<8x128xf32>
    %cst_234 = arith.constant dense<0.000000e+00> : vector<8x128xf32>
    %555 = tpu.matmul %553, %1, %cst_234 {dimension_numbers = #tpu.dot_dimension_numbers<[1], [0], [0], [1], [0, 0, 1, 1], [], []>} : vector<8x32xf32>, vector<32x128xf32>, vector<8x128xf32> -> vector<8x128xf32>
    %556 = arith.addf %554, %555 : vector<8x128xf32>
    %557 = vector.extract_strided_slice %474 {offsets = [0, 0], sizes = [8, 128], strides = [1, 1]} : vector<16x128xf32> to vector<8x128xf32>
    %558 = arith.addf %557, %556 : vector<8x128xf32>
    %c5_235 = arith.constant 5 : index
    %c0_236 = arith.constant 0 : index
    %c0_237 = arith.constant 0 : index
    %559 = vector.load %arg5[%c5_235, %c0_236, %c0_237] : memref<6x16x16xf32, #tpu.memory_space<vmem>>, vector<1x16x16xf32>
    %560 = vector.shape_cast %559 : vector<1x16x16xf32> to vector<16x16xf32>
    %561 = tpu.concatenate %558, %556 in 0 : vector<8x128xf32>, vector<8x128xf32> -> vector<16x128xf32>
    %cst_238 = arith.constant dense<0.000000e+00> : vector<16x128xf32>
    %562 = tpu.matmul %560, %561, %cst_238 {dimension_numbers = #tpu.dot_dimension_numbers<[1], [0], [0], [1], [0, 0, 1, 1], [], []>} : vector<16x16xf32>, vector<16x128xf32>, vector<16x128xf32> -> vector<16x128xf32>
    %c5_239 = arith.constant 5 : index
    %c0_240 = arith.constant 0 : index
    %c0_241 = arith.constant 0 : index
    %563 = vector.load %arg6[%c5_239, %c0_240, %c0_241] : memref<6x16x1xf32, #tpu.memory_space<vmem>>, vector<1x16x1xf32>
    %564 = vector.shape_cast %563 : vector<1x16x1xf32> to vector<16x1xf32>
    %565 = vector.broadcast %564 : vector<16x1xf32> to vector<16x128xf32>
    %566 = arith.addf %562, %565 : vector<16x128xf32>
    %c6 = arith.constant 6 : index
    %c0_242 = arith.constant 0 : index
    %c0_243 = arith.constant 0 : index
    %567 = vector.load %arg7[%c6, %c0_242, %c0_243] : memref<7x24x8xf32, #tpu.memory_space<vmem>>, vector<1x24x8xf32>
    %568 = vector.shape_cast %567 : vector<1x24x8xf32> to vector<24x8xf32>
    %c6_244 = arith.constant 6 : index
    %c0_245 = arith.constant 0 : index
    %c0_246 = arith.constant 0 : index
    %569 = vector.load %arg8[%c6_244, %c0_245, %c0_246] : memref<7x24x1xf32, #tpu.memory_space<vmem>>, vector<1x24x1xf32>
    %570 = vector.shape_cast %569 : vector<1x24x1xf32> to vector<24x1xf32>
    %c6_247 = arith.constant 6 : index
    %c0_248 = arith.constant 0 : index
    %c0_249 = arith.constant 0 : index
    %571 = vector.load %arg9[%c6_247, %c0_248, %c0_249] : memref<7x8x8xf32, #tpu.memory_space<vmem>>, vector<1x8x8xf32>
    %572 = vector.shape_cast %571 : vector<1x8x8xf32> to vector<8x8xf32>
    %c6_250 = arith.constant 6 : index
    %c0_251 = arith.constant 0 : index
    %c0_252 = arith.constant 0 : index
    %573 = vector.load %arg10[%c6_250, %c0_251, %c0_252] : memref<7x8x1xf32, #tpu.memory_space<vmem>>, vector<1x8x1xf32>
    %574 = vector.shape_cast %573 : vector<1x8x1xf32> to vector<8x1xf32>
    %cst_253 = arith.constant dense<0.000000e+00> : vector<24x32xf32>
    %575 = tpu.matmul %568, %553, %cst_253 {dimension_numbers = #tpu.dot_dimension_numbers<[1], [0], [0], [1], [0, 0, 1, 1], [], []>} : vector<24x8xf32>, vector<8x32xf32>, vector<24x32xf32> -> vector<24x32xf32>
    %576 = vector.broadcast %570 : vector<24x1xf32> to vector<24x32xf32>
    %577 = arith.addf %575, %576 : vector<24x32xf32>
    %578 = vector.extract_strided_slice %577 {offsets = [0, 0], sizes = [2, 32], strides = [1, 1]} : vector<24x32xf32> to vector<2x32xf32>
    %579 = vector.extract_strided_slice %577 {offsets = [8, 0], sizes = [2, 32], strides = [1, 1]} : vector<24x32xf32> to vector<2x32xf32>
    %580 = vector.extract_strided_slice %577 {offsets = [16, 0], sizes = [2, 32], strides = [1, 1]} : vector<24x32xf32> to vector<2x32xf32>
    %cst_254 = arith.constant dense<0.000000e+00> : vector<32x32xf32>
    %581 = tpu.matmul %578, %579, %cst_254 {dimension_numbers = #tpu.dot_dimension_numbers<[0], [0], [1], [1], [0, 1, 1, 1], [], []>} : vector<2x32xf32>, vector<2x32xf32>, vector<32x32xf32> -> vector<32x32xf32>
    %582 = arith.addf %581, %0 : vector<32x32xf32>
    %cst_255 = arith.constant dense<0xFF800000> : vector<32xf32>
    %583 = vector.multi_reduction <maximumf>, %582, %cst_255 [1] : vector<32x32xf32> to vector<32xf32>
    %584 = vector.shape_cast %583 : vector<32xf32> to vector<32x1xf32>
    %585 = vector.broadcast %584 : vector<32x1xf32> to vector<32x32xf32>
    %586 = arith.subf %582, %585 : vector<32x32xf32>
    %587 = math.exp %586 : vector<32x32xf32>
    %cst_256 = arith.constant dense<0.000000e+00> : vector<32xf32>
    %588 = vector.multi_reduction <add>, %587, %cst_256 [1] : vector<32x32xf32> to vector<32xf32>
    %589 = vector.shape_cast %588 : vector<32xf32> to vector<32x1xf32>
    %590 = tpu.reciprocal %589 {approx = true} : vector<32x1xf32> -> vector<32x1xf32>
    %591 = vector.broadcast %590 : vector<32x1xf32> to vector<32x32xf32>
    %592 = arith.mulf %587, %591 : vector<32x32xf32>
    %cst_257 = arith.constant dense<0.000000e+00> : vector<2x32xf32>
    %593 = tpu.matmul %580, %592, %cst_257 {dimension_numbers = #tpu.dot_dimension_numbers<[1], [1], [0], [0], [0, 0, 1, 0], [], []>} : vector<2x32xf32>, vector<32x32xf32>, vector<2x32xf32> -> vector<2x32xf32>
    %594 = vector.extract_strided_slice %577 {offsets = [2, 0], sizes = [2, 32], strides = [1, 1]} : vector<24x32xf32> to vector<2x32xf32>
    %595 = vector.extract_strided_slice %577 {offsets = [10, 0], sizes = [2, 32], strides = [1, 1]} : vector<24x32xf32> to vector<2x32xf32>
    %596 = vector.extract_strided_slice %577 {offsets = [18, 0], sizes = [2, 32], strides = [1, 1]} : vector<24x32xf32> to vector<2x32xf32>
    %cst_258 = arith.constant dense<0.000000e+00> : vector<32x32xf32>
    %597 = tpu.matmul %594, %595, %cst_258 {dimension_numbers = #tpu.dot_dimension_numbers<[0], [0], [1], [1], [0, 1, 1, 1], [], []>} : vector<2x32xf32>, vector<2x32xf32>, vector<32x32xf32> -> vector<32x32xf32>
    %598 = arith.addf %597, %0 : vector<32x32xf32>
    %cst_259 = arith.constant dense<0xFF800000> : vector<32xf32>
    %599 = vector.multi_reduction <maximumf>, %598, %cst_259 [1] : vector<32x32xf32> to vector<32xf32>
    %600 = vector.shape_cast %599 : vector<32xf32> to vector<32x1xf32>
    %601 = vector.broadcast %600 : vector<32x1xf32> to vector<32x32xf32>
    %602 = arith.subf %598, %601 : vector<32x32xf32>
    %603 = math.exp %602 : vector<32x32xf32>
    %cst_260 = arith.constant dense<0.000000e+00> : vector<32xf32>
    %604 = vector.multi_reduction <add>, %603, %cst_260 [1] : vector<32x32xf32> to vector<32xf32>
    %605 = vector.shape_cast %604 : vector<32xf32> to vector<32x1xf32>
    %606 = tpu.reciprocal %605 {approx = true} : vector<32x1xf32> -> vector<32x1xf32>
    %607 = vector.broadcast %606 : vector<32x1xf32> to vector<32x32xf32>
    %608 = arith.mulf %603, %607 : vector<32x32xf32>
    %cst_261 = arith.constant dense<0.000000e+00> : vector<2x32xf32>
    %609 = tpu.matmul %596, %608, %cst_261 {dimension_numbers = #tpu.dot_dimension_numbers<[1], [1], [0], [0], [0, 0, 1, 0], [], []>} : vector<2x32xf32>, vector<32x32xf32>, vector<2x32xf32> -> vector<2x32xf32>
    %610 = vector.extract_strided_slice %577 {offsets = [4, 0], sizes = [2, 32], strides = [1, 1]} : vector<24x32xf32> to vector<2x32xf32>
    %611 = vector.extract_strided_slice %577 {offsets = [12, 0], sizes = [2, 32], strides = [1, 1]} : vector<24x32xf32> to vector<2x32xf32>
    %612 = vector.extract_strided_slice %577 {offsets = [20, 0], sizes = [2, 32], strides = [1, 1]} : vector<24x32xf32> to vector<2x32xf32>
    %cst_262 = arith.constant dense<0.000000e+00> : vector<32x32xf32>
    %613 = tpu.matmul %610, %611, %cst_262 {dimension_numbers = #tpu.dot_dimension_numbers<[0], [0], [1], [1], [0, 1, 1, 1], [], []>} : vector<2x32xf32>, vector<2x32xf32>, vector<32x32xf32> -> vector<32x32xf32>
    %614 = arith.addf %613, %0 : vector<32x32xf32>
    %cst_263 = arith.constant dense<0xFF800000> : vector<32xf32>
    %615 = vector.multi_reduction <maximumf>, %614, %cst_263 [1] : vector<32x32xf32> to vector<32xf32>
    %616 = vector.shape_cast %615 : vector<32xf32> to vector<32x1xf32>
    %617 = vector.broadcast %616 : vector<32x1xf32> to vector<32x32xf32>
    %618 = arith.subf %614, %617 : vector<32x32xf32>
    %619 = math.exp %618 : vector<32x32xf32>
    %cst_264 = arith.constant dense<0.000000e+00> : vector<32xf32>
    %620 = vector.multi_reduction <add>, %619, %cst_264 [1] : vector<32x32xf32> to vector<32xf32>
    %621 = vector.shape_cast %620 : vector<32xf32> to vector<32x1xf32>
    %622 = tpu.reciprocal %621 {approx = true} : vector<32x1xf32> -> vector<32x1xf32>
    %623 = vector.broadcast %622 : vector<32x1xf32> to vector<32x32xf32>
    %624 = arith.mulf %619, %623 : vector<32x32xf32>
    %cst_265 = arith.constant dense<0.000000e+00> : vector<2x32xf32>
    %625 = tpu.matmul %612, %624, %cst_265 {dimension_numbers = #tpu.dot_dimension_numbers<[1], [1], [0], [0], [0, 0, 1, 0], [], []>} : vector<2x32xf32>, vector<32x32xf32>, vector<2x32xf32> -> vector<2x32xf32>
    %626 = vector.extract_strided_slice %577 {offsets = [6, 0], sizes = [2, 32], strides = [1, 1]} : vector<24x32xf32> to vector<2x32xf32>
    %627 = vector.extract_strided_slice %577 {offsets = [14, 0], sizes = [2, 32], strides = [1, 1]} : vector<24x32xf32> to vector<2x32xf32>
    %628 = vector.extract_strided_slice %577 {offsets = [22, 0], sizes = [2, 32], strides = [1, 1]} : vector<24x32xf32> to vector<2x32xf32>
    %cst_266 = arith.constant dense<0.000000e+00> : vector<32x32xf32>
    %629 = tpu.matmul %626, %627, %cst_266 {dimension_numbers = #tpu.dot_dimension_numbers<[0], [0], [1], [1], [0, 1, 1, 1], [], []>} : vector<2x32xf32>, vector<2x32xf32>, vector<32x32xf32> -> vector<32x32xf32>
    %630 = arith.addf %629, %0 : vector<32x32xf32>
    %cst_267 = arith.constant dense<0xFF800000> : vector<32xf32>
    %631 = vector.multi_reduction <maximumf>, %630, %cst_267 [1] : vector<32x32xf32> to vector<32xf32>
    %632 = vector.shape_cast %631 : vector<32xf32> to vector<32x1xf32>
    %633 = vector.broadcast %632 : vector<32x1xf32> to vector<32x32xf32>
    %634 = arith.subf %630, %633 : vector<32x32xf32>
    %635 = math.exp %634 : vector<32x32xf32>
    %cst_268 = arith.constant dense<0.000000e+00> : vector<32xf32>
    %636 = vector.multi_reduction <add>, %635, %cst_268 [1] : vector<32x32xf32> to vector<32xf32>
    %637 = vector.shape_cast %636 : vector<32xf32> to vector<32x1xf32>
    %638 = tpu.reciprocal %637 {approx = true} : vector<32x1xf32> -> vector<32x1xf32>
    %639 = vector.broadcast %638 : vector<32x1xf32> to vector<32x32xf32>
    %640 = arith.mulf %635, %639 : vector<32x32xf32>
    %cst_269 = arith.constant dense<0.000000e+00> : vector<2x32xf32>
    %641 = tpu.matmul %628, %640, %cst_269 {dimension_numbers = #tpu.dot_dimension_numbers<[1], [1], [0], [0], [0, 0, 1, 0], [], []>} : vector<2x32xf32>, vector<32x32xf32>, vector<2x32xf32> -> vector<2x32xf32>
    %642 = tpu.concatenate %593, %609, %625, %641 in 0 : vector<2x32xf32>, vector<2x32xf32>, vector<2x32xf32>, vector<2x32xf32> -> vector<8x32xf32>
    %cst_270 = arith.constant dense<0.000000e+00> : vector<8x32xf32>
    %643 = tpu.matmul %572, %642, %cst_270 {dimension_numbers = #tpu.dot_dimension_numbers<[1], [0], [0], [1], [0, 0, 1, 1], [], []>} : vector<8x8xf32>, vector<8x32xf32>, vector<8x32xf32> -> vector<8x32xf32>
    %644 = vector.broadcast %574 : vector<8x1xf32> to vector<8x32xf32>
    %645 = arith.addf %643, %644 : vector<8x32xf32>
    %646 = vector.extract_strided_slice %566 {offsets = [8, 0], sizes = [8, 128], strides = [1, 1]} : vector<16x128xf32> to vector<8x128xf32>
    %cst_271 = arith.constant dense<0.000000e+00> : vector<8x128xf32>
    %647 = tpu.matmul %645, %1, %cst_271 {dimension_numbers = #tpu.dot_dimension_numbers<[1], [0], [0], [1], [0, 0, 1, 1], [], []>} : vector<8x32xf32>, vector<32x128xf32>, vector<8x128xf32> -> vector<8x128xf32>
    %648 = arith.addf %646, %647 : vector<8x128xf32>
    %649 = vector.extract_strided_slice %566 {offsets = [0, 0], sizes = [8, 128], strides = [1, 1]} : vector<16x128xf32> to vector<8x128xf32>
    %650 = arith.addf %649, %648 : vector<8x128xf32>
    %cst_272 = arith.constant 0.000000e+00 : f32
    %651 = vector.broadcast %cst_272 : f32 to vector<8x96xf32>
    %652 = tpu.concatenate %650, %648, %645, %651 in 1 : vector<8x128xf32>, vector<8x128xf32>, vector<8x32xf32>, vector<8x96xf32> -> vector<8x384xf32>
    %c0_273 = arith.constant 0 : index
    %c0_274 = arith.constant 0 : index
    %653 = vector.load %arg14[%c0_273, %c0_274] : memref<8x384xf32, #tpu.memory_space<vmem>>, vector<8x384xf32>
    tpu.vector_store %arg14[%c0_273, %c0_274], %652 {strides = array<i32>} : memref<8x384xf32, #tpu.memory_space<vmem>>, vector<8x384xf32>,
    return
  }
}

</mosaic_0001>

<llo_original>
// kernel: stacked_bifpn.1
$region0: #{stacked_bifpn.1}
  #allocation0 [shape = 'u32[]', space=smem, size = 0x4, offset = 0x4, fixed_abs, tag = 'smem constant byte address 0x4 - core index']
  #allocation1 [shape = 'u32[144,128]{1,0:T(1,128)}', space=vmem, size = 0x12000, scoped, tag = 'internal scratch']
  %s0 = inlined_call_operand.vmem [shape: f32[8,672], index: 0, kind: input, shape index: {}]
  %s1 = inlined_call_operand.vmem [shape: f32[8,8], index: 1, kind: input, shape index: {}]
  %s2 = inlined_call_operand.vmem [shape: f32[8,1], index: 2, kind: input, shape index: {}]
  %s3 = inlined_call_operand.vmem [shape: f32[8,8], index: 3, kind: input, shape index: {}]
  %s4 = inlined_call_operand.vmem [shape: f32[8,1], index: 4, kind: input, shape index: {}]
  %s5 = inlined_call_operand.vmem [shape: f32[6,16,16], index: 5, kind: input, shape index: {}]
  %s6 = inlined_call_operand.vmem [shape: f32[6,16,1], index: 6, kind: input, shape index: {}]
  %s7 = inlined_call_operand.vmem [shape: f32[7,24,8], index: 7, kind: input, shape index: {}]
  %s8 = inlined_call_operand.vmem [shape: f32[7,24,1], index: 8, kind: input, shape index: {}]
  %s9 = inlined_call_operand.vmem [shape: f32[7,8,8], index: 9, kind: input, shape index: {}]
  %s10 = inlined_call_operand.vmem [shape: f32[7,8,1], index: 10, kind: input, shape index: {}]
  %s11 = inlined_call_operand.vmem [shape: f32[512,128], index: 11, kind: input, shape index: {}]
  %s12 = inlined_call_operand.vmem [shape: f32[32,128], index: 12, kind: input, shape index: {}]
  %s13 = inlined_call_operand.vmem [shape: f32[32,32], index: 13, kind: input, shape index: {}]
  %s14 = inlined_call_operand.vmem [shape: f32[8,384], index: 14, kind: output, shape index: {}]
  %s15 = sld [smem:[#allocation0]]
  $region66: #{stacked_bifpn.1} parent=0
    _
  %s17 = ssub.s32 1, %s15
  %s18 = scalar_select 0, %s17, %s15
  // Predicated region
  $region2: #{stacked_bifpn.1} parent=0 // pred_check
    _
  $region3: #{stacked_bifpn.1} parent=0 // pred_check_branch
    %20 = sbr.rel (0) target = $region5
  $region4: #{stacked_bifpn.1} parent=0 // pred_region
    _
  $region5: #{stacked_bifpn.1} parent=0 // pred_fallthru
    _
  // Predicated region
  $region6: #{stacked_bifpn.1} parent=0 // pred_check
    _
  $region7: #{stacked_bifpn.1} parent=0 // pred_check_branch
    %22 = sbr.rel (0) target = $region9
  $region8: #{stacked_bifpn.1} parent=0 // pred_region
    _
  $region9: #{stacked_bifpn.1} parent=0 // pred_fallthru
    _
  // Predicated region
  $region10: #{stacked_bifpn.1} parent=0 // pred_check
    _
  $region11: #{stacked_bifpn.1} parent=0 // pred_check_branch
    %24 = sbr.rel (0) target = $region13
  $region12: #{stacked_bifpn.1} parent=0 // pred_region
    _
  $region13: #{stacked_bifpn.1} parent=0 // pred_fallthru
    _
  // Predicated region
  $region14: #{stacked_bifpn.1} parent=0 // pred_check
    _
  $region15: #{stacked_bifpn.1} parent=0 // pred_check_branch
    %26 = sbr.rel (0) target = $region17
  $region16: #{stacked_bifpn.1} parent=0 // pred_region
    _
  $region17: #{stacked_bifpn.1} parent=0 // pred_fallthru
    _
  // Predicated region
  $region18: #{stacked_bifpn.1} parent=0 // pred_check
    _
  $region19: #{stacked_bifpn.1} parent=0 // pred_check_branch
    %28 = sbr.rel (0) target = $region21
  $region20: #{stacked_bifpn.1} parent=0 // pred_region
    _
  $region21: #{stacked_bifpn.1} parent=0 // pred_fallthru
    _
  // Predicated region
  $region22: #{stacked_bifpn.1} parent=0 // pred_check
    _
  $region23: #{stacked_bifpn.1} parent=0 // pred_check_branch
    %30 = sbr.rel (0) target = $region25
  $region24: #{stacked_bifpn.1} parent=0 // pred_region
    _
  $region25: #{stacked_bifpn.1} parent=0 // pred_fallthru
    _
  // Predicated region
  $region26: #{stacked_bifpn.1} parent=0 // pred_check
    _
  $region27: #{stacked_bifpn.1} parent=0 // pred_check_branch
    %32 = sbr.rel (0) target = $region29
  $region28: #{stacked_bifpn.1} parent=0 // pred_region
    _
  $region29: #{stacked_bifpn.1} parent=0 // pred_fallthru
    _
  // Predicated region
  $region30: #{stacked_bifpn.1} parent=0 // pred_check
    _
  $region31: #{stacked_bifpn.1} parent=0 // pred_check_branch
    %34 = sbr.rel (0) target = $region33
  $region32: #{stacked_bifpn.1} parent=0 // pred_region
    _
  $region33: #{stacked_bifpn.1} parent=0 // pred_fallthru
    _
  // Predicated region
  $region34: #{stacked_bifpn.1} parent=0 // pred_check
    _
  $region35: #{stacked_bifpn.1} parent=0 // pred_check_branch
    %36 = sbr.rel (0) target = $region37
  $region36: #{stacked_bifpn.1} parent=0 // pred_region
    _
  $region37: #{stacked_bifpn.1} parent=0 // pred_fallthru
    _
  // Predicated region
  $region38: #{stacked_bifpn.1} parent=0 // pred_check
    _
  $region39: #{stacked_bifpn.1} parent=0 // pred_check_branch
    %38 = sbr.rel (0) target = $region41
  $region40: #{stacked_bifpn.1} parent=0 // pred_region
    _
  $region41: #{stacked_bifpn.1} parent=0 // pred_fallthru
    _
  // Predicated region
  $region42: #{stacked_bifpn.1} parent=0 // pred_check
    _
  $region43: #{stacked_bifpn.1} parent=0 // pred_check_branch
    %40 = sbr.rel (0) target = $region45
  $region44: #{stacked_bifpn.1} parent=0 // pred_region
    _
  $region45: #{stacked_bifpn.1} parent=0 // pred_fallthru
    _
  // Predicated region
  $region46: #{stacked_bifpn.1} parent=0 // pred_check
    _
  $region47: #{stacked_bifpn.1} parent=0 // pred_check_branch
    %42 = sbr.rel (0) target = $region49
  $region48: #{stacked_bifpn.1} parent=0 // pred_region
    _
  $region49: #{stacked_bifpn.1} parent=0 // pred_fallthru
    _
  // Predicated region
  $region50: #{stacked_bifpn.1} parent=0 // pred_check
    _
  $region51: #{stacked_bifpn.1} parent=0 // pred_check_branch
    %44 = sbr.rel (0) target = $region53
  $region52: #{stacked_bifpn.1} parent=0 // pred_region
    _
  $region53: #{stacked_bifpn.1} parent=0 // pred_fallthru
    _
  // Predicated region
  $region54: #{stacked_bifpn.1} parent=0 // pred_check
    _
  $region55: #{stacked_bifpn.1} parent=0 // pred_check_branch
    %46 = sbr.rel (0) target = $region57
  $region56: #{stacked_bifpn.1} parent=0 // pred_region
    _
  $region57: #{stacked_bifpn.1} parent=0 // pred_fallthru
    _
  %v47 = vld [vmem:[%s13] sm:$0xff]
  %v48 = vld [vmem:[%s13 + $0x8] sm:$0xff]
  %v49 = vld [vmem:[%s13 + $0x10] sm:$0xff]
  %v50 = vld [vmem:[%s13 + $0x18] sm:$0xff]
  %v51 = vld [vmem:[%s12] sm:$0xff]
  %v52 = vld [vmem:[%s12 + $0x8] sm:$0xff]
  %v53 = vld [vmem:[%s12 + $0x10] sm:$0xff]
  %v54 = vld [vmem:[%s12 + $0x18] sm:$0xff]
  %v55 = vld [vmem:[%s1] sm:$0xff]
  %v56 = vld [vmem:[%s0] sm:$0xff]
  %v57 = vld [vmem:[%s0 + $0x8] sm:$0xff]
  %v58 = vld [vmem:[%s0 + $0x10] sm:$0xff]
  %v59 = vld [vmem:[%s0 + $0x18] sm:$0xff]
  %v60 = vld [vmem:[%s2] sm:$0xff]
  %62 = vset.pattern.permute.xlu0 0
  %63 = vperm.xlu0 %62, %v60
  %v64 = vpop.permute.xlu0 %63
  %vm66 = vcmask 64512
  %v68 = vsel %vm66, %v55, 0
  %70 = vmatprep.subr.mxu0 %v57
  %71 = vmatpush1.msra.mxu0 %v56
  %72 = vmatprep.subr.mxu0 0.0
  %73 = vmatpush1.msra.mxu0 0.0
  %74 = vmatprep.subr.mxu0 0.0
  %75 = vmatpush1.msra.mxu0 0.0
  %76 = vmatprep.subr.mxu0 0.0
  %77 = vmatpush1.msra.mxu0 0.0
  %78 = vmatprep.subr.mxu0 0.0
  %79 = vmatpush1.msra.mxu0 0.0
  %80 = vmatprep.subr.mxu0 0.0
  %81 = vmatpush1.msra.mxu0 0.0
  %82 = vmatprep.subr.mxu0 0.0
  %83 = vmatpush1.msra.mxu0 0.0
  %84 = vmatprep.subr.mxu0 0.0
  %85 = vmatpush1.msra.mxu0 0.0
  %86 = vmatprep.subr.mxu0 0.0
  %87 = vmatpush1.msra.mxu0 0.0
  %88 = vmatprep.subr.mxu0 0.0
  %89 = vmatpush1.msra.mxu0 0.0
  %90 = vmatprep.subr.mxu0 0.0
  %91 = vmatpush1.msra.mxu0 0.0
  %92 = vmatprep.subr.mxu0 0.0
  %93 = vmatpush1.msra.mxu0 0.0
  %94 = vmatprep.subr.mxu0 0.0
  %95 = vmatpush1.msra.mxu0 0.0
  %96 = vmatprep.subr.mxu0 0.0
  %97 = vmatpush1.msra.mxu0 0.0
  %98 = vmatprep.subr.mxu0 0.0
  %99 = vmatpush1.msra.mxu0 0.0
  %100 = vmatprep.subr.mxu0 0.0
  %101 = vmatpush1.msra.mxu0 0.0
  %102 = vmatprep.subr.mxu0 0.0
  %103 = vmatpush1.msra.mxu0 0.0
  %104 = vmatprep.subr.mxu0 0.0
  %105 = vmatpush1.msra.mxu0 0.0
  %106 = vmatprep.subr.mxu0 0.0
  %107 = vmatpush1.msra.mxu0 0.0
  %108 = vmatprep.subr.mxu0 0.0
  %109 = vmatpush1.msra.mxu0 0.0
  %110 = vmatprep.subr.mxu0 0.0
  %111 = vmatpush1.msra.mxu0 0.0
  %112 = vmatprep.subr.mxu0 0.0
  %113 = vmatpush1.msra.mxu0 0.0
  %114 = vmatprep.subr.mxu0 0.0
  %115 = vmatpush1.msra.mxu0 0.0
  %116 = vmatprep.subr.mxu0 0.0
  %117 = vmatpush1.msra.mxu0 0.0
  %118 = vmatprep.subr.mxu0 0.0
  %119 = vmatpush1.msra.mxu0 0.0
  %120 = vmatprep.subr.mxu0 0.0
  %121 = vmatpush1.msra.mxu0 0.0
  %122 = vmatprep.subr.mxu0 0.0
  %123 = vmatpush1.msra.mxu0 0.0
  %124 = vmatprep.subr.mxu0 0.0
  %125 = vmatpush1.msra.mxu0 0.0
  %126 = vmatprep.subr.mxu0 0.0
  %127 = vmatpush1.msra.mxu0 0.0
  %128 = vmatprep.subr.mxu0 0.0
  %129 = vmatpush1.msra.mxu0 0.0
  %130 = vmatprep.subr.mxu0 0.0
  %131 = vmatpush1.msra.mxu0 0.0
  %132 = vmatprep.subr.mxu0 0.0
  %133 = vmatpush1.msra.mxu0 0.0
  %134 = vmatprep.mubr.f32.mxu0 0.0
  %135 = vmatmul.mubr.f32.gmra.mrb[0].mxu0 %v68
  %v136 = vpop.f32.mrb[0].mxu0
  %v137 = vadd.f32 %v64, %v136
  %v138 = vpop.f32.mrb[0].mxu0
  %v139 = vadd.f32 %v64, %v138
  %140 = vdwg.mxu0
  %141 = vmatprep.subr.mxu0 %v59
  %142 = vmatpush1.msra.mxu0 %v58
  %143 = vmatprep.subr.mxu0 0.0
  %144 = vmatpush1.msra.mxu0 0.0
  %145 = vmatprep.subr.mxu0 0.0
  %146 = vmatpush1.msra.mxu0 0.0
  %147 = vmatprep.subr.mxu0 0.0
  %148 = vmatpush1.msra.mxu0 0.0
  %149 = vmatprep.subr.mxu0 0.0
  %150 = vmatpush1.msra.mxu0 0.0
  %151 = vmatprep.subr.mxu0 0.0
  %152 = vmatpush1.msra.mxu0 0.0
  %153 = vmatprep.subr.mxu0 0.0
  %154 = vmatpush1.msra.mxu0 0.0
  %155 = vmatprep.subr.mxu0 0.0
  %156 = vmatpush1.msra.mxu0 0.0
  %157 = vmatprep.subr.mxu0 0.0
  %158 = vmatpush1.msra.mxu0 0.0
  %159 = vmatprep.subr.mxu0 0.0
  %160 = vmatpush1.msra.mxu0 0.0
  %161 = vmatprep.subr.mxu0 0.0
  %162 = vmatpush1.msra.mxu0 0.0
  %163 = vmatprep.subr.mxu0 0.0
  %164 = vmatpush1.msra.mxu0 0.0
  %165 = vmatprep.subr.mxu0 0.0
  %166 = vmatpush1.msra.mxu0 0.0
  %167 = vmatprep.subr.mxu0 0.0
  %168 = vmatpush1.msra.mxu0 0.0
  %169 = vmatprep.subr.mxu0 0.0
  %170 = vmatpush1.msra.mxu0 0.0
  %171 = vmatprep.subr.mxu0 0.0
  %172 = vmatpush1.msra.mxu0 0.0
  %173 = vmatprep.subr.mxu0 0.0
  %174 = vmatpush1.msra.mxu0 0.0
  %175 = vmatprep.subr.mxu0 0.0
  %176 = vmatpush1.msra.mxu0 0.0
  %177 = vmatprep.subr.mxu0 0.0
  %178 = vmatpush1.msra.mxu0 0.0
  %179 = vmatprep.subr.mxu0 0.0
  %180 = vmatpush1.msra.mxu0 0.0
  %181 = vmatprep.subr.mxu0 0.0
  %182 = vmatpush1.msra.mxu0 0.0
  %183 = vmatprep.subr.mxu0 0.0
  %184 = vmatpush1.msra.mxu0 0.0
  %185 = vmatprep.subr.mxu0 0.0
  %186 = vmatpush1.msra.mxu0 0.0
  %187 = vmatprep.subr.mxu0 0.0
  %188 = vmatpush1.msra.mxu0 0.0
  %189 = vmatprep.subr.mxu0 0.0
  %190 = vmatpush1.msra.mxu0 0.0
  %191 = vmatprep.subr.mxu0 0.0
  %192 = vmatpush1.msra.mxu0 0.0
  %193 = vmatprep.subr.mxu0 0.0
  %194 = vmatpush1.msra.mxu0 0.0
  %195 = vmatprep.subr.mxu0 0.0
  %196 = vmatpush1.msra.mxu0 0.0
  %197 = vmatprep.subr.mxu0 0.0
  %198 = vmatpush1.msra.mxu0 0.0
  %199 = vmatprep.subr.mxu0 0.0
  %200 = vmatpush1.msra.mxu0 0.0
  %201 = vmatprep.subr.mxu0 0.0
  %202 = vmatpush1.msra.mxu0 0.0
  %203 = vmatprep.subr.mxu0 0.0
  %204 = vmatpush1.msra.mxu0 0.0
  %205 = vmatprep.mubr.f32.mxu0 0.0
  %206 = vmatmul.mubr.f32.gmra.mrb[0].mxu0 %v68
  %v207 = vpop.f32.mrb[0].mxu0
  %v208 = vadd.f32 %v64, %v207
  %v209 = vpop.f32.mrb[0].mxu0
  %v210 = vadd.f32 %v64, %v209
  %211 = vdwg.mxu0
  %v212 = vld [vmem:[%s11] sm:$0xff]
  %v213 = vld [vmem:[%s11 + $0x8] sm:$0xff]
  %v214 = vld [vmem:[%s11 + $0x10] sm:$0xff]
  %v215 = vld [vmem:[%s11 + $0x18] sm:$0xff]
  %v216 = vld [vmem:[%s11 + $0x20] sm:$0xff]
  %v217 = vld [vmem:[%s11 + $0x28] sm:$0xff]
  %v218 = vld [vmem:[%s11 + $0x30] sm:$0xff]
  %v219 = vld [vmem:[%s11 + $0x38] sm:$0xff]
  %v220 = vld [vmem:[%s11 + $0x40] sm:$0xff]
  %v221 = vld [vmem:[%s11 + $0x48] sm:$0xff]
  %v222 = vld [vmem:[%s11 + $0x50] sm:$0xff]
  %v223 = vld [vmem:[%s11 + $0x58] sm:$0xff]
  %v224 = vld [vmem:[%s11 + $0x60] sm:$0xff]
  %v225 = vld [vmem:[%s11 + $0x68] sm:$0xff]
  %v226 = vld [vmem:[%s11 + $0x70] sm:$0xff]
  %v227 = vld [vmem:[%s11 + $0x78] sm:$0xff]
  %v228 = vld [vmem:[%s11 + $0x80] sm:$0xff]
  %v229 = vld [vmem:[%s11 + $0x88] sm:$0xff]
  %v230 = vld [vmem:[%s11 + $0x90] sm:$0xff]
  %v231 = vld [vmem:[%s11 + $0x98] sm:$0xff]
  %v232 = vld [vmem:[%s11 + $0xa0] sm:$0xff]
  %v233 = vld [vmem:[%s11 + $0xa8] sm:$0xff]
  %v234 = vld [vmem:[%s11 + $0xb0] sm:$0xff]
  %v235 = vld [vmem:[%s11 + $0xb8] sm:$0xff]
  %v236 = vld [vmem:[%s11 + $0xc0] sm:$0xff]
  %v237 = vld [vmem:[%s11 + $0xc8] sm:$0xff]
  %v238 = vld [vmem:[%s11 + $0xd0] sm:$0xff]
  %v239 = vld [vmem:[%s11 + $0xd8] sm:$0xff]
  %v240 = vld [vmem:[%s11 + $0xe0] sm:$0xff]
  %v241 = vld [vmem:[%s11 + $0xe8] sm:$0xff]
  %v242 = vld [vmem:[%s11 + $0xf0] sm:$0xff]
  %v243 = vld [vmem:[%s11 + $0xf8] sm:$0xff]
  %v244 = vld [vmem:[%s11 + $0x100] sm:$0xff]
  %v245 = vld [vmem:[%s11 + $0x108] sm:$0xff]
  %v246 = vld [vmem:[%s11 + $0x110] sm:$0xff]
  %v247 = vld [vmem:[%s11 + $0x118] sm:$0xff]
  %v248 = vld [vmem:[%s11 + $0x120] sm:$0xff]
  %v249 = vld [vmem:[%s11 + $0x128] sm:$0xff]
  %v250 = vld [vmem:[%s11 + $0x130] sm:$0xff]
  %v251 = vld [vmem:[%s11 + $0x138] sm:$0xff]
  %v252 = vld [vmem:[%s11 + $0x140] sm:$0xff]
  %v253 = vld [vmem:[%s11 + $0x148] sm:$0xff]
  %v254 = vld [vmem:[%s11 + $0x150] sm:$0xff]
  %v255 = vld [vmem:[%s11 + $0x158] sm:$0xff]
  %v256 = vld [vmem:[%s11 + $0x160] sm:$0xff]
  %v257 = vld [vmem:[%s11 + $0x168] sm:$0xff]
  %v258 = vld [vmem:[%s11 + $0x170] sm:$0xff]
  %v259 = vld [vmem:[%s11 + $0x178] sm:$0xff]
  %v260 = vld [vmem:[%s11 + $0x180] sm:$0xff]
  %v261 = vld [vmem:[%s11 + $0x188] sm:$0xff]
  %v262 = vld [vmem:[%s11 + $0x190] sm:$0xff]
  %v263 = vld [vmem:[%s11 + $0x198] sm:$0xff]
  %v264 = vld [vmem:[%s11 + $0x1a0] sm:$0xff]
  %v265 = vld [vmem:[%s11 + $0x1a8] sm:$0xff]
  %v266 = vld [vmem:[%s11 + $0x1b0] sm:$0xff]
  %v267 = vld [vmem:[%s11 + $0x1b8] sm:$0xff]
  %v268 = vld [vmem:[%s11 + $0x1c0] sm:$0xff]
  %v269 = vld [vmem:[%s11 + $0x1c8] sm:$0xff]
  %v270 = vld [vmem:[%s11 + $0x1d0] sm:$0xff]
  %v271 = vld [vmem:[%s11 + $0x1d8] sm:$0xff]
  %v272 = vld [vmem:[%s11 + $0x1e0] sm:$0xff]
  %v273 = vld [vmem:[%s11 + $0x1e8] sm:$0xff]
  %v274 = vld [vmem:[%s11 + $0x1f0] sm:$0xff]
  %v275 = vld [vmem:[%s11 + $0x1f8] sm:$0xff]
  %v276 = vld [vmem:[%s3] sm:$0xff]
  %v277 = vld [vmem:[%s0 + $0x20] sm:$0xff]
  %v278 = vld [vmem:[%s4] sm:$0xff]
  %280 = vset.pattern.permute.xlu0 0
  %281 = vperm.xlu0 %280, %v278
  %v282 = vpop.permute.xlu0 %281
  %v285 = vsel %vm66, %v276, 0
  %287 = vmatprep.subr.mxu0 0.0
  %288 = vmatpush1.msra.mxu0 %v277
  %289 = vmatprep.subr.mxu0 0.0
  %290 = vmatpush1.msra.mxu0 0.0
  %291 = vmatprep.subr.mxu0 0.0
  %292 = vmatpush1.msra.mxu0 0.0
  %293 = vmatprep.subr.mxu0 0.0
  %294 = vmatpush1.msra.mxu0 0.0
  %295 = vmatprep.subr.mxu0 0.0
  %296 = vmatpush1.msra.mxu0 0.0
  %297 = vmatprep.subr.mxu0 0.0
  %298 = vmatpush1.msra.mxu0 0.0
  %299 = vmatprep.subr.mxu0 0.0
  %300 = vmatpush1.msra.mxu0 0.0
  %301 = vmatprep.subr.mxu0 0.0
  %302 = vmatpush1.msra.mxu0 0.0
  %303 = vmatprep.subr.mxu0 0.0
  %304 = vmatpush1.msra.mxu0 0.0
  %305 = vmatprep.subr.mxu0 0.0
  %306 = vmatpush1.msra.mxu0 0.0
  %307 = vmatprep.subr.mxu0 0.0
  %308 = vmatpush1.msra.mxu0 0.0
  %309 = vmatprep.subr.mxu0 0.0
  %310 = vmatpush1.msra.mxu0 0.0
  %311 = vmatprep.subr.mxu0 0.0
  %312 = vmatpush1.msra.mxu0 0.0
  %313 = vmatprep.subr.mxu0 0.0
  %314 = vmatpush1.msra.mxu0 0.0
  %315 = vmatprep.subr.mxu0 0.0
  %316 = vmatpush1.msra.mxu0 0.0
  %317 = vmatprep.subr.mxu0 0.0
  %318 = vmatpush1.msra.mxu0 0.0
  %319 = vmatprep.subr.mxu0 0.0
  %320 = vmatpush1.msra.mxu0 0.0
  %321 = vmatprep.subr.mxu0 0.0
  %322 = vmatpush1.msra.mxu0 0.0
  %323 = vmatprep.subr.mxu0 0.0
  %324 = vmatpush1.msra.mxu0 0.0
  %325 = vmatprep.subr.mxu0 0.0
  %326 = vmatpush1.msra.mxu0 0.0
  %327 = vmatprep.subr.mxu0 0.0
  %328 = vmatpush1.msra.mxu0 0.0
  %329 = vmatprep.subr.mxu0 0.0
  %330 = vmatpush1.msra.mxu0 0.0
  %331 = vmatprep.subr.mxu0 0.0
  %332 = vmatpush1.msra.mxu0 0.0
  %333 = vmatprep.subr.mxu0 0.0
  %334 = vmatpush1.msra.mxu0 0.0
  %335 = vmatprep.subr.mxu0 0.0
  %336 = vmatpush1.msra.mxu0 0.0
  %337 = vmatprep.subr.mxu0 0.0
  %338 = vmatpush1.msra.mxu0 0.0
  %339 = vmatprep.subr.mxu0 0.0
  %340 = vmatpush1.msra.mxu0 0.0
  %341 = vmatprep.subr.mxu0 0.0
  %342 = vmatpush1.msra.mxu0 0.0
  %343 = vmatprep.subr.mxu0 0.0
  %344 = vmatpush1.msra.mxu0 0.0
  %345 = vmatprep.subr.mxu0 0.0
  %346 = vmatpush1.msra.mxu0 0.0
  %347 = vmatprep.subr.mxu0 0.0
  %348 = vmatpush1.msra.mxu0 0.0
  %349 = vmatprep.subr.mxu0 0.0
  %350 = vmatpush1.msra.mxu0 0.0
  %351 = vmatprep.mubr.f32.mxu0 0.0
  %352 = vmatmul.mubr.f32.gmra.mrb[0].mxu0 %v285
  %v353 = vpop.f32.mrb[0].mxu0
  %v354 = vadd.f32 %v282, %v353
  %v355 = vpop.f32.mrb[0].mxu0
  %356 = vdwg.mxu0
  %v357 = vld [vmem:[%s0 + $0x28] sm:$0xff]
  %v358 = vld [vmem:[%s7] sm:$0xff]
  %v359 = vld [vmem:[%s7 + $0x8] sm:$0xff]
  %v360 = vld [vmem:[%s7 + $0x10] sm:$0xff]
  %v361 = vld [vmem:[%s8] sm:$0xff]
  %v362 = vld [vmem:[%s8 + $0x8] sm:$0xff]
  %v363 = vld [vmem:[%s8 + $0x10] sm:$0xff]
  %v364 = vld [vmem:[%s9] sm:$0xff]
  %v365 = vld [vmem:[%s10] sm:$0xff]
  %367 = vset.pattern.permute.xlu0 0
  %368 = vperm.xlu0 %367, %v361
  %v369 = vpop.permute.xlu0 %368
  %372 = vset.pattern.permute.xlu0 0
  %373 = vperm.xlu0 %372, %v362
  %v374 = vpop.permute.xlu0 %373
  %377 = vset.pattern.permute.xlu0 0
  %378 = vperm.xlu0 %377, %v363
  %v379 = vpop.permute.xlu0 %378
  %v382 = vsel %vm66, %v358, 0
  %v385 = vsel %vm66, %v359, 0
  %v388 = vsel %vm66, %v360, 0
  %390 = vmatprep.subr.mxu0 0.0
  %391 = vmatpush1.msra.mxu0 %v357
  %392 = vmatprep.subr.mxu0 0.0
  %393 = vmatpush1.msra.mxu0 0.0
  %394 = vmatprep.subr.mxu0 0.0
  %395 = vmatpush1.msra.mxu0 0.0
  %396 = vmatprep.subr.mxu0 0.0
  %397 = vmatpush1.msra.mxu0 0.0
  %398 = vmatprep.subr.mxu0 0.0
  %399 = vmatpush1.msra.mxu0 0.0
  %400 = vmatprep.subr.mxu0 0.0
  %401 = vmatpush1.msra.mxu0 0.0
  %402 = vmatprep.subr.mxu0 0.0
  %403 = vmatpush1.msra.mxu0 0.0
  %404 = vmatprep.subr.mxu0 0.0
  %405 = vmatpush1.msra.mxu0 0.0
  %406 = vmatprep.subr.mxu0 0.0
  %407 = vmatpush1.msra.mxu0 0.0
  %408 = vmatprep.subr.mxu0 0.0
  %409 = vmatpush1.msra.mxu0 0.0
  %410 = vmatprep.subr.mxu0 0.0
  %411 = vmatpush1.msra.mxu0 0.0
  %412 = vmatprep.subr.mxu0 0.0
  %413 = vmatpush1.msra.mxu0 0.0
  %414 = vmatprep.subr.mxu0 0.0
  %415 = vmatpush1.msra.mxu0 0.0
  %416 = vmatprep.subr.mxu0 0.0
  %417 = vmatpush1.msra.mxu0 0.0
  %418 = vmatprep.subr.mxu0 0.0
  %419 = vmatpush1.msra.mxu0 0.0
  %420 = vmatprep.subr.mxu0 0.0
  %421 = vmatpush1.msra.mxu0 0.0
  %422 = vmatprep.subr.mxu0 0.0
  %423 = vmatpush1.msra.mxu0 0.0
  %424 = vmatprep.subr.mxu0 0.0
  %425 = vmatpush1.msra.mxu0 0.0
  %426 = vmatprep.subr.mxu0 0.0
  %427 = vmatpush1.msra.mxu0 0.0
  %428 = vmatprep.subr.mxu0 0.0
  %429 = vmatpush1.msra.mxu0 0.0
  %430 = vmatprep.subr.mxu0 0.0
  %431 = vmatpush1.msra.mxu0 0.0
  %432 = vmatprep.subr.mxu0 0.0
  %433 = vmatpush1.msra.mxu0 0.0
  %434 = vmatprep.subr.mxu0 0.0
  %435 = vmatpush1.msra.mxu0 0.0
  %436 = vmatprep.subr.mxu0 0.0
  %437 = vmatpush1.msra.mxu0 0.0
  %438 = vmatprep.subr.mxu0 0.0
  %439 = vmatpush1.msra.mxu0 0.0
  %440 = vmatprep.subr.mxu0 0.0
  %441 = vmatpush1.msra.mxu0 0.0
  %442 = vmatprep.subr.mxu0 0.0
  %443 = vmatpush1.msra.mxu0 0.0
  %444 = vmatprep.subr.mxu0 0.0
  %445 = vmatpush1.msra.mxu0 0.0
  %446 = vmatprep.subr.mxu0 0.0
  %447 = vmatpush1.msra.mxu0 0.0
  %448 = vmatprep.subr.mxu0 0.0
  %449 = vmatpush1.msra.mxu0 0.0
  %450 = vmatprep.subr.mxu0 0.0
  %451 = vmatpush1.msra.mxu0 0.0
  %452 = vmatprep.subr.mxu0 0.0
  %453 = vmatpush1.msra.mxu0 0.0
  %454 = vmatprep.mubr.f32.mxu0 0.0
  %455 = vmatmul.mubr.f32.gmra.mrb[0].mxu0 %v382
  %v456 = vpop.f32.mrb[0].mxu0
  %v457 = vadd.f32 %v369, %v456
  %v458 = vpop.f32.mrb[0].mxu0
  %459 = vmatprep.mubr.f32.mxu0 0.0
  %460 = vmatmul.mubr.f32.gmra.mrb[0].mxu0 %v385
  %v461 = vpop.f32.mrb[0].mxu0
  %v462 = vadd.f32 %v374, %v461
  %v463 = vpop.f32.mrb[0].mxu0
  %464 = vmatprep.mubr.f32.mxu0 0.0
  %465 = vmatmul.mubr.f32.gmra.mrb[0].mxu0 %v388
  %v466 = vpop.f32.mrb[0].mxu0
  %v467 = vadd.f32 %v379, %v466
  %v468 = vpop.f32.mrb[0].mxu0
  %469 = vdwg.mxu0
  %470 = vxpose.xlu0.b32.start [1/16] %v457, 128
  %471 = vxpose.xlu0.b32.cont [2/16] 0.0, 128
  %472 = vxpose.xlu0.b32.cont [3/16] 0.0, 128
  %473 = vxpose.xlu0.b32.cont [4/16] 0.0, 128
  %474 = vxpose.xlu0.b32.cont [5/16] 0.0, 128
  %475 = vxpose.xlu0.b32.cont [6/16] 0.0, 128
  %476 = vxpose.xlu0.b32.cont [7/16] 0.0, 128
  %477 = vxpose.xlu0.b32.cont [8/16] 0.0, 128
  %478 = vxpose.xlu0.b32.cont [9/16] 0.0, 128
  %479 = vxpose.xlu0.b32.cont [10/16] 0.0, 128
  %480 = vxpose.xlu0.b32.cont [11/16] 0.0, 128
  %481 = vxpose.xlu0.b32.cont [12/16] 0.0, 128
  %482 = vxpose.xlu0.b32.cont [13/16] 0.0, 128
  %483 = vxpose.xlu0.b32.cont [14/16] 0.0, 128
  %484 = vxpose.xlu0.b32.cont [15/16] 0.0, 128
  %485 = vxpose.xlu0.b32.end [16/16] 0.0, 128
  %v486 = vpop.trf.xlu0
  %v487 = vpop.trf.xlu0
  %v488 = vpop.trf.xlu0
  %v489 = vpop.trf.xlu0
  %v490 = vpop.trf.xlu0
  %v491 = vpop.trf.xlu0
  %v492 = vpop.trf.xlu0
  %v493 = vpop.trf.xlu0
  %v494 = vpop.trf.xlu0
  %v495 = vpop.trf.xlu0
  %v496 = vpop.trf.xlu0
  %v497 = vpop.trf.xlu0
  %v498 = vpop.trf.xlu0
  %v499 = vpop.trf.xlu0
  %v500 = vpop.trf.xlu0
  %v501 = vpop.trf.xlu0
  %vm502 = vcmask 15360
  %v504 = vsel %vm502, %v486, 0
  %v507 = vsel %vm502, %v487, 0
  %v510 = vsel %vm502, %v488, 0
  %v513 = vsel %vm502, %v489, 0
  %vm515 = vcmask 1041408
  %v517 = vsel %vm515, %v462, 0
  %519 = vmatprep.subr.mxu0 0.0
  %520 = vmatpush1.msra.mxu0 %v517
  %521 = vmatprep.subr.mxu0 0.0
  %522 = vmatpush1.msra.mxu0 0.0
  %523 = vmatprep.subr.mxu0 0.0
  %524 = vmatpush1.msra.mxu0 0.0
  %525 = vmatprep.subr.mxu0 0.0
  %526 = vmatpush1.msra.mxu0 0.0
  %527 = vmatprep.subr.mxu0 0.0
  %528 = vmatpush1.msra.mxu0 0.0
  %529 = vmatprep.subr.mxu0 0.0
  %530 = vmatpush1.msra.mxu0 0.0
  %531 = vmatprep.subr.mxu0 0.0
  %532 = vmatpush1.msra.mxu0 0.0
  %533 = vmatprep.subr.mxu0 0.0
  %534 = vmatpush1.msra.mxu0 0.0
  %535 = vmatprep.subr.mxu0 0.0
  %536 = vmatpush1.msra.mxu0 0.0
  %537 = vmatprep.subr.mxu0 0.0
  %538 = vmatpush1.msra.mxu0 0.0
  %539 = vmatprep.subr.mxu0 0.0
  %540 = vmatpush1.msra.mxu0 0.0
  %541 = vmatprep.subr.mxu0 0.0
  %542 = vmatpush1.msra.mxu0 0.0
  %543 = vmatprep.subr.mxu0 0.0
  %544 = vmatpush1.msra.mxu0 0.0
  %545 = vmatprep.subr.mxu0 0.0
  %546 = vmatpush1.msra.mxu0 0.0
  %547 = vmatprep.subr.mxu0 0.0
  %548 = vmatpush1.msra.mxu0 0.0
  %549 = vmatprep.subr.mxu0 0.0
  %550 = vmatpush1.msra.mxu0 0.0
  %551 = vmatprep.subr.mxu0 0.0
  %552 = vmatpush1.msra.mxu0 0.0
  %553 = vmatprep.subr.mxu0 0.0
  %554 = vmatpush1.msra.mxu0 0.0
  %555 = vmatprep.subr.mxu0 0.0
  %556 = vmatpush1.msra.mxu0 0.0
  %557 = vmatprep.subr.mxu0 0.0
  %558 = vmatpush1.msra.mxu0 0.0
  %559 = vmatprep.subr.mxu0 0.0
  %560 = vmatpush1.msra.mxu0 0.0
  %561 = vmatprep.subr.mxu0 0.0
  %562 = vmatpush1.msra.mxu0 0.0
  %563 = vmatprep.subr.mxu0 0.0
  %564 = vmatpush1.msra.mxu0 0.0
  %565 = vmatprep.subr.mxu0 0.0
  %566 = vmatpush1.msra.mxu0 0.0
  %567 = vmatprep.subr.mxu0 0.0
  %568 = vmatpush1.msra.mxu0 0.0
  %569 = vmatprep.subr.mxu0 0.0
  %570 = vmatpush1.msra.mxu0 0.0
  %571 = vmatprep.subr.mxu0 0.0
  %572 = vmatpush1.msra.mxu0 0.0
  %573 = vmatprep.subr.mxu0 0.0
  %574 = vmatpush1.msra.mxu0 0.0
  %575 = vmatprep.subr.mxu0 0.0
  %576 = vmatpush1.msra.mxu0 0.0
  %577 = vmatprep.subr.mxu0 0.0
  %578 = vmatpush1.msra.mxu0 0.0
  %579 = vmatprep.subr.mxu0 0.0
  %580 = vmatpush1.msra.mxu0 0.0
  %581 = vmatprep.subr.mxu0 0.0
  %582 = vmatpush1.msra.mxu0 0.0
  %583 = vmatprep.mubr.f32.mxu0 0.0
  %584 = vmatmul.mubr.f32.gmra.mrb[0].mxu0 %v504
  %v585 = vpop.f32.mrb[0].mxu0
  %v586 = vadd.f32 %v47, %v585
  %v587 = vpop.f32.mrb[0].mxu0
  %588 = vmatprep.mubr.f32.mxu0 0.0
  %589 = vmatmul.mubr.f32.gmra.mrb[0].mxu0 %v507
  %v590 = vpop.f32.mrb[0].mxu0
  %v591 = vadd.f32 %v48, %v590
  %v592 = vpop.f32.mrb[0].mxu0
  %593 = vmatprep.mubr.f32.mxu0 0.0
  %594 = vmatmul.mubr.f32.gmra.mrb[0].mxu0 %v510
  %v595 = vpop.f32.mrb[0].mxu0
  %v596 = vadd.f32 %v49, %v595
  %v597 = vpop.f32.mrb[0].mxu0
  %598 = vmatprep.mubr.f32.mxu0 0.0
  %599 = vmatmul.mubr.f32.gmra.mrb[0].mxu0 %v513
  %v600 = vpop.f32.mrb[0].mxu0
  %v601 = vadd.f32 %v50, %v600
  %v602 = vpop.f32.mrb[0].mxu0
  %603 = vdwg.mxu0
  %vm604 = vcmask 261120
  %v605 = vsel %vm604, %v586, -inf
  %606 = vmax.xlane.f32.xlu0 %v605
  %v607 = vpop.xlane.xlu0 %606
  %v608 = vsel %vm604, %v591, -inf
  %609 = vmax.xlane.f32.xlu0 %v608
  %v610 = vpop.xlane.xlu0 %609
  %v611 = vsel %vm604, %v596, -inf
  %612 = vmax.xlane.f32.xlu0 %v611
  %v613 = vpop.xlane.xlu0 %612
  %v614 = vsel %vm604, %v601, -inf
  %615 = vmax.xlane.f32.xlu0 %v614
  %v616 = vpop.xlane.xlu0 %615
  %v617 = vsub.f32 %v586, %v607
  %v618 = vsub.f32 %v591, %v610
  %v619 = vsub.f32 %v596, %v613
  %v620 = vsub.f32 %v601, %v616
  %v621 = vmul.f32 %v617, 1.442695
  %v622 = vpow.pop %v621
  %v623 = vmul.f32 %v618, 1.442695
  %v624 = vpow.pop %v623
  %v625 = vmul.f32 %v619, 1.442695
  %v626 = vpow.pop %v625
  %v627 = vmul.f32 %v620, 1.442695
  %v628 = vpow.pop %v627
  %v629 = vsel %vm604, %v622, 0.0
  %630 = vadd.xlane.f32.xlu0 %v629
  %v631 = vpop.xlane.xlu0 %630
  %v632 = vsel %vm604, %v624, 0.0
  %633 = vadd.xlane.f32.xlu0 %v632
  %v634 = vpop.xlane.xlu0 %633
  %v635 = vsel %vm604, %v626, 0.0
  %636 = vadd.xlane.f32.xlu0 %v635
  %v637 = vpop.xlane.xlu0 %636
  %v638 = vsel %vm604, %v628, 0.0
  %639 = vadd.xlane.f32.xlu0 %v638
  %v640 = vpop.xlane.xlu0 %639
  %v641 = vrcp.pop %v631
  %v642 = vrcp.pop %v634
  %v643 = vrcp.pop %v637
  %v644 = vrcp.pop %v640
  %v645 = vmul.f32 %v622, %v641
  %v646 = vmul.f32 %v624, %v642
  %v647 = vmul.f32 %v626, %v643
  %v648 = vmul.f32 %v628, %v644
  %v650 = vsel %vm604, %v467, 0
  %v653 = vsel %vm604, %v645, 0
  %v656 = vsel %vm604, %v646, 0
  %v659 = vsel %vm604, %v647, 0
  %v662 = vsel %vm604, %v648, 0
  %664 = vmatprep.subr.mxu0 0.0
  %665 = vmatpush1.xpose.msra.mxu0 %v653
  %666 = vmatprep.subr.mxu0 0.0
  %667 = vmatpush1.xpose.msra.mxu0 %v656
  %668 = vmatprep.subr.mxu0 0.0
  %669 = vmatpush1.xpose.msra.mxu0 %v659
  %670 = vmatprep.subr.mxu0 0.0
  %671 = vmatpush1.xpose.msra.mxu0 %v662
  %672 = vmatprep.subr.mxu0 0.0
  %673 = vmatpush1.xpose.msra.mxu0 0.0
  %674 = vmatprep.subr.mxu0 0.0
  %675 = vmatpush1.xpose.msra.mxu0 0.0
  %676 = vmatprep.subr.mxu0 0.0
  %677 = vmatpush1.xpose.msra.mxu0 0.0
  %678 = vmatprep.subr.mxu0 0.0
  %679 = vmatpush1.xpose.msra.mxu0 0.0
  %680 = vmatprep.subr.mxu0 0.0
  %681 = vmatpush1.xpose.msra.mxu0 0.0
  %682 = vmatprep.subr.mxu0 0.0
  %683 = vmatpush1.xpose.msra.mxu0 0.0
  %684 = vmatprep.subr.mxu0 0.0
  %685 = vmatpush1.xpose.msra.mxu0 0.0
  %686 = vmatprep.subr.mxu0 0.0
  %687 = vmatpush1.xpose.msra.mxu0 0.0
  %688 = vmatprep.subr.mxu0 0.0
  %689 = vmatpush1.xpose.msra.mxu0 0.0
  %690 = vmatprep.subr.mxu0 0.0
  %691 = vmatpush1.xpose.msra.mxu0 0.0
  %692 = vmatprep.subr.mxu0 0.0
  %693 = vmatpush1.xpose.msra.mxu0 0.0
  %694 = vmatprep.subr.mxu0 0.0
  %695 = vmatpush1.xpose.msra.mxu0 0.0
  %696 = vmatprep.subr.mxu0 0.0
  %697 = vmatpush1.xpose.msra.mxu0 0.0
  %698 = vmatprep.subr.mxu0 0.0
  %699 = vmatpush1.xpose.msra.mxu0 0.0
  %700 = vmatprep.subr.mxu0 0.0
  %701 = vmatpush1.xpose.msra.mxu0 0.0
  %702 = vmatprep.subr.mxu0 0.0
  %703 = vmatpush1.xpose.msra.mxu0 0.0
  %704 = vmatprep.subr.mxu0 0.0
  %705 = vmatpush1.xpose.msra.mxu0 0.0
  %706 = vmatprep.subr.mxu0 0.0
  %707 = vmatpush1.xpose.msra.mxu0 0.0
  %708 = vmatprep.subr.mxu0 0.0
  %709 = vmatpush1.xpose.msra.mxu0 0.0
  %710 = vmatprep.subr.mxu0 0.0
  %711 = vmatpush1.xpose.msra.mxu0 0.0
  %712 = vmatprep.subr.mxu0 0.0
  %713 = vmatpush1.xpose.msra.mxu0 0.0
  %714 = vmatprep.subr.mxu0 0.0
  %715 = vmatpush1.xpose.msra.mxu0 0.0
  %716 = vmatprep.subr.mxu0 0.0
  %717 = vmatpush1.xpose.msra.mxu0 0.0
  %718 = vmatprep.subr.mxu0 0.0
  %719 = vmatpush1.xpose.msra.mxu0 0.0
  %720 = vmatprep.subr.mxu0 0.0
  %721 = vmatpush1.xpose.msra.mxu0 0.0
  %722 = vmatprep.subr.mxu0 0.0
  %723 = vmatpush1.xpose.msra.mxu0 0.0
  %724 = vmatprep.subr.mxu0 0.0
  %725 = vmatpush1.xpose.msra.mxu0 0.0
  %726 = vmatprep.subr.mxu0 0.0
  %727 = vmatpush1.xpose.msra.mxu0 0.0
  %728 = vmatprep.mubr.f32.mxu0 0.0
  %729 = vmatmul.mubr.f32.gmra.mrb[0].mxu0 %v650
  %v730 = vpop.f32.mrb[0].mxu0
  %v731 = vadd.f32 0.0, %v730
  %v732 = vpop.f32.mrb[0].mxu0
  %733 = vdwg.mxu0
  %v735 = vrot.slane %v457, 2
  %737 = vxpose.xlu0.b32.start [1/16] %v735, 128
  %738 = vxpose.xlu0.b32.cont [2/16] 0.0, 128
  %739 = vxpose.xlu0.b32.cont [3/16] 0.0, 128
  %740 = vxpose.xlu0.b32.cont [4/16] 0.0, 128
  %741 = vxpose.xlu0.b32.cont [5/16] 0.0, 128
  %742 = vxpose.xlu0.b32.cont [6/16] 0.0, 128
  %743 = vxpose.xlu0.b32.cont [7/16] 0.0, 128
  %744 = vxpose.xlu0.b32.cont [8/16] 0.0, 128
  %745 = vxpose.xlu0.b32.cont [9/16] 0.0, 128
  %746 = vxpose.xlu0.b32.cont [10/16] 0.0, 128
  %747 = vxpose.xlu0.b32.cont [11/16] 0.0, 128
  %748 = vxpose.xlu0.b32.cont [12/16] 0.0, 128
  %749 = vxpose.xlu0.b32.cont [13/16] 0.0, 128
  %750 = vxpose.xlu0.b32.cont [14/16] 0.0, 128
  %751 = vxpose.xlu0.b32.cont [15/16] 0.0, 128
  %752 = vxpose.xlu0.b32.end [16/16] 0.0, 128
  %v753 = vpop.trf.xlu0
  %v754 = vpop.trf.xlu0
  %v755 = vpop.trf.xlu0
  %v756 = vpop.trf.xlu0
  %v757 = vpop.trf.xlu0
  %v758 = vpop.trf.xlu0
  %v759 = vpop.trf.xlu0
  %v760 = vpop.trf.xlu0
  %v761 = vpop.trf.xlu0
  %v762 = vpop.trf.xlu0
  %v763 = vpop.trf.xlu0
  %v764 = vpop.trf.xlu0
  %v765 = vpop.trf.xlu0
  %v766 = vpop.trf.xlu0
  %v767 = vpop.trf.xlu0
  %v768 = vpop.trf.xlu0
  %v769 = vrot.slane %v462, 2
  %v771 = vsel %vm502, %v753, 0
  %v774 = vsel %vm502, %v754, 0
  %v777 = vsel %vm502, %v755, 0
  %v780 = vsel %vm502, %v756, 0
  %v782 = vsel %vm515, %v769, 0
  %784 = vmatprep.subr.mxu0 0.0
  %785 = vmatpush1.msra.mxu0 %v782
  %786 = vmatprep.subr.mxu0 0.0
  %787 = vmatpush1.msra.mxu0 0.0
  %788 = vmatprep.subr.mxu0 0.0
  %789 = vmatpush1.msra.mxu0 0.0
  %790 = vmatprep.subr.mxu0 0.0
  %791 = vmatpush1.msra.mxu0 0.0
  %792 = vmatprep.subr.mxu0 0.0
  %793 = vmatpush1.msra.mxu0 0.0
  %794 = vmatprep.subr.mxu0 0.0
  %795 = vmatpush1.msra.mxu0 0.0
  %796 = vmatprep.subr.mxu0 0.0
  %797 = vmatpush1.msra.mxu0 0.0
  %798 = vmatprep.subr.mxu0 0.0
  %799 = vmatpush1.msra.mxu0 0.0
  %800 = vmatprep.subr.mxu0 0.0
  %801 = vmatpush1.msra.mxu0 0.0
  %802 = vmatprep.subr.mxu0 0.0
  %803 = vmatpush1.msra.mxu0 0.0
  %804 = vmatprep.subr.mxu0 0.0
  %805 = vmatpush1.msra.mxu0 0.0
  %806 = vmatprep.subr.mxu0 0.0
  %807 = vmatpush1.msra.mxu0 0.0
  %808 = vmatprep.subr.mxu0 0.0
  %809 = vmatpush1.msra.mxu0 0.0
  %810 = vmatprep.subr.mxu0 0.0
  %811 = vmatpush1.msra.mxu0 0.0
  %812 = vmatprep.subr.mxu0 0.0
  %813 = vmatpush1.msra.mxu0 0.0
  %814 = vmatprep.subr.mxu0 0.0
  %815 = vmatpush1.msra.mxu0 0.0
  %816 = vmatprep.subr.mxu0 0.0
  %817 = vmatpush1.msra.mxu0 0.0
  %818 = vmatprep.subr.mxu0 0.0
  %819 = vmatpush1.msra.mxu0 0.0
  %820 = vmatprep.subr.mxu0 0.0
  %821 = vmatpush1.msra.mxu0 0.0
  %822 = vmatprep.subr.mxu0 0.0
  %823 = vmatpush1.msra.mxu0 0.0
  %824 = vmatprep.subr.mxu0 0.0
  %825 = vmatpush1.msra.mxu0 0.0
  %826 = vmatprep.subr.mxu0 0.0
  %827 = vmatpush1.msra.mxu0 0.0
  %828 = vmatprep.subr.mxu0 0.0
  %829 = vmatpush1.msra.mxu0 0.0
  %830 = vmatprep.subr.mxu0 0.0
  %831 = vmatpush1.msra.mxu0 0.0
  %832 = vmatprep.subr.mxu0 0.0
  %833 = vmatpush1.msra.mxu0 0.0
  %834 = vmatprep.subr.mxu0 0.0
  %835 = vmatpush1.msra.mxu0 0.0
  %836 = vmatprep.subr.mxu0 0.0
  %837 = vmatpush1.msra.mxu0 0.0
  %838 = vmatprep.subr.mxu0 0.0
  %839 = vmatpush1.msra.mxu0 0.0
  %840 = vmatprep.subr.mxu0 0.0
  %841 = vmatpush1.msra.mxu0 0.0
  %842 = vmatprep.subr.mxu0 0.0
  %843 = vmatpush1.msra.mxu0 0.0
  %844 = vmatprep.subr.mxu0 0.0
  %845 = vmatpush1.msra.mxu0 0.0
  %846 = vmatprep.subr.mxu0 0.0
  %847 = vmatpush1.msra.mxu0 0.0
  %848 = vmatprep.mubr.f32.mxu0 0.0
  %849 = vmatmul.mubr.f32.gmra.mrb[0].mxu0 %v771
  %v850 = vpop.f32.mrb[0].mxu0
  %v851 = vadd.f32 %v47, %v850
  %v852 = vpop.f32.mrb[0].mxu0
  %853 = vmatprep.mubr.f32.mxu0 0.0
  %854 = vmatmul.mubr.f32.gmra.mrb[0].mxu0 %v774
  %v855 = vpop.f32.mrb[0].mxu0
  %v856 = vadd.f32 %v48, %v855
  %v857 = vpop.f32.mrb[0].mxu0
  %858 = vmatprep.mubr.f32.mxu0 0.0
  %859 = vmatmul.mubr.f32.gmra.mrb[0].mxu0 %v777
  %v860 = vpop.f32.mrb[0].mxu0
  %v861 = vadd.f32 %v49, %v860
  %v862 = vpop.f32.mrb[0].mxu0
  %863 = vmatprep.mubr.f32.mxu0 0.0
  %864 = vmatmul.mubr.f32.gmra.mrb[0].mxu0 %v780
  %v865 = vpop.f32.mrb[0].mxu0
  %v866 = vadd.f32 %v50, %v865
  %v867 = vpop.f32.mrb[0].mxu0
  %868 = vdwg.mxu0
  %v869 = vsel %vm604, %v851, -inf
  %870 = vmax.xlane.f32.xlu0 %v869
  %v871 = vpop.xlane.xlu0 %870
  %v872 = vsel %vm604, %v856, -inf
  %873 = vmax.xlane.f32.xlu0 %v872
  %v874 = vpop.xlane.xlu0 %873
  %v875 = vsel %vm604, %v861, -inf
  %876 = vmax.xlane.f32.xlu0 %v875
  %v877 = vpop.xlane.xlu0 %876
  %v878 = vsel %vm604, %v866, -inf
  %879 = vmax.xlane.f32.xlu0 %v878
  %v880 = vpop.xlane.xlu0 %879
  %v881 = vsub.f32 %v851, %v871
  %v882 = vsub.f32 %v856, %v874
  %v883 = vsub.f32 %v861, %v877
  %v884 = vsub.f32 %v866, %v880
  %v885 = vmul.f32 %v881, 1.442695
  %v886 = vpow.pop %v885
  %v887 = vmul.f32 %v882, 1.442695
  %v888 = vpow.pop %v887
  %v889 = vmul.f32 %v883, 1.442695
  %v890 = vpow.pop %v889
  %v891 = vmul.f32 %v884, 1.442695
  %v892 = vpow.pop %v891
  %v893 = vsel %vm604, %v886, 0.0
  %894 = vadd.xlane.f32.xlu0 %v893
  %v895 = vpop.xlane.xlu0 %894
  %v896 = vsel %vm604, %v888, 0.0
  %897 = vadd.xlane.f32.xlu0 %v896
  %v898 = vpop.xlane.xlu0 %897
  %v899 = vsel %vm604, %v890, 0.0
  %900 = vadd.xlane.f32.xlu0 %v899
  %v901 = vpop.xlane.xlu0 %900
  %v902 = vsel %vm604, %v892, 0.0
  %903 = vadd.xlane.f32.xlu0 %v902
  %v904 = vpop.xlane.xlu0 %903
  %v905 = vrcp.pop %v895
  %v906 = vrcp.pop %v898
  %v907 = vrcp.pop %v901
  %v908 = vrcp.pop %v904
  %v909 = vmul.f32 %v886, %v905
  %v910 = vmul.f32 %v888, %v906
  %v911 = vmul.f32 %v890, %v907
  %v912 = vmul.f32 %v892, %v908
  %v913 = vrot.slane %v467, 2
  %v914 = vsel %vm604, %v913, 0
  %v917 = vsel %vm604, %v909, 0
  %v920 = vsel %vm604, %v910, 0
  %v923 = vsel %vm604, %v911, 0
  %v926 = vsel %vm604, %v912, 0
  %928 = vmatprep.subr.mxu0 0.0
  %929 = vmatpush1.xpose.msra.mxu0 %v917
  %930 = vmatprep.subr.mxu0 0.0
  %931 = vmatpush1.xpose.msra.mxu0 %v920
  %932 = vmatprep.subr.mxu0 0.0
  %933 = vmatpush1.xpose.msra.mxu0 %v923
  %934 = vmatprep.subr.mxu0 0.0
  %935 = vmatpush1.xpose.msra.mxu0 %v926
  %936 = vmatprep.subr.mxu0 0.0
  %937 = vmatpush1.xpose.msra.mxu0 0.0
  %938 = vmatprep.subr.mxu0 0.0
  %939 = vmatpush1.xpose.msra.mxu0 0.0
  %940 = vmatprep.subr.mxu0 0.0
  %941 = vmatpush1.xpose.msra.mxu0 0.0
  %942 = vmatprep.subr.mxu0 0.0
  %943 = vmatpush1.xpose.msra.mxu0 0.0
  %944 = vmatprep.subr.mxu0 0.0
  %945 = vmatpush1.xpose.msra.mxu0 0.0
  %946 = vmatprep.subr.mxu0 0.0
  %947 = vmatpush1.xpose.msra.mxu0 0.0
  %948 = vmatprep.subr.mxu0 0.0
  %949 = vmatpush1.xpose.msra.mxu0 0.0
  %950 = vmatprep.subr.mxu0 0.0
  %951 = vmatpush1.xpose.msra.mxu0 0.0
  %952 = vmatprep.subr.mxu0 0.0
  %953 = vmatpush1.xpose.msra.mxu0 0.0
  %954 = vmatprep.subr.mxu0 0.0
  %955 = vmatpush1.xpose.msra.mxu0 0.0
  %956 = vmatprep.subr.mxu0 0.0
  %957 = vmatpush1.xpose.msra.mxu0 0.0
  %958 = vmatprep.subr.mxu0 0.0
  %959 = vmatpush1.xpose.msra.mxu0 0.0
  %960 = vmatprep.subr.mxu0 0.0
  %961 = vmatpush1.xpose.msra.mxu0 0.0
  %962 = vmatprep.subr.mxu0 0.0
  %963 = vmatpush1.xpose.msra.mxu0 0.0
  %964 = vmatprep.subr.mxu0 0.0
  %965 = vmatpush1.xpose.msra.mxu0 0.0
  %966 = vmatprep.subr.mxu0 0.0
  %967 = vmatpush1.xpose.msra.mxu0 0.0
  %968 = vmatprep.subr.mxu0 0.0
  %969 = vmatpush1.xpose.msra.mxu0 0.0
  %970 = vmatprep.subr.mxu0 0.0
  %971 = vmatpush1.xpose.msra.mxu0 0.0
  %972 = vmatprep.subr.mxu0 0.0
  %973 = vmatpush1.xpose.msra.mxu0 0.0
  %974 = vmatprep.subr.mxu0 0.0
  %975 = vmatpush1.xpose.msra.mxu0 0.0
  %976 = vmatprep.subr.mxu0 0.0
  %977 = vmatpush1.xpose.msra.mxu0 0.0
  %978 = vmatprep.subr.mxu0 0.0
  %979 = vmatpush1.xpose.msra.mxu0 0.0
  %980 = vmatprep.subr.mxu0 0.0
  %981 = vmatpush1.xpose.msra.mxu0 0.0
  %982 = vmatprep.subr.mxu0 0.0
  %983 = vmatpush1.xpose.msra.mxu0 0.0
  %984 = vmatprep.subr.mxu0 0.0
  %985 = vmatpush1.xpose.msra.mxu0 0.0
  %986 = vmatprep.subr.mxu0 0.0
  %987 = vmatpush1.xpose.msra.mxu0 0.0
  %988 = vmatprep.subr.mxu0 0.0
  %989 = vmatpush1.xpose.msra.mxu0 0.0
  %990 = vmatprep.subr.mxu0 0.0
  %991 = vmatpush1.xpose.msra.mxu0 0.0
  %992 = vmatprep.mubr.f32.mxu0 0.0
  %993 = vmatmul.mubr.f32.gmra.mrb[0].mxu0 %v914
  %v994 = vpop.f32.mrb[0].mxu0
  %v995 = vadd.f32 0.0, %v994
  %v996 = vpop.f32.mrb[0].mxu0
  %997 = vdwg.mxu0
  %v998 = vrot.slane %v457, 4
  %1000 = vxpose.xlu0.b32.start [1/16] %v998, 128
  %1001 = vxpose.xlu0.b32.cont [2/16] 0.0, 128
  %1002 = vxpose.xlu0.b32.cont [3/16] 0.0, 128
  %1003 = vxpose.xlu0.b32.cont [4/16] 0.0, 128
  %1004 = vxpose.xlu0.b32.cont [5/16] 0.0, 128
  %1005 = vxpose.xlu0.b32.cont [6/16] 0.0, 128
  %1006 = vxpose.xlu0.b32.cont [7/16] 0.0, 128
  %1007 = vxpose.xlu0.b32.cont [8/16] 0.0, 128
  %1008 = vxpose.xlu0.b32.cont [9/16] 0.0, 128
  %1009 = vxpose.xlu0.b32.cont [10/16] 0.0, 128
  %1010 = vxpose.xlu0.b32.cont [11/16] 0.0, 128
  %1011 = vxpose.xlu0.b32.cont [12/16] 0.0, 128
  %1012 = vxpose.xlu0.b32.cont [13/16] 0.0, 128
  %1013 = vxpose.xlu0.b32.cont [14/16] 0.0, 128
  %1014 = vxpose.xlu0.b32.cont [15/16] 0.0, 128
  %1015 = vxpose.xlu0.b32.end [16/16] 0.0, 128
  %v1016 = vpop.trf.xlu0
  %v1017 = vpop.trf.xlu0
  %v1018 = vpop.trf.xlu0
  %v1019 = vpop.trf.xlu0
  %v1020 = vpop.trf.xlu0
  %v1021 = vpop.trf.xlu0
  %v1022 = vpop.trf.xlu0
  %v1023 = vpop.trf.xlu0
  %v1024 = vpop.trf.xlu0
  %v1025 = vpop.trf.xlu0
  %v1026 = vpop.trf.xlu0
  %v1027 = vpop.trf.xlu0
  %v1028 = vpop.trf.xlu0
  %v1029 = vpop.trf.xlu0
  %v1030 = vpop.trf.xlu0
  %v1031 = vpop.trf.xlu0
  %v1032 = vrot.slane %v462, 4
  %v1034 = vsel %vm502, %v1016, 0
  %v1037 = vsel %vm502, %v1017, 0
  %v1040 = vsel %vm502, %v1018, 0
  %v1043 = vsel %vm502, %v1019, 0
  %v1045 = vsel %vm515, %v1032, 0
  %1047 = vmatprep.subr.mxu0 0.0
  %1048 = vmatpush1.msra.mxu0 %v1045
  %1049 = vmatprep.subr.mxu0 0.0
  %1050 = vmatpush1.msra.mxu0 0.0
  %1051 = vmatprep.subr.mxu0 0.0
  %1052 = vmatpush1.msra.mxu0 0.0
  %1053 = vmatprep.subr.mxu0 0.0
  %1054 = vmatpush1.msra.mxu0 0.0
  %1055 = vmatprep.subr.mxu0 0.0
  %1056 = vmatpush1.msra.mxu0 0.0
  %1057 = vmatprep.subr.mxu0 0.0
  %1058 = vmatpush1.msra.mxu0 0.0
  %1059 = vmatprep.subr.mxu0 0.0
  %1060 = vmatpush1.msra.mxu0 0.0
  %1061 = vmatprep.subr.mxu0 0.0
  %1062 = vmatpush1.msra.mxu0 0.0
  %1063 = vmatprep.subr.mxu0 0.0
  %1064 = vmatpush1.msra.mxu0 0.0
  %1065 = vmatprep.subr.mxu0 0.0
  %1066 = vmatpush1.msra.mxu0 0.0
  %1067 = vmatprep.subr.mxu0 0.0
  %1068 = vmatpush1.msra.mxu0 0.0
  %1069 = vmatprep.subr.mxu0 0.0
  %1070 = vmatpush1.msra.mxu0 0.0
  %1071 = vmatprep.subr.mxu0 0.0
  %1072 = vmatpush1.msra.mxu0 0.0
  %1073 = vmatprep.subr.mxu0 0.0
  %1074 = vmatpush1.msra.mxu0 0.0
  %1075 = vmatprep.subr.mxu0 0.0
  %1076 = vmatpush1.msra.mxu0 0.0
  %1077 = vmatprep.subr.mxu0 0.0
  %1078 = vmatpush1.msra.mxu0 0.0
  %1079 = vmatprep.subr.mxu0 0.0
  %1080 = vmatpush1.msra.mxu0 0.0
  %1081 = vmatprep.subr.mxu0 0.0
  %1082 = vmatpush1.msra.mxu0 0.0
  %1083 = vmatprep.subr.mxu0 0.0
  %1084 = vmatpush1.msra.mxu0 0.0
  %1085 = vmatprep.subr.mxu0 0.0
  %1086 = vmatpush1.msra.mxu0 0.0
  %1087 = vmatprep.subr.mxu0 0.0
  %1088 = vmatpush1.msra.mxu0 0.0
  %1089 = vmatprep.subr.mxu0 0.0
  %1090 = vmatpush1.msra.mxu0 0.0
  %1091 = vmatprep.subr.mxu0 0.0
  %1092 = vmatpush1.msra.mxu0 0.0
  %1093 = vmatprep.subr.mxu0 0.0
  %1094 = vmatpush1.msra.mxu0 0.0
  %1095 = vmatprep.subr.mxu0 0.0
  %1096 = vmatpush1.msra.mxu0 0.0
  %1097 = vmatprep.subr.mxu0 0.0
  %1098 = vmatpush1.msra.mxu0 0.0
  %1099 = vmatprep.subr.mxu0 0.0
  %1100 = vmatpush1.msra.mxu0 0.0
  %1101 = vmatprep.subr.mxu0 0.0
  %1102 = vmatpush1.msra.mxu0 0.0
  %1103 = vmatprep.subr.mxu0 0.0
  %1104 = vmatpush1.msra.mxu0 0.0
  %1105 = vmatprep.subr.mxu0 0.0
  %1106 = vmatpush1.msra.mxu0 0.0
  %1107 = vmatprep.subr.mxu0 0.0
  %1108 = vmatpush1.msra.mxu0 0.0
  %1109 = vmatprep.subr.mxu0 0.0
  %1110 = vmatpush1.msra.mxu0 0.0
  %1111 = vmatprep.mubr.f32.mxu0 0.0
  %1112 = vmatmul.mubr.f32.gmra.mrb[0].mxu0 %v1034
  %v1113 = vpop.f32.mrb[0].mxu0
  %v1114 = vadd.f32 %v47, %v1113
  %v1115 = vpop.f32.mrb[0].mxu0
  %1116 = vmatprep.mubr.f32.mxu0 0.0
  %1117 = vmatmul.mubr.f32.gmra.mrb[0].mxu0 %v1037
  %v1118 = vpop.f32.mrb[0].mxu0
  %v1119 = vadd.f32 %v48, %v1118
  %v1120 = vpop.f32.mrb[0].mxu0
  %1121 = vmatprep.mubr.f32.mxu0 0.0
  %1122 = vmatmul.mubr.f32.gmra.mrb[0].mxu0 %v1040
  %v1123 = vpop.f32.mrb[0].mxu0
  %v1124 = vadd.f32 %v49, %v1123
  %v1125 = vpop.f32.mrb[0].mxu0
  %1126 = vmatprep.mubr.f32.mxu0 0.0
  %1127 = vmatmul.mubr.f32.gmra.mrb[0].mxu0 %v1043
  %v1128 = vpop.f32.mrb[0].mxu0
  %v1129 = vadd.f32 %v50, %v1128
  %v1130 = vpop.f32.mrb[0].mxu0
  %1131 = vdwg.mxu0
  %v1132 = vsel %vm604, %v1114, -inf
  %1133 = vmax.xlane.f32.xlu0 %v1132
  %v1134 = vpop.xlane.xlu0 %1133
  %v1135 = vsel %vm604, %v1119, -inf
  %1136 = vmax.xlane.f32.xlu0 %v1135
  %v1137 = vpop.xlane.xlu0 %1136
  %v1138 = vsel %vm604, %v1124, -inf
  %1139 = vmax.xlane.f32.xlu0 %v1138
  %v1140 = vpop.xlane.xlu0 %1139
  %v1141 = vsel %vm604, %v1129, -inf
  %1142 = vmax.xlane.f32.xlu0 %v1141
  %v1143 = vpop.xlane.xlu0 %1142
  %v1144 = vsub.f32 %v1114, %v1134
  %v1145 = vsub.f32 %v1119, %v1137
  %v1146 = vsub.f32 %v1124, %v1140
  %v1147 = vsub.f32 %v1129, %v1143
  %v1148 = vmul.f32 %v1144, 1.442695
  %v1149 = vpow.pop %v1148
  %v1150 = vmul.f32 %v1145, 1.442695
  %v1151 = vpow.pop %v1150
  %v1152 = vmul.f32 %v1146, 1.442695
  %v1153 = vpow.pop %v1152
  %v1154 = vmul.f32 %v1147, 1.442695
  %v1155 = vpow.pop %v1154
  %v1156 = vsel %vm604, %v1149, 0.0
  %1157 = vadd.xlane.f32.xlu0 %v1156
  %v1158 = vpop.xlane.xlu0 %1157
  %v1159 = vsel %vm604, %v1151, 0.0
  %1160 = vadd.xlane.f32.xlu0 %v1159
  %v1161 = vpop.xlane.xlu0 %1160
  %v1162 = vsel %vm604, %v1153, 0.0
  %1163 = vadd.xlane.f32.xlu0 %v1162
  %v1164 = vpop.xlane.xlu0 %1163
  %v1165 = vsel %vm604, %v1155, 0.0
  %1166 = vadd.xlane.f32.xlu0 %v1165
  %v1167 = vpop.xlane.xlu0 %1166
  %v1168 = vrcp.pop %v1158
  %v1169 = vrcp.pop %v1161
  %v1170 = vrcp.pop %v1164
  %v1171 = vrcp.pop %v1167
  %v1172 = vmul.f32 %v1149, %v1168
  %v1173 = vmul.f32 %v1151, %v1169
  %v1174 = vmul.f32 %v1153, %v1170
  %v1175 = vmul.f32 %v1155, %v1171
  %v1176 = vrot.slane %v467, 4
  %v1177 = vsel %vm604, %v1176, 0
  %v1180 = vsel %vm604, %v1172, 0
  %v1183 = vsel %vm604, %v1173, 0
  %v1186 = vsel %vm604, %v1174, 0
  %v1189 = vsel %vm604, %v1175, 0
  %1191 = vmatprep.subr.mxu0 0.0
  %1192 = vmatpush1.xpose.msra.mxu0 %v1180
  %1193 = vmatprep.subr.mxu0 0.0
  %1194 = vmatpush1.xpose.msra.mxu0 %v1183
  %1195 = vmatprep.subr.mxu0 0.0
  %1196 = vmatpush1.xpose.msra.mxu0 %v1186
  %1197 = vmatprep.subr.mxu0 0.0
  %1198 = vmatpush1.xpose.msra.mxu0 %v1189
  %1199 = vmatprep.subr.mxu0 0.0
  %1200 = vmatpush1.xpose.msra.mxu0 0.0
  %1201 = vmatprep.subr.mxu0 0.0
  %1202 = vmatpush1.xpose.msra.mxu0 0.0
  %1203 = vmatprep.subr.mxu0 0.0
  %1204 = vmatpush1.xpose.msra.mxu0 0.0
  %1205 = vmatprep.subr.mxu0 0.0
  %1206 = vmatpush1.xpose.msra.mxu0 0.0
  %1207 = vmatprep.subr.mxu0 0.0
  %1208 = vmatpush1.xpose.msra.mxu0 0.0
  %1209 = vmatprep.subr.mxu0 0.0
  %1210 = vmatpush1.xpose.msra.mxu0 0.0
  %1211 = vmatprep.subr.mxu0 0.0
  %1212 = vmatpush1.xpose.msra.mxu0 0.0
  %1213 = vmatprep.subr.mxu0 0.0
  %1214 = vmatpush1.xpose.msra.mxu0 0.0
  %1215 = vmatprep.subr.mxu0 0.0
  %1216 = vmatpush1.xpose.msra.mxu0 0.0
  %1217 = vmatprep.subr.mxu0 0.0
  %1218 = vmatpush1.xpose.msra.mxu0 0.0
  %1219 = vmatprep.subr.mxu0 0.0
  %1220 = vmatpush1.xpose.msra.mxu0 0.0
  %1221 = vmatprep.subr.mxu0 0.0
  %1222 = vmatpush1.xpose.msra.mxu0 0.0
  %1223 = vmatprep.subr.mxu0 0.0
  %1224 = vmatpush1.xpose.msra.mxu0 0.0
  %1225 = vmatprep.subr.mxu0 0.0
  %1226 = vmatpush1.xpose.msra.mxu0 0.0
  %1227 = vmatprep.subr.mxu0 0.0
  %1228 = vmatpush1.xpose.msra.mxu0 0.0
  %1229 = vmatprep.subr.mxu0 0.0
  %1230 = vmatpush1.xpose.msra.mxu0 0.0
  %1231 = vmatprep.subr.mxu0 0.0
  %1232 = vmatpush1.xpose.msra.mxu0 0.0
  %1233 = vmatprep.subr.mxu0 0.0
  %1234 = vmatpush1.xpose.msra.mxu0 0.0
  %1235 = vmatprep.subr.mxu0 0.0
  %1236 = vmatpush1.xpose.msra.mxu0 0.0
  %1237 = vmatprep.subr.mxu0 0.0
  %1238 = vmatpush1.xpose.msra.mxu0 0.0
  %1239 = vmatprep.subr.mxu0 0.0
  %1240 = vmatpush1.xpose.msra.mxu0 0.0
  %1241 = vmatprep.subr.mxu0 0.0
  %1242 = vmatpush1.xpose.msra.mxu0 0.0
  %1243 = vmatprep.subr.mxu0 0.0
  %1244 = vmatpush1.xpose.msra.mxu0 0.0
  %1245 = vmatprep.subr.mxu0 0.0
  %1246 = vmatpush1.xpose.msra.mxu0 0.0
  %1247 = vmatprep.subr.mxu0 0.0
  %1248 = vmatpush1.xpose.msra.mxu0 0.0
  %1249 = vmatprep.subr.mxu0 0.0
  %1250 = vmatpush1.xpose.msra.mxu0 0.0
  %1251 = vmatprep.subr.mxu0 0.0
  %1252 = vmatpush1.xpose.msra.mxu0 0.0
  %1253 = vmatprep.subr.mxu0 0.0
  %1254 = vmatpush1.xpose.msra.mxu0 0.0
  %1255 = vmatprep.mubr.f32.mxu0 0.0
  %1256 = vmatmul.mubr.f32.gmra.mrb[0].mxu0 %v1177
  %v1257 = vpop.f32.mrb[0].mxu0
  %v1258 = vadd.f32 0.0, %v1257
  %v1259 = vpop.f32.mrb[0].mxu0
  %1260 = vdwg.mxu0
  %v1261 = vrot.slane %v457, 6
  %1263 = vxpose.xlu0.b32.start [1/16] %v1261, 128
  %1264 = vxpose.xlu0.b32.cont [2/16] 0.0, 128
  %1265 = vxpose.xlu0.b32.cont [3/16] 0.0, 128
  %1266 = vxpose.xlu0.b32.cont [4/16] 0.0, 128
  %1267 = vxpose.xlu0.b32.cont [5/16] 0.0, 128
  %1268 = vxpose.xlu0.b32.cont [6/16] 0.0, 128
  %1269 = vxpose.xlu0.b32.cont [7/16] 0.0, 128
  %1270 = vxpose.xlu0.b32.cont [8/16] 0.0, 128
  %1271 = vxpose.xlu0.b32.cont [9/16] 0.0, 128
  %1272 = vxpose.xlu0.b32.cont [10/16] 0.0, 128
  %1273 = vxpose.xlu0.b32.cont [11/16] 0.0, 128
  %1274 = vxpose.xlu0.b32.cont [12/16] 0.0, 128
  %1275 = vxpose.xlu0.b32.cont [13/16] 0.0, 128
  %1276 = vxpose.xlu0.b32.cont [14/16] 0.0, 128
  %1277 = vxpose.xlu0.b32.cont [15/16] 0.0, 128
  %1278 = vxpose.xlu0.b32.end [16/16] 0.0, 128
  %v1279 = vpop.trf.xlu0
  %v1280 = vpop.trf.xlu0
  %v1281 = vpop.trf.xlu0
  %v1282 = vpop.trf.xlu0
  %v1283 = vpop.trf.xlu0
  %v1284 = vpop.trf.xlu0
  %v1285 = vpop.trf.xlu0
  %v1286 = vpop.trf.xlu0
  %v1287 = vpop.trf.xlu0
  %v1288 = vpop.trf.xlu0
  %v1289 = vpop.trf.xlu0
  %v1290 = vpop.trf.xlu0
  %v1291 = vpop.trf.xlu0
  %v1292 = vpop.trf.xlu0
  %v1293 = vpop.trf.xlu0
  %v1294 = vpop.trf.xlu0
  %v1295 = vrot.slane %v462, 6
  %v1297 = vsel %vm502, %v1279, 0
  %v1300 = vsel %vm502, %v1280, 0
  %v1303 = vsel %vm502, %v1281, 0
  %v1306 = vsel %vm502, %v1282, 0
  %v1308 = vsel %vm515, %v1295, 0
  %1310 = vmatprep.subr.mxu0 0.0
  %1311 = vmatpush1.msra.mxu0 %v1308
  %1312 = vmatprep.subr.mxu0 0.0
  %1313 = vmatpush1.msra.mxu0 0.0
  %1314 = vmatprep.subr.mxu0 0.0
  %1315 = vmatpush1.msra.mxu0 0.0
  %1316 = vmatprep.subr.mxu0 0.0
  %1317 = vmatpush1.msra.mxu0 0.0
  %1318 = vmatprep.subr.mxu0 0.0
  %1319 = vmatpush1.msra.mxu0 0.0
  %1320 = vmatprep.subr.mxu0 0.0
  %1321 = vmatpush1.msra.mxu0 0.0
  %1322 = vmatprep.subr.mxu0 0.0
  %1323 = vmatpush1.msra.mxu0 0.0
  %1324 = vmatprep.subr.mxu0 0.0
  %1325 = vmatpush1.msra.mxu0 0.0
  %1326 = vmatprep.subr.mxu0 0.0
  %1327 = vmatpush1.msra.mxu0 0.0
  %1328 = vmatprep.subr.mxu0 0.0
  %1329 = vmatpush1.msra.mxu0 0.0
  %1330 = vmatprep.subr.mxu0 0.0
  %1331 = vmatpush1.msra.mxu0 0.0
  %1332 = vmatprep.subr.mxu0 0.0
  %1333 = vmatpush1.msra.mxu0 0.0
  %1334 = vmatprep.subr.mxu0 0.0
  %1335 = vmatpush1.msra.mxu0 0.0
  %1336 = vmatprep.subr.mxu0 0.0
  %1337 = vmatpush1.msra.mxu0 0.0
  %1338 = vmatprep.subr.mxu0 0.0
  %1339 = vmatpush1.msra.mxu0 0.0
  %1340 = vmatprep.subr.mxu0 0.0
  %1341 = vmatpush1.msra.mxu0 0.0
  %1342 = vmatprep.subr.mxu0 0.0
  %1343 = vmatpush1.msra.mxu0 0.0
  %1344 = vmatprep.subr.mxu0 0.0
  %1345 = vmatpush1.msra.mxu0 0.0
  %1346 = vmatprep.subr.mxu0 0.0
  %1347 = vmatpush1.msra.mxu0 0.0
  %1348 = vmatprep.subr.mxu0 0.0
  %1349 = vmatpush1.msra.mxu0 0.0
  %1350 = vmatprep.subr.mxu0 0.0
  %1351 = vmatpush1.msra.mxu0 0.0
  %1352 = vmatprep.subr.mxu0 0.0
  %1353 = vmatpush1.msra.mxu0 0.0
  %1354 = vmatprep.subr.mxu0 0.0
  %1355 = vmatpush1.msra.mxu0 0.0
  %1356 = vmatprep.subr.mxu0 0.0
  %1357 = vmatpush1.msra.mxu0 0.0
  %1358 = vmatprep.subr.mxu0 0.0
  %1359 = vmatpush1.msra.mxu0 0.0
  %1360 = vmatprep.subr.mxu0 0.0
  %1361 = vmatpush1.msra.mxu0 0.0
  %1362 = vmatprep.subr.mxu0 0.0
  %1363 = vmatpush1.msra.mxu0 0.0
  %1364 = vmatprep.subr.mxu0 0.0
  %1365 = vmatpush1.msra.mxu0 0.0
  %1366 = vmatprep.subr.mxu0 0.0
  %1367 = vmatpush1.msra.mxu0 0.0
  %1368 = vmatprep.subr.mxu0 0.0
  %1369 = vmatpush1.msra.mxu0 0.0
  %1370 = vmatprep.subr.mxu0 0.0
  %1371 = vmatpush1.msra.mxu0 0.0
  %1372 = vmatprep.subr.mxu0 0.0
  %1373 = vmatpush1.msra.mxu0 0.0
  %1374 = vmatprep.mubr.f32.mxu0 0.0
  %1375 = vmatmul.mubr.f32.gmra.mrb[0].mxu0 %v1297
  %v1376 = vpop.f32.mrb[0].mxu0
  %v1377 = vadd.f32 %v47, %v1376
  %v1378 = vpop.f32.mrb[0].mxu0
  %1379 = vmatprep.mubr.f32.mxu0 0.0
  %1380 = vmatmul.mubr.f32.gmra.mrb[0].mxu0 %v1300
  %v1381 = vpop.f32.mrb[0].mxu0
  %v1382 = vadd.f32 %v48, %v1381
  %v1383 = vpop.f32.mrb[0].mxu0
  %1384 = vmatprep.mubr.f32.mxu0 0.0
  %1385 = vmatmul.mubr.f32.gmra.mrb[0].mxu0 %v1303
  %v1386 = vpop.f32.mrb[0].mxu0
  %v1387 = vadd.f32 %v49, %v1386
  %v1388 = vpop.f32.mrb[0].mxu0
  %1389 = vmatprep.mubr.f32.mxu0 0.0
  %1390 = vmatmul.mubr.f32.gmra.mrb[0].mxu0 %v1306
  %v1391 = vpop.f32.mrb[0].mxu0
  %v1392 = vadd.f32 %v50, %v1391
  %v1393 = vpop.f32.mrb[0].mxu0
  %1394 = vdwg.mxu0
  %v1395 = vsel %vm604, %v1377, -inf
  %1396 = vmax.xlane.f32.xlu0 %v1395
  %v1397 = vpop.xlane.xlu0 %1396
  %v1398 = vsel %vm604, %v1382, -inf
  %1399 = vmax.xlane.f32.xlu0 %v1398
  %v1400 = vpop.xlane.xlu0 %1399
  %v1401 = vsel %vm604, %v1387, -inf
  %1402 = vmax.xlane.f32.xlu0 %v1401
  %v1403 = vpop.xlane.xlu0 %1402
  %v1404 = vsel %vm604, %v1392, -inf
  %1405 = vmax.xlane.f32.xlu0 %v1404
  %v1406 = vpop.xlane.xlu0 %1405
  %v1407 = vsub.f32 %v1377, %v1397
  %v1408 = vsub.f32 %v1382, %v1400
  %v1409 = vsub.f32 %v1387, %v1403
  %v1410 = vsub.f32 %v1392, %v1406
  %v1411 = vmul.f32 %v1407, 1.442695
  %v1412 = vpow.pop %v1411
  %v1413 = vmul.f32 %v1408, 1.442695
  %v1414 = vpow.pop %v1413
  %v1415 = vmul.f32 %v1409, 1.442695
  %v1416 = vpow.pop %v1415
  %v1417 = vmul.f32 %v1410, 1.442695
  %v1418 = vpow.pop %v1417
  %v1419 = vsel %vm604, %v1412, 0.0
  %1420 = vadd.xlane.f32.xlu0 %v1419
  %v1421 = vpop.xlane.xlu0 %1420
  %v1422 = vsel %vm604, %v1414, 0.0
  %1423 = vadd.xlane.f32.xlu0 %v1422
  %v1424 = vpop.xlane.xlu0 %1423
  %v1425 = vsel %vm604, %v1416, 0.0
  %1426 = vadd.xlane.f32.xlu0 %v1425
  %v1427 = vpop.xlane.xlu0 %1426
  %v1428 = vsel %vm604, %v1418, 0.0
  %1429 = vadd.xlane.f32.xlu0 %v1428
  %v1430 = vpop.xlane.xlu0 %1429
  %v1431 = vrcp.pop %v1421
  %v1432 = vrcp.pop %v1424
  %v1433 = vrcp.pop %v1427
  %v1434 = vrcp.pop %v1430
  %v1435 = vmul.f32 %v1412, %v1431
  %v1436 = vmul.f32 %v1414, %v1432
  %v1437 = vmul.f32 %v1416, %v1433
  %v1438 = vmul.f32 %v1418, %v1434
  %v1439 = vrot.slane %v467, 6
  %v1440 = vsel %vm604, %v1439, 0
  %v1443 = vsel %vm604, %v1435, 0
  %v1446 = vsel %vm604, %v1436, 0
  %v1449 = vsel %vm604, %v1437, 0
  %v1452 = vsel %vm604, %v1438, 0
  %1454 = vmatprep.subr.mxu0 0.0
  %1455 = vmatpush1.xpose.msra.mxu0 %v1443
  %1456 = vmatprep.subr.mxu0 0.0
  %1457 = vmatpush1.xpose.msra.mxu0 %v1446
  %1458 = vmatprep.subr.mxu0 0.0
  %1459 = vmatpush1.xpose.msra.mxu0 %v1449
  %1460 = vmatprep.subr.mxu0 0.0
  %1461 = vmatpush1.xpose.msra.mxu0 %v1452
  %1462 = vmatprep.subr.mxu0 0.0
  %1463 = vmatpush1.xpose.msra.mxu0 0.0
  %1464 = vmatprep.subr.mxu0 0.0
  %1465 = vmatpush1.xpose.msra.mxu0 0.0
  %1466 = vmatprep.subr.mxu0 0.0
  %1467 = vmatpush1.xpose.msra.mxu0 0.0
  %1468 = vmatprep.subr.mxu0 0.0
  %1469 = vmatpush1.xpose.msra.mxu0 0.0
  %1470 = vmatprep.subr.mxu0 0.0
  %1471 = vmatpush1.xpose.msra.mxu0 0.0
  %1472 = vmatprep.subr.mxu0 0.0
  %1473 = vmatpush1.xpose.msra.mxu0 0.0
  %1474 = vmatprep.subr.mxu0 0.0
  %1475 = vmatpush1.xpose.msra.mxu0 0.0
  %1476 = vmatprep.subr.mxu0 0.0
  %1477 = vmatpush1.xpose.msra.mxu0 0.0
  %1478 = vmatprep.subr.mxu0 0.0
  %1479 = vmatpush1.xpose.msra.mxu0 0.0
  %1480 = vmatprep.subr.mxu0 0.0
  %1481 = vmatpush1.xpose.msra.mxu0 0.0
  %1482 = vmatprep.subr.mxu0 0.0
  %1483 = vmatpush1.xpose.msra.mxu0 0.0
  %1484 = vmatprep.subr.mxu0 0.0
  %1485 = vmatpush1.xpose.msra.mxu0 0.0
  %1486 = vmatprep.subr.mxu0 0.0
  %1487 = vmatpush1.xpose.msra.mxu0 0.0
  %1488 = vmatprep.subr.mxu0 0.0
  %1489 = vmatpush1.xpose.msra.mxu0 0.0
  %1490 = vmatprep.subr.mxu0 0.0
  %1491 = vmatpush1.xpose.msra.mxu0 0.0
  %1492 = vmatprep.subr.mxu0 0.0
  %1493 = vmatpush1.xpose.msra.mxu0 0.0
  %1494 = vmatprep.subr.mxu0 0.0
  %1495 = vmatpush1.xpose.msra.mxu0 0.0
  %1496 = vmatprep.subr.mxu0 0.0
  %1497 = vmatpush1.xpose.msra.mxu0 0.0
  %1498 = vmatprep.subr.mxu0 0.0
  %1499 = vmatpush1.xpose.msra.mxu0 0.0
  %1500 = vmatprep.subr.mxu0 0.0
  %1501 = vmatpush1.xpose.msra.mxu0 0.0
  %1502 = vmatprep.subr.mxu0 0.0
  %1503 = vmatpush1.xpose.msra.mxu0 0.0
  %1504 = vmatprep.subr.mxu0 0.0
  %1505 = vmatpush1.xpose.msra.mxu0 0.0
  %1506 = vmatprep.subr.mxu0 0.0
  %1507 = vmatpush1.xpose.msra.mxu0 0.0
  %1508 = vmatprep.subr.mxu0 0.0
  %1509 = vmatpush1.xpose.msra.mxu0 0.0
  %1510 = vmatprep.subr.mxu0 0.0
  %1511 = vmatpush1.xpose.msra.mxu0 0.0
  %1512 = vmatprep.subr.mxu0 0.0
  %1513 = vmatpush1.xpose.msra.mxu0 0.0
  %1514 = vmatprep.subr.mxu0 0.0
  %1515 = vmatpush1.xpose.msra.mxu0 0.0
  %1516 = vmatprep.subr.mxu0 0.0
  %1517 = vmatpush1.xpose.msra.mxu0 0.0
  %1518 = vmatprep.mubr.f32.mxu0 0.0
  %1519 = vmatmul.mubr.f32.gmra.mrb[0].mxu0 %v1440
  %v1520 = vpop.f32.mrb[0].mxu0
  %v1521 = vadd.f32 0.0, %v1520
  %v1522 = vpop.f32.mrb[0].mxu0
  %1523 = vdwg.mxu0
  %v1525 = vrot.slane %v995, 6
  %v1528 = vrot.slane %v1258, 4
  %v1531 = vrot.slane %v1521, 2
  %v1533 = vsel %vm515, %v731, %v1525
  %vm1534 = vcmask 1043456
  %v1535 = vsel %vm1534, %v1533, %v1528
  %vm1536 = vcmask 1045504
  %v1537 = vsel %vm1536, %v1535, %v1531
  %1539 = vset.pattern.permute.xlu0 0
  %1540 = vperm.xlu0 %1539, %v365
  %v1541 = vpop.permute.xlu0 %1540
  %v1544 = vsel %vm66, %v364, 0
  %1546 = vmatprep.subr.mxu0 0.0
  %1547 = vmatpush1.msra.mxu0 %v1537
  %1548 = vmatprep.subr.mxu0 0.0
  %1549 = vmatpush1.msra.mxu0 0.0
  %1550 = vmatprep.subr.mxu0 0.0
  %1551 = vmatpush1.msra.mxu0 0.0
  %1552 = vmatprep.subr.mxu0 0.0
  %1553 = vmatpush1.msra.mxu0 0.0
  %1554 = vmatprep.subr.mxu0 0.0
  %1555 = vmatpush1.msra.mxu0 0.0
  %1556 = vmatprep.subr.mxu0 0.0
  %1557 = vmatpush1.msra.mxu0 0.0
  %1558 = vmatprep.subr.mxu0 0.0
  %1559 = vmatpush1.msra.mxu0 0.0
  %1560 = vmatprep.subr.mxu0 0.0
  %1561 = vmatpush1.msra.mxu0 0.0
  %1562 = vmatprep.subr.mxu0 0.0
  %1563 = vmatpush1.msra.mxu0 0.0
  %1564 = vmatprep.subr.mxu0 0.0
  %1565 = vmatpush1.msra.mxu0 0.0
  %1566 = vmatprep.subr.mxu0 0.0
  %1567 = vmatpush1.msra.mxu0 0.0
  %1568 = vmatprep.subr.mxu0 0.0
  %1569 = vmatpush1.msra.mxu0 0.0
  %1570 = vmatprep.subr.mxu0 0.0
  %1571 = vmatpush1.msra.mxu0 0.0
  %1572 = vmatprep.subr.mxu0 0.0
  %1573 = vmatpush1.msra.mxu0 0.0
  %1574 = vmatprep.subr.mxu0 0.0
  %1575 = vmatpush1.msra.mxu0 0.0
  %1576 = vmatprep.subr.mxu0 0.0
  %1577 = vmatpush1.msra.mxu0 0.0
  %1578 = vmatprep.subr.mxu0 0.0
  %1579 = vmatpush1.msra.mxu0 0.0
  %1580 = vmatprep.subr.mxu0 0.0
  %1581 = vmatpush1.msra.mxu0 0.0
  %1582 = vmatprep.subr.mxu0 0.0
  %1583 = vmatpush1.msra.mxu0 0.0
  %1584 = vmatprep.subr.mxu0 0.0
  %1585 = vmatpush1.msra.mxu0 0.0
  %1586 = vmatprep.subr.mxu0 0.0
  %1587 = vmatpush1.msra.mxu0 0.0
  %1588 = vmatprep.subr.mxu0 0.0
  %1589 = vmatpush1.msra.mxu0 0.0
  %1590 = vmatprep.subr.mxu0 0.0
  %1591 = vmatpush1.msra.mxu0 0.0
  %1592 = vmatprep.subr.mxu0 0.0
  %1593 = vmatpush1.msra.mxu0 0.0
  %1594 = vmatprep.subr.mxu0 0.0
  %1595 = vmatpush1.msra.mxu0 0.0
  %1596 = vmatprep.subr.mxu0 0.0
  %1597 = vmatpush1.msra.mxu0 0.0
  %1598 = vmatprep.subr.mxu0 0.0
  %1599 = vmatpush1.msra.mxu0 0.0
  %1600 = vmatprep.subr.mxu0 0.0
  %1601 = vmatpush1.msra.mxu0 0.0
  %1602 = vmatprep.subr.mxu0 0.0
  %1603 = vmatpush1.msra.mxu0 0.0
  %1604 = vmatprep.subr.mxu0 0.0
  %1605 = vmatpush1.msra.mxu0 0.0
  %1606 = vmatprep.subr.mxu0 0.0
  %1607 = vmatpush1.msra.mxu0 0.0
  %1608 = vmatprep.subr.mxu0 0.0
  %1609 = vmatpush1.msra.mxu0 0.0
  %1610 = vmatprep.mubr.f32.mxu0 0.0
  %1611 = vmatmul.mubr.f32.gmra.mrb[0].mxu0 %v1544
  %v1612 = vpop.f32.mrb[0].mxu0
  %v1613 = vadd.f32 %v1541, %v1612
  %v1614 = vpop.f32.mrb[0].mxu0
  %1615 = vdwg.mxu0
  %v1617 = vsel %vm604, %v1613, 0
  %1619 = vmatprep.subr.mxu0 0.0
  %1620 = vmatpush1.msra.mxu0 %v51
  %1621 = vmatprep.subr.mxu0 0.0
  %1622 = vmatpush1.msra.mxu0 %v52
  %1623 = vmatprep.subr.mxu0 0.0
  %1624 = vmatpush1.msra.mxu0 %v53
  %1625 = vmatprep.subr.mxu0 0.0
  %1626 = vmatpush1.msra.mxu0 %v54
  %1627 = vmatprep.subr.mxu0 0.0
  %1628 = vmatpush1.msra.mxu0 0.0
  %1629 = vmatprep.subr.mxu0 0.0
  %1630 = vmatpush1.msra.mxu0 0.0
  %1631 = vmatprep.subr.mxu0 0.0
  %1632 = vmatpush1.msra.mxu0 0.0
  %1633 = vmatprep.subr.mxu0 0.0
  %1634 = vmatpush1.msra.mxu0 0.0
  %1635 = vmatprep.subr.mxu0 0.0
  %1636 = vmatpush1.msra.mxu0 0.0
  %1637 = vmatprep.subr.mxu0 0.0
  %1638 = vmatpush1.msra.mxu0 0.0
  %1639 = vmatprep.subr.mxu0 0.0
  %1640 = vmatpush1.msra.mxu0 0.0
  %1641 = vmatprep.subr.mxu0 0.0
  %1642 = vmatpush1.msra.mxu0 0.0
  %1643 = vmatprep.subr.mxu0 0.0
  %1644 = vmatpush1.msra.mxu0 0.0
  %1645 = vmatprep.subr.mxu0 0.0
  %1646 = vmatpush1.msra.mxu0 0.0
  %1647 = vmatprep.subr.mxu0 0.0
  %1648 = vmatpush1.msra.mxu0 0.0
  %1649 = vmatprep.subr.mxu0 0.0
  %1650 = vmatpush1.msra.mxu0 0.0
  %1651 = vmatprep.subr.mxu0 0.0
  %1652 = vmatpush1.msra.mxu0 0.0
  %1653 = vmatprep.subr.mxu0 0.0
  %1654 = vmatpush1.msra.mxu0 0.0
  %1655 = vmatprep.subr.mxu0 0.0
  %1656 = vmatpush1.msra.mxu0 0.0
  %1657 = vmatprep.subr.mxu0 0.0
  %1658 = vmatpush1.msra.mxu0 0.0
  %1659 = vmatprep.subr.mxu0 0.0
  %1660 = vmatpush1.msra.mxu0 0.0
  %1661 = vmatprep.subr.mxu0 0.0
  %1662 = vmatpush1.msra.mxu0 0.0
  %1663 = vmatprep.subr.mxu0 0.0
  %1664 = vmatpush1.msra.mxu0 0.0
  %1665 = vmatprep.subr.mxu0 0.0
  %1666 = vmatpush1.msra.mxu0 0.0
  %1667 = vmatprep.subr.mxu0 0.0
  %1668 = vmatpush1.msra.mxu0 0.0
  %1669 = vmatprep.subr.mxu0 0.0
  %1670 = vmatpush1.msra.mxu0 0.0
  %1671 = vmatprep.subr.mxu0 0.0
  %1672 = vmatpush1.msra.mxu0 0.0
  %1673 = vmatprep.subr.mxu0 0.0
  %1674 = vmatpush1.msra.mxu0 0.0
  %1675 = vmatprep.subr.mxu0 0.0
  %1676 = vmatpush1.msra.mxu0 0.0
  %1677 = vmatprep.subr.mxu0 0.0
  %1678 = vmatpush1.msra.mxu0 0.0
  %1679 = vmatprep.subr.mxu0 0.0
  %1680 = vmatpush1.msra.mxu0 0.0
  %1681 = vmatprep.subr.mxu0 0.0
  %1682 = vmatpush1.msra.mxu0 0.0
  %1683 = vmatprep.mubr.f32.mxu0 0.0
  %1684 = vmatmul.mubr.f32.gmra.mrb[0].mxu0 %v1617
  %v1685 = vpop.f32.mrb[0].mxu0
  %v1686 = vadd.f32 0.0, %v1685
  %v1687 = vpop.f32.mrb[0].mxu0
  %1688 = vdwg.mxu0
  %v1689 = vadd.f32 %v354, %v1686
  %1690 = vmatprep.subr.mxu0 0.0
  %1691 = vmatpush1.msra.mxu0 %v212
  %1692 = vmatprep.subr.mxu0 0.0
  %1693 = vmatpush1.msra.mxu0 %v213
  %1694 = vmatprep.subr.mxu0 0.0
  %1695 = vmatpush1.msra.mxu0 %v214
  %1696 = vmatprep.subr.mxu0 0.0
  %1697 = vmatpush1.msra.mxu0 %v215
  %1698 = vmatprep.subr.mxu0 0.0
  %1699 = vmatpush1.msra.mxu0 %v216
  %1700 = vmatprep.subr.mxu0 0.0
  %1701 = vmatpush1.msra.mxu0 %v217
  %1702 = vmatprep.subr.mxu0 0.0
  %1703 = vmatpush1.msra.mxu0 %v218
  %1704 = vmatprep.subr.mxu0 0.0
  %1705 = vmatpush1.msra.mxu0 %v219
  %1706 = vmatprep.subr.mxu0 0.0
  %1707 = vmatpush1.msra.mxu0 %v220
  %1708 = vmatprep.subr.mxu0 0.0
  %1709 = vmatpush1.msra.mxu0 %v221
  %1710 = vmatprep.subr.mxu0 0.0
  %1711 = vmatpush1.msra.mxu0 %v222
  %1712 = vmatprep.subr.mxu0 0.0
  %1713 = vmatpush1.msra.mxu0 %v223
  %1714 = vmatprep.subr.mxu0 0.0
  %1715 = vmatpush1.msra.mxu0 %v224
  %1716 = vmatprep.subr.mxu0 0.0
  %1717 = vmatpush1.msra.mxu0 %v225
  %1718 = vmatprep.subr.mxu0 0.0
  %1719 = vmatpush1.msra.mxu0 %v226
  %1720 = vmatprep.subr.mxu0 0.0
  %1721 = vmatpush1.msra.mxu0 %v227
  %1722 = vmatprep.subr.mxu0 0.0
  %1723 = vmatpush1.msra.mxu0 %v228
  %1724 = vmatprep.subr.mxu0 0.0
  %1725 = vmatpush1.msra.mxu0 %v229
  %1726 = vmatprep.subr.mxu0 0.0
  %1727 = vmatpush1.msra.mxu0 %v230
  %1728 = vmatprep.subr.mxu0 0.0
  %1729 = vmatpush1.msra.mxu0 %v231
  %1730 = vmatprep.subr.mxu0 0.0
  %1731 = vmatpush1.msra.mxu0 %v232
  %1732 = vmatprep.subr.mxu0 0.0
  %1733 = vmatpush1.msra.mxu0 %v233
  %1734 = vmatprep.subr.mxu0 0.0
  %1735 = vmatpush1.msra.mxu0 %v234
  %1736 = vmatprep.subr.mxu0 0.0
  %1737 = vmatpush1.msra.mxu0 %v235
  %1738 = vmatprep.subr.mxu0 0.0
  %1739 = vmatpush1.msra.mxu0 %v236
  %1740 = vmatprep.subr.mxu0 0.0
  %1741 = vmatpush1.msra.mxu0 %v237
  %1742 = vmatprep.subr.mxu0 0.0
  %1743 = vmatpush1.msra.mxu0 %v238
  %1744 = vmatprep.subr.mxu0 0.0
  %1745 = vmatpush1.msra.mxu0 %v239
  %1746 = vmatprep.subr.mxu0 0.0
  %1747 = vmatpush1.msra.mxu0 %v240
  %1748 = vmatprep.subr.mxu0 0.0
  %1749 = vmatpush1.msra.mxu0 %v241
  %1750 = vmatprep.subr.mxu0 0.0
  %1751 = vmatpush1.msra.mxu0 %v242
  %1752 = vmatprep.subr.mxu0 0.0
  %1753 = vmatpush1.msra.mxu0 %v243
  %1754 = vmatprep.mubr.f32.mxu0 %v139
  %1755 = vmatmul.mubr.f32.gmra.mrb[0].mxu0 %v137
  %v1756 = vpop.f32.mrb[0].mxu0
  %v1757 = vadd.f32 %v1689, %v1756
  %v1758 = vpop.f32.mrb[0].mxu0
  %1759 = vdwg.mxu0
  %1760 = vmatprep.subr.mxu0 0.0
  %1761 = vmatpush1.msra.mxu0 %v244
  %1762 = vmatprep.subr.mxu0 0.0
  %1763 = vmatpush1.msra.mxu0 %v245
  %1764 = vmatprep.subr.mxu0 0.0
  %1765 = vmatpush1.msra.mxu0 %v246
  %1766 = vmatprep.subr.mxu0 0.0
  %1767 = vmatpush1.msra.mxu0 %v247
  %1768 = vmatprep.subr.mxu0 0.0
  %1769 = vmatpush1.msra.mxu0 %v248
  %1770 = vmatprep.subr.mxu0 0.0
  %1771 = vmatpush1.msra.mxu0 %v249
  %1772 = vmatprep.subr.mxu0 0.0
  %1773 = vmatpush1.msra.mxu0 %v250
  %1774 = vmatprep.subr.mxu0 0.0
  %1775 = vmatpush1.msra.mxu0 %v251
  %1776 = vmatprep.subr.mxu0 0.0
  %1777 = vmatpush1.msra.mxu0 %v252
  %1778 = vmatprep.subr.mxu0 0.0
  %1779 = vmatpush1.msra.mxu0 %v253
  %1780 = vmatprep.subr.mxu0 0.0
  %1781 = vmatpush1.msra.mxu0 %v254
  %1782 = vmatprep.subr.mxu0 0.0
  %1783 = vmatpush1.msra.mxu0 %v255
  %1784 = vmatprep.subr.mxu0 0.0
  %1785 = vmatpush1.msra.mxu0 %v256
  %1786 = vmatprep.subr.mxu0 0.0
  %1787 = vmatpush1.msra.mxu0 %v257
  %1788 = vmatprep.subr.mxu0 0.0
  %1789 = vmatpush1.msra.mxu0 %v258
  %1790 = vmatprep.subr.mxu0 0.0
  %1791 = vmatpush1.msra.mxu0 %v259
  %1792 = vmatprep.subr.mxu0 0.0
  %1793 = vmatpush1.msra.mxu0 %v260
  %1794 = vmatprep.subr.mxu0 0.0
  %1795 = vmatpush1.msra.mxu0 %v261
  %1796 = vmatprep.subr.mxu0 0.0
  %1797 = vmatpush1.msra.mxu0 %v262
  %1798 = vmatprep.subr.mxu0 0.0
  %1799 = vmatpush1.msra.mxu0 %v263
  %1800 = vmatprep.subr.mxu0 0.0
  %1801 = vmatpush1.msra.mxu0 %v264
  %1802 = vmatprep.subr.mxu0 0.0
  %1803 = vmatpush1.msra.mxu0 %v265
  %1804 = vmatprep.subr.mxu0 0.0
  %1805 = vmatpush1.msra.mxu0 %v266
  %1806 = vmatprep.subr.mxu0 0.0
  %1807 = vmatpush1.msra.mxu0 %v267
  %1808 = vmatprep.subr.mxu0 0.0
  %1809 = vmatpush1.msra.mxu0 %v268
  %1810 = vmatprep.subr.mxu0 0.0
  %1811 = vmatpush1.msra.mxu0 %v269
  %1812 = vmatprep.subr.mxu0 0.0
  %1813 = vmatpush1.msra.mxu0 %v270
  %1814 = vmatprep.subr.mxu0 0.0
  %1815 = vmatpush1.msra.mxu0 %v271
  %1816 = vmatprep.subr.mxu0 0.0
  %1817 = vmatpush1.msra.mxu0 %v272
  %1818 = vmatprep.subr.mxu0 0.0
  %1819 = vmatpush1.msra.mxu0 %v273
  %1820 = vmatprep.subr.mxu0 0.0
  %1821 = vmatpush1.msra.mxu0 %v274
  %1822 = vmatprep.subr.mxu0 0.0
  %1823 = vmatpush1.msra.mxu0 %v275
  %1824 = vmatprep.mubr.f32.mxu0 %v210
  %1825 = vmatmul.mubr.f32.gmra.mrb[0].mxu0 %v208
  %v1826 = vpop.f32.mrb[0].mxu0
  %v1827 = vadd.f32 %v1757, %v1826
  %v1828 = vpop.f32.mrb[0].mxu0
  %1829 = vdwg.mxu0
  %v1830 = vld [vmem:[%s5] sm:$0xff]
  %v1831 = vld [vmem:[%s5 + $0x8] sm:$0xff]
  %v1832 = vld [vmem:[%s6] sm:$0xff]
  %v1833 = vld [vmem:[%s6 + $0x8] sm:$0xff]
  %1835 = vset.pattern.permute.xlu0 0
  %1836 = vperm.xlu0 %1835, %v1832
  %v1837 = vpop.permute.xlu0 %1836
  %1840 = vset.pattern.permute.xlu0 0
  %1841 = vperm.xlu0 %1840, %v1833
  %v1842 = vpop.permute.xlu0 %1841
  %vm1844 = vcmask 130048
  %v1846 = vsel %vm1844, %v1830, 0
  %v1849 = vsel %vm1844, %v1831, 0
  %1851 = vmatprep.subr.mxu0 0.0
  %1852 = vmatpush1.msra.mxu0 %v1827
  %1853 = vmatprep.subr.mxu0 0.0
  %1854 = vmatpush1.msra.mxu0 %v1689
  %1855 = vmatprep.subr.mxu0 0.0
  %1856 = vmatpush1.msra.mxu0 0.0
  %1857 = vmatprep.subr.mxu0 0.0
  %1858 = vmatpush1.msra.mxu0 0.0
  %1859 = vmatprep.subr.mxu0 0.0
  %1860 = vmatpush1.msra.mxu0 0.0
  %1861 = vmatprep.subr.mxu0 0.0
  %1862 = vmatpush1.msra.mxu0 0.0
  %1863 = vmatprep.subr.mxu0 0.0
  %1864 = vmatpush1.msra.mxu0 0.0
  %1865 = vmatprep.subr.mxu0 0.0
  %1866 = vmatpush1.msra.mxu0 0.0
  %1867 = vmatprep.subr.mxu0 0.0
  %1868 = vmatpush1.msra.mxu0 0.0
  %1869 = vmatprep.subr.mxu0 0.0
  %1870 = vmatpush1.msra.mxu0 0.0
  %1871 = vmatprep.subr.mxu0 0.0
  %1872 = vmatpush1.msra.mxu0 0.0
  %1873 = vmatprep.subr.mxu0 0.0
  %1874 = vmatpush1.msra.mxu0 0.0
  %1875 = vmatprep.subr.mxu0 0.0
  %1876 = vmatpush1.msra.mxu0 0.0
  %1877 = vmatprep.subr.mxu0 0.0
  %1878 = vmatpush1.msra.mxu0 0.0
  %1879 = vmatprep.subr.mxu0 0.0
  %1880 = vmatpush1.msra.mxu0 0.0
  %1881 = vmatprep.subr.mxu0 0.0
  %1882 = vmatpush1.msra.mxu0 0.0
  %1883 = vmatprep.subr.mxu0 0.0
  %1884 = vmatpush1.msra.mxu0 0.0
  %1885 = vmatprep.subr.mxu0 0.0
  %1886 = vmatpush1.msra.mxu0 0.0
  %1887 = vmatprep.subr.mxu0 0.0
  %1888 = vmatpush1.msra.mxu0 0.0
  %1889 = vmatprep.subr.mxu0 0.0
  %1890 = vmatpush1.msra.mxu0 0.0
  %1891 = vmatprep.subr.mxu0 0.0
  %1892 = vmatpush1.msra.mxu0 0.0
  %1893 = vmatprep.subr.mxu0 0.0
  %1894 = vmatpush1.msra.mxu0 0.0
  %1895 = vmatprep.subr.mxu0 0.0
  %1896 = vmatpush1.msra.mxu0 0.0
  %1897 = vmatprep.subr.mxu0 0.0
  %1898 = vmatpush1.msra.mxu0 0.0
  %1899 = vmatprep.subr.mxu0 0.0
  %1900 = vmatpush1.msra.mxu0 0.0
  %1901 = vmatprep.subr.mxu0 0.0
  %1902 = vmatpush1.msra.mxu0 0.0
  %1903 = vmatprep.subr.mxu0 0.0
  %1904 = vmatpush1.msra.mxu0 0.0
  %1905 = vmatprep.subr.mxu0 0.0
  %1906 = vmatpush1.msra.mxu0 0.0
  %1907 = vmatprep.subr.mxu0 0.0
  %1908 = vmatpush1.msra.mxu0 0.0
  %1909 = vmatprep.subr.mxu0 0.0
  %1910 = vmatpush1.msra.mxu0 0.0
  %1911 = vmatprep.subr.mxu0 0.0
  %1912 = vmatpush1.msra.mxu0 0.0
  %1913 = vmatprep.subr.mxu0 0.0
  %1914 = vmatpush1.msra.mxu0 0.0
  %1915 = vmatprep.mubr.f32.mxu0 0.0
  %1916 = vmatmul.mubr.f32.gmra.mrb[0].mxu0 %v1846
  %v1917 = vpop.f32.mrb[0].mxu0
  %v1918 = vadd.f32 %v1837, %v1917
  %v1919 = vpop.f32.mrb[0].mxu0
  %1920 = vmatprep.mubr.f32.mxu0 0.0
  %1921 = vmatmul.mubr.f32.gmra.mrb[0].mxu0 %v1849
  %v1922 = vpop.f32.mrb[0].mxu0
  %v1923 = vadd.f32 %v1842, %v1922
  %v1924 = vpop.f32.mrb[0].mxu0
  %1925 = vdwg.mxu0
  %s1926 = scalar_lea.vmem %s7, 24
  %v1927 = vld [vmem:[%s1926] sm:$0xff]
  %v1928 = vld [vmem:[%s1926 + $0x8] sm:$0xff]
  %v1929 = vld [vmem:[%s1926 + $0x10] sm:$0xff]
  %s1930 = scalar_lea.vmem %s8, 24
  %v1931 = vld [vmem:[%s1930] sm:$0xff]
  %v1932 = vld [vmem:[%s1930 + $0x8] sm:$0xff]
  %v1933 = vld [vmem:[%s1930 + $0x10] sm:$0xff]
  %s1934 = scalar_lea.vmem %s9, 8
  %v1935 = vld [vmem:[%s1934] sm:$0xff]
  %s1936 = scalar_lea.vmem %s10, 8
  %v1937 = vld [vmem:[%s1936] sm:$0xff]
  %1939 = vset.pattern.permute.xlu0 0
  %1940 = vperm.xlu0 %1939, %v1931
  %v1941 = vpop.permute.xlu0 %1940
  %1944 = vset.pattern.permute.xlu0 0
  %1945 = vperm.xlu0 %1944, %v1932
  %v1946 = vpop.permute.xlu0 %1945
  %1949 = vset.pattern.permute.xlu0 0
  %1950 = vperm.xlu0 %1949, %v1933
  %v1951 = vpop.permute.xlu0 %1950
  %v1954 = vsel %vm66, %v1927, 0
  %v1957 = vsel %vm66, %v1928, 0
  %v1960 = vsel %vm66, %v1929, 0
  %1962 = vmatprep.subr.mxu0 0.0
  %1963 = vmatpush1.msra.mxu0 %v1613
  %1964 = vmatprep.subr.mxu0 0.0
  %1965 = vmatpush1.msra.mxu0 0.0
  %1966 = vmatprep.subr.mxu0 0.0
  %1967 = vmatpush1.msra.mxu0 0.0
  %1968 = vmatprep.subr.mxu0 0.0
  %1969 = vmatpush1.msra.mxu0 0.0
  %1970 = vmatprep.subr.mxu0 0.0
  %1971 = vmatpush1.msra.mxu0 0.0
  %1972 = vmatprep.subr.mxu0 0.0
  %1973 = vmatpush1.msra.mxu0 0.0
  %1974 = vmatprep.subr.mxu0 0.0
  %1975 = vmatpush1.msra.mxu0 0.0
  %1976 = vmatprep.subr.mxu0 0.0
  %1977 = vmatpush1.msra.mxu0 0.0
  %1978 = vmatprep.subr.mxu0 0.0
  %1979 = vmatpush1.msra.mxu0 0.0
  %1980 = vmatprep.subr.mxu0 0.0
  %1981 = vmatpush1.msra.mxu0 0.0
  %1982 = vmatprep.subr.mxu0 0.0
  %1983 = vmatpush1.msra.mxu0 0.0
  %1984 = vmatprep.subr.mxu0 0.0
  %1985 = vmatpush1.msra.mxu0 0.0
  %1986 = vmatprep.subr.mxu0 0.0
  %1987 = vmatpush1.msra.mxu0 0.0
  %1988 = vmatprep.subr.mxu0 0.0
  %1989 = vmatpush1.msra.mxu0 0.0
  %1990 = vmatprep.subr.mxu0 0.0
  %1991 = vmatpush1.msra.mxu0 0.0
  %1992 = vmatprep.subr.mxu0 0.0
  %1993 = vmatpush1.msra.mxu0 0.0
  %1994 = vmatprep.subr.mxu0 0.0
  %1995 = vmatpush1.msra.mxu0 0.0
  %1996 = vmatprep.subr.mxu0 0.0
  %1997 = vmatpush1.msra.mxu0 0.0
  %1998 = vmatprep.subr.mxu0 0.0
  %1999 = vmatpush1.msra.mxu0 0.0
  %2000 = vmatprep.subr.mxu0 0.0
  %2001 = vmatpush1.msra.mxu0 0.0
  %2002 = vmatprep.subr.mxu0 0.0
  %2003 = vmatpush1.msra.mxu0 0.0
  %2004 = vmatprep.subr.mxu0 0.0
  %2005 = vmatpush1.msra.mxu0 0.0
  %2006 = vmatprep.subr.mxu0 0.0
  %2007 = vmatpush1.msra.mxu0 0.0
  %2008 = vmatprep.subr.mxu0 0.0
  %2009 = vmatpush1.msra.mxu0 0.0
  %2010 = vmatprep.subr.mxu0 0.0
  %2011 = vmatpush1.msra.mxu0 0.0
  %2012 = vmatprep.subr.mxu0 0.0
  %2013 = vmatpush1.msra.mxu0 0.0
  %2014 = vmatprep.subr.mxu0 0.0
  %2015 = vmatpush1.msra.mxu0 0.0
  %2016 = vmatprep.subr.mxu0 0.0
  %2017 = vmatpush1.msra.mxu0 0.0
  %2018 = vmatprep.subr.mxu0 0.0
  %2019 = vmatpush1.msra.mxu0 0.0
  %2020 = vmatprep.subr.mxu0 0.0
  %2021 = vmatpush1.msra.mxu0 0.0
  %2022 = vmatprep.subr.mxu0 0.0
  %2023 = vmatpush1.msra.mxu0 0.0
  %2024 = vmatprep.subr.mxu0 0.0
  %2025 = vmatpush1.msra.mxu0 0.0
  %2026 = vmatprep.mubr.f32.mxu0 0.0
  %2027 = vmatmul.mubr.f32.gmra.mrb[0].mxu0 %v1954
  %v2028 = vpop.f32.mrb[0].mxu0
  %v2029 = vadd.f32 %v1941, %v2028
  %v2030 = vpop.f32.mrb[0].mxu0
  %2031 = vmatprep.mubr.f32.mxu0 0.0
  %2032 = vmatmul.mubr.f32.gmra.mrb[0].mxu0 %v1957
  %v2033 = vpop.f32.mrb[0].mxu0
  %v2034 = vadd.f32 %v1946, %v2033
  %v2035 = vpop.f32.mrb[0].mxu0
  %2036 = vmatprep.mubr.f32.mxu0 0.0
  %2037 = vmatmul.mubr.f32.gmra.mrb[0].mxu0 %v1960
  %v2038 = vpop.f32.mrb[0].mxu0
  %v2039 = vadd.f32 %v1951, %v2038
  %v2040 = vpop.f32.mrb[0].mxu0
  %2041 = vdwg.mxu0
  %2042 = vxpose.xlu0.b32.start [1/16] %v2029, 128
  %2043 = vxpose.xlu0.b32.cont [2/16] 0.0, 128
  %2044 = vxpose.xlu0.b32.cont [3/16] 0.0, 128
  %2045 = vxpose.xlu0.b32.cont [4/16] 0.0, 128
  %2046 = vxpose.xlu0.b32.cont [5/16] 0.0, 128
  %2047 = vxpose.xlu0.b32.cont [6/16] 0.0, 128
  %2048 = vxpose.xlu0.b32.cont [7/16] 0.0, 128
  %2049 = vxpose.xlu0.b32.cont [8/16] 0.0, 128
  %2050 = vxpose.xlu0.b32.cont [9/16] 0.0, 128
  %2051 = vxpose.xlu0.b32.cont [10/16] 0.0, 128
  %2052 = vxpose.xlu0.b32.cont [11/16] 0.0, 128
  %2053 = vxpose.xlu0.b32.cont [12/16] 0.0, 128
  %2054 = vxpose.xlu0.b32.cont [13/16] 0.0, 128
  %2055 = vxpose.xlu0.b32.cont [14/16] 0.0, 128
  %2056 = vxpose.xlu0.b32.cont [15/16] 0.0, 128
  %2057 = vxpose.xlu0.b32.end [16/16] 0.0, 128
  %v2058 = vpop.trf.xlu0
  %v2059 = vpop.trf.xlu0
  %v2060 = vpop.trf.xlu0
  %v2061 = vpop.trf.xlu0
  %v2062 = vpop.trf.xlu0
  %v2063 = vpop.trf.xlu0
  %v2064 = vpop.trf.xlu0
  %v2065 = vpop.trf.xlu0
  %v2066 = vpop.trf.xlu0
  %v2067 = vpop.trf.xlu0
  %v2068 = vpop.trf.xlu0
  %v2069 = vpop.trf.xlu0
  %v2070 = vpop.trf.xlu0
  %v2071 = vpop.trf.xlu0
  %v2072 = vpop.trf.xlu0
  %v2073 = vpop.trf.xlu0
  %v2075 = vsel %vm502, %v2058, 0
  %v2078 = vsel %vm502, %v2059, 0
  %v2081 = vsel %vm502, %v2060, 0
  %v2084 = vsel %vm502, %v2061, 0
  %v2087 = vsel %vm515, %v2034, 0
  %2089 = vmatprep.subr.mxu0 0.0
  %2090 = vmatpush1.msra.mxu0 %v2087
  %2091 = vmatprep.subr.mxu0 0.0
  %2092 = vmatpush1.msra.mxu0 0.0
  %2093 = vmatprep.subr.mxu0 0.0
  %2094 = vmatpush1.msra.mxu0 0.0
  %2095 = vmatprep.subr.mxu0 0.0
  %2096 = vmatpush1.msra.mxu0 0.0
  %2097 = vmatprep.subr.mxu0 0.0
  %2098 = vmatpush1.msra.mxu0 0.0
  %2099 = vmatprep.subr.mxu0 0.0
  %2100 = vmatpush1.msra.mxu0 0.0
  %2101 = vmatprep.subr.mxu0 0.0
  %2102 = vmatpush1.msra.mxu0 0.0
  %2103 = vmatprep.subr.mxu0 0.0
  %2104 = vmatpush1.msra.mxu0 0.0
  %2105 = vmatprep.subr.mxu0 0.0
  %2106 = vmatpush1.msra.mxu0 0.0
  %2107 = vmatprep.subr.mxu0 0.0
  %2108 = vmatpush1.msra.mxu0 0.0
  %2109 = vmatprep.subr.mxu0 0.0
  %2110 = vmatpush1.msra.mxu0 0.0
  %2111 = vmatprep.subr.mxu0 0.0
  %2112 = vmatpush1.msra.mxu0 0.0
  %2113 = vmatprep.subr.mxu0 0.0
  %2114 = vmatpush1.msra.mxu0 0.0
  %2115 = vmatprep.subr.mxu0 0.0
  %2116 = vmatpush1.msra.mxu0 0.0
  %2117 = vmatprep.subr.mxu0 0.0
  %2118 = vmatpush1.msra.mxu0 0.0
  %2119 = vmatprep.subr.mxu0 0.0
  %2120 = vmatpush1.msra.mxu0 0.0
  %2121 = vmatprep.subr.mxu0 0.0
  %2122 = vmatpush1.msra.mxu0 0.0
  %2123 = vmatprep.subr.mxu0 0.0
  %2124 = vmatpush1.msra.mxu0 0.0
  %2125 = vmatprep.subr.mxu0 0.0
  %2126 = vmatpush1.msra.mxu0 0.0
  %2127 = vmatprep.subr.mxu0 0.0
  %2128 = vmatpush1.msra.mxu0 0.0
  %2129 = vmatprep.subr.mxu0 0.0
  %2130 = vmatpush1.msra.mxu0 0.0
  %2131 = vmatprep.subr.mxu0 0.0
  %2132 = vmatpush1.msra.mxu0 0.0
  %2133 = vmatprep.subr.mxu0 0.0
  %2134 = vmatpush1.msra.mxu0 0.0
  %2135 = vmatprep.subr.mxu0 0.0
  %2136 = vmatpush1.msra.mxu0 0.0
  %2137 = vmatprep.subr.mxu0 0.0
  %2138 = vmatpush1.msra.mxu0 0.0
  %2139 = vmatprep.subr.mxu0 0.0
  %2140 = vmatpush1.msra.mxu0 0.0
  %2141 = vmatprep.subr.mxu0 0.0
  %2142 = vmatpush1.msra.mxu0 0.0
  %2143 = vmatprep.subr.mxu0 0.0
  %2144 = vmatpush1.msra.mxu0 0.0
  %2145 = vmatprep.subr.mxu0 0.0
  %2146 = vmatpush1.msra.mxu0 0.0
  %2147 = vmatprep.subr.mxu0 0.0
  %2148 = vmatpush1.msra.mxu0 0.0
  %2149 = vmatprep.subr.mxu0 0.0
  %2150 = vmatpush1.msra.mxu0 0.0
  %2151 = vmatprep.subr.mxu0 0.0
  %2152 = vmatpush1.msra.mxu0 0.0
  %2153 = vmatprep.mubr.f32.mxu0 0.0
  %2154 = vmatmul.mubr.f32.gmra.mrb[0].mxu0 %v2075
  %v2155 = vpop.f32.mrb[0].mxu0
  %v2156 = vadd.f32 %v47, %v2155
  %v2157 = vpop.f32.mrb[0].mxu0
  %2158 = vmatprep.mubr.f32.mxu0 0.0
  %2159 = vmatmul.mubr.f32.gmra.mrb[0].mxu0 %v2078
  %v2160 = vpop.f32.mrb[0].mxu0
  %v2161 = vadd.f32 %v48, %v2160
  %v2162 = vpop.f32.mrb[0].mxu0
  %2163 = vmatprep.mubr.f32.mxu0 0.0
  %2164 = vmatmul.mubr.f32.gmra.mrb[0].mxu0 %v2081
  %v2165 = vpop.f32.mrb[0].mxu0
  %v2166 = vadd.f32 %v49, %v2165
  %v2167 = vpop.f32.mrb[0].mxu0
  %2168 = vmatprep.mubr.f32.mxu0 0.0
  %2169 = vmatmul.mubr.f32.gmra.mrb[0].mxu0 %v2084
  %v2170 = vpop.f32.mrb[0].mxu0
  %v2171 = vadd.f32 %v50, %v2170
  %v2172 = vpop.f32.mrb[0].mxu0
  %2173 = vdwg.mxu0
  %v2174 = vsel %vm604, %v2156, -inf
  %2175 = vmax.xlane.f32.xlu0 %v2174
  %v2176 = vpop.xlane.xlu0 %2175
  %v2177 = vsel %vm604, %v2161, -inf
  %2178 = vmax.xlane.f32.xlu0 %v2177
  %v2179 = vpop.xlane.xlu0 %2178
  %v2180 = vsel %vm604, %v2166, -inf
  %2181 = vmax.xlane.f32.xlu0 %v2180
  %v2182 = vpop.xlane.xlu0 %2181
  %v2183 = vsel %vm604, %v2171, -inf
  %2184 = vmax.xlane.f32.xlu0 %v2183
  %v2185 = vpop.xlane.xlu0 %2184
  %v2186 = vsub.f32 %v2156, %v2176
  %v2187 = vsub.f32 %v2161, %v2179
  %v2188 = vsub.f32 %v2166, %v2182
  %v2189 = vsub.f32 %v2171, %v2185
  %v2190 = vmul.f32 %v2186, 1.442695
  %v2191 = vpow.pop %v2190
  %v2192 = vmul.f32 %v2187, 1.442695
  %v2193 = vpow.pop %v2192
  %v2194 = vmul.f32 %v2188, 1.442695
  %v2195 = vpow.pop %v2194
  %v2196 = vmul.f32 %v2189, 1.442695
  %v2197 = vpow.pop %v2196
  %v2198 = vsel %vm604, %v2191, 0.0
  %2199 = vadd.xlane.f32.xlu0 %v2198
  %v2200 = vpop.xlane.xlu0 %2199
  %v2201 = vsel %vm604, %v2193, 0.0
  %2202 = vadd.xlane.f32.xlu0 %v2201
  %v2203 = vpop.xlane.xlu0 %2202
  %v2204 = vsel %vm604, %v2195, 0.0
  %2205 = vadd.xlane.f32.xlu0 %v2204
  %v2206 = vpop.xlane.xlu0 %2205
  %v2207 = vsel %vm604, %v2197, 0.0
  %2208 = vadd.xlane.f32.xlu0 %v2207
  %v2209 = vpop.xlane.xlu0 %2208
  %v2210 = vrcp.pop %v2200
  %v2211 = vrcp.pop %v2203
  %v2212 = vrcp.pop %v2206
  %v2213 = vrcp.pop %v2209
  %v2214 = vmul.f32 %v2191, %v2210
  %v2215 = vmul.f32 %v2193, %v2211
  %v2216 = vmul.f32 %v2195, %v2212
  %v2217 = vmul.f32 %v2197, %v2213
  %v2219 = vsel %vm604, %v2039, 0
  %v2222 = vsel %vm604, %v2214, 0
  %v2225 = vsel %vm604, %v2215, 0
  %v2228 = vsel %vm604, %v2216, 0
  %v2231 = vsel %vm604, %v2217, 0
  %2233 = vmatprep.subr.mxu0 0.0
  %2234 = vmatpush1.xpose.msra.mxu0 %v2222
  %2235 = vmatprep.subr.mxu0 0.0
  %2236 = vmatpush1.xpose.msra.mxu0 %v2225
  %2237 = vmatprep.subr.mxu0 0.0
  %2238 = vmatpush1.xpose.msra.mxu0 %v2228
  %2239 = vmatprep.subr.mxu0 0.0
  %2240 = vmatpush1.xpose.msra.mxu0 %v2231
  %2241 = vmatprep.subr.mxu0 0.0
  %2242 = vmatpush1.xpose.msra.mxu0 0.0
  %2243 = vmatprep.subr.mxu0 0.0
  %2244 = vmatpush1.xpose.msra.mxu0 0.0
  %2245 = vmatprep.subr.mxu0 0.0
  %2246 = vmatpush1.xpose.msra.mxu0 0.0
  %2247 = vmatprep.subr.mxu0 0.0
  %2248 = vmatpush1.xpose.msra.mxu0 0.0
  %2249 = vmatprep.subr.mxu0 0.0
  %2250 = vmatpush1.xpose.msra.mxu0 0.0
  %2251 = vmatprep.subr.mxu0 0.0
  %2252 = vmatpush1.xpose.msra.mxu0 0.0
  %2253 = vmatprep.subr.mxu0 0.0
  %2254 = vmatpush1.xpose.msra.mxu0 0.0
  %2255 = vmatprep.subr.mxu0 0.0
  %2256 = vmatpush1.xpose.msra.mxu0 0.0
  %2257 = vmatprep.subr.mxu0 0.0
  %2258 = vmatpush1.xpose.msra.mxu0 0.0
  %2259 = vmatprep.subr.mxu0 0.0
  %2260 = vmatpush1.xpose.msra.mxu0 0.0
  %2261 = vmatprep.subr.mxu0 0.0
  %2262 = vmatpush1.xpose.msra.mxu0 0.0
  %2263 = vmatprep.subr.mxu0 0.0
  %2264 = vmatpush1.xpose.msra.mxu0 0.0
  %2265 = vmatprep.subr.mxu0 0.0
  %2266 = vmatpush1.xpose.msra.mxu0 0.0
  %2267 = vmatprep.subr.mxu0 0.0
  %2268 = vmatpush1.xpose.msra.mxu0 0.0
  %2269 = vmatprep.subr.mxu0 0.0
  %2270 = vmatpush1.xpose.msra.mxu0 0.0
  %2271 = vmatprep.subr.mxu0 0.0
  %2272 = vmatpush1.xpose.msra.mxu0 0.0
  %2273 = vmatprep.subr.mxu0 0.0
  %2274 = vmatpush1.xpose.msra.mxu0 0.0
  %2275 = vmatprep.subr.mxu0 0.0
  %2276 = vmatpush1.xpose.msra.mxu0 0.0
  %2277 = vmatprep.subr.mxu0 0.0
  %2278 = vmatpush1.xpose.msra.mxu0 0.0
  %2279 = vmatprep.subr.mxu0 0.0
  %2280 = vmatpush1.xpose.msra.mxu0 0.0
  %2281 = vmatprep.subr.mxu0 0.0
  %2282 = vmatpush1.xpose.msra.mxu0 0.0
  %2283 = vmatprep.subr.mxu0 0.0
  %2284 = vmatpush1.xpose.msra.mxu0 0.0
  %2285 = vmatprep.subr.mxu0 0.0
  %2286 = vmatpush1.xpose.msra.mxu0 0.0
  %2287 = vmatprep.subr.mxu0 0.0
  %2288 = vmatpush1.xpose.msra.mxu0 0.0
  %2289 = vmatprep.subr.mxu0 0.0
  %2290 = vmatpush1.xpose.msra.mxu0 0.0
  %2291 = vmatprep.subr.mxu0 0.0
  %2292 = vmatpush1.xpose.msra.mxu0 0.0
  %2293 = vmatprep.subr.mxu0 0.0
  %2294 = vmatpush1.xpose.msra.mxu0 0.0
  %2295 = vmatprep.subr.mxu0 0.0
  %2296 = vmatpush1.xpose.msra.mxu0 0.0
  %2297 = vmatprep.mubr.f32.mxu0 0.0
  %2298 = vmatmul.mubr.f32.gmra.mrb[0].mxu0 %v2219
  %v2299 = vpop.f32.mrb[0].mxu0
  %v2300 = vadd.f32 0.0, %v2299
  %v2301 = vpop.f32.mrb[0].mxu0
  %2302 = vdwg.mxu0
  %v2304 = vrot.slane %v2029, 2
  %2306 = vxpose.xlu0.b32.start [1/16] %v2304, 128
  %2307 = vxpose.xlu0.b32.cont [2/16] 0.0, 128
  %2308 = vxpose.xlu0.b32.cont [3/16] 0.0, 128
  %2309 = vxpose.xlu0.b32.cont [4/16] 0.0, 128
  %2310 = vxpose.xlu0.b32.cont [5/16] 0.0, 128
  %2311 = vxpose.xlu0.b32.cont [6/16] 0.0, 128
  %2312 = vxpose.xlu0.b32.cont [7/16] 0.0, 128
  %2313 = vxpose.xlu0.b32.cont [8/16] 0.0, 128
  %2314 = vxpose.xlu0.b32.cont [9/16] 0.0, 128
  %2315 = vxpose.xlu0.b32.cont [10/16] 0.0, 128
  %2316 = vxpose.xlu0.b32.cont [11/16] 0.0, 128
  %2317 = vxpose.xlu0.b32.cont [12/16] 0.0, 128
  %2318 = vxpose.xlu0.b32.cont [13/16] 0.0, 128
  %2319 = vxpose.xlu0.b32.cont [14/16] 0.0, 128
  %2320 = vxpose.xlu0.b32.cont [15/16] 0.0, 128
  %2321 = vxpose.xlu0.b32.end [16/16] 0.0, 128
  %v2322 = vpop.trf.xlu0
  %v2323 = vpop.trf.xlu0
  %v2324 = vpop.trf.xlu0
  %v2325 = vpop.trf.xlu0
  %v2326 = vpop.trf.xlu0
  %v2327 = vpop.trf.xlu0
  %v2328 = vpop.trf.xlu0
  %v2329 = vpop.trf.xlu0
  %v2330 = vpop.trf.xlu0
  %v2331 = vpop.trf.xlu0
  %v2332 = vpop.trf.xlu0
  %v2333 = vpop.trf.xlu0
  %v2334 = vpop.trf.xlu0
  %v2335 = vpop.trf.xlu0
  %v2336 = vpop.trf.xlu0
  %v2337 = vpop.trf.xlu0
  %v2338 = vrot.slane %v2034, 2
  %v2340 = vsel %vm502, %v2322, 0
  %v2343 = vsel %vm502, %v2323, 0
  %v2346 = vsel %vm502, %v2324, 0
  %v2349 = vsel %vm502, %v2325, 0
  %v2351 = vsel %vm515, %v2338, 0
  %2353 = vmatprep.subr.mxu0 0.0
  %2354 = vmatpush1.msra.mxu0 %v2351
  %2355 = vmatprep.subr.mxu0 0.0
  %2356 = vmatpush1.msra.mxu0 0.0
  %2357 = vmatprep.subr.mxu0 0.0
  %2358 = vmatpush1.msra.mxu0 0.0
  %2359 = vmatprep.subr.mxu0 0.0
  %2360 = vmatpush1.msra.mxu0 0.0
  %2361 = vmatprep.subr.mxu0 0.0
  %2362 = vmatpush1.msra.mxu0 0.0
  %2363 = vmatprep.subr.mxu0 0.0
  %2364 = vmatpush1.msra.mxu0 0.0
  %2365 = vmatprep.subr.mxu0 0.0
  %2366 = vmatpush1.msra.mxu0 0.0
  %2367 = vmatprep.subr.mxu0 0.0
  %2368 = vmatpush1.msra.mxu0 0.0
  %2369 = vmatprep.subr.mxu0 0.0
  %2370 = vmatpush1.msra.mxu0 0.0
  %2371 = vmatprep.subr.mxu0 0.0
  %2372 = vmatpush1.msra.mxu0 0.0
  %2373 = vmatprep.subr.mxu0 0.0
  %2374 = vmatpush1.msra.mxu0 0.0
  %2375 = vmatprep.subr.mxu0 0.0
  %2376 = vmatpush1.msra.mxu0 0.0
  %2377 = vmatprep.subr.mxu0 0.0
  %2378 = vmatpush1.msra.mxu0 0.0
  %2379 = vmatprep.subr.mxu0 0.0
  %2380 = vmatpush1.msra.mxu0 0.0
  %2381 = vmatprep.subr.mxu0 0.0
  %2382 = vmatpush1.msra.mxu0 0.0
  %2383 = vmatprep.subr.mxu0 0.0
  %2384 = vmatpush1.msra.mxu0 0.0
  %2385 = vmatprep.subr.mxu0 0.0
  %2386 = vmatpush1.msra.mxu0 0.0
  %2387 = vmatprep.subr.mxu0 0.0
  %2388 = vmatpush1.msra.mxu0 0.0
  %2389 = vmatprep.subr.mxu0 0.0
  %2390 = vmatpush1.msra.mxu0 0.0
  %2391 = vmatprep.subr.mxu0 0.0
  %2392 = vmatpush1.msra.mxu0 0.0
  %2393 = vmatprep.subr.mxu0 0.0
  %2394 = vmatpush1.msra.mxu0 0.0
  %2395 = vmatprep.subr.mxu0 0.0
  %2396 = vmatpush1.msra.mxu0 0.0
  %2397 = vmatprep.subr.mxu0 0.0
  %2398 = vmatpush1.msra.mxu0 0.0
  %2399 = vmatprep.subr.mxu0 0.0
  %2400 = vmatpush1.msra.mxu0 0.0
  %2401 = vmatprep.subr.mxu0 0.0
  %2402 = vmatpush1.msra.mxu0 0.0
  %2403 = vmatprep.subr.mxu0 0.0
  %2404 = vmatpush1.msra.mxu0 0.0
  %2405 = vmatprep.subr.mxu0 0.0
  %2406 = vmatpush1.msra.mxu0 0.0
  %2407 = vmatprep.subr.mxu0 0.0
  %2408 = vmatpush1.msra.mxu0 0.0
  %2409 = vmatprep.subr.mxu0 0.0
  %2410 = vmatpush1.msra.mxu0 0.0
  %2411 = vmatprep.subr.mxu0 0.0
  %2412 = vmatpush1.msra.mxu0 0.0
  %2413 = vmatprep.subr.mxu0 0.0
  %2414 = vmatpush1.msra.mxu0 0.0
  %2415 = vmatprep.subr.mxu0 0.0
  %2416 = vmatpush1.msra.mxu0 0.0
  %2417 = vmatprep.mubr.f32.mxu0 0.0
  %2418 = vmatmul.mubr.f32.gmra.mrb[0].mxu0 %v2340
  %v2419 = vpop.f32.mrb[0].mxu0
  %v2420 = vadd.f32 %v47, %v2419
  %v2421 = vpop.f32.mrb[0].mxu0
  %2422 = vmatprep.mubr.f32.mxu0 0.0
  %2423 = vmatmul.mubr.f32.gmra.mrb[0].mxu0 %v2343
  %v2424 = vpop.f32.mrb[0].mxu0
  %v2425 = vadd.f32 %v48, %v2424
  %v2426 = vpop.f32.mrb[0].mxu0
  %2427 = vmatprep.mubr.f32.mxu0 0.0
  %2428 = vmatmul.mubr.f32.gmra.mrb[0].mxu0 %v2346
  %v2429 = vpop.f32.mrb[0].mxu0
  %v2430 = vadd.f32 %v49, %v2429
  %v2431 = vpop.f32.mrb[0].mxu0
  %2432 = vmatprep.mubr.f32.mxu0 0.0
  %2433 = vmatmul.mubr.f32.gmra.mrb[0].mxu0 %v2349
  %v2434 = vpop.f32.mrb[0].mxu0
  %v2435 = vadd.f32 %v50, %v2434
  %v2436 = vpop.f32.mrb[0].mxu0
  %2437 = vdwg.mxu0
  %v2438 = vsel %vm604, %v2420, -inf
  %2439 = vmax.xlane.f32.xlu0 %v2438
  %v2440 = vpop.xlane.xlu0 %2439
  %v2441 = vsel %vm604, %v2425, -inf
  %2442 = vmax.xlane.f32.xlu0 %v2441
  %v2443 = vpop.xlane.xlu0 %2442
  %v2444 = vsel %vm604, %v2430, -inf
  %2445 = vmax.xlane.f32.xlu0 %v2444
  %v2446 = vpop.xlane.xlu0 %2445
  %v2447 = vsel %vm604, %v2435, -inf
  %2448 = vmax.xlane.f32.xlu0 %v2447
  %v2449 = vpop.xlane.xlu0 %2448
  %v2450 = vsub.f32 %v2420, %v2440
  %v2451 = vsub.f32 %v2425, %v2443
  %v2452 = vsub.f32 %v2430, %v2446
  %v2453 = vsub.f32 %v2435, %v2449
  %v2454 = vmul.f32 %v2450, 1.442695
  %v2455 = vpow.pop %v2454
  %v2456 = vmul.f32 %v2451, 1.442695
  %v2457 = vpow.pop %v2456
  %v2458 = vmul.f32 %v2452, 1.442695
  %v2459 = vpow.pop %v2458
  %v2460 = vmul.f32 %v2453, 1.442695
  %v2461 = vpow.pop %v2460
  %v2462 = vsel %vm604, %v2455, 0.0
  %2463 = vadd.xlane.f32.xlu0 %v2462
  %v2464 = vpop.xlane.xlu0 %2463
  %v2465 = vsel %vm604, %v2457, 0.0
  %2466 = vadd.xlane.f32.xlu0 %v2465
  %v2467 = vpop.xlane.xlu0 %2466
  %v2468 = vsel %vm604, %v2459, 0.0
  %2469 = vadd.xlane.f32.xlu0 %v2468
  %v2470 = vpop.xlane.xlu0 %2469
  %v2471 = vsel %vm604, %v2461, 0.0
  %2472 = vadd.xlane.f32.xlu0 %v2471
  %v2473 = vpop.xlane.xlu0 %2472
  %v2474 = vrcp.pop %v2464
  %v2475 = vrcp.pop %v2467
  %v2476 = vrcp.pop %v2470
  %v2477 = vrcp.pop %v2473
  %v2478 = vmul.f32 %v2455, %v2474
  %v2479 = vmul.f32 %v2457, %v2475
  %v2480 = vmul.f32 %v2459, %v2476
  %v2481 = vmul.f32 %v2461, %v2477
  %v2482 = vrot.slane %v2039, 2
  %v2483 = vsel %vm604, %v2482, 0
  %v2486 = vsel %vm604, %v2478, 0
  %v2489 = vsel %vm604, %v2479, 0
  %v2492 = vsel %vm604, %v2480, 0
  %v2495 = vsel %vm604, %v2481, 0
  %2497 = vmatprep.subr.mxu0 0.0
  %2498 = vmatpush1.xpose.msra.mxu0 %v2486
  %2499 = vmatprep.subr.mxu0 0.0
  %2500 = vmatpush1.xpose.msra.mxu0 %v2489
  %2501 = vmatprep.subr.mxu0 0.0
  %2502 = vmatpush1.xpose.msra.mxu0 %v2492
  %2503 = vmatprep.subr.mxu0 0.0
  %2504 = vmatpush1.xpose.msra.mxu0 %v2495
  %2505 = vmatprep.subr.mxu0 0.0
  %2506 = vmatpush1.xpose.msra.mxu0 0.0
  %2507 = vmatprep.subr.mxu0 0.0
  %2508 = vmatpush1.xpose.msra.mxu0 0.0
  %2509 = vmatprep.subr.mxu0 0.0
  %2510 = vmatpush1.xpose.msra.mxu0 0.0
  %2511 = vmatprep.subr.mxu0 0.0
  %2512 = vmatpush1.xpose.msra.mxu0 0.0
  %2513 = vmatprep.subr.mxu0 0.0
  %2514 = vmatpush1.xpose.msra.mxu0 0.0
  %2515 = vmatprep.subr.mxu0 0.0
  %2516 = vmatpush1.xpose.msra.mxu0 0.0
  %2517 = vmatprep.subr.mxu0 0.0
  %2518 = vmatpush1.xpose.msra.mxu0 0.0
  %2519 = vmatprep.subr.mxu0 0.0
  %2520 = vmatpush1.xpose.msra.mxu0 0.0
  %2521 = vmatprep.subr.mxu0 0.0
  %2522 = vmatpush1.xpose.msra.mxu0 0.0
  %2523 = vmatprep.subr.mxu0 0.0
  %2524 = vmatpush1.xpose.msra.mxu0 0.0
  %2525 = vmatprep.subr.mxu0 0.0
  %2526 = vmatpush1.xpose.msra.mxu0 0.0
  %2527 = vmatprep.subr.mxu0 0.0
  %2528 = vmatpush1.xpose.msra.mxu0 0.0
  %2529 = vmatprep.subr.mxu0 0.0
  %2530 = vmatpush1.xpose.msra.mxu0 0.0
  %2531 = vmatprep.subr.mxu0 0.0
  %2532 = vmatpush1.xpose.msra.mxu0 0.0
  %2533 = vmatprep.subr.mxu0 0.0
  %2534 = vmatpush1.xpose.msra.mxu0 0.0
  %2535 = vmatprep.subr.mxu0 0.0
  %2536 = vmatpush1.xpose.msra.mxu0 0.0
  %2537 = vmatprep.subr.mxu0 0.0
  %2538 = vmatpush1.xpose.msra.mxu0 0.0
  %2539 = vmatprep.subr.mxu0 0.0
  %2540 = vmatpush1.xpose.msra.mxu0 0.0
  %2541 = vmatprep.subr.mxu0 0.0
  %2542 = vmatpush1.xpose.msra.mxu0 0.0
  %2543 = vmatprep.subr.mxu0 0.0
  %2544 = vmatpush1.xpose.msra.mxu0 0.0
  %2545 = vmatprep.subr.mxu0 0.0
  %2546 = vmatpush1.xpose.msra.mxu0 0.0
  %2547 = vmatprep.subr.mxu0 0.0
  %2548 = vmatpush1.xpose.msra.mxu0 0.0
  %2549 = vmatprep.subr.mxu0 0.0
  %2550 = vmatpush1.xpose.msra.mxu0 0.0
  %2551 = vmatprep.subr.mxu0 0.0
  %2552 = vmatpush1.xpose.msra.mxu0 0.0
  %2553 = vmatprep.subr.mxu0 0.0
  %2554 = vmatpush1.xpose.msra.mxu0 0.0
  %2555 = vmatprep.subr.mxu0 0.0
  %2556 = vmatpush1.xpose.msra.mxu0 0.0
  %2557 = vmatprep.subr.mxu0 0.0
  %2558 = vmatpush1.xpose.msra.mxu0 0.0
  %2559 = vmatprep.subr.mxu0 0.0
  %2560 = vmatpush1.xpose.msra.mxu0 0.0
  %2561 = vmatprep.mubr.f32.mxu0 0.0
  %2562 = vmatmul.mubr.f32.gmra.mrb[0].mxu0 %v2483
  %v2563 = vpop.f32.mrb[0].mxu0
  %v2564 = vadd.f32 0.0, %v2563
  %v2565 = vpop.f32.mrb[0].mxu0
  %2566 = vdwg.mxu0
  %v2567 = vrot.slane %v2029, 4
  %2569 = vxpose.xlu0.b32.start [1/16] %v2567, 128
  %2570 = vxpose.xlu0.b32.cont [2/16] 0.0, 128
  %2571 = vxpose.xlu0.b32.cont [3/16] 0.0, 128
  %2572 = vxpose.xlu0.b32.cont [4/16] 0.0, 128
  %2573 = vxpose.xlu0.b32.cont [5/16] 0.0, 128
  %2574 = vxpose.xlu0.b32.cont [6/16] 0.0, 128
  %2575 = vxpose.xlu0.b32.cont [7/16] 0.0, 128
  %2576 = vxpose.xlu0.b32.cont [8/16] 0.0, 128
  %2577 = vxpose.xlu0.b32.cont [9/16] 0.0, 128
  %2578 = vxpose.xlu0.b32.cont [10/16] 0.0, 128
  %2579 = vxpose.xlu0.b32.cont [11/16] 0.0, 128
  %2580 = vxpose.xlu0.b32.cont [12/16] 0.0, 128
  %2581 = vxpose.xlu0.b32.cont [13/16] 0.0, 128
  %2582 = vxpose.xlu0.b32.cont [14/16] 0.0, 128
  %2583 = vxpose.xlu0.b32.cont [15/16] 0.0, 128
  %2584 = vxpose.xlu0.b32.end [16/16] 0.0, 128
  %v2585 = vpop.trf.xlu0
  %v2586 = vpop.trf.xlu0
  %v2587 = vpop.trf.xlu0
  %v2588 = vpop.trf.xlu0
  %v2589 = vpop.trf.xlu0
  %v2590 = vpop.trf.xlu0
  %v2591 = vpop.trf.xlu0
  %v2592 = vpop.trf.xlu0
  %v2593 = vpop.trf.xlu0
  %v2594 = vpop.trf.xlu0
  %v2595 = vpop.trf.xlu0
  %v2596 = vpop.trf.xlu0
  %v2597 = vpop.trf.xlu0
  %v2598 = vpop.trf.xlu0
  %v2599 = vpop.trf.xlu0
  %v2600 = vpop.trf.xlu0
  %v2601 = vrot.slane %v2034, 4
  %v2603 = vsel %vm502, %v2585, 0
  %v2606 = vsel %vm502, %v2586, 0
  %v2609 = vsel %vm502, %v2587, 0
  %v2612 = vsel %vm502, %v2588, 0
  %v2614 = vsel %vm515, %v2601, 0
  %2616 = vmatprep.subr.mxu0 0.0
  %2617 = vmatpush1.msra.mxu0 %v2614
  %2618 = vmatprep.subr.mxu0 0.0
  %2619 = vmatpush1.msra.mxu0 0.0
  %2620 = vmatprep.subr.mxu0 0.0
  %2621 = vmatpush1.msra.mxu0 0.0
  %2622 = vmatprep.subr.mxu0 0.0
  %2623 = vmatpush1.msra.mxu0 0.0
  %2624 = vmatprep.subr.mxu0 0.0
  %2625 = vmatpush1.msra.mxu0 0.0
  %2626 = vmatprep.subr.mxu0 0.0
  %2627 = vmatpush1.msra.mxu0 0.0
  %2628 = vmatprep.subr.mxu0 0.0
  %2629 = vmatpush1.msra.mxu0 0.0
  %2630 = vmatprep.subr.mxu0 0.0
  %2631 = vmatpush1.msra.mxu0 0.0
  %2632 = vmatprep.subr.mxu0 0.0
  %2633 = vmatpush1.msra.mxu0 0.0
  %2634 = vmatprep.subr.mxu0 0.0
  %2635 = vmatpush1.msra.mxu0 0.0
  %2636 = vmatprep.subr.mxu0 0.0
  %2637 = vmatpush1.msra.mxu0 0.0
  %2638 = vmatprep.subr.mxu0 0.0
  %2639 = vmatpush1.msra.mxu0 0.0
  %2640 = vmatprep.subr.mxu0 0.0
  %2641 = vmatpush1.msra.mxu0 0.0
  %2642 = vmatprep.subr.mxu0 0.0
  %2643 = vmatpush1.msra.mxu0 0.0
  %2644 = vmatprep.subr.mxu0 0.0
  %2645 = vmatpush1.msra.mxu0 0.0
  %2646 = vmatprep.subr.mxu0 0.0
  %2647 = vmatpush1.msra.mxu0 0.0
  %2648 = vmatprep.subr.mxu0 0.0
  %2649 = vmatpush1.msra.mxu0 0.0
  %2650 = vmatprep.subr.mxu0 0.0
  %2651 = vmatpush1.msra.mxu0 0.0
  %2652 = vmatprep.subr.mxu0 0.0
  %2653 = vmatpush1.msra.mxu0 0.0
  %2654 = vmatprep.subr.mxu0 0.0
  %2655 = vmatpush1.msra.mxu0 0.0
  %2656 = vmatprep.subr.mxu0 0.0
  %2657 = vmatpush1.msra.mxu0 0.0
  %2658 = vmatprep.subr.mxu0 0.0
  %2659 = vmatpush1.msra.mxu0 0.0
  %2660 = vmatprep.subr.mxu0 0.0
  %2661 = vmatpush1.msra.mxu0 0.0
  %2662 = vmatprep.subr.mxu0 0.0
  %2663 = vmatpush1.msra.mxu0 0.0
  %2664 = vmatprep.subr.mxu0 0.0
  %2665 = vmatpush1.msra.mxu0 0.0
  %2666 = vmatprep.subr.mxu0 0.0
  %2667 = vmatpush1.msra.mxu0 0.0
  %2668 = vmatprep.subr.mxu0 0.0
  %2669 = vmatpush1.msra.mxu0 0.0
  %2670 = vmatprep.subr.mxu0 0.0
  %2671 = vmatpush1.msra.mxu0 0.0
  %2672 = vmatprep.subr.mxu0 0.0
  %2673 = vmatpush1.msra.mxu0 0.0
  %2674 = vmatprep.subr.mxu0 0.0
  %2675 = vmatpush1.msra.mxu0 0.0
  %2676 = vmatprep.subr.mxu0 0.0
  %2677 = vmatpush1.msra.mxu0 0.0
  %2678 = vmatprep.subr.mxu0 0.0
  %2679 = vmatpush1.msra.mxu0 0.0
  %2680 = vmatprep.mubr.f32.mxu0 0.0
  %2681 = vmatmul.mubr.f32.gmra.mrb[0].mxu0 %v2603
  %v2682 = vpop.f32.mrb[0].mxu0
  %v2683 = vadd.f32 %v47, %v2682
  %v2684 = vpop.f32.mrb[0].mxu0
  %2685 = vmatprep.mubr.f32.mxu0 0.0
  %2686 = vmatmul.mubr.f32.gmra.mrb[0].mxu0 %v2606
  %v2687 = vpop.f32.mrb[0].mxu0
  %v2688 = vadd.f32 %v48, %v2687
  %v2689 = vpop.f32.mrb[0].mxu0
  %2690 = vmatprep.mubr.f32.mxu0 0.0
  %2691 = vmatmul.mubr.f32.gmra.mrb[0].mxu0 %v2609
  %v2692 = vpop.f32.mrb[0].mxu0
  %v2693 = vadd.f32 %v49, %v2692
  %v2694 = vpop.f32.mrb[0].mxu0
  %2695 = vmatprep.mubr.f32.mxu0 0.0
  %2696 = vmatmul.mubr.f32.gmra.mrb[0].mxu0 %v2612
  %v2697 = vpop.f32.mrb[0].mxu0
  %v2698 = vadd.f32 %v50, %v2697
  %v2699 = vpop.f32.mrb[0].mxu0
  %2700 = vdwg.mxu0
  %v2701 = vsel %vm604, %v2683, -inf
  %2702 = vmax.xlane.f32.xlu0 %v2701
  %v2703 = vpop.xlane.xlu0 %2702
  %v2704 = vsel %vm604, %v2688, -inf
  %2705 = vmax.xlane.f32.xlu0 %v2704
  %v2706 = vpop.xlane.xlu0 %2705
  %v2707 = vsel %vm604, %v2693, -inf
  %2708 = vmax.xlane.f32.xlu0 %v2707
  %v2709 = vpop.xlane.xlu0 %2708
  %v2710 = vsel %vm604, %v2698, -inf
  %2711 = vmax.xlane.f32.xlu0 %v2710
  %v2712 = vpop.xlane.xlu0 %2711
  %v2713 = vsub.f32 %v2683, %v2703
  %v2714 = vsub.f32 %v2688, %v2706
  %v2715 = vsub.f32 %v2693, %v2709
  %v2716 = vsub.f32 %v2698, %v2712
  %v2717 = vmul.f32 %v2713, 1.442695
  %v2718 = vpow.pop %v2717
  %v2719 = vmul.f32 %v2714, 1.442695
  %v2720 = vpow.pop %v2719
  %v2721 = vmul.f32 %v2715, 1.442695
  %v2722 = vpow.pop %v2721
  %v2723 = vmul.f32 %v2716, 1.442695
  %v2724 = vpow.pop %v2723
  %v2725 = vsel %vm604, %v2718, 0.0
  %2726 = vadd.xlane.f32.xlu0 %v2725
  %v2727 = vpop.xlane.xlu0 %2726
  %v2728 = vsel %vm604, %v2720, 0.0
  %2729 = vadd.xlane.f32.xlu0 %v2728
  %v2730 = vpop.xlane.xlu0 %2729
  %v2731 = vsel %vm604, %v2722, 0.0
  %2732 = vadd.xlane.f32.xlu0 %v2731
  %v2733 = vpop.xlane.xlu0 %2732
  %v2734 = vsel %vm604, %v2724, 0.0
  %2735 = vadd.xlane.f32.xlu0 %v2734
  %v2736 = vpop.xlane.xlu0 %2735
  %v2737 = vrcp.pop %v2727
  %v2738 = vrcp.pop %v2730
  %v2739 = vrcp.pop %v2733
  %v2740 = vrcp.pop %v2736
  %v2741 = vmul.f32 %v2718, %v2737
  %v2742 = vmul.f32 %v2720, %v2738
  %v2743 = vmul.f32 %v2722, %v2739
  %v2744 = vmul.f32 %v2724, %v2740
  %v2745 = vrot.slane %v2039, 4
  %v2746 = vsel %vm604, %v2745, 0
  %v2749 = vsel %vm604, %v2741, 0
  %v2752 = vsel %vm604, %v2742, 0
  %v2755 = vsel %vm604, %v2743, 0
  %v2758 = vsel %vm604, %v2744, 0
  %2760 = vmatprep.subr.mxu0 0.0
  %2761 = vmatpush1.xpose.msra.mxu0 %v2749
  %2762 = vmatprep.subr.mxu0 0.0
  %2763 = vmatpush1.xpose.msra.mxu0 %v2752
  %2764 = vmatprep.subr.mxu0 0.0
  %2765 = vmatpush1.xpose.msra.mxu0 %v2755
  %2766 = vmatprep.subr.mxu0 0.0
  %2767 = vmatpush1.xpose.msra.mxu0 %v2758
  %2768 = vmatprep.subr.mxu0 0.0
  %2769 = vmatpush1.xpose.msra.mxu0 0.0
  %2770 = vmatprep.subr.mxu0 0.0
  %2771 = vmatpush1.xpose.msra.mxu0 0.0
  %2772 = vmatprep.subr.mxu0 0.0
  %2773 = vmatpush1.xpose.msra.mxu0 0.0
  %2774 = vmatprep.subr.mxu0 0.0
  %2775 = vmatpush1.xpose.msra.mxu0 0.0
  %2776 = vmatprep.subr.mxu0 0.0
  %2777 = vmatpush1.xpose.msra.mxu0 0.0
  %2778 = vmatprep.subr.mxu0 0.0
  %2779 = vmatpush1.xpose.msra.mxu0 0.0
  %2780 = vmatprep.subr.mxu0 0.0
  %2781 = vmatpush1.xpose.msra.mxu0 0.0
  %2782 = vmatprep.subr.mxu0 0.0
  %2783 = vmatpush1.xpose.msra.mxu0 0.0
  %2784 = vmatprep.subr.mxu0 0.0
  %2785 = vmatpush1.xpose.msra.mxu0 0.0
  %2786 = vmatprep.subr.mxu0 0.0
  %2787 = vmatpush1.xpose.msra.mxu0 0.0
  %2788 = vmatprep.subr.mxu0 0.0
  %2789 = vmatpush1.xpose.msra.mxu0 0.0
  %2790 = vmatprep.subr.mxu0 0.0
  %2791 = vmatpush1.xpose.msra.mxu0 0.0
  %2792 = vmatprep.subr.mxu0 0.0
  %2793 = vmatpush1.xpose.msra.mxu0 0.0
  %2794 = vmatprep.subr.mxu0 0.0
  %2795 = vmatpush1.xpose.msra.mxu0 0.0
  %2796 = vmatprep.subr.mxu0 0.0
  %2797 = vmatpush1.xpose.msra.mxu0 0.0
  %2798 = vmatprep.subr.mxu0 0.0
  %2799 = vmatpush1.xpose.msra.mxu0 0.0
  %2800 = vmatprep.subr.mxu0 0.0
  %2801 = vmatpush1.xpose.msra.mxu0 0.0
  %2802 = vmatprep.subr.mxu0 0.0
  %2803 = vmatpush1.xpose.msra.mxu0 0.0
  %2804 = vmatprep.subr.mxu0 0.0
  %2805 = vmatpush1.xpose.msra.mxu0 0.0
  %2806 = vmatprep.subr.mxu0 0.0
  %2807 = vmatpush1.xpose.msra.mxu0 0.0
  %2808 = vmatprep.subr.mxu0 0.0
  %2809 = vmatpush1.xpose.msra.mxu0 0.0
  %2810 = vmatprep.subr.mxu0 0.0
  %2811 = vmatpush1.xpose.msra.mxu0 0.0
  %2812 = vmatprep.subr.mxu0 0.0
  %2813 = vmatpush1.xpose.msra.mxu0 0.0
  %2814 = vmatprep.subr.mxu0 0.0
  %2815 = vmatpush1.xpose.msra.mxu0 0.0
  %2816 = vmatprep.subr.mxu0 0.0
  %2817 = vmatpush1.xpose.msra.mxu0 0.0
  %2818 = vmatprep.subr.mxu0 0.0
  %2819 = vmatpush1.xpose.msra.mxu0 0.0
  %2820 = vmatprep.subr.mxu0 0.0
  %2821 = vmatpush1.xpose.msra.mxu0 0.0
  %2822 = vmatprep.subr.mxu0 0.0
  %2823 = vmatpush1.xpose.msra.mxu0 0.0
  %2824 = vmatprep.mubr.f32.mxu0 0.0
  %2825 = vmatmul.mubr.f32.gmra.mrb[0].mxu0 %v2746
  %v2826 = vpop.f32.mrb[0].mxu0
  %v2827 = vadd.f32 0.0, %v2826
  %v2828 = vpop.f32.mrb[0].mxu0
  %2829 = vdwg.mxu0
  %v2830 = vrot.slane %v2029, 6
  %2832 = vxpose.xlu0.b32.start [1/16] %v2830, 128
  %2833 = vxpose.xlu0.b32.cont [2/16] 0.0, 128
  %2834 = vxpose.xlu0.b32.cont [3/16] 0.0, 128
  %2835 = vxpose.xlu0.b32.cont [4/16] 0.0, 128
  %2836 = vxpose.xlu0.b32.cont [5/16] 0.0, 128
  %2837 = vxpose.xlu0.b32.cont [6/16] 0.0, 128
  %2838 = vxpose.xlu0.b32.cont [7/16] 0.0, 128
  %2839 = vxpose.xlu0.b32.cont [8/16] 0.0, 128
  %2840 = vxpose.xlu0.b32.cont [9/16] 0.0, 128
  %2841 = vxpose.xlu0.b32.cont [10/16] 0.0, 128
  %2842 = vxpose.xlu0.b32.cont [11/16] 0.0, 128
  %2843 = vxpose.xlu0.b32.cont [12/16] 0.0, 128
  %2844 = vxpose.xlu0.b32.cont [13/16] 0.0, 128
  %2845 = vxpose.xlu0.b32.cont [14/16] 0.0, 128
  %2846 = vxpose.xlu0.b32.cont [15/16] 0.0, 128
  %2847 = vxpose.xlu0.b32.end [16/16] 0.0, 128
  %v2848 = vpop.trf.xlu0
  %v2849 = vpop.trf.xlu0
  %v2850 = vpop.trf.xlu0
  %v2851 = vpop.trf.xlu0
  %v2852 = vpop.trf.xlu0
  %v2853 = vpop.trf.xlu0
  %v2854 = vpop.trf.xlu0
  %v2855 = vpop.trf.xlu0
  %v2856 = vpop.trf.xlu0
  %v2857 = vpop.trf.xlu0
  %v2858 = vpop.trf.xlu0
  %v2859 = vpop.trf.xlu0
  %v2860 = vpop.trf.xlu0
  %v2861 = vpop.trf.xlu0
  %v2862 = vpop.trf.xlu0
  %v2863 = vpop.trf.xlu0
  %v2864 = vrot.slane %v2034, 6
  %v2866 = vsel %vm502, %v2848, 0
  %v2869 = vsel %vm502, %v2849, 0
  %v2872 = vsel %vm502, %v2850, 0
  %v2875 = vsel %vm502, %v2851, 0
  %v2877 = vsel %vm515, %v2864, 0
  %2879 = vmatprep.subr.mxu0 0.0
  %2880 = vmatpush1.msra.mxu0 %v2877
  %2881 = vmatprep.subr.mxu0 0.0
  %2882 = vmatpush1.msra.mxu0 0.0
  %2883 = vmatprep.subr.mxu0 0.0
  %2884 = vmatpush1.msra.mxu0 0.0
  %2885 = vmatprep.subr.mxu0 0.0
  %2886 = vmatpush1.msra.mxu0 0.0
  %2887 = vmatprep.subr.mxu0 0.0
  %2888 = vmatpush1.msra.mxu0 0.0
  %2889 = vmatprep.subr.mxu0 0.0
  %2890 = vmatpush1.msra.mxu0 0.0
  %2891 = vmatprep.subr.mxu0 0.0
  %2892 = vmatpush1.msra.mxu0 0.0
  %2893 = vmatprep.subr.mxu0 0.0
  %2894 = vmatpush1.msra.mxu0 0.0
  %2895 = vmatprep.subr.mxu0 0.0
  %2896 = vmatpush1.msra.mxu0 0.0
  %2897 = vmatprep.subr.mxu0 0.0
  %2898 = vmatpush1.msra.mxu0 0.0
  %2899 = vmatprep.subr.mxu0 0.0
  %2900 = vmatpush1.msra.mxu0 0.0
  %2901 = vmatprep.subr.mxu0 0.0
  %2902 = vmatpush1.msra.mxu0 0.0
  %2903 = vmatprep.subr.mxu0 0.0
  %2904 = vmatpush1.msra.mxu0 0.0
  %2905 = vmatprep.subr.mxu0 0.0
  %2906 = vmatpush1.msra.mxu0 0.0
  %2907 = vmatprep.subr.mxu0 0.0
  %2908 = vmatpush1.msra.mxu0 0.0
  %2909 = vmatprep.subr.mxu0 0.0
  %2910 = vmatpush1.msra.mxu0 0.0
  %2911 = vmatprep.subr.mxu0 0.0
  %2912 = vmatpush1.msra.mxu0 0.0
  %2913 = vmatprep.subr.mxu0 0.0
  %2914 = vmatpush1.msra.mxu0 0.0
  %2915 = vmatprep.subr.mxu0 0.0
  %2916 = vmatpush1.msra.mxu0 0.0
  %2917 = vmatprep.subr.mxu0 0.0
  %2918 = vmatpush1.msra.mxu0 0.0
  %2919 = vmatprep.subr.mxu0 0.0
  %2920 = vmatpush1.msra.mxu0 0.0
  %2921 = vmatprep.subr.mxu0 0.0
  %2922 = vmatpush1.msra.mxu0 0.0
  %2923 = vmatprep.subr.mxu0 0.0
  %2924 = vmatpush1.msra.mxu0 0.0
  %2925 = vmatprep.subr.mxu0 0.0
  %2926 = vmatpush1.msra.mxu0 0.0
  %2927 = vmatprep.subr.mxu0 0.0
  %2928 = vmatpush1.msra.mxu0 0.0
  %2929 = vmatprep.subr.mxu0 0.0
  %2930 = vmatpush1.msra.mxu0 0.0
  %2931 = vmatprep.subr.mxu0 0.0
  %2932 = vmatpush1.msra.mxu0 0.0
  %2933 = vmatprep.subr.mxu0 0.0
  %2934 = vmatpush1.msra.mxu0 0.0
  %2935 = vmatprep.subr.mxu0 0.0
  %2936 = vmatpush1.msra.mxu0 0.0
  %2937 = vmatprep.subr.mxu0 0.0
  %2938 = vmatpush1.msra.mxu0 0.0
  %2939 = vmatprep.subr.mxu0 0.0
  %2940 = vmatpush1.msra.mxu0 0.0
  %2941 = vmatprep.subr.mxu0 0.0
  %2942 = vmatpush1.msra.mxu0 0.0
  %2943 = vmatprep.mubr.f32.mxu0 0.0
  %2944 = vmatmul.mubr.f32.gmra.mrb[0].mxu0 %v2866
  %v2945 = vpop.f32.mrb[0].mxu0
  %v2946 = vadd.f32 %v47, %v2945
  %v2947 = vpop.f32.mrb[0].mxu0
  %2948 = vmatprep.mubr.f32.mxu0 0.0
  %2949 = vmatmul.mubr.f32.gmra.mrb[0].mxu0 %v2869
  %v2950 = vpop.f32.mrb[0].mxu0
  %v2951 = vadd.f32 %v48, %v2950
  %v2952 = vpop.f32.mrb[0].mxu0
  %2953 = vmatprep.mubr.f32.mxu0 0.0
  %2954 = vmatmul.mubr.f32.gmra.mrb[0].mxu0 %v2872
  %v2955 = vpop.f32.mrb[0].mxu0
  %v2956 = vadd.f32 %v49, %v2955
  %v2957 = vpop.f32.mrb[0].mxu0
  %2958 = vmatprep.mubr.f32.mxu0 0.0
  %2959 = vmatmul.mubr.f32.gmra.mrb[0].mxu0 %v2875
  %v2960 = vpop.f32.mrb[0].mxu0
  %v2961 = vadd.f32 %v50, %v2960
  %v2962 = vpop.f32.mrb[0].mxu0
  %2963 = vdwg.mxu0
  %v2964 = vsel %vm604, %v2946, -inf
  %2965 = vmax.xlane.f32.xlu0 %v2964
  %v2966 = vpop.xlane.xlu0 %2965
  %v2967 = vsel %vm604, %v2951, -inf
  %2968 = vmax.xlane.f32.xlu0 %v2967
  %v2969 = vpop.xlane.xlu0 %2968
  %v2970 = vsel %vm604, %v2956, -inf
  %2971 = vmax.xlane.f32.xlu0 %v2970
  %v2972 = vpop.xlane.xlu0 %2971
  %v2973 = vsel %vm604, %v2961, -inf
  %2974 = vmax.xlane.f32.xlu0 %v2973
  %v2975 = vpop.xlane.xlu0 %2974
  %v2976 = vsub.f32 %v2946, %v2966
  %v2977 = vsub.f32 %v2951, %v2969
  %v2978 = vsub.f32 %v2956, %v2972
  %v2979 = vsub.f32 %v2961, %v2975
  %v2980 = vmul.f32 %v2976, 1.442695
  %v2981 = vpow.pop %v2980
  %v2982 = vmul.f32 %v2977, 1.442695
  %v2983 = vpow.pop %v2982
  %v2984 = vmul.f32 %v2978, 1.442695
  %v2985 = vpow.pop %v2984
  %v2986 = vmul.f32 %v2979, 1.442695
  %v2987 = vpow.pop %v2986
  %v2988 = vsel %vm604, %v2981, 0.0
  %2989 = vadd.xlane.f32.xlu0 %v2988
  %v2990 = vpop.xlane.xlu0 %2989
  %v2991 = vsel %vm604, %v2983, 0.0
  %2992 = vadd.xlane.f32.xlu0 %v2991
  %v2993 = vpop.xlane.xlu0 %2992
  %v2994 = vsel %vm604, %v2985, 0.0
  %2995 = vadd.xlane.f32.xlu0 %v2994
  %v2996 = vpop.xlane.xlu0 %2995
  %v2997 = vsel %vm604, %v2987, 0.0
  %2998 = vadd.xlane.f32.xlu0 %v2997
  %v2999 = vpop.xlane.xlu0 %2998
  %v3000 = vrcp.pop %v2990
  %v3001 = vrcp.pop %v2993
  %v3002 = vrcp.pop %v2996
  %v3003 = vrcp.pop %v2999
  %v3004 = vmul.f32 %v2981, %v3000
  %v3005 = vmul.f32 %v2983, %v3001
  %v3006 = vmul.f32 %v2985, %v3002
  %v3007 = vmul.f32 %v2987, %v3003
  %v3008 = vrot.slane %v2039, 6
  %v3009 = vsel %vm604, %v3008, 0
  %v3012 = vsel %vm604, %v3004, 0
  %v3015 = vsel %vm604, %v3005, 0
  %v3018 = vsel %vm604, %v3006, 0
  %v3021 = vsel %vm604, %v3007, 0
  %3023 = vmatprep.subr.mxu0 0.0
  %3024 = vmatpush1.xpose.msra.mxu0 %v3012
  %3025 = vmatprep.subr.mxu0 0.0
  %3026 = vmatpush1.xpose.msra.mxu0 %v3015
  %3027 = vmatprep.subr.mxu0 0.0
  %3028 = vmatpush1.xpose.msra.mxu0 %v3018
  %3029 = vmatprep.subr.mxu0 0.0
  %3030 = vmatpush1.xpose.msra.mxu0 %v3021
  %3031 = vmatprep.subr.mxu0 0.0
  %3032 = vmatpush1.xpose.msra.mxu0 0.0
  %3033 = vmatprep.subr.mxu0 0.0
  %3034 = vmatpush1.xpose.msra.mxu0 0.0
  %3035 = vmatprep.subr.mxu0 0.0
  %3036 = vmatpush1.xpose.msra.mxu0 0.0
  %3037 = vmatprep.subr.mxu0 0.0
  %3038 = vmatpush1.xpose.msra.mxu0 0.0
  %3039 = vmatprep.subr.mxu0 0.0
  %3040 = vmatpush1.xpose.msra.mxu0 0.0
  %3041 = vmatprep.subr.mxu0 0.0
  %3042 = vmatpush1.xpose.msra.mxu0 0.0
  %3043 = vmatprep.subr.mxu0 0.0
  %3044 = vmatpush1.xpose.msra.mxu0 0.0
  %3045 = vmatprep.subr.mxu0 0.0
  %3046 = vmatpush1.xpose.msra.mxu0 0.0
  %3047 = vmatprep.subr.mxu0 0.0
  %3048 = vmatpush1.xpose.msra.mxu0 0.0
  %3049 = vmatprep.subr.mxu0 0.0
  %3050 = vmatpush1.xpose.msra.mxu0 0.0
  %3051 = vmatprep.subr.mxu0 0.0
  %3052 = vmatpush1.xpose.msra.mxu0 0.0
  %3053 = vmatprep.subr.mxu0 0.0
  %3054 = vmatpush1.xpose.msra.mxu0 0.0
  %3055 = vmatprep.subr.mxu0 0.0
  %3056 = vmatpush1.xpose.msra.mxu0 0.0
  %3057 = vmatprep.subr.mxu0 0.0
  %3058 = vmatpush1.xpose.msra.mxu0 0.0
  %3059 = vmatprep.subr.mxu0 0.0
  %3060 = vmatpush1.xpose.msra.mxu0 0.0
  %3061 = vmatprep.subr.mxu0 0.0
  %3062 = vmatpush1.xpose.msra.mxu0 0.0
  %3063 = vmatprep.subr.mxu0 0.0
  %3064 = vmatpush1.xpose.msra.mxu0 0.0
  %3065 = vmatprep.subr.mxu0 0.0
  %3066 = vmatpush1.xpose.msra.mxu0 0.0
  %3067 = vmatprep.subr.mxu0 0.0
  %3068 = vmatpush1.xpose.msra.mxu0 0.0
  %3069 = vmatprep.subr.mxu0 0.0
  %3070 = vmatpush1.xpose.msra.mxu0 0.0
  %3071 = vmatprep.subr.mxu0 0.0
  %3072 = vmatpush1.xpose.msra.mxu0 0.0
  %3073 = vmatprep.subr.mxu0 0.0
  %3074 = vmatpush1.xpose.msra.mxu0 0.0
  %3075 = vmatprep.subr.mxu0 0.0
  %3076 = vmatpush1.xpose.msra.mxu0 0.0
  %3077 = vmatprep.subr.mxu0 0.0
  %3078 = vmatpush1.xpose.msra.mxu0 0.0
  %3079 = vmatprep.subr.mxu0 0.0
  %3080 = vmatpush1.xpose.msra.mxu0 0.0
  %3081 = vmatprep.subr.mxu0 0.0
  %3082 = vmatpush1.xpose.msra.mxu0 0.0
  %3083 = vmatprep.subr.mxu0 0.0
  %3084 = vmatpush1.xpose.msra.mxu0 0.0
  %3085 = vmatprep.subr.mxu0 0.0
  %3086 = vmatpush1.xpose.msra.mxu0 0.0
  %3087 = vmatprep.mubr.f32.mxu0 0.0
  %3088 = vmatmul.mubr.f32.gmra.mrb[0].mxu0 %v3009
  %v3089 = vpop.f32.mrb[0].mxu0
  %v3090 = vadd.f32 0.0, %v3089
  %v3091 = vpop.f32.mrb[0].mxu0
  %3092 = vdwg.mxu0
  %v3094 = vrot.slane %v2564, 6
  %v3097 = vrot.slane %v2827, 4
  %v3100 = vrot.slane %v3090, 2
  %v3102 = vsel %vm515, %v2300, %v3094
  %v3103 = vsel %vm1534, %v3102, %v3097
  %v3104 = vsel %vm1536, %v3103, %v3100
  %3106 = vset.pattern.permute.xlu0 0
  %3107 = vperm.xlu0 %3106, %v1937
  %v3108 = vpop.permute.xlu0 %3107
  %v3111 = vsel %vm66, %v1935, 0
  %3113 = vmatprep.subr.mxu0 0.0
  %3114 = vmatpush1.msra.mxu0 %v3104
  %3115 = vmatprep.subr.mxu0 0.0
  %3116 = vmatpush1.msra.mxu0 0.0
  %3117 = vmatprep.subr.mxu0 0.0
  %3118 = vmatpush1.msra.mxu0 0.0
  %3119 = vmatprep.subr.mxu0 0.0
  %3120 = vmatpush1.msra.mxu0 0.0
  %3121 = vmatprep.subr.mxu0 0.0
  %3122 = vmatpush1.msra.mxu0 0.0
  %3123 = vmatprep.subr.mxu0 0.0
  %3124 = vmatpush1.msra.mxu0 0.0
  %3125 = vmatprep.subr.mxu0 0.0
  %3126 = vmatpush1.msra.mxu0 0.0
  %3127 = vmatprep.subr.mxu0 0.0
  %3128 = vmatpush1.msra.mxu0 0.0
  %3129 = vmatprep.subr.mxu0 0.0
  %3130 = vmatpush1.msra.mxu0 0.0
  %3131 = vmatprep.subr.mxu0 0.0
  %3132 = vmatpush1.msra.mxu0 0.0
  %3133 = vmatprep.subr.mxu0 0.0
  %3134 = vmatpush1.msra.mxu0 0.0
  %3135 = vmatprep.subr.mxu0 0.0
  %3136 = vmatpush1.msra.mxu0 0.0
  %3137 = vmatprep.subr.mxu0 0.0
  %3138 = vmatpush1.msra.mxu0 0.0
  %3139 = vmatprep.subr.mxu0 0.0
  %3140 = vmatpush1.msra.mxu0 0.0
  %3141 = vmatprep.subr.mxu0 0.0
  %3142 = vmatpush1.msra.mxu0 0.0
  %3143 = vmatprep.subr.mxu0 0.0
  %3144 = vmatpush1.msra.mxu0 0.0
  %3145 = vmatprep.subr.mxu0 0.0
  %3146 = vmatpush1.msra.mxu0 0.0
  %3147 = vmatprep.subr.mxu0 0.0
  %3148 = vmatpush1.msra.mxu0 0.0
  %3149 = vmatprep.subr.mxu0 0.0
  %3150 = vmatpush1.msra.mxu0 0.0
  %3151 = vmatprep.subr.mxu0 0.0
  %3152 = vmatpush1.msra.mxu0 0.0
  %3153 = vmatprep.subr.mxu0 0.0
  %3154 = vmatpush1.msra.mxu0 0.0
  %3155 = vmatprep.subr.mxu0 0.0
  %3156 = vmatpush1.msra.mxu0 0.0
  %3157 = vmatprep.subr.mxu0 0.0
  %3158 = vmatpush1.msra.mxu0 0.0
  %3159 = vmatprep.subr.mxu0 0.0
  %3160 = vmatpush1.msra.mxu0 0.0
  %3161 = vmatprep.subr.mxu0 0.0
  %3162 = vmatpush1.msra.mxu0 0.0
  %3163 = vmatprep.subr.mxu0 0.0
  %3164 = vmatpush1.msra.mxu0 0.0
  %3165 = vmatprep.subr.mxu0 0.0
  %3166 = vmatpush1.msra.mxu0 0.0
  %3167 = vmatprep.subr.mxu0 0.0
  %3168 = vmatpush1.msra.mxu0 0.0
  %3169 = vmatprep.subr.mxu0 0.0
  %3170 = vmatpush1.msra.mxu0 0.0
  %3171 = vmatprep.subr.mxu0 0.0
  %3172 = vmatpush1.msra.mxu0 0.0
  %3173 = vmatprep.subr.mxu0 0.0
  %3174 = vmatpush1.msra.mxu0 0.0
  %3175 = vmatprep.subr.mxu0 0.0
  %3176 = vmatpush1.msra.mxu0 0.0
  %3177 = vmatprep.mubr.f32.mxu0 0.0
  %3178 = vmatmul.mubr.f32.gmra.mrb[0].mxu0 %v3111
  %v3179 = vpop.f32.mrb[0].mxu0
  %v3180 = vadd.f32 %v3108, %v3179
  %v3181 = vpop.f32.mrb[0].mxu0
  %3182 = vdwg.mxu0
  %v3184 = vsel %vm604, %v3180, 0
  %3186 = vmatprep.subr.mxu0 0.0
  %3187 = vmatpush1.msra.mxu0 %v51
  %3188 = vmatprep.subr.mxu0 0.0
  %3189 = vmatpush1.msra.mxu0 %v52
  %3190 = vmatprep.subr.mxu0 0.0
  %3191 = vmatpush1.msra.mxu0 %v53
  %3192 = vmatprep.subr.mxu0 0.0
  %3193 = vmatpush1.msra.mxu0 %v54
  %3194 = vmatprep.subr.mxu0 0.0
  %3195 = vmatpush1.msra.mxu0 0.0
  %3196 = vmatprep.subr.mxu0 0.0
  %3197 = vmatpush1.msra.mxu0 0.0
  %3198 = vmatprep.subr.mxu0 0.0
  %3199 = vmatpush1.msra.mxu0 0.0
  %3200 = vmatprep.subr.mxu0 0.0
  %3201 = vmatpush1.msra.mxu0 0.0
  %3202 = vmatprep.subr.mxu0 0.0
  %3203 = vmatpush1.msra.mxu0 0.0
  %3204 = vmatprep.subr.mxu0 0.0
  %3205 = vmatpush1.msra.mxu0 0.0
  %3206 = vmatprep.subr.mxu0 0.0
  %3207 = vmatpush1.msra.mxu0 0.0
  %3208 = vmatprep.subr.mxu0 0.0
  %3209 = vmatpush1.msra.mxu0 0.0
  %3210 = vmatprep.subr.mxu0 0.0
  %3211 = vmatpush1.msra.mxu0 0.0
  %3212 = vmatprep.subr.mxu0 0.0
  %3213 = vmatpush1.msra.mxu0 0.0
  %3214 = vmatprep.subr.mxu0 0.0
  %3215 = vmatpush1.msra.mxu0 0.0
  %3216 = vmatprep.subr.mxu0 0.0
  %3217 = vmatpush1.msra.mxu0 0.0
  %3218 = vmatprep.subr.mxu0 0.0
  %3219 = vmatpush1.msra.mxu0 0.0
  %3220 = vmatprep.subr.mxu0 0.0
  %3221 = vmatpush1.msra.mxu0 0.0
  %3222 = vmatprep.subr.mxu0 0.0
  %3223 = vmatpush1.msra.mxu0 0.0
  %3224 = vmatprep.subr.mxu0 0.0
  %3225 = vmatpush1.msra.mxu0 0.0
  %3226 = vmatprep.subr.mxu0 0.0
  %3227 = vmatpush1.msra.mxu0 0.0
  %3228 = vmatprep.subr.mxu0 0.0
  %3229 = vmatpush1.msra.mxu0 0.0
  %3230 = vmatprep.subr.mxu0 0.0
  %3231 = vmatpush1.msra.mxu0 0.0
  %3232 = vmatprep.subr.mxu0 0.0
  %3233 = vmatpush1.msra.mxu0 0.0
  %3234 = vmatprep.subr.mxu0 0.0
  %3235 = vmatpush1.msra.mxu0 0.0
  %3236 = vmatprep.subr.mxu0 0.0
  %3237 = vmatpush1.msra.mxu0 0.0
  %3238 = vmatprep.subr.mxu0 0.0
  %3239 = vmatpush1.msra.mxu0 0.0
  %3240 = vmatprep.subr.mxu0 0.0
  %3241 = vmatpush1.msra.mxu0 0.0
  %3242 = vmatprep.subr.mxu0 0.0
  %3243 = vmatpush1.msra.mxu0 0.0
  %3244 = vmatprep.subr.mxu0 0.0
  %3245 = vmatpush1.msra.mxu0 0.0
  %3246 = vmatprep.subr.mxu0 0.0
  %3247 = vmatpush1.msra.mxu0 0.0
  %3248 = vmatprep.subr.mxu0 0.0
  %3249 = vmatpush1.msra.mxu0 0.0
  %3250 = vmatprep.mubr.f32.mxu0 0.0
  %3251 = vmatmul.mubr.f32.gmra.mrb[0].mxu0 %v3184
  %v3252 = vpop.f32.mrb[0].mxu0
  %v3253 = vadd.f32 0.0, %v3252
  %v3254 = vpop.f32.mrb[0].mxu0
  %3255 = vdwg.mxu0
  %v3256 = vadd.f32 %v1923, %v3253
  %v3257 = vadd.f32 %v1918, %v3256
  %s3258 = scalar_lea.vmem %s5, 16
  %v3259 = vld [vmem:[%s3258] sm:$0xff]
  %v3260 = vld [vmem:[%s3258 + $0x8] sm:$0xff]
  %s3261 = scalar_lea.vmem %s6, 16
  %v3262 = vld [vmem:[%s3261] sm:$0xff]
  %v3263 = vld [vmem:[%s3261 + $0x8] sm:$0xff]
  %3265 = vset.pattern.permute.xlu0 0
  %3266 = vperm.xlu0 %3265, %v3262
  %v3267 = vpop.permute.xlu0 %3266
  %3270 = vset.pattern.permute.xlu0 0
  %3271 = vperm.xlu0 %3270, %v3263
  %v3272 = vpop.permute.xlu0 %3271
  %v3275 = vsel %vm1844, %v3259, 0
  %v3278 = vsel %vm1844, %v3260, 0
  %3280 = vmatprep.subr.mxu0 0.0
  %3281 = vmatpush1.msra.mxu0 %v3257
  %3282 = vmatprep.subr.mxu0 0.0
  %3283 = vmatpush1.msra.mxu0 %v3256
  %3284 = vmatprep.subr.mxu0 0.0
  %3285 = vmatpush1.msra.mxu0 0.0
  %3286 = vmatprep.subr.mxu0 0.0
  %3287 = vmatpush1.msra.mxu0 0.0
  %3288 = vmatprep.subr.mxu0 0.0
  %3289 = vmatpush1.msra.mxu0 0.0
  %3290 = vmatprep.subr.mxu0 0.0
  %3291 = vmatpush1.msra.mxu0 0.0
  %3292 = vmatprep.subr.mxu0 0.0
  %3293 = vmatpush1.msra.mxu0 0.0
  %3294 = vmatprep.subr.mxu0 0.0
  %3295 = vmatpush1.msra.mxu0 0.0
  %3296 = vmatprep.subr.mxu0 0.0
  %3297 = vmatpush1.msra.mxu0 0.0
  %3298 = vmatprep.subr.mxu0 0.0
  %3299 = vmatpush1.msra.mxu0 0.0
  %3300 = vmatprep.subr.mxu0 0.0
  %3301 = vmatpush1.msra.mxu0 0.0
  %3302 = vmatprep.subr.mxu0 0.0
  %3303 = vmatpush1.msra.mxu0 0.0
  %3304 = vmatprep.subr.mxu0 0.0
  %3305 = vmatpush1.msra.mxu0 0.0
  %3306 = vmatprep.subr.mxu0 0.0
  %3307 = vmatpush1.msra.mxu0 0.0
  %3308 = vmatprep.subr.mxu0 0.0
  %3309 = vmatpush1.msra.mxu0 0.0
  %3310 = vmatprep.subr.mxu0 0.0
  %3311 = vmatpush1.msra.mxu0 0.0
  %3312 = vmatprep.subr.mxu0 0.0
  %3313 = vmatpush1.msra.mxu0 0.0
  %3314 = vmatprep.subr.mxu0 0.0
  %3315 = vmatpush1.msra.mxu0 0.0
  %3316 = vmatprep.subr.mxu0 0.0
  %3317 = vmatpush1.msra.mxu0 0.0
  %3318 = vmatprep.subr.mxu0 0.0
  %3319 = vmatpush1.msra.mxu0 0.0
  %3320 = vmatprep.subr.mxu0 0.0
  %3321 = vmatpush1.msra.mxu0 0.0
  %3322 = vmatprep.subr.mxu0 0.0
  %3323 = vmatpush1.msra.mxu0 0.0
  %3324 = vmatprep.subr.mxu0 0.0
  %3325 = vmatpush1.msra.mxu0 0.0
  %3326 = vmatprep.subr.mxu0 0.0
  %3327 = vmatpush1.msra.mxu0 0.0
  %3328 = vmatprep.subr.mxu0 0.0
  %3329 = vmatpush1.msra.mxu0 0.0
  %3330 = vmatprep.subr.mxu0 0.0
  %3331 = vmatpush1.msra.mxu0 0.0
  %3332 = vmatprep.subr.mxu0 0.0
  %3333 = vmatpush1.msra.mxu0 0.0
  %3334 = vmatprep.subr.mxu0 0.0
  %3335 = vmatpush1.msra.mxu0 0.0
  %3336 = vmatprep.subr.mxu0 0.0
  %3337 = vmatpush1.msra.mxu0 0.0
  %3338 = vmatprep.subr.mxu0 0.0
  %3339 = vmatpush1.msra.mxu0 0.0
  %3340 = vmatprep.subr.mxu0 0.0
  %3341 = vmatpush1.msra.mxu0 0.0
  %3342 = vmatprep.subr.mxu0 0.0
  %3343 = vmatpush1.msra.mxu0 0.0
  %3344 = vmatprep.mubr.f32.mxu0 0.0
  %3345 = vmatmul.mubr.f32.gmra.mrb[0].mxu0 %v3275
  %v3346 = vpop.f32.mrb[0].mxu0
  %v3347 = vadd.f32 %v3267, %v3346
  %v3348 = vpop.f32.mrb[0].mxu0
  %3349 = vmatprep.mubr.f32.mxu0 0.0
  %3350 = vmatmul.mubr.f32.gmra.mrb[0].mxu0 %v3278
  %v3351 = vpop.f32.mrb[0].mxu0
  %v3352 = vadd.f32 %v3272, %v3351
  %v3353 = vpop.f32.mrb[0].mxu0
  %3354 = vdwg.mxu0
  %s3355 = scalar_lea.vmem %s7, 48
  %v3356 = vld [vmem:[%s3355] sm:$0xff]
  %v3357 = vld [vmem:[%s3355 + $0x8] sm:$0xff]
  %v3358 = vld [vmem:[%s3355 + $0x10] sm:$0xff]
  %s3359 = scalar_lea.vmem %s8, 48
  %v3360 = vld [vmem:[%s3359] sm:$0xff]
  %v3361 = vld [vmem:[%s3359 + $0x8] sm:$0xff]
  %v3362 = vld [vmem:[%s3359 + $0x10] sm:$0xff]
  %s3363 = scalar_lea.vmem %s9, 16
  %v3364 = vld [vmem:[%s3363] sm:$0xff]
  %s3365 = scalar_lea.vmem %s10, 16
  %v3366 = vld [vmem:[%s3365] sm:$0xff]
  %3368 = vset.pattern.permute.xlu0 0
  %3369 = vperm.xlu0 %3368, %v3360
  %v3370 = vpop.permute.xlu0 %3369
  %3373 = vset.pattern.permute.xlu0 0
  %3374 = vperm.xlu0 %3373, %v3361
  %v3375 = vpop.permute.xlu0 %3374
  %3378 = vset.pattern.permute.xlu0 0
  %3379 = vperm.xlu0 %3378, %v3362
  %v3380 = vpop.permute.xlu0 %3379
  %v3383 = vsel %vm66, %v3356, 0
  %v3386 = vsel %vm66, %v3357, 0
  %v3389 = vsel %vm66, %v3358, 0
  %3391 = vmatprep.subr.mxu0 0.0
  %3392 = vmatpush1.msra.mxu0 %v3180
  %3393 = vmatprep.subr.mxu0 0.0
  %3394 = vmatpush1.msra.mxu0 0.0
  %3395 = vmatprep.subr.mxu0 0.0
  %3396 = vmatpush1.msra.mxu0 0.0
  %3397 = vmatprep.subr.mxu0 0.0
  %3398 = vmatpush1.msra.mxu0 0.0
  %3399 = vmatprep.subr.mxu0 0.0
  %3400 = vmatpush1.msra.mxu0 0.0
  %3401 = vmatprep.subr.mxu0 0.0
  %3402 = vmatpush1.msra.mxu0 0.0
  %3403 = vmatprep.subr.mxu0 0.0
  %3404 = vmatpush1.msra.mxu0 0.0
  %3405 = vmatprep.subr.mxu0 0.0
  %3406 = vmatpush1.msra.mxu0 0.0
  %3407 = vmatprep.subr.mxu0 0.0
  %3408 = vmatpush1.msra.mxu0 0.0
  %3409 = vmatprep.subr.mxu0 0.0
  %3410 = vmatpush1.msra.mxu0 0.0
  %3411 = vmatprep.subr.mxu0 0.0
  %3412 = vmatpush1.msra.mxu0 0.0
  %3413 = vmatprep.subr.mxu0 0.0
  %3414 = vmatpush1.msra.mxu0 0.0
  %3415 = vmatprep.subr.mxu0 0.0
  %3416 = vmatpush1.msra.mxu0 0.0
  %3417 = vmatprep.subr.mxu0 0.0
  %3418 = vmatpush1.msra.mxu0 0.0
  %3419 = vmatprep.subr.mxu0 0.0
  %3420 = vmatpush1.msra.mxu0 0.0
  %3421 = vmatprep.subr.mxu0 0.0
  %3422 = vmatpush1.msra.mxu0 0.0
  %3423 = vmatprep.subr.mxu0 0.0
  %3424 = vmatpush1.msra.mxu0 0.0
  %3425 = vmatprep.subr.mxu0 0.0
  %3426 = vmatpush1.msra.mxu0 0.0
  %3427 = vmatprep.subr.mxu0 0.0
  %3428 = vmatpush1.msra.mxu0 0.0
  %3429 = vmatprep.subr.mxu0 0.0
  %3430 = vmatpush1.msra.mxu0 0.0
  %3431 = vmatprep.subr.mxu0 0.0
  %3432 = vmatpush1.msra.mxu0 0.0
  %3433 = vmatprep.subr.mxu0 0.0
  %3434 = vmatpush1.msra.mxu0 0.0
  %3435 = vmatprep.subr.mxu0 0.0
  %3436 = vmatpush1.msra.mxu0 0.0
  %3437 = vmatprep.subr.mxu0 0.0
  %3438 = vmatpush1.msra.mxu0 0.0
  %3439 = vmatprep.subr.mxu0 0.0
  %3440 = vmatpush1.msra.mxu0 0.0
  %3441 = vmatprep.subr.mxu0 0.0
  %3442 = vmatpush1.msra.mxu0 0.0
  %3443 = vmatprep.subr.mxu0 0.0
  %3444 = vmatpush1.msra.mxu0 0.0
  %3445 = vmatprep.subr.mxu0 0.0
  %3446 = vmatpush1.msra.mxu0 0.0
  %3447 = vmatprep.subr.mxu0 0.0
  %3448 = vmatpush1.msra.mxu0 0.0
  %3449 = vmatprep.subr.mxu0 0.0
  %3450 = vmatpush1.msra.mxu0 0.0
  %3451 = vmatprep.subr.mxu0 0.0
  %3452 = vmatpush1.msra.mxu0 0.0
  %3453 = vmatprep.subr.mxu0 0.0
  %3454 = vmatpush1.msra.mxu0 0.0
  %3455 = vmatprep.mubr.f32.mxu0 0.0
  %3456 = vmatmul.mubr.f32.gmra.mrb[0].mxu0 %v3383
  %v3457 = vpop.f32.mrb[0].mxu0
  %v3458 = vadd.f32 %v3370, %v3457
  %v3459 = vpop.f32.mrb[0].mxu0
  %3460 = vmatprep.mubr.f32.mxu0 0.0
  %3461 = vmatmul.mubr.f32.gmra.mrb[0].mxu0 %v3386
  %v3462 = vpop.f32.mrb[0].mxu0
  %v3463 = vadd.f32 %v3375, %v3462
  %v3464 = vpop.f32.mrb[0].mxu0
  %3465 = vmatprep.mubr.f32.mxu0 0.0
  %3466 = vmatmul.mubr.f32.gmra.mrb[0].mxu0 %v3389
  %v3467 = vpop.f32.mrb[0].mxu0
  %v3468 = vadd.f32 %v3380, %v3467
  %v3469 = vpop.f32.mrb[0].mxu0
  %3470 = vdwg.mxu0
  %3471 = vxpose.xlu0.b32.start [1/16] %v3458, 128
  %3472 = vxpose.xlu0.b32.cont [2/16] 0.0, 128
  %3473 = vxpose.xlu0.b32.cont [3/16] 0.0, 128
  %3474 = vxpose.xlu0.b32.cont [4/16] 0.0, 128
  %3475 = vxpose.xlu0.b32.cont [5/16] 0.0, 128
  %3476 = vxpose.xlu0.b32.cont [6/16] 0.0, 128
  %3477 = vxpose.xlu0.b32.cont [7/16] 0.0, 128
  %3478 = vxpose.xlu0.b32.cont [8/16] 0.0, 128
  %3479 = vxpose.xlu0.b32.cont [9/16] 0.0, 128
  %3480 = vxpose.xlu0.b32.cont [10/16] 0.0, 128
  %3481 = vxpose.xlu0.b32.cont [11/16] 0.0, 128
  %3482 = vxpose.xlu0.b32.cont [12/16] 0.0, 128
  %3483 = vxpose.xlu0.b32.cont [13/16] 0.0, 128
  %3484 = vxpose.xlu0.b32.cont [14/16] 0.0, 128
  %3485 = vxpose.xlu0.b32.cont [15/16] 0.0, 128
  %3486 = vxpose.xlu0.b32.end [16/16] 0.0, 128
  %v3487 = vpop.trf.xlu0
  %v3488 = vpop.trf.xlu0
  %v3489 = vpop.trf.xlu0
  %v3490 = vpop.trf.xlu0
  %v3491 = vpop.trf.xlu0
  %v3492 = vpop.trf.xlu0
  %v3493 = vpop.trf.xlu0
  %v3494 = vpop.trf.xlu0
  %v3495 = vpop.trf.xlu0
  %v3496 = vpop.trf.xlu0
  %v3497 = vpop.trf.xlu0
  %v3498 = vpop.trf.xlu0
  %v3499 = vpop.trf.xlu0
  %v3500 = vpop.trf.xlu0
  %v3501 = vpop.trf.xlu0
  %v3502 = vpop.trf.xlu0
  %v3504 = vsel %vm502, %v3487, 0
  %v3507 = vsel %vm502, %v3488, 0
  %v3510 = vsel %vm502, %v3489, 0
  %v3513 = vsel %vm502, %v3490, 0
  %v3516 = vsel %vm515, %v3463, 0
  %3518 = vmatprep.subr.mxu0 0.0
  %3519 = vmatpush1.msra.mxu0 %v3516
  %3520 = vmatprep.subr.mxu0 0.0
  %3521 = vmatpush1.msra.mxu0 0.0
  %3522 = vmatprep.subr.mxu0 0.0
  %3523 = vmatpush1.msra.mxu0 0.0
  %3524 = vmatprep.subr.mxu0 0.0
  %3525 = vmatpush1.msra.mxu0 0.0
  %3526 = vmatprep.subr.mxu0 0.0
  %3527 = vmatpush1.msra.mxu0 0.0
  %3528 = vmatprep.subr.mxu0 0.0
  %3529 = vmatpush1.msra.mxu0 0.0
  %3530 = vmatprep.subr.mxu0 0.0
  %3531 = vmatpush1.msra.mxu0 0.0
  %3532 = vmatprep.subr.mxu0 0.0
  %3533 = vmatpush1.msra.mxu0 0.0
  %3534 = vmatprep.subr.mxu0 0.0
  %3535 = vmatpush1.msra.mxu0 0.0
  %3536 = vmatprep.subr.mxu0 0.0
  %3537 = vmatpush1.msra.mxu0 0.0
  %3538 = vmatprep.subr.mxu0 0.0
  %3539 = vmatpush1.msra.mxu0 0.0
  %3540 = vmatprep.subr.mxu0 0.0
  %3541 = vmatpush1.msra.mxu0 0.0
  %3542 = vmatprep.subr.mxu0 0.0
  %3543 = vmatpush1.msra.mxu0 0.0
  %3544 = vmatprep.subr.mxu0 0.0
  %3545 = vmatpush1.msra.mxu0 0.0
  %3546 = vmatprep.subr.mxu0 0.0
  %3547 = vmatpush1.msra.mxu0 0.0
  %3548 = vmatprep.subr.mxu0 0.0
  %3549 = vmatpush1.msra.mxu0 0.0
  %3550 = vmatprep.subr.mxu0 0.0
  %3551 = vmatpush1.msra.mxu0 0.0
  %3552 = vmatprep.subr.mxu0 0.0
  %3553 = vmatpush1.msra.mxu0 0.0
  %3554 = vmatprep.subr.mxu0 0.0
  %3555 = vmatpush1.msra.mxu0 0.0
  %3556 = vmatprep.subr.mxu0 0.0
  %3557 = vmatpush1.msra.mxu0 0.0
  %3558 = vmatprep.subr.mxu0 0.0
  %3559 = vmatpush1.msra.mxu0 0.0
  %3560 = vmatprep.subr.mxu0 0.0
  %3561 = vmatpush1.msra.mxu0 0.0
  %3562 = vmatprep.subr.mxu0 0.0
  %3563 = vmatpush1.msra.mxu0 0.0
  %3564 = vmatprep.subr.mxu0 0.0
  %3565 = vmatpush1.msra.mxu0 0.0
  %3566 = vmatprep.subr.mxu0 0.0
  %3567 = vmatpush1.msra.mxu0 0.0
  %3568 = vmatprep.subr.mxu0 0.0
  %3569 = vmatpush1.msra.mxu0 0.0
  %3570 = vmatprep.subr.mxu0 0.0
  %3571 = vmatpush1.msra.mxu0 0.0
  %3572 = vmatprep.subr.mxu0 0.0
  %3573 = vmatpush1.msra.mxu0 0.0
  %3574 = vmatprep.subr.mxu0 0.0
  %3575 = vmatpush1.msra.mxu0 0.0
  %3576 = vmatprep.subr.mxu0 0.0
  %3577 = vmatpush1.msra.mxu0 0.0
  %3578 = vmatprep.subr.mxu0 0.0
  %3579 = vmatpush1.msra.mxu0 0.0
  %3580 = vmatprep.subr.mxu0 0.0
  %3581 = vmatpush1.msra.mxu0 0.0
  %3582 = vmatprep.mubr.f32.mxu0 0.0
  %3583 = vmatmul.mubr.f32.gmra.mrb[0].mxu0 %v3504
  %v3584 = vpop.f32.mrb[0].mxu0
  %v3585 = vadd.f32 %v47, %v3584
  %v3586 = vpop.f32.mrb[0].mxu0
  %3587 = vmatprep.mubr.f32.mxu0 0.0
  %3588 = vmatmul.mubr.f32.gmra.mrb[0].mxu0 %v3507
  %v3589 = vpop.f32.mrb[0].mxu0
  %v3590 = vadd.f32 %v48, %v3589
  %v3591 = vpop.f32.mrb[0].mxu0
  %3592 = vmatprep.mubr.f32.mxu0 0.0
  %3593 = vmatmul.mubr.f32.gmra.mrb[0].mxu0 %v3510
  %v3594 = vpop.f32.mrb[0].mxu0
  %v3595 = vadd.f32 %v49, %v3594
  %v3596 = vpop.f32.mrb[0].mxu0
  %3597 = vmatprep.mubr.f32.mxu0 0.0
  %3598 = vmatmul.mubr.f32.gmra.mrb[0].mxu0 %v3513
  %v3599 = vpop.f32.mrb[0].mxu0
  %v3600 = vadd.f32 %v50, %v3599
  %v3601 = vpop.f32.mrb[0].mxu0
  %3602 = vdwg.mxu0
  %v3603 = vsel %vm604, %v3585, -inf
  %3604 = vmax.xlane.f32.xlu0 %v3603
  %v3605 = vpop.xlane.xlu0 %3604
  %v3606 = vsel %vm604, %v3590, -inf
  %3607 = vmax.xlane.f32.xlu0 %v3606
  %v3608 = vpop.xlane.xlu0 %3607
  %v3609 = vsel %vm604, %v3595, -inf
  %3610 = vmax.xlane.f32.xlu0 %v3609
  %v3611 = vpop.xlane.xlu0 %3610
  %v3612 = vsel %vm604, %v3600, -inf
  %3613 = vmax.xlane.f32.xlu0 %v3612
  %v3614 = vpop.xlane.xlu0 %3613
  %v3615 = vsub.f32 %v3585, %v3605
  %v3616 = vsub.f32 %v3590, %v3608
  %v3617 = vsub.f32 %v3595, %v3611
  %v3618 = vsub.f32 %v3600, %v3614
  %v3619 = vmul.f32 %v3615, 1.442695
  %v3620 = vpow.pop %v3619
  %v3621 = vmul.f32 %v3616, 1.442695
  %v3622 = vpow.pop %v3621
  %v3623 = vmul.f32 %v3617, 1.442695
  %v3624 = vpow.pop %v3623
  %v3625 = vmul.f32 %v3618, 1.442695
  %v3626 = vpow.pop %v3625
  %v3627 = vsel %vm604, %v3620, 0.0
  %3628 = vadd.xlane.f32.xlu0 %v3627
  %v3629 = vpop.xlane.xlu0 %3628
  %v3630 = vsel %vm604, %v3622, 0.0
  %3631 = vadd.xlane.f32.xlu0 %v3630
  %v3632 = vpop.xlane.xlu0 %3631
  %v3633 = vsel %vm604, %v3624, 0.0
  %3634 = vadd.xlane.f32.xlu0 %v3633
  %v3635 = vpop.xlane.xlu0 %3634
  %v3636 = vsel %vm604, %v3626, 0.0
  %3637 = vadd.xlane.f32.xlu0 %v3636
  %v3638 = vpop.xlane.xlu0 %3637
  %v3639 = vrcp.pop %v3629
  %v3640 = vrcp.pop %v3632
  %v3641 = vrcp.pop %v3635
  %v3642 = vrcp.pop %v3638
  %v3643 = vmul.f32 %v3620, %v3639
  %v3644 = vmul.f32 %v3622, %v3640
  %v3645 = vmul.f32 %v3624, %v3641
  %v3646 = vmul.f32 %v3626, %v3642
  %v3648 = vsel %vm604, %v3468, 0
  %v3651 = vsel %vm604, %v3643, 0
  %v3654 = vsel %vm604, %v3644, 0
  %v3657 = vsel %vm604, %v3645, 0
  %v3660 = vsel %vm604, %v3646, 0
  %3662 = vmatprep.subr.mxu0 0.0
  %3663 = vmatpush1.xpose.msra.mxu0 %v3651
  %3664 = vmatprep.subr.mxu0 0.0
  %3665 = vmatpush1.xpose.msra.mxu0 %v3654
  %3666 = vmatprep.subr.mxu0 0.0
  %3667 = vmatpush1.xpose.msra.mxu0 %v3657
  %3668 = vmatprep.subr.mxu0 0.0
  %3669 = vmatpush1.xpose.msra.mxu0 %v3660
  %3670 = vmatprep.subr.mxu0 0.0
  %3671 = vmatpush1.xpose.msra.mxu0 0.0
  %3672 = vmatprep.subr.mxu0 0.0
  %3673 = vmatpush1.xpose.msra.mxu0 0.0
  %3674 = vmatprep.subr.mxu0 0.0
  %3675 = vmatpush1.xpose.msra.mxu0 0.0
  %3676 = vmatprep.subr.mxu0 0.0
  %3677 = vmatpush1.xpose.msra.mxu0 0.0
  %3678 = vmatprep.subr.mxu0 0.0
  %3679 = vmatpush1.xpose.msra.mxu0 0.0
  %3680 = vmatprep.subr.mxu0 0.0
  %3681 = vmatpush1.xpose.msra.mxu0 0.0
  %3682 = vmatprep.subr.mxu0 0.0
  %3683 = vmatpush1.xpose.msra.mxu0 0.0
  %3684 = vmatprep.subr.mxu0 0.0
  %3685 = vmatpush1.xpose.msra.mxu0 0.0
  %3686 = vmatprep.subr.mxu0 0.0
  %3687 = vmatpush1.xpose.msra.mxu0 0.0
  %3688 = vmatprep.subr.mxu0 0.0
  %3689 = vmatpush1.xpose.msra.mxu0 0.0
  %3690 = vmatprep.subr.mxu0 0.0
  %3691 = vmatpush1.xpose.msra.mxu0 0.0
  %3692 = vmatprep.subr.mxu0 0.0
  %3693 = vmatpush1.xpose.msra.mxu0 0.0
  %3694 = vmatprep.subr.mxu0 0.0
  %3695 = vmatpush1.xpose.msra.mxu0 0.0
  %3696 = vmatprep.subr.mxu0 0.0
  %3697 = vmatpush1.xpose.msra.mxu0 0.0
  %3698 = vmatprep.subr.mxu0 0.0
  %3699 = vmatpush1.xpose.msra.mxu0 0.0
  %3700 = vmatprep.subr.mxu0 0.0
  %3701 = vmatpush1.xpose.msra.mxu0 0.0
  %3702 = vmatprep.subr.mxu0 0.0
  %3703 = vmatpush1.xpose.msra.mxu0 0.0
  %3704 = vmatprep.subr.mxu0 0.0
  %3705 = vmatpush1.xpose.msra.mxu0 0.0
  %3706 = vmatprep.subr.mxu0 0.0
  %3707 = vmatpush1.xpose.msra.mxu0 0.0
  %3708 = vmatprep.subr.mxu0 0.0
  %3709 = vmatpush1.xpose.msra.mxu0 0.0
  %3710 = vmatprep.subr.mxu0 0.0
  %3711 = vmatpush1.xpose.msra.mxu0 0.0
  %3712 = vmatprep.subr.mxu0 0.0
  %3713 = vmatpush1.xpose.msra.mxu0 0.0
  %3714 = vmatprep.subr.mxu0 0.0
  %3715 = vmatpush1.xpose.msra.mxu0 0.0
  %3716 = vmatprep.subr.mxu0 0.0
  %3717 = vmatpush1.xpose.msra.mxu0 0.0
  %3718 = vmatprep.subr.mxu0 0.0
  %3719 = vmatpush1.xpose.msra.mxu0 0.0
  %3720 = vmatprep.subr.mxu0 0.0
  %3721 = vmatpush1.xpose.msra.mxu0 0.0
  %3722 = vmatprep.subr.mxu0 0.0
  %3723 = vmatpush1.xpose.msra.mxu0 0.0
  %3724 = vmatprep.subr.mxu0 0.0
  %3725 = vmatpush1.xpose.msra.mxu0 0.0
  %3726 = vmatprep.mubr.f32.mxu0 0.0
  %3727 = vmatmul.mubr.f32.gmra.mrb[0].mxu0 %v3648
  %v3728 = vpop.f32.mrb[0].mxu0
  %v3729 = vadd.f32 0.0, %v3728
  %v3730 = vpop.f32.mrb[0].mxu0
  %3731 = vdwg.mxu0
  %v3733 = vrot.slane %v3458, 2
  %3735 = vxpose.xlu0.b32.start [1/16] %v3733, 128
  %3736 = vxpose.xlu0.b32.cont [2/16] 0.0, 128
  %3737 = vxpose.xlu0.b32.cont [3/16] 0.0, 128
  %3738 = vxpose.xlu0.b32.cont [4/16] 0.0, 128
  %3739 = vxpose.xlu0.b32.cont [5/16] 0.0, 128
  %3740 = vxpose.xlu0.b32.cont [6/16] 0.0, 128
  %3741 = vxpose.xlu0.b32.cont [7/16] 0.0, 128
  %3742 = vxpose.xlu0.b32.cont [8/16] 0.0, 128
  %3743 = vxpose.xlu0.b32.cont [9/16] 0.0, 128
  %3744 = vxpose.xlu0.b32.cont [10/16] 0.0, 128
  %3745 = vxpose.xlu0.b32.cont [11/16] 0.0, 128
  %3746 = vxpose.xlu0.b32.cont [12/16] 0.0, 128
  %3747 = vxpose.xlu0.b32.cont [13/16] 0.0, 128
  %3748 = vxpose.xlu0.b32.cont [14/16] 0.0, 128
  %3749 = vxpose.xlu0.b32.cont [15/16] 0.0, 128
  %3750 = vxpose.xlu0.b32.end [16/16] 0.0, 128
  %v3751 = vpop.trf.xlu0
  %v3752 = vpop.trf.xlu0
  %v3753 = vpop.trf.xlu0
  %v3754 = vpop.trf.xlu0
  %v3755 = vpop.trf.xlu0
  %v3756 = vpop.trf.xlu0
  %v3757 = vpop.trf.xlu0
  %v3758 = vpop.trf.xlu0
  %v3759 = vpop.trf.xlu0
  %v3760 = vpop.trf.xlu0
  %v3761 = vpop.trf.xlu0
  %v3762 = vpop.trf.xlu0
  %v3763 = vpop.trf.xlu0
  %v3764 = vpop.trf.xlu0
  %v3765 = vpop.trf.xlu0
  %v3766 = vpop.trf.xlu0
  %v3767 = vrot.slane %v3463, 2
  %v3769 = vsel %vm502, %v3751, 0
  %v3772 = vsel %vm502, %v3752, 0
  %v3775 = vsel %vm502, %v3753, 0
  %v3778 = vsel %vm502, %v3754, 0
  %v3780 = vsel %vm515, %v3767, 0
  %3782 = vmatprep.subr.mxu0 0.0
  %3783 = vmatpush1.msra.mxu0 %v3780
  %3784 = vmatprep.subr.mxu0 0.0
  %3785 = vmatpush1.msra.mxu0 0.0
  %3786 = vmatprep.subr.mxu0 0.0
  %3787 = vmatpush1.msra.mxu0 0.0
  %3788 = vmatprep.subr.mxu0 0.0
  %3789 = vmatpush1.msra.mxu0 0.0
  %3790 = vmatprep.subr.mxu0 0.0
  %3791 = vmatpush1.msra.mxu0 0.0
  %3792 = vmatprep.subr.mxu0 0.0
  %3793 = vmatpush1.msra.mxu0 0.0
  %3794 = vmatprep.subr.mxu0 0.0
  %3795 = vmatpush1.msra.mxu0 0.0
  %3796 = vmatprep.subr.mxu0 0.0
  %3797 = vmatpush1.msra.mxu0 0.0
  %3798 = vmatprep.subr.mxu0 0.0
  %3799 = vmatpush1.msra.mxu0 0.0
  %3800 = vmatprep.subr.mxu0 0.0
  %3801 = vmatpush1.msra.mxu0 0.0
  %3802 = vmatprep.subr.mxu0 0.0
  %3803 = vmatpush1.msra.mxu0 0.0
  %3804 = vmatprep.subr.mxu0 0.0
  %3805 = vmatpush1.msra.mxu0 0.0
  %3806 = vmatprep.subr.mxu0 0.0
  %3807 = vmatpush1.msra.mxu0 0.0
  %3808 = vmatprep.subr.mxu0 0.0
  %3809 = vmatpush1.msra.mxu0 0.0
  %3810 = vmatprep.subr.mxu0 0.0
  %3811 = vmatpush1.msra.mxu0 0.0
  %3812 = vmatprep.subr.mxu0 0.0
  %3813 = vmatpush1.msra.mxu0 0.0
  %3814 = vmatprep.subr.mxu0 0.0
  %3815 = vmatpush1.msra.mxu0 0.0
  %3816 = vmatprep.subr.mxu0 0.0
  %3817 = vmatpush1.msra.mxu0 0.0
  %3818 = vmatprep.subr.mxu0 0.0
  %3819 = vmatpush1.msra.mxu0 0.0
  %3820 = vmatprep.subr.mxu0 0.0
  %3821 = vmatpush1.msra.mxu0 0.0
  %3822 = vmatprep.subr.mxu0 0.0
  %3823 = vmatpush1.msra.mxu0 0.0
  %3824 = vmatprep.subr.mxu0 0.0
  %3825 = vmatpush1.msra.mxu0 0.0
  %3826 = vmatprep.subr.mxu0 0.0
  %3827 = vmatpush1.msra.mxu0 0.0
  %3828 = vmatprep.subr.mxu0 0.0
  %3829 = vmatpush1.msra.mxu0 0.0
  %3830 = vmatprep.subr.mxu0 0.0
  %3831 = vmatpush1.msra.mxu0 0.0
  %3832 = vmatprep.subr.mxu0 0.0
  %3833 = vmatpush1.msra.mxu0 0.0
  %3834 = vmatprep.subr.mxu0 0.0
  %3835 = vmatpush1.msra.mxu0 0.0
  %3836 = vmatprep.subr.mxu0 0.0
  %3837 = vmatpush1.msra.mxu0 0.0
  %3838 = vmatprep.subr.mxu0 0.0
  %3839 = vmatpush1.msra.mxu0 0.0
  %3840 = vmatprep.subr.mxu0 0.0
  %3841 = vmatpush1.msra.mxu0 0.0
  %3842 = vmatprep.subr.mxu0 0.0
  %3843 = vmatpush1.msra.mxu0 0.0
  %3844 = vmatprep.subr.mxu0 0.0
  %3845 = vmatpush1.msra.mxu0 0.0
  %3846 = vmatprep.mubr.f32.mxu0 0.0
  %3847 = vmatmul.mubr.f32.gmra.mrb[0].mxu0 %v3769
  %v3848 = vpop.f32.mrb[0].mxu0
  %v3849 = vadd.f32 %v47, %v3848
  %v3850 = vpop.f32.mrb[0].mxu0
  %3851 = vmatprep.mubr.f32.mxu0 0.0
  %3852 = vmatmul.mubr.f32.gmra.mrb[0].mxu0 %v3772
  %v3853 = vpop.f32.mrb[0].mxu0
  %v3854 = vadd.f32 %v48, %v3853
  %v3855 = vpop.f32.mrb[0].mxu0
  %3856 = vmatprep.mubr.f32.mxu0 0.0
  %3857 = vmatmul.mubr.f32.gmra.mrb[0].mxu0 %v3775
  %v3858 = vpop.f32.mrb[0].mxu0
  %v3859 = vadd.f32 %v49, %v3858
  %v3860 = vpop.f32.mrb[0].mxu0
  %3861 = vmatprep.mubr.f32.mxu0 0.0
  %3862 = vmatmul.mubr.f32.gmra.mrb[0].mxu0 %v3778
  %v3863 = vpop.f32.mrb[0].mxu0
  %v3864 = vadd.f32 %v50, %v3863
  %v3865 = vpop.f32.mrb[0].mxu0
  %3866 = vdwg.mxu0
  %v3867 = vsel %vm604, %v3849, -inf
  %3868 = vmax.xlane.f32.xlu0 %v3867
  %v3869 = vpop.xlane.xlu0 %3868
  %v3870 = vsel %vm604, %v3854, -inf
  %3871 = vmax.xlane.f32.xlu0 %v3870
  %v3872 = vpop.xlane.xlu0 %3871
  %v3873 = vsel %vm604, %v3859, -inf
  %3874 = vmax.xlane.f32.xlu0 %v3873
  %v3875 = vpop.xlane.xlu0 %3874
  %v3876 = vsel %vm604, %v3864, -inf
  %3877 = vmax.xlane.f32.xlu0 %v3876
  %v3878 = vpop.xlane.xlu0 %3877
  %v3879 = vsub.f32 %v3849, %v3869
  %v3880 = vsub.f32 %v3854, %v3872
  %v3881 = vsub.f32 %v3859, %v3875
  %v3882 = vsub.f32 %v3864, %v3878
  %v3883 = vmul.f32 %v3879, 1.442695
  %v3884 = vpow.pop %v3883
  %v3885 = vmul.f32 %v3880, 1.442695
  %v3886 = vpow.pop %v3885
  %v3887 = vmul.f32 %v3881, 1.442695
  %v3888 = vpow.pop %v3887
  %v3889 = vmul.f32 %v3882, 1.442695
  %v3890 = vpow.pop %v3889
  %v3891 = vsel %vm604, %v3884, 0.0
  %3892 = vadd.xlane.f32.xlu0 %v3891
  %v3893 = vpop.xlane.xlu0 %3892
  %v3894 = vsel %vm604, %v3886, 0.0
  %3895 = vadd.xlane.f32.xlu0 %v3894
  %v3896 = vpop.xlane.xlu0 %3895
  %v3897 = vsel %vm604, %v3888, 0.0
  %3898 = vadd.xlane.f32.xlu0 %v3897
  %v3899 = vpop.xlane.xlu0 %3898
  %v3900 = vsel %vm604, %v3890, 0.0
  %3901 = vadd.xlane.f32.xlu0 %v3900
  %v3902 = vpop.xlane.xlu0 %3901
  %v3903 = vrcp.pop %v3893
  %v3904 = vrcp.pop %v3896
  %v3905 = vrcp.pop %v3899
  %v3906 = vrcp.pop %v3902
  %v3907 = vmul.f32 %v3884, %v3903
  %v3908 = vmul.f32 %v3886, %v3904
  %v3909 = vmul.f32 %v3888, %v3905
  %v3910 = vmul.f32 %v3890, %v3906
  %v3911 = vrot.slane %v3468, 2
  %v3912 = vsel %vm604, %v3911, 0
  %v3915 = vsel %vm604, %v3907, 0
  %v3918 = vsel %vm604, %v3908, 0
  %v3921 = vsel %vm604, %v3909, 0
  %v3924 = vsel %vm604, %v3910, 0
  %3926 = vmatprep.subr.mxu0 0.0
  %3927 = vmatpush1.xpose.msra.mxu0 %v3915
  %3928 = vmatprep.subr.mxu0 0.0
  %3929 = vmatpush1.xpose.msra.mxu0 %v3918
  %3930 = vmatprep.subr.mxu0 0.0
  %3931 = vmatpush1.xpose.msra.mxu0 %v3921
  %3932 = vmatprep.subr.mxu0 0.0
  %3933 = vmatpush1.xpose.msra.mxu0 %v3924
  %3934 = vmatprep.subr.mxu0 0.0
  %3935 = vmatpush1.xpose.msra.mxu0 0.0
  %3936 = vmatprep.subr.mxu0 0.0
  %3937 = vmatpush1.xpose.msra.mxu0 0.0
  %3938 = vmatprep.subr.mxu0 0.0
  %3939 = vmatpush1.xpose.msra.mxu0 0.0
  %3940 = vmatprep.subr.mxu0 0.0
  %3941 = vmatpush1.xpose.msra.mxu0 0.0
  %3942 = vmatprep.subr.mxu0 0.0
  %3943 = vmatpush1.xpose.msra.mxu0 0.0
  %3944 = vmatprep.subr.mxu0 0.0
  %3945 = vmatpush1.xpose.msra.mxu0 0.0
  %3946 = vmatprep.subr.mxu0 0.0
  %3947 = vmatpush1.xpose.msra.mxu0 0.0
  %3948 = vmatprep.subr.mxu0 0.0
  %3949 = vmatpush1.xpose.msra.mxu0 0.0
  %3950 = vmatprep.subr.mxu0 0.0
  %3951 = vmatpush1.xpose.msra.mxu0 0.0
  %3952 = vmatprep.subr.mxu0 0.0
  %3953 = vmatpush1.xpose.msra.mxu0 0.0
  %3954 = vmatprep.subr.mxu0 0.0
  %3955 = vmatpush1.xpose.msra.mxu0 0.0
  %3956 = vmatprep.subr.mxu0 0.0
  %3957 = vmatpush1.xpose.msra.mxu0 0.0
  %3958 = vmatprep.subr.mxu0 0.0
  %3959 = vmatpush1.xpose.msra.mxu0 0.0
  %3960 = vmatprep.subr.mxu0 0.0
  %3961 = vmatpush1.xpose.msra.mxu0 0.0
  %3962 = vmatprep.subr.mxu0 0.0
  %3963 = vmatpush1.xpose.msra.mxu0 0.0
  %3964 = vmatprep.subr.mxu0 0.0
  %3965 = vmatpush1.xpose.msra.mxu0 0.0
  %3966 = vmatprep.subr.mxu0 0.0
  %3967 = vmatpush1.xpose.msra.mxu0 0.0
  %3968 = vmatprep.subr.mxu0 0.0
  %3969 = vmatpush1.xpose.msra.mxu0 0.0
  %3970 = vmatprep.subr.mxu0 0.0
  %3971 = vmatpush1.xpose.msra.mxu0 0.0
  %3972 = vmatprep.subr.mxu0 0.0
  %3973 = vmatpush1.xpose.msra.mxu0 0.0
  %3974 = vmatprep.subr.mxu0 0.0
  %3975 = vmatpush1.xpose.msra.mxu0 0.0
  %3976 = vmatprep.subr.mxu0 0.0
  %3977 = vmatpush1.xpose.msra.mxu0 0.0
  %3978 = vmatprep.subr.mxu0 0.0
  %3979 = vmatpush1.xpose.msra.mxu0 0.0
  %3980 = vmatprep.subr.mxu0 0.0
  %3981 = vmatpush1.xpose.msra.mxu0 0.0
  %3982 = vmatprep.subr.mxu0 0.0
  %3983 = vmatpush1.xpose.msra.mxu0 0.0
  %3984 = vmatprep.subr.mxu0 0.0
  %3985 = vmatpush1.xpose.msra.mxu0 0.0
  %3986 = vmatprep.subr.mxu0 0.0
  %3987 = vmatpush1.xpose.msra.mxu0 0.0
  %3988 = vmatprep.subr.mxu0 0.0
  %3989 = vmatpush1.xpose.msra.mxu0 0.0
  %3990 = vmatprep.mubr.f32.mxu0 0.0
  %3991 = vmatmul.mubr.f32.gmra.mrb[0].mxu0 %v3912
  %v3992 = vpop.f32.mrb[0].mxu0
  %v3993 = vadd.f32 0.0, %v3992
  %v3994 = vpop.f32.mrb[0].mxu0
  %3995 = vdwg.mxu0
  %v3996 = vrot.slane %v3458, 4
  %3998 = vxpose.xlu0.b32.start [1/16] %v3996, 128
  %3999 = vxpose.xlu0.b32.cont [2/16] 0.0, 128
  %4000 = vxpose.xlu0.b32.cont [3/16] 0.0, 128
  %4001 = vxpose.xlu0.b32.cont [4/16] 0.0, 128
  %4002 = vxpose.xlu0.b32.cont [5/16] 0.0, 128
  %4003 = vxpose.xlu0.b32.cont [6/16] 0.0, 128
  %4004 = vxpose.xlu0.b32.cont [7/16] 0.0, 128
  %4005 = vxpose.xlu0.b32.cont [8/16] 0.0, 128
  %4006 = vxpose.xlu0.b32.cont [9/16] 0.0, 128
  %4007 = vxpose.xlu0.b32.cont [10/16] 0.0, 128
  %4008 = vxpose.xlu0.b32.cont [11/16] 0.0, 128
  %4009 = vxpose.xlu0.b32.cont [12/16] 0.0, 128
  %4010 = vxpose.xlu0.b32.cont [13/16] 0.0, 128
  %4011 = vxpose.xlu0.b32.cont [14/16] 0.0, 128
  %4012 = vxpose.xlu0.b32.cont [15/16] 0.0, 128
  %4013 = vxpose.xlu0.b32.end [16/16] 0.0, 128
  %v4014 = vpop.trf.xlu0
  %v4015 = vpop.trf.xlu0
  %v4016 = vpop.trf.xlu0
  %v4017 = vpop.trf.xlu0
  %v4018 = vpop.trf.xlu0
  %v4019 = vpop.trf.xlu0
  %v4020 = vpop.trf.xlu0
  %v4021 = vpop.trf.xlu0
  %v4022 = vpop.trf.xlu0
  %v4023 = vpop.trf.xlu0
  %v4024 = vpop.trf.xlu0
  %v4025 = vpop.trf.xlu0
  %v4026 = vpop.trf.xlu0
  %v4027 = vpop.trf.xlu0
  %v4028 = vpop.trf.xlu0
  %v4029 = vpop.trf.xlu0
  %v4030 = vrot.slane %v3463, 4
  %v4032 = vsel %vm502, %v4014, 0
  %v4035 = vsel %vm502, %v4015, 0
  %v4038 = vsel %vm502, %v4016, 0
  %v4041 = vsel %vm502, %v4017, 0
  %v4043 = vsel %vm515, %v4030, 0
  %4045 = vmatprep.subr.mxu0 0.0
  %4046 = vmatpush1.msra.mxu0 %v4043
  %4047 = vmatprep.subr.mxu0 0.0
  %4048 = vmatpush1.msra.mxu0 0.0
  %4049 = vmatprep.subr.mxu0 0.0
  %4050 = vmatpush1.msra.mxu0 0.0
  %4051 = vmatprep.subr.mxu0 0.0
  %4052 = vmatpush1.msra.mxu0 0.0
  %4053 = vmatprep.subr.mxu0 0.0
  %4054 = vmatpush1.msra.mxu0 0.0
  %4055 = vmatprep.subr.mxu0 0.0
  %4056 = vmatpush1.msra.mxu0 0.0
  %4057 = vmatprep.subr.mxu0 0.0
  %4058 = vmatpush1.msra.mxu0 0.0
  %4059 = vmatprep.subr.mxu0 0.0
  %4060 = vmatpush1.msra.mxu0 0.0
  %4061 = vmatprep.subr.mxu0 0.0
  %4062 = vmatpush1.msra.mxu0 0.0
  %4063 = vmatprep.subr.mxu0 0.0
  %4064 = vmatpush1.msra.mxu0 0.0
  %4065 = vmatprep.subr.mxu0 0.0
  %4066 = vmatpush1.msra.mxu0 0.0
  %4067 = vmatprep.subr.mxu0 0.0
  %4068 = vmatpush1.msra.mxu0 0.0
  %4069 = vmatprep.subr.mxu0 0.0
  %4070 = vmatpush1.msra.mxu0 0.0
  %4071 = vmatprep.subr.mxu0 0.0
  %4072 = vmatpush1.msra.mxu0 0.0
  %4073 = vmatprep.subr.mxu0 0.0
  %4074 = vmatpush1.msra.mxu0 0.0
  %4075 = vmatprep.subr.mxu0 0.0
  %4076 = vmatpush1.msra.mxu0 0.0
  %4077 = vmatprep.subr.mxu0 0.0
  %4078 = vmatpush1.msra.mxu0 0.0
  %4079 = vmatprep.subr.mxu0 0.0
  %4080 = vmatpush1.msra.mxu0 0.0
  %4081 = vmatprep.subr.mxu0 0.0
  %4082 = vmatpush1.msra.mxu0 0.0
  %4083 = vmatprep.subr.mxu0 0.0
  %4084 = vmatpush1.msra.mxu0 0.0
  %4085 = vmatprep.subr.mxu0 0.0
  %4086 = vmatpush1.msra.mxu0 0.0
  %4087 = vmatprep.subr.mxu0 0.0
  %4088 = vmatpush1.msra.mxu0 0.0
  %4089 = vmatprep.subr.mxu0 0.0
  %4090 = vmatpush1.msra.mxu0 0.0
  %4091 = vmatprep.subr.mxu0 0.0
  %4092 = vmatpush1.msra.mxu0 0.0
  %4093 = vmatprep.subr.mxu0 0.0
  %4094 = vmatpush1.msra.mxu0 0.0
  %4095 = vmatprep.subr.mxu0 0.0
  %4096 = vmatpush1.msra.mxu0 0.0
  %4097 = vmatprep.subr.mxu0 0.0
  %4098 = vmatpush1.msra.mxu0 0.0
  %4099 = vmatprep.subr.mxu0 0.0
  %4100 = vmatpush1.msra.mxu0 0.0
  %4101 = vmatprep.subr.mxu0 0.0
  %4102 = vmatpush1.msra.mxu0 0.0
  %4103 = vmatprep.subr.mxu0 0.0
  %4104 = vmatpush1.msra.mxu0 0.0
  %4105 = vmatprep.subr.mxu0 0.0
  %4106 = vmatpush1.msra.mxu0 0.0
  %4107 = vmatprep.subr.mxu0 0.0
  %4108 = vmatpush1.msra.mxu0 0.0
  %4109 = vmatprep.mubr.f32.mxu0 0.0
  %4110 = vmatmul.mubr.f32.gmra.mrb[0].mxu0 %v4032
  %v4111 = vpop.f32.mrb[0].mxu0
  %v4112 = vadd.f32 %v47, %v4111
  %v4113 = vpop.f32.mrb[0].mxu0
  %4114 = vmatprep.mubr.f32.mxu0 0.0
  %4115 = vmatmul.mubr.f32.gmra.mrb[0].mxu0 %v4035
  %v4116 = vpop.f32.mrb[0].mxu0
  %v4117 = vadd.f32 %v48, %v4116
  %v4118 = vpop.f32.mrb[0].mxu0
  %4119 = vmatprep.mubr.f32.mxu0 0.0
  %4120 = vmatmul.mubr.f32.gmra.mrb[0].mxu0 %v4038
  %v4121 = vpop.f32.mrb[0].mxu0
  %v4122 = vadd.f32 %v49, %v4121
  %v4123 = vpop.f32.mrb[0].mxu0
  %4124 = vmatprep.mubr.f32.mxu0 0.0
  %4125 = vmatmul.mubr.f32.gmra.mrb[0].mxu0 %v4041
  %v4126 = vpop.f32.mrb[0].mxu0
  %v4127 = vadd.f32 %v50, %v4126
  %v4128 = vpop.f32.mrb[0].mxu0
  %4129 = vdwg.mxu0
  %v4130 = vsel %vm604, %v4112, -inf
  %4131 = vmax.xlane.f32.xlu0 %v4130
  %v4132 = vpop.xlane.xlu0 %4131
  %v4133 = vsel %vm604, %v4117, -inf
  %4134 = vmax.xlane.f32.xlu0 %v4133
  %v4135 = vpop.xlane.xlu0 %4134
  %v4136 = vsel %vm604, %v4122, -inf
  %4137 = vmax.xlane.f32.xlu0 %v4136
  %v4138 = vpop.xlane.xlu0 %4137
  %v4139 = vsel %vm604, %v4127, -inf
  %4140 = vmax.xlane.f32.xlu0 %v4139
  %v4141 = vpop.xlane.xlu0 %4140
  %v4142 = vsub.f32 %v4112, %v4132
  %v4143 = vsub.f32 %v4117, %v4135
  %v4144 = vsub.f32 %v4122, %v4138
  %v4145 = vsub.f32 %v4127, %v4141
  %v4146 = vmul.f32 %v4142, 1.442695
  %v4147 = vpow.pop %v4146
  %v4148 = vmul.f32 %v4143, 1.442695
  %v4149 = vpow.pop %v4148
  %v4150 = vmul.f32 %v4144, 1.442695
  %v4151 = vpow.pop %v4150
  %v4152 = vmul.f32 %v4145, 1.442695
  %v4153 = vpow.pop %v4152
  %v4154 = vsel %vm604, %v4147, 0.0
  %4155 = vadd.xlane.f32.xlu0 %v4154
  %v4156 = vpop.xlane.xlu0 %4155
  %v4157 = vsel %vm604, %v4149, 0.0
  %4158 = vadd.xlane.f32.xlu0 %v4157
  %v4159 = vpop.xlane.xlu0 %4158
  %v4160 = vsel %vm604, %v4151, 0.0
  %4161 = vadd.xlane.f32.xlu0 %v4160
  %v4162 = vpop.xlane.xlu0 %4161
  %v4163 = vsel %vm604, %v4153, 0.0
  %4164 = vadd.xlane.f32.xlu0 %v4163
  %v4165 = vpop.xlane.xlu0 %4164
  %v4166 = vrcp.pop %v4156
  %v4167 = vrcp.pop %v4159
  %v4168 = vrcp.pop %v4162
  %v4169 = vrcp.pop %v4165
  %v4170 = vmul.f32 %v4147, %v4166
  %v4171 = vmul.f32 %v4149, %v4167
  %v4172 = vmul.f32 %v4151, %v4168
  %v4173 = vmul.f32 %v4153, %v4169
  %v4174 = vrot.slane %v3468, 4
  %v4175 = vsel %vm604, %v4174, 0
  %v4178 = vsel %vm604, %v4170, 0
  %v4181 = vsel %vm604, %v4171, 0
  %v4184 = vsel %vm604, %v4172, 0
  %v4187 = vsel %vm604, %v4173, 0
  %4189 = vmatprep.subr.mxu0 0.0
  %4190 = vmatpush1.xpose.msra.mxu0 %v4178
  %4191 = vmatprep.subr.mxu0 0.0
  %4192 = vmatpush1.xpose.msra.mxu0 %v4181
  %4193 = vmatprep.subr.mxu0 0.0
  %4194 = vmatpush1.xpose.msra.mxu0 %v4184
  %4195 = vmatprep.subr.mxu0 0.0
  %4196 = vmatpush1.xpose.msra.mxu0 %v4187
  %4197 = vmatprep.subr.mxu0 0.0
  %4198 = vmatpush1.xpose.msra.mxu0 0.0
  %4199 = vmatprep.subr.mxu0 0.0
  %4200 = vmatpush1.xpose.msra.mxu0 0.0
  %4201 = vmatprep.subr.mxu0 0.0
  %4202 = vmatpush1.xpose.msra.mxu0 0.0
  %4203 = vmatprep.subr.mxu0 0.0
  %4204 = vmatpush1.xpose.msra.mxu0 0.0
  %4205 = vmatprep.subr.mxu0 0.0
  %4206 = vmatpush1.xpose.msra.mxu0 0.0
  %4207 = vmatprep.subr.mxu0 0.0
  %4208 = vmatpush1.xpose.msra.mxu0 0.0
  %4209 = vmatprep.subr.mxu0 0.0
  %4210 = vmatpush1.xpose.msra.mxu0 0.0
  %4211 = vmatprep.subr.mxu0 0.0
  %4212 = vmatpush1.xpose.msra.mxu0 0.0
  %4213 = vmatprep.subr.mxu0 0.0
  %4214 = vmatpush1.xpose.msra.mxu0 0.0
  %4215 = vmatprep.subr.mxu0 0.0
  %4216 = vmatpush1.xpose.msra.mxu0 0.0
  %4217 = vmatprep.subr.mxu0 0.0
  %4218 = vmatpush1.xpose.msra.mxu0 0.0
  %4219 = vmatprep.subr.mxu0 0.0
  %4220 = vmatpush1.xpose.msra.mxu0 0.0
  %4221 = vmatprep.subr.mxu0 0.0
  %4222 = vmatpush1.xpose.msra.mxu0 0.0
  %4223 = vmatprep.subr.mxu0 0.0
  %4224 = vmatpush1.xpose.msra.mxu0 0.0
  %4225 = vmatprep.subr.mxu0 0.0
  %4226 = vmatpush1.xpose.msra.mxu0 0.0
  %4227 = vmatprep.subr.mxu0 0.0
  %4228 = vmatpush1.xpose.msra.mxu0 0.0
  %4229 = vmatprep.subr.mxu0 0.0
  %4230 = vmatpush1.xpose.msra.mxu0 0.0
  %4231 = vmatprep.subr.mxu0 0.0
  %4232 = vmatpush1.xpose.msra.mxu0 0.0
  %4233 = vmatprep.subr.mxu0 0.0
  %4234 = vmatpush1.xpose.msra.mxu0 0.0
  %4235 = vmatprep.subr.mxu0 0.0
  %4236 = vmatpush1.xpose.msra.mxu0 0.0
  %4237 = vmatprep.subr.mxu0 0.0
  %4238 = vmatpush1.xpose.msra.mxu0 0.0
  %4239 = vmatprep.subr.mxu0 0.0
  %4240 = vmatpush1.xpose.msra.mxu0 0.0
  %4241 = vmatprep.subr.mxu0 0.0
  %4242 = vmatpush1.xpose.msra.mxu0 0.0
  %4243 = vmatprep.subr.mxu0 0.0
  %4244 = vmatpush1.xpose.msra.mxu0 0.0
  %4245 = vmatprep.subr.mxu0 0.0
  %4246 = vmatpush1.xpose.msra.mxu0 0.0
  %4247 = vmatprep.subr.mxu0 0.0
  %4248 = vmatpush1.xpose.msra.mxu0 0.0
  %4249 = vmatprep.subr.mxu0 0.0
  %4250 = vmatpush1.xpose.msra.mxu0 0.0
  %4251 = vmatprep.subr.mxu0 0.0
  %4252 = vmatpush1.xpose.msra.mxu0 0.0
  %4253 = vmatprep.mubr.f32.mxu0 0.0
  %4254 = vmatmul.mubr.f32.gmra.mrb[0].mxu0 %v4175
  %v4255 = vpop.f32.mrb[0].mxu0
  %v4256 = vadd.f32 0.0, %v4255
  %v4257 = vpop.f32.mrb[0].mxu0
  %4258 = vdwg.mxu0
  %v4259 = vrot.slane %v3458, 6
  %4261 = vxpose.xlu0.b32.start [1/16] %v4259, 128
  %4262 = vxpose.xlu0.b32.cont [2/16] 0.0, 128
  %4263 = vxpose.xlu0.b32.cont [3/16] 0.0, 128
  %4264 = vxpose.xlu0.b32.cont [4/16] 0.0, 128
  %4265 = vxpose.xlu0.b32.cont [5/16] 0.0, 128
  %4266 = vxpose.xlu0.b32.cont [6/16] 0.0, 128
  %4267 = vxpose.xlu0.b32.cont [7/16] 0.0, 128
  %4268 = vxpose.xlu0.b32.cont [8/16] 0.0, 128
  %4269 = vxpose.xlu0.b32.cont [9/16] 0.0, 128
  %4270 = vxpose.xlu0.b32.cont [10/16] 0.0, 128
  %4271 = vxpose.xlu0.b32.cont [11/16] 0.0, 128
  %4272 = vxpose.xlu0.b32.cont [12/16] 0.0, 128
  %4273 = vxpose.xlu0.b32.cont [13/16] 0.0, 128
  %4274 = vxpose.xlu0.b32.cont [14/16] 0.0, 128
  %4275 = vxpose.xlu0.b32.cont [15/16] 0.0, 128
  %4276 = vxpose.xlu0.b32.end [16/16] 0.0, 128
  %v4277 = vpop.trf.xlu0
  %v4278 = vpop.trf.xlu0
  %v4279 = vpop.trf.xlu0
  %v4280 = vpop.trf.xlu0
  %v4281 = vpop.trf.xlu0
  %v4282 = vpop.trf.xlu0
  %v4283 = vpop.trf.xlu0
  %v4284 = vpop.trf.xlu0
  %v4285 = vpop.trf.xlu0
  %v4286 = vpop.trf.xlu0
  %v4287 = vpop.trf.xlu0
  %v4288 = vpop.trf.xlu0
  %v4289 = vpop.trf.xlu0
  %v4290 = vpop.trf.xlu0
  %v4291 = vpop.trf.xlu0
  %v4292 = vpop.trf.xlu0
  %v4293 = vrot.slane %v3463, 6
  %v4295 = vsel %vm502, %v4277, 0
  %v4298 = vsel %vm502, %v4278, 0
  %v4301 = vsel %vm502, %v4279, 0
  %v4304 = vsel %vm502, %v4280, 0
  %v4306 = vsel %vm515, %v4293, 0
  %4308 = vmatprep.subr.mxu0 0.0
  %4309 = vmatpush1.msra.mxu0 %v4306
  %4310 = vmatprep.subr.mxu0 0.0
  %4311 = vmatpush1.msra.mxu0 0.0
  %4312 = vmatprep.subr.mxu0 0.0
  %4313 = vmatpush1.msra.mxu0 0.0
  %4314 = vmatprep.subr.mxu0 0.0
  %4315 = vmatpush1.msra.mxu0 0.0
  %4316 = vmatprep.subr.mxu0 0.0
  %4317 = vmatpush1.msra.mxu0 0.0
  %4318 = vmatprep.subr.mxu0 0.0
  %4319 = vmatpush1.msra.mxu0 0.0
  %4320 = vmatprep.subr.mxu0 0.0
  %4321 = vmatpush1.msra.mxu0 0.0
  %4322 = vmatprep.subr.mxu0 0.0
  %4323 = vmatpush1.msra.mxu0 0.0
  %4324 = vmatprep.subr.mxu0 0.0
  %4325 = vmatpush1.msra.mxu0 0.0
  %4326 = vmatprep.subr.mxu0 0.0
  %4327 = vmatpush1.msra.mxu0 0.0
  %4328 = vmatprep.subr.mxu0 0.0
  %4329 = vmatpush1.msra.mxu0 0.0
  %4330 = vmatprep.subr.mxu0 0.0
  %4331 = vmatpush1.msra.mxu0 0.0
  %4332 = vmatprep.subr.mxu0 0.0
  %4333 = vmatpush1.msra.mxu0 0.0
  %4334 = vmatprep.subr.mxu0 0.0
  %4335 = vmatpush1.msra.mxu0 0.0
  %4336 = vmatprep.subr.mxu0 0.0
  %4337 = vmatpush1.msra.mxu0 0.0
  %4338 = vmatprep.subr.mxu0 0.0
  %4339 = vmatpush1.msra.mxu0 0.0
  %4340 = vmatprep.subr.mxu0 0.0
  %4341 = vmatpush1.msra.mxu0 0.0
  %4342 = vmatprep.subr.mxu0 0.0
  %4343 = vmatpush1.msra.mxu0 0.0
  %4344 = vmatprep.subr.mxu0 0.0
  %4345 = vmatpush1.msra.mxu0 0.0
  %4346 = vmatprep.subr.mxu0 0.0
  %4347 = vmatpush1.msra.mxu0 0.0
  %4348 = vmatprep.subr.mxu0 0.0
  %4349 = vmatpush1.msra.mxu0 0.0
  %4350 = vmatprep.subr.mxu0 0.0
  %4351 = vmatpush1.msra.mxu0 0.0
  %4352 = vmatprep.subr.mxu0 0.0
  %4353 = vmatpush1.msra.mxu0 0.0
  %4354 = vmatprep.subr.mxu0 0.0
  %4355 = vmatpush1.msra.mxu0 0.0
  %4356 = vmatprep.subr.mxu0 0.0
  %4357 = vmatpush1.msra.mxu0 0.0
  %4358 = vmatprep.subr.mxu0 0.0
  %4359 = vmatpush1.msra.mxu0 0.0
  %4360 = vmatprep.subr.mxu0 0.0
  %4361 = vmatpush1.msra.mxu0 0.0
  %4362 = vmatprep.subr.mxu0 0.0
  %4363 = vmatpush1.msra.mxu0 0.0
  %4364 = vmatprep.subr.mxu0 0.0
  %4365 = vmatpush1.msra.mxu0 0.0
  %4366 = vmatprep.subr.mxu0 0.0
  %4367 = vmatpush1.msra.mxu0 0.0
  %4368 = vmatprep.subr.mxu0 0.0
  %4369 = vmatpush1.msra.mxu0 0.0
  %4370 = vmatprep.subr.mxu0 0.0
  %4371 = vmatpush1.msra.mxu0 0.0
  %4372 = vmatprep.mubr.f32.mxu0 0.0
  %4373 = vmatmul.mubr.f32.gmra.mrb[0].mxu0 %v4295
  %v4374 = vpop.f32.mrb[0].mxu0
  %v4375 = vadd.f32 %v47, %v4374
  %v4376 = vpop.f32.mrb[0].mxu0
  %4377 = vmatprep.mubr.f32.mxu0 0.0
  %4378 = vmatmul.mubr.f32.gmra.mrb[0].mxu0 %v4298
  %v4379 = vpop.f32.mrb[0].mxu0
  %v4380 = vadd.f32 %v48, %v4379
  %v4381 = vpop.f32.mrb[0].mxu0
  %4382 = vmatprep.mubr.f32.mxu0 0.0
  %4383 = vmatmul.mubr.f32.gmra.mrb[0].mxu0 %v4301
  %v4384 = vpop.f32.mrb[0].mxu0
  %v4385 = vadd.f32 %v49, %v4384
  %v4386 = vpop.f32.mrb[0].mxu0
  %4387 = vmatprep.mubr.f32.mxu0 0.0
  %4388 = vmatmul.mubr.f32.gmra.mrb[0].mxu0 %v4304
  %v4389 = vpop.f32.mrb[0].mxu0
  %v4390 = vadd.f32 %v50, %v4389
  %v4391 = vpop.f32.mrb[0].mxu0
  %4392 = vdwg.mxu0
  %v4393 = vsel %vm604, %v4375, -inf
  %4394 = vmax.xlane.f32.xlu0 %v4393
  %v4395 = vpop.xlane.xlu0 %4394
  %v4396 = vsel %vm604, %v4380, -inf
  %4397 = vmax.xlane.f32.xlu0 %v4396
  %v4398 = vpop.xlane.xlu0 %4397
  %v4399 = vsel %vm604, %v4385, -inf
  %4400 = vmax.xlane.f32.xlu0 %v4399
  %v4401 = vpop.xlane.xlu0 %4400
  %v4402 = vsel %vm604, %v4390, -inf
  %4403 = vmax.xlane.f32.xlu0 %v4402
  %v4404 = vpop.xlane.xlu0 %4403
  %v4405 = vsub.f32 %v4375, %v4395
  %v4406 = vsub.f32 %v4380, %v4398
  %v4407 = vsub.f32 %v4385, %v4401
  %v4408 = vsub.f32 %v4390, %v4404
  %v4409 = vmul.f32 %v4405, 1.442695
  %v4410 = vpow.pop %v4409
  %v4411 = vmul.f32 %v4406, 1.442695
  %v4412 = vpow.pop %v4411
  %v4413 = vmul.f32 %v4407, 1.442695
  %v4414 = vpow.pop %v4413
  %v4415 = vmul.f32 %v4408, 1.442695
  %v4416 = vpow.pop %v4415
  %v4417 = vsel %vm604, %v4410, 0.0
  %4418 = vadd.xlane.f32.xlu0 %v4417
  %v4419 = vpop.xlane.xlu0 %4418
  %v4420 = vsel %vm604, %v4412, 0.0
  %4421 = vadd.xlane.f32.xlu0 %v4420
  %v4422 = vpop.xlane.xlu0 %4421
  %v4423 = vsel %vm604, %v4414, 0.0
  %4424 = vadd.xlane.f32.xlu0 %v4423
  %v4425 = vpop.xlane.xlu0 %4424
  %v4426 = vsel %vm604, %v4416, 0.0
  %4427 = vadd.xlane.f32.xlu0 %v4426
  %v4428 = vpop.xlane.xlu0 %4427
  %v4429 = vrcp.pop %v4419
  %v4430 = vrcp.pop %v4422
  %v4431 = vrcp.pop %v4425
  %v4432 = vrcp.pop %v4428
  %v4433 = vmul.f32 %v4410, %v4429
  %v4434 = vmul.f32 %v4412, %v4430
  %v4435 = vmul.f32 %v4414, %v4431
  %v4436 = vmul.f32 %v4416, %v4432
  %v4437 = vrot.slane %v3468, 6
  %v4438 = vsel %vm604, %v4437, 0
  %v4441 = vsel %vm604, %v4433, 0
  %v4444 = vsel %vm604, %v4434, 0
  %v4447 = vsel %vm604, %v4435, 0
  %v4450 = vsel %vm604, %v4436, 0
  %4452 = vmatprep.subr.mxu0 0.0
  %4453 = vmatpush1.xpose.msra.mxu0 %v4441
  %4454 = vmatprep.subr.mxu0 0.0
  %4455 = vmatpush1.xpose.msra.mxu0 %v4444
  %4456 = vmatprep.subr.mxu0 0.0
  %4457 = vmatpush1.xpose.msra.mxu0 %v4447
  %4458 = vmatprep.subr.mxu0 0.0
  %4459 = vmatpush1.xpose.msra.mxu0 %v4450
  %4460 = vmatprep.subr.mxu0 0.0
  %4461 = vmatpush1.xpose.msra.mxu0 0.0
  %4462 = vmatprep.subr.mxu0 0.0
  %4463 = vmatpush1.xpose.msra.mxu0 0.0
  %4464 = vmatprep.subr.mxu0 0.0
  %4465 = vmatpush1.xpose.msra.mxu0 0.0
  %4466 = vmatprep.subr.mxu0 0.0
  %4467 = vmatpush1.xpose.msra.mxu0 0.0
  %4468 = vmatprep.subr.mxu0 0.0
  %4469 = vmatpush1.xpose.msra.mxu0 0.0
  %4470 = vmatprep.subr.mxu0 0.0
  %4471 = vmatpush1.xpose.msra.mxu0 0.0
  %4472 = vmatprep.subr.mxu0 0.0
  %4473 = vmatpush1.xpose.msra.mxu0 0.0
  %4474 = vmatprep.subr.mxu0 0.0
  %4475 = vmatpush1.xpose.msra.mxu0 0.0
  %4476 = vmatprep.subr.mxu0 0.0
  %4477 = vmatpush1.xpose.msra.mxu0 0.0
  %4478 = vmatprep.subr.mxu0 0.0
  %4479 = vmatpush1.xpose.msra.mxu0 0.0
  %4480 = vmatprep.subr.mxu0 0.0
  %4481 = vmatpush1.xpose.msra.mxu0 0.0
  %4482 = vmatprep.subr.mxu0 0.0
  %4483 = vmatpush1.xpose.msra.mxu0 0.0
  %4484 = vmatprep.subr.mxu0 0.0
  %4485 = vmatpush1.xpose.msra.mxu0 0.0
  %4486 = vmatprep.subr.mxu0 0.0
  %4487 = vmatpush1.xpose.msra.mxu0 0.0
  %4488 = vmatprep.subr.mxu0 0.0
  %4489 = vmatpush1.xpose.msra.mxu0 0.0
  %4490 = vmatprep.subr.mxu0 0.0
  %4491 = vmatpush1.xpose.msra.mxu0 0.0
  %4492 = vmatprep.subr.mxu0 0.0
  %4493 = vmatpush1.xpose.msra.mxu0 0.0
  %4494 = vmatprep.subr.mxu0 0.0
  %4495 = vmatpush1.xpose.msra.mxu0 0.0
  %4496 = vmatprep.subr.mxu0 0.0
  %4497 = vmatpush1.xpose.msra.mxu0 0.0
  %4498 = vmatprep.subr.mxu0 0.0
  %4499 = vmatpush1.xpose.msra.mxu0 0.0
  %4500 = vmatprep.subr.mxu0 0.0
  %4501 = vmatpush1.xpose.msra.mxu0 0.0
  %4502 = vmatprep.subr.mxu0 0.0
  %4503 = vmatpush1.xpose.msra.mxu0 0.0
  %4504 = vmatprep.subr.mxu0 0.0
  %4505 = vmatpush1.xpose.msra.mxu0 0.0
  %4506 = vmatprep.subr.mxu0 0.0
  %4507 = vmatpush1.xpose.msra.mxu0 0.0
  %4508 = vmatprep.subr.mxu0 0.0
  %4509 = vmatpush1.xpose.msra.mxu0 0.0
  %4510 = vmatprep.subr.mxu0 0.0
  %4511 = vmatpush1.xpose.msra.mxu0 0.0
  %4512 = vmatprep.subr.mxu0 0.0
  %4513 = vmatpush1.xpose.msra.mxu0 0.0
  %4514 = vmatprep.subr.mxu0 0.0
  %4515 = vmatpush1.xpose.msra.mxu0 0.0
  %4516 = vmatprep.mubr.f32.mxu0 0.0
  %4517 = vmatmul.mubr.f32.gmra.mrb[0].mxu0 %v4438
  %v4518 = vpop.f32.mrb[0].mxu0
  %v4519 = vadd.f32 0.0, %v4518
  %v4520 = vpop.f32.mrb[0].mxu0
  %4521 = vdwg.mxu0
  %v4523 = vrot.slane %v3993, 6
  %v4526 = vrot.slane %v4256, 4
  %v4529 = vrot.slane %v4519, 2
  %v4531 = vsel %vm515, %v3729, %v4523
  %v4532 = vsel %vm1534, %v4531, %v4526
  %v4533 = vsel %vm1536, %v4532, %v4529
  %4535 = vset.pattern.permute.xlu0 0
  %4536 = vperm.xlu0 %4535, %v3366
  %v4537 = vpop.permute.xlu0 %4536
  %v4540 = vsel %vm66, %v3364, 0
  %4542 = vmatprep.subr.mxu0 0.0
  %4543 = vmatpush1.msra.mxu0 %v4533
  %4544 = vmatprep.subr.mxu0 0.0
  %4545 = vmatpush1.msra.mxu0 0.0
  %4546 = vmatprep.subr.mxu0 0.0
  %4547 = vmatpush1.msra.mxu0 0.0
  %4548 = vmatprep.subr.mxu0 0.0
  %4549 = vmatpush1.msra.mxu0 0.0
  %4550 = vmatprep.subr.mxu0 0.0
  %4551 = vmatpush1.msra.mxu0 0.0
  %4552 = vmatprep.subr.mxu0 0.0
  %4553 = vmatpush1.msra.mxu0 0.0
  %4554 = vmatprep.subr.mxu0 0.0
  %4555 = vmatpush1.msra.mxu0 0.0
  %4556 = vmatprep.subr.mxu0 0.0
  %4557 = vmatpush1.msra.mxu0 0.0
  %4558 = vmatprep.subr.mxu0 0.0
  %4559 = vmatpush1.msra.mxu0 0.0
  %4560 = vmatprep.subr.mxu0 0.0
  %4561 = vmatpush1.msra.mxu0 0.0
  %4562 = vmatprep.subr.mxu0 0.0
  %4563 = vmatpush1.msra.mxu0 0.0
  %4564 = vmatprep.subr.mxu0 0.0
  %4565 = vmatpush1.msra.mxu0 0.0
  %4566 = vmatprep.subr.mxu0 0.0
  %4567 = vmatpush1.msra.mxu0 0.0
  %4568 = vmatprep.subr.mxu0 0.0
  %4569 = vmatpush1.msra.mxu0 0.0
  %4570 = vmatprep.subr.mxu0 0.0
  %4571 = vmatpush1.msra.mxu0 0.0
  %4572 = vmatprep.subr.mxu0 0.0
  %4573 = vmatpush1.msra.mxu0 0.0
  %4574 = vmatprep.subr.mxu0 0.0
  %4575 = vmatpush1.msra.mxu0 0.0
  %4576 = vmatprep.subr.mxu0 0.0
  %4577 = vmatpush1.msra.mxu0 0.0
  %4578 = vmatprep.subr.mxu0 0.0
  %4579 = vmatpush1.msra.mxu0 0.0
  %4580 = vmatprep.subr.mxu0 0.0
  %4581 = vmatpush1.msra.mxu0 0.0
  %4582 = vmatprep.subr.mxu0 0.0
  %4583 = vmatpush1.msra.mxu0 0.0
  %4584 = vmatprep.subr.mxu0 0.0
  %4585 = vmatpush1.msra.mxu0 0.0
  %4586 = vmatprep.subr.mxu0 0.0
  %4587 = vmatpush1.msra.mxu0 0.0
  %4588 = vmatprep.subr.mxu0 0.0
  %4589 = vmatpush1.msra.mxu0 0.0
  %4590 = vmatprep.subr.mxu0 0.0
  %4591 = vmatpush1.msra.mxu0 0.0
  %4592 = vmatprep.subr.mxu0 0.0
  %4593 = vmatpush1.msra.mxu0 0.0
  %4594 = vmatprep.subr.mxu0 0.0
  %4595 = vmatpush1.msra.mxu0 0.0
  %4596 = vmatprep.subr.mxu0 0.0
  %4597 = vmatpush1.msra.mxu0 0.0
  %4598 = vmatprep.subr.mxu0 0.0
  %4599 = vmatpush1.msra.mxu0 0.0
  %4600 = vmatprep.subr.mxu0 0.0
  %4601 = vmatpush1.msra.mxu0 0.0
  %4602 = vmatprep.subr.mxu0 0.0
  %4603 = vmatpush1.msra.mxu0 0.0
  %4604 = vmatprep.subr.mxu0 0.0
  %4605 = vmatpush1.msra.mxu0 0.0
  %4606 = vmatprep.mubr.f32.mxu0 0.0
  %4607 = vmatmul.mubr.f32.gmra.mrb[0].mxu0 %v4540
  %v4608 = vpop.f32.mrb[0].mxu0
  %v4609 = vadd.f32 %v4537, %v4608
  %v4610 = vpop.f32.mrb[0].mxu0
  %4611 = vdwg.mxu0
  %v4613 = vsel %vm604, %v4609, 0
  %4615 = vmatprep.subr.mxu0 0.0
  %4616 = vmatpush1.msra.mxu0 %v51
  %4617 = vmatprep.subr.mxu0 0.0
  %4618 = vmatpush1.msra.mxu0 %v52
  %4619 = vmatprep.subr.mxu0 0.0
  %4620 = vmatpush1.msra.mxu0 %v53
  %4621 = vmatprep.subr.mxu0 0.0
  %4622 = vmatpush1.msra.mxu0 %v54
  %4623 = vmatprep.subr.mxu0 0.0
  %4624 = vmatpush1.msra.mxu0 0.0
  %4625 = vmatprep.subr.mxu0 0.0
  %4626 = vmatpush1.msra.mxu0 0.0
  %4627 = vmatprep.subr.mxu0 0.0
  %4628 = vmatpush1.msra.mxu0 0.0
  %4629 = vmatprep.subr.mxu0 0.0
  %4630 = vmatpush1.msra.mxu0 0.0
  %4631 = vmatprep.subr.mxu0 0.0
  %4632 = vmatpush1.msra.mxu0 0.0
  %4633 = vmatprep.subr.mxu0 0.0
  %4634 = vmatpush1.msra.mxu0 0.0
  %4635 = vmatprep.subr.mxu0 0.0
  %4636 = vmatpush1.msra.mxu0 0.0
  %4637 = vmatprep.subr.mxu0 0.0
  %4638 = vmatpush1.msra.mxu0 0.0
  %4639 = vmatprep.subr.mxu0 0.0
  %4640 = vmatpush1.msra.mxu0 0.0
  %4641 = vmatprep.subr.mxu0 0.0
  %4642 = vmatpush1.msra.mxu0 0.0
  %4643 = vmatprep.subr.mxu0 0.0
  %4644 = vmatpush1.msra.mxu0 0.0
  %4645 = vmatprep.subr.mxu0 0.0
  %4646 = vmatpush1.msra.mxu0 0.0
  %4647 = vmatprep.subr.mxu0 0.0
  %4648 = vmatpush1.msra.mxu0 0.0
  %4649 = vmatprep.subr.mxu0 0.0
  %4650 = vmatpush1.msra.mxu0 0.0
  %4651 = vmatprep.subr.mxu0 0.0
  %4652 = vmatpush1.msra.mxu0 0.0
  %4653 = vmatprep.subr.mxu0 0.0
  %4654 = vmatpush1.msra.mxu0 0.0
  %4655 = vmatprep.subr.mxu0 0.0
  %4656 = vmatpush1.msra.mxu0 0.0
  %4657 = vmatprep.subr.mxu0 0.0
  %4658 = vmatpush1.msra.mxu0 0.0
  %4659 = vmatprep.subr.mxu0 0.0
  %4660 = vmatpush1.msra.mxu0 0.0
  %4661 = vmatprep.subr.mxu0 0.0
  %4662 = vmatpush1.msra.mxu0 0.0
  %4663 = vmatprep.subr.mxu0 0.0
  %4664 = vmatpush1.msra.mxu0 0.0
  %4665 = vmatprep.subr.mxu0 0.0
  %4666 = vmatpush1.msra.mxu0 0.0
  %4667 = vmatprep.subr.mxu0 0.0
  %4668 = vmatpush1.msra.mxu0 0.0
  %4669 = vmatprep.subr.mxu0 0.0
  %4670 = vmatpush1.msra.mxu0 0.0
  %4671 = vmatprep.subr.mxu0 0.0
  %4672 = vmatpush1.msra.mxu0 0.0
  %4673 = vmatprep.subr.mxu0 0.0
  %4674 = vmatpush1.msra.mxu0 0.0
  %4675 = vmatprep.subr.mxu0 0.0
  %4676 = vmatpush1.msra.mxu0 0.0
  %4677 = vmatprep.subr.mxu0 0.0
  %4678 = vmatpush1.msra.mxu0 0.0
  %4679 = vmatprep.mubr.f32.mxu0 0.0
  %4680 = vmatmul.mubr.f32.gmra.mrb[0].mxu0 %v4613
  %v4681 = vpop.f32.mrb[0].mxu0
  %v4682 = vadd.f32 0.0, %v4681
  %v4683 = vpop.f32.mrb[0].mxu0
  %4684 = vdwg.mxu0
  %v4685 = vadd.f32 %v3352, %v4682
  %v4686 = vadd.f32 %v3347, %v4685
  %s4687 = scalar_lea.vmem %s5, 32
  %v4688 = vld [vmem:[%s4687] sm:$0xff]
  %v4689 = vld [vmem:[%s4687 + $0x8] sm:$0xff]
  %s4690 = scalar_lea.vmem %s6, 32
  %v4691 = vld [vmem:[%s4690] sm:$0xff]
  %v4692 = vld [vmem:[%s4690 + $0x8] sm:$0xff]
  %4694 = vset.pattern.permute.xlu0 0
  %4695 = vperm.xlu0 %4694, %v4691
  %v4696 = vpop.permute.xlu0 %4695
  %4699 = vset.pattern.permute.xlu0 0
  %4700 = vperm.xlu0 %4699, %v4692
  %v4701 = vpop.permute.xlu0 %4700
  %v4704 = vsel %vm1844, %v4688, 0
  %v4707 = vsel %vm1844, %v4689, 0
  %4709 = vmatprep.subr.mxu0 0.0
  %4710 = vmatpush1.msra.mxu0 %v4686
  %4711 = vmatprep.subr.mxu0 0.0
  %4712 = vmatpush1.msra.mxu0 %v4685
  %4713 = vmatprep.subr.mxu0 0.0
  %4714 = vmatpush1.msra.mxu0 0.0
  %4715 = vmatprep.subr.mxu0 0.0
  %4716 = vmatpush1.msra.mxu0 0.0
  %4717 = vmatprep.subr.mxu0 0.0
  %4718 = vmatpush1.msra.mxu0 0.0
  %4719 = vmatprep.subr.mxu0 0.0
  %4720 = vmatpush1.msra.mxu0 0.0
  %4721 = vmatprep.subr.mxu0 0.0
  %4722 = vmatpush1.msra.mxu0 0.0
  %4723 = vmatprep.subr.mxu0 0.0
  %4724 = vmatpush1.msra.mxu0 0.0
  %4725 = vmatprep.subr.mxu0 0.0
  %4726 = vmatpush1.msra.mxu0 0.0
  %4727 = vmatprep.subr.mxu0 0.0
  %4728 = vmatpush1.msra.mxu0 0.0
  %4729 = vmatprep.subr.mxu0 0.0
  %4730 = vmatpush1.msra.mxu0 0.0
  %4731 = vmatprep.subr.mxu0 0.0
  %4732 = vmatpush1.msra.mxu0 0.0
  %4733 = vmatprep.subr.mxu0 0.0
  %4734 = vmatpush1.msra.mxu0 0.0
  %4735 = vmatprep.subr.mxu0 0.0
  %4736 = vmatpush1.msra.mxu0 0.0
  %4737 = vmatprep.subr.mxu0 0.0
  %4738 = vmatpush1.msra.mxu0 0.0
  %4739 = vmatprep.subr.mxu0 0.0
  %4740 = vmatpush1.msra.mxu0 0.0
  %4741 = vmatprep.subr.mxu0 0.0
  %4742 = vmatpush1.msra.mxu0 0.0
  %4743 = vmatprep.subr.mxu0 0.0
  %4744 = vmatpush1.msra.mxu0 0.0
  %4745 = vmatprep.subr.mxu0 0.0
  %4746 = vmatpush1.msra.mxu0 0.0
  %4747 = vmatprep.subr.mxu0 0.0
  %4748 = vmatpush1.msra.mxu0 0.0
  %4749 = vmatprep.subr.mxu0 0.0
  %4750 = vmatpush1.msra.mxu0 0.0
  %4751 = vmatprep.subr.mxu0 0.0
  %4752 = vmatpush1.msra.mxu0 0.0
  %4753 = vmatprep.subr.mxu0 0.0
  %4754 = vmatpush1.msra.mxu0 0.0
  %4755 = vmatprep.subr.mxu0 0.0
  %4756 = vmatpush1.msra.mxu0 0.0
  %4757 = vmatprep.subr.mxu0 0.0
  %4758 = vmatpush1.msra.mxu0 0.0
  %4759 = vmatprep.subr.mxu0 0.0
  %4760 = vmatpush1.msra.mxu0 0.0
  %4761 = vmatprep.subr.mxu0 0.0
  %4762 = vmatpush1.msra.mxu0 0.0
  %4763 = vmatprep.subr.mxu0 0.0
  %4764 = vmatpush1.msra.mxu0 0.0
  %4765 = vmatprep.subr.mxu0 0.0
  %4766 = vmatpush1.msra.mxu0 0.0
  %4767 = vmatprep.subr.mxu0 0.0
  %4768 = vmatpush1.msra.mxu0 0.0
  %4769 = vmatprep.subr.mxu0 0.0
  %4770 = vmatpush1.msra.mxu0 0.0
  %4771 = vmatprep.subr.mxu0 0.0
  %4772 = vmatpush1.msra.mxu0 0.0
  %4773 = vmatprep.mubr.f32.mxu0 0.0
  %4774 = vmatmul.mubr.f32.gmra.mrb[0].mxu0 %v4704
  %v4775 = vpop.f32.mrb[0].mxu0
  %v4776 = vadd.f32 %v4696, %v4775
  %v4777 = vpop.f32.mrb[0].mxu0
  %4778 = vmatprep.mubr.f32.mxu0 0.0
  %4779 = vmatmul.mubr.f32.gmra.mrb[0].mxu0 %v4707
  %v4780 = vpop.f32.mrb[0].mxu0
  %v4781 = vadd.f32 %v4701, %v4780
  %v4782 = vpop.f32.mrb[0].mxu0
  %4783 = vdwg.mxu0
  %s4784 = scalar_lea.vmem %s7, 72
  %v4785 = vld [vmem:[%s4784] sm:$0xff]
  %v4786 = vld [vmem:[%s4784 + $0x8] sm:$0xff]
  %v4787 = vld [vmem:[%s4784 + $0x10] sm:$0xff]
  %s4788 = scalar_lea.vmem %s8, 72
  %v4789 = vld [vmem:[%s4788] sm:$0xff]
  %v4790 = vld [vmem:[%s4788 + $0x8] sm:$0xff]
  %v4791 = vld [vmem:[%s4788 + $0x10] sm:$0xff]
  %s4792 = scalar_lea.vmem %s9, 24
  %v4793 = vld [vmem:[%s4792] sm:$0xff]
  %s4794 = scalar_lea.vmem %s10, 24
  %v4795 = vld [vmem:[%s4794] sm:$0xff]
  %4797 = vset.pattern.permute.xlu0 0
  %4798 = vperm.xlu0 %4797, %v4789
  %v4799 = vpop.permute.xlu0 %4798
  %4802 = vset.pattern.permute.xlu0 0
  %4803 = vperm.xlu0 %4802, %v4790
  %v4804 = vpop.permute.xlu0 %4803
  %4807 = vset.pattern.permute.xlu0 0
  %4808 = vperm.xlu0 %4807, %v4791
  %v4809 = vpop.permute.xlu0 %4808
  %v4812 = vsel %vm66, %v4785, 0
  %v4815 = vsel %vm66, %v4786, 0
  %v4818 = vsel %vm66, %v4787, 0
  %4820 = vmatprep.subr.mxu0 0.0
  %4821 = vmatpush1.msra.mxu0 %v4609
  %4822 = vmatprep.subr.mxu0 0.0
  %4823 = vmatpush1.msra.mxu0 0.0
  %4824 = vmatprep.subr.mxu0 0.0
  %4825 = vmatpush1.msra.mxu0 0.0
  %4826 = vmatprep.subr.mxu0 0.0
  %4827 = vmatpush1.msra.mxu0 0.0
  %4828 = vmatprep.subr.mxu0 0.0
  %4829 = vmatpush1.msra.mxu0 0.0
  %4830 = vmatprep.subr.mxu0 0.0
  %4831 = vmatpush1.msra.mxu0 0.0
  %4832 = vmatprep.subr.mxu0 0.0
  %4833 = vmatpush1.msra.mxu0 0.0
  %4834 = vmatprep.subr.mxu0 0.0
  %4835 = vmatpush1.msra.mxu0 0.0
  %4836 = vmatprep.subr.mxu0 0.0
  %4837 = vmatpush1.msra.mxu0 0.0
  %4838 = vmatprep.subr.mxu0 0.0
  %4839 = vmatpush1.msra.mxu0 0.0
  %4840 = vmatprep.subr.mxu0 0.0
  %4841 = vmatpush1.msra.mxu0 0.0
  %4842 = vmatprep.subr.mxu0 0.0
  %4843 = vmatpush1.msra.mxu0 0.0
  %4844 = vmatprep.subr.mxu0 0.0
  %4845 = vmatpush1.msra.mxu0 0.0
  %4846 = vmatprep.subr.mxu0 0.0
  %4847 = vmatpush1.msra.mxu0 0.0
  %4848 = vmatprep.subr.mxu0 0.0
  %4849 = vmatpush1.msra.mxu0 0.0
  %4850 = vmatprep.subr.mxu0 0.0
  %4851 = vmatpush1.msra.mxu0 0.0
  %4852 = vmatprep.subr.mxu0 0.0
  %4853 = vmatpush1.msra.mxu0 0.0
  %4854 = vmatprep.subr.mxu0 0.0
  %4855 = vmatpush1.msra.mxu0 0.0
  %4856 = vmatprep.subr.mxu0 0.0
  %4857 = vmatpush1.msra.mxu0 0.0
  %4858 = vmatprep.subr.mxu0 0.0
  %4859 = vmatpush1.msra.mxu0 0.0
  %4860 = vmatprep.subr.mxu0 0.0
  %4861 = vmatpush1.msra.mxu0 0.0
  %4862 = vmatprep.subr.mxu0 0.0
  %4863 = vmatpush1.msra.mxu0 0.0
  %4864 = vmatprep.subr.mxu0 0.0
  %4865 = vmatpush1.msra.mxu0 0.0
  %4866 = vmatprep.subr.mxu0 0.0
  %4867 = vmatpush1.msra.mxu0 0.0
  %4868 = vmatprep.subr.mxu0 0.0
  %4869 = vmatpush1.msra.mxu0 0.0
  %4870 = vmatprep.subr.mxu0 0.0
  %4871 = vmatpush1.msra.mxu0 0.0
  %4872 = vmatprep.subr.mxu0 0.0
  %4873 = vmatpush1.msra.mxu0 0.0
  %4874 = vmatprep.subr.mxu0 0.0
  %4875 = vmatpush1.msra.mxu0 0.0
  %4876 = vmatprep.subr.mxu0 0.0
  %4877 = vmatpush1.msra.mxu0 0.0
  %4878 = vmatprep.subr.mxu0 0.0
  %4879 = vmatpush1.msra.mxu0 0.0
  %4880 = vmatprep.subr.mxu0 0.0
  %4881 = vmatpush1.msra.mxu0 0.0
  %4882 = vmatprep.subr.mxu0 0.0
  %4883 = vmatpush1.msra.mxu0 0.0
  %4884 = vmatprep.mubr.f32.mxu0 0.0
  %4885 = vmatmul.mubr.f32.gmra.mrb[0].mxu0 %v4812
  %v4886 = vpop.f32.mrb[0].mxu0
  %v4887 = vadd.f32 %v4799, %v4886
  %v4888 = vpop.f32.mrb[0].mxu0
  %4889 = vmatprep.mubr.f32.mxu0 0.0
  %4890 = vmatmul.mubr.f32.gmra.mrb[0].mxu0 %v4815
  %v4891 = vpop.f32.mrb[0].mxu0
  %v4892 = vadd.f32 %v4804, %v4891
  %v4893 = vpop.f32.mrb[0].mxu0
  %4894 = vmatprep.mubr.f32.mxu0 0.0
  %4895 = vmatmul.mubr.f32.gmra.mrb[0].mxu0 %v4818
  %v4896 = vpop.f32.mrb[0].mxu0
  %v4897 = vadd.f32 %v4809, %v4896
  %v4898 = vpop.f32.mrb[0].mxu0
  %4899 = vdwg.mxu0
  %4900 = vxpose.xlu0.b32.start [1/16] %v4887, 128
  %4901 = vxpose.xlu0.b32.cont [2/16] 0.0, 128
  %4902 = vxpose.xlu0.b32.cont [3/16] 0.0, 128
  %4903 = vxpose.xlu0.b32.cont [4/16] 0.0, 128
  %4904 = vxpose.xlu0.b32.cont [5/16] 0.0, 128
  %4905 = vxpose.xlu0.b32.cont [6/16] 0.0, 128
  %4906 = vxpose.xlu0.b32.cont [7/16] 0.0, 128
  %4907 = vxpose.xlu0.b32.cont [8/16] 0.0, 128
  %4908 = vxpose.xlu0.b32.cont [9/16] 0.0, 128
  %4909 = vxpose.xlu0.b32.cont [10/16] 0.0, 128
  %4910 = vxpose.xlu0.b32.cont [11/16] 0.0, 128
  %4911 = vxpose.xlu0.b32.cont [12/16] 0.0, 128
  %4912 = vxpose.xlu0.b32.cont [13/16] 0.0, 128
  %4913 = vxpose.xlu0.b32.cont [14/16] 0.0, 128
  %4914 = vxpose.xlu0.b32.cont [15/16] 0.0, 128
  %4915 = vxpose.xlu0.b32.end [16/16] 0.0, 128
  %v4916 = vpop.trf.xlu0
  %v4917 = vpop.trf.xlu0
  %v4918 = vpop.trf.xlu0
  %v4919 = vpop.trf.xlu0
  %v4920 = vpop.trf.xlu0
  %v4921 = vpop.trf.xlu0
  %v4922 = vpop.trf.xlu0
  %v4923 = vpop.trf.xlu0
  %v4924 = vpop.trf.xlu0
  %v4925 = vpop.trf.xlu0
  %v4926 = vpop.trf.xlu0
  %v4927 = vpop.trf.xlu0
  %v4928 = vpop.trf.xlu0
  %v4929 = vpop.trf.xlu0
  %v4930 = vpop.trf.xlu0
  %v4931 = vpop.trf.xlu0
  %v4933 = vsel %vm502, %v4916, 0
  %v4936 = vsel %vm502, %v4917, 0
  %v4939 = vsel %vm502, %v4918, 0
  %v4942 = vsel %vm502, %v4919, 0
  %v4945 = vsel %vm515, %v4892, 0
  %4947 = vmatprep.subr.mxu0 0.0
  %4948 = vmatpush1.msra.mxu0 %v4945
  %4949 = vmatprep.subr.mxu0 0.0
  %4950 = vmatpush1.msra.mxu0 0.0
  %4951 = vmatprep.subr.mxu0 0.0
  %4952 = vmatpush1.msra.mxu0 0.0
  %4953 = vmatprep.subr.mxu0 0.0
  %4954 = vmatpush1.msra.mxu0 0.0
  %4955 = vmatprep.subr.mxu0 0.0
  %4956 = vmatpush1.msra.mxu0 0.0
  %4957 = vmatprep.subr.mxu0 0.0
  %4958 = vmatpush1.msra.mxu0 0.0
  %4959 = vmatprep.subr.mxu0 0.0
  %4960 = vmatpush1.msra.mxu0 0.0
  %4961 = vmatprep.subr.mxu0 0.0
  %4962 = vmatpush1.msra.mxu0 0.0
  %4963 = vmatprep.subr.mxu0 0.0
  %4964 = vmatpush1.msra.mxu0 0.0
  %4965 = vmatprep.subr.mxu0 0.0
  %4966 = vmatpush1.msra.mxu0 0.0
  %4967 = vmatprep.subr.mxu0 0.0
  %4968 = vmatpush1.msra.mxu0 0.0
  %4969 = vmatprep.subr.mxu0 0.0
  %4970 = vmatpush1.msra.mxu0 0.0
  %4971 = vmatprep.subr.mxu0 0.0
  %4972 = vmatpush1.msra.mxu0 0.0
  %4973 = vmatprep.subr.mxu0 0.0
  %4974 = vmatpush1.msra.mxu0 0.0
  %4975 = vmatprep.subr.mxu0 0.0
  %4976 = vmatpush1.msra.mxu0 0.0
  %4977 = vmatprep.subr.mxu0 0.0
  %4978 = vmatpush1.msra.mxu0 0.0
  %4979 = vmatprep.subr.mxu0 0.0
  %4980 = vmatpush1.msra.mxu0 0.0
  %4981 = vmatprep.subr.mxu0 0.0
  %4982 = vmatpush1.msra.mxu0 0.0
  %4983 = vmatprep.subr.mxu0 0.0
  %4984 = vmatpush1.msra.mxu0 0.0
  %4985 = vmatprep.subr.mxu0 0.0
  %4986 = vmatpush1.msra.mxu0 0.0
  %4987 = vmatprep.subr.mxu0 0.0
  %4988 = vmatpush1.msra.mxu0 0.0
  %4989 = vmatprep.subr.mxu0 0.0
  %4990 = vmatpush1.msra.mxu0 0.0
  %4991 = vmatprep.subr.mxu0 0.0
  %4992 = vmatpush1.msra.mxu0 0.0
  %4993 = vmatprep.subr.mxu0 0.0
  %4994 = vmatpush1.msra.mxu0 0.0
  %4995 = vmatprep.subr.mxu0 0.0
  %4996 = vmatpush1.msra.mxu0 0.0
  %4997 = vmatprep.subr.mxu0 0.0
  %4998 = vmatpush1.msra.mxu0 0.0
  %4999 = vmatprep.subr.mxu0 0.0
  %5000 = vmatpush1.msra.mxu0 0.0
  %5001 = vmatprep.subr.mxu0 0.0
  %5002 = vmatpush1.msra.mxu0 0.0
  %5003 = vmatprep.subr.mxu0 0.0
  %5004 = vmatpush1.msra.mxu0 0.0
  %5005 = vmatprep.subr.mxu0 0.0
  %5006 = vmatpush1.msra.mxu0 0.0
  %5007 = vmatprep.subr.mxu0 0.0
  %5008 = vmatpush1.msra.mxu0 0.0
  %5009 = vmatprep.subr.mxu0 0.0
  %5010 = vmatpush1.msra.mxu0 0.0
  %5011 = vmatprep.mubr.f32.mxu0 0.0
  %5012 = vmatmul.mubr.f32.gmra.mrb[0].mxu0 %v4933
  %v5013 = vpop.f32.mrb[0].mxu0
  %v5014 = vadd.f32 %v47, %v5013
  %v5015 = vpop.f32.mrb[0].mxu0
  %5016 = vmatprep.mubr.f32.mxu0 0.0
  %5017 = vmatmul.mubr.f32.gmra.mrb[0].mxu0 %v4936
  %v5018 = vpop.f32.mrb[0].mxu0
  %v5019 = vadd.f32 %v48, %v5018
  %v5020 = vpop.f32.mrb[0].mxu0
  %5021 = vmatprep.mubr.f32.mxu0 0.0
  %5022 = vmatmul.mubr.f32.gmra.mrb[0].mxu0 %v4939
  %v5023 = vpop.f32.mrb[0].mxu0
  %v5024 = vadd.f32 %v49, %v5023
  %v5025 = vpop.f32.mrb[0].mxu0
  %5026 = vmatprep.mubr.f32.mxu0 0.0
  %5027 = vmatmul.mubr.f32.gmra.mrb[0].mxu0 %v4942
  %v5028 = vpop.f32.mrb[0].mxu0
  %v5029 = vadd.f32 %v50, %v5028
  %v5030 = vpop.f32.mrb[0].mxu0
  %5031 = vdwg.mxu0
  %v5032 = vsel %vm604, %v5014, -inf
  %5033 = vmax.xlane.f32.xlu0 %v5032
  %v5034 = vpop.xlane.xlu0 %5033
  %v5035 = vsel %vm604, %v5019, -inf
  %5036 = vmax.xlane.f32.xlu0 %v5035
  %v5037 = vpop.xlane.xlu0 %5036
  %v5038 = vsel %vm604, %v5024, -inf
  %5039 = vmax.xlane.f32.xlu0 %v5038
  %v5040 = vpop.xlane.xlu0 %5039
  %v5041 = vsel %vm604, %v5029, -inf
  %5042 = vmax.xlane.f32.xlu0 %v5041
  %v5043 = vpop.xlane.xlu0 %5042
  %v5044 = vsub.f32 %v5014, %v5034
  %v5045 = vsub.f32 %v5019, %v5037
  %v5046 = vsub.f32 %v5024, %v5040
  %v5047 = vsub.f32 %v5029, %v5043
  %v5048 = vmul.f32 %v5044, 1.442695
  %v5049 = vpow.pop %v5048
  %v5050 = vmul.f32 %v5045, 1.442695
  %v5051 = vpow.pop %v5050
  %v5052 = vmul.f32 %v5046, 1.442695
  %v5053 = vpow.pop %v5052
  %v5054 = vmul.f32 %v5047, 1.442695
  %v5055 = vpow.pop %v5054
  %v5056 = vsel %vm604, %v5049, 0.0
  %5057 = vadd.xlane.f32.xlu0 %v5056
  %v5058 = vpop.xlane.xlu0 %5057
  %v5059 = vsel %vm604, %v5051, 0.0
  %5060 = vadd.xlane.f32.xlu0 %v5059
  %v5061 = vpop.xlane.xlu0 %5060
  %v5062 = vsel %vm604, %v5053, 0.0
  %5063 = vadd.xlane.f32.xlu0 %v5062
  %v5064 = vpop.xlane.xlu0 %5063
  %v5065 = vsel %vm604, %v5055, 0.0
  %5066 = vadd.xlane.f32.xlu0 %v5065
  %v5067 = vpop.xlane.xlu0 %5066
  %v5068 = vrcp.pop %v5058
  %v5069 = vrcp.pop %v5061
  %v5070 = vrcp.pop %v5064
  %v5071 = vrcp.pop %v5067
  %v5072 = vmul.f32 %v5049, %v5068
  %v5073 = vmul.f32 %v5051, %v5069
  %v5074 = vmul.f32 %v5053, %v5070
  %v5075 = vmul.f32 %v5055, %v5071
  %v5077 = vsel %vm604, %v4897, 0
  %v5080 = vsel %vm604, %v5072, 0
  %v5083 = vsel %vm604, %v5073, 0
  %v5086 = vsel %vm604, %v5074, 0
  %v5089 = vsel %vm604, %v5075, 0
  %5091 = vmatprep.subr.mxu0 0.0
  %5092 = vmatpush1.xpose.msra.mxu0 %v5080
  %5093 = vmatprep.subr.mxu0 0.0
  %5094 = vmatpush1.xpose.msra.mxu0 %v5083
  %5095 = vmatprep.subr.mxu0 0.0
  %5096 = vmatpush1.xpose.msra.mxu0 %v5086
  %5097 = vmatprep.subr.mxu0 0.0
  %5098 = vmatpush1.xpose.msra.mxu0 %v5089
  %5099 = vmatprep.subr.mxu0 0.0
  %5100 = vmatpush1.xpose.msra.mxu0 0.0
  %5101 = vmatprep.subr.mxu0 0.0
  %5102 = vmatpush1.xpose.msra.mxu0 0.0
  %5103 = vmatprep.subr.mxu0 0.0
  %5104 = vmatpush1.xpose.msra.mxu0 0.0
  %5105 = vmatprep.subr.mxu0 0.0
  %5106 = vmatpush1.xpose.msra.mxu0 0.0
  %5107 = vmatprep.subr.mxu0 0.0
  %5108 = vmatpush1.xpose.msra.mxu0 0.0
  %5109 = vmatprep.subr.mxu0 0.0
  %5110 = vmatpush1.xpose.msra.mxu0 0.0
  %5111 = vmatprep.subr.mxu0 0.0
  %5112 = vmatpush1.xpose.msra.mxu0 0.0
  %5113 = vmatprep.subr.mxu0 0.0
  %5114 = vmatpush1.xpose.msra.mxu0 0.0
  %5115 = vmatprep.subr.mxu0 0.0
  %5116 = vmatpush1.xpose.msra.mxu0 0.0
  %5117 = vmatprep.subr.mxu0 0.0
  %5118 = vmatpush1.xpose.msra.mxu0 0.0
  %5119 = vmatprep.subr.mxu0 0.0
  %5120 = vmatpush1.xpose.msra.mxu0 0.0
  %5121 = vmatprep.subr.mxu0 0.0
  %5122 = vmatpush1.xpose.msra.mxu0 0.0
  %5123 = vmatprep.subr.mxu0 0.0
  %5124 = vmatpush1.xpose.msra.mxu0 0.0
  %5125 = vmatprep.subr.mxu0 0.0
  %5126 = vmatpush1.xpose.msra.mxu0 0.0
  %5127 = vmatprep.subr.mxu0 0.0
  %5128 = vmatpush1.xpose.msra.mxu0 0.0
  %5129 = vmatprep.subr.mxu0 0.0
  %5130 = vmatpush1.xpose.msra.mxu0 0.0
  %5131 = vmatprep.subr.mxu0 0.0
  %5132 = vmatpush1.xpose.msra.mxu0 0.0
  %5133 = vmatprep.subr.mxu0 0.0
  %5134 = vmatpush1.xpose.msra.mxu0 0.0
  %5135 = vmatprep.subr.mxu0 0.0
  %5136 = vmatpush1.xpose.msra.mxu0 0.0
  %5137 = vmatprep.subr.mxu0 0.0
  %5138 = vmatpush1.xpose.msra.mxu0 0.0
  %5139 = vmatprep.subr.mxu0 0.0
  %5140 = vmatpush1.xpose.msra.mxu0 0.0
  %5141 = vmatprep.subr.mxu0 0.0
  %5142 = vmatpush1.xpose.msra.mxu0 0.0
  %5143 = vmatprep.subr.mxu0 0.0
  %5144 = vmatpush1.xpose.msra.mxu0 0.0
  %5145 = vmatprep.subr.mxu0 0.0
  %5146 = vmatpush1.xpose.msra.mxu0 0.0
  %5147 = vmatprep.subr.mxu0 0.0
  %5148 = vmatpush1.xpose.msra.mxu0 0.0
  %5149 = vmatprep.subr.mxu0 0.0
  %5150 = vmatpush1.xpose.msra.mxu0 0.0
  %5151 = vmatprep.subr.mxu0 0.0
  %5152 = vmatpush1.xpose.msra.mxu0 0.0
  %5153 = vmatprep.subr.mxu0 0.0
  %5154 = vmatpush1.xpose.msra.mxu0 0.0
  %5155 = vmatprep.mubr.f32.mxu0 0.0
  %5156 = vmatmul.mubr.f32.gmra.mrb[0].mxu0 %v5077
  %v5157 = vpop.f32.mrb[0].mxu0
  %v5158 = vadd.f32 0.0, %v5157
  %v5159 = vpop.f32.mrb[0].mxu0
  %5160 = vdwg.mxu0
  %v5162 = vrot.slane %v4887, 2
  %5164 = vxpose.xlu0.b32.start [1/16] %v5162, 128
  %5165 = vxpose.xlu0.b32.cont [2/16] 0.0, 128
  %5166 = vxpose.xlu0.b32.cont [3/16] 0.0, 128
  %5167 = vxpose.xlu0.b32.cont [4/16] 0.0, 128
  %5168 = vxpose.xlu0.b32.cont [5/16] 0.0, 128
  %5169 = vxpose.xlu0.b32.cont [6/16] 0.0, 128
  %5170 = vxpose.xlu0.b32.cont [7/16] 0.0, 128
  %5171 = vxpose.xlu0.b32.cont [8/16] 0.0, 128
  %5172 = vxpose.xlu0.b32.cont [9/16] 0.0, 128
  %5173 = vxpose.xlu0.b32.cont [10/16] 0.0, 128
  %5174 = vxpose.xlu0.b32.cont [11/16] 0.0, 128
  %5175 = vxpose.xlu0.b32.cont [12/16] 0.0, 128
  %5176 = vxpose.xlu0.b32.cont [13/16] 0.0, 128
  %5177 = vxpose.xlu0.b32.cont [14/16] 0.0, 128
  %5178 = vxpose.xlu0.b32.cont [15/16] 0.0, 128
  %5179 = vxpose.xlu0.b32.end [16/16] 0.0, 128
  %v5180 = vpop.trf.xlu0
  %v5181 = vpop.trf.xlu0
  %v5182 = vpop.trf.xlu0
  %v5183 = vpop.trf.xlu0
  %v5184 = vpop.trf.xlu0
  %v5185 = vpop.trf.xlu0
  %v5186 = vpop.trf.xlu0
  %v5187 = vpop.trf.xlu0
  %v5188 = vpop.trf.xlu0
  %v5189 = vpop.trf.xlu0
  %v5190 = vpop.trf.xlu0
  %v5191 = vpop.trf.xlu0
  %v5192 = vpop.trf.xlu0
  %v5193 = vpop.trf.xlu0
  %v5194 = vpop.trf.xlu0
  %v5195 = vpop.trf.xlu0
  %v5196 = vrot.slane %v4892, 2
  %v5198 = vsel %vm502, %v5180, 0
  %v5201 = vsel %vm502, %v5181, 0
  %v5204 = vsel %vm502, %v5182, 0
  %v5207 = vsel %vm502, %v5183, 0
  %v5209 = vsel %vm515, %v5196, 0
  %5211 = vmatprep.subr.mxu0 0.0
  %5212 = vmatpush1.msra.mxu0 %v5209
  %5213 = vmatprep.subr.mxu0 0.0
  %5214 = vmatpush1.msra.mxu0 0.0
  %5215 = vmatprep.subr.mxu0 0.0
  %5216 = vmatpush1.msra.mxu0 0.0
  %5217 = vmatprep.subr.mxu0 0.0
  %5218 = vmatpush1.msra.mxu0 0.0
  %5219 = vmatprep.subr.mxu0 0.0
  %5220 = vmatpush1.msra.mxu0 0.0
  %5221 = vmatprep.subr.mxu0 0.0
  %5222 = vmatpush1.msra.mxu0 0.0
  %5223 = vmatprep.subr.mxu0 0.0
  %5224 = vmatpush1.msra.mxu0 0.0
  %5225 = vmatprep.subr.mxu0 0.0
  %5226 = vmatpush1.msra.mxu0 0.0
  %5227 = vmatprep.subr.mxu0 0.0
  %5228 = vmatpush1.msra.mxu0 0.0
  %5229 = vmatprep.subr.mxu0 0.0
  %5230 = vmatpush1.msra.mxu0 0.0
  %5231 = vmatprep.subr.mxu0 0.0
  %5232 = vmatpush1.msra.mxu0 0.0
  %5233 = vmatprep.subr.mxu0 0.0
  %5234 = vmatpush1.msra.mxu0 0.0
  %5235 = vmatprep.subr.mxu0 0.0
  %5236 = vmatpush1.msra.mxu0 0.0
  %5237 = vmatprep.subr.mxu0 0.0
  %5238 = vmatpush1.msra.mxu0 0.0
  %5239 = vmatprep.subr.mxu0 0.0
  %5240 = vmatpush1.msra.mxu0 0.0
  %5241 = vmatprep.subr.mxu0 0.0
  %5242 = vmatpush1.msra.mxu0 0.0
  %5243 = vmatprep.subr.mxu0 0.0
  %5244 = vmatpush1.msra.mxu0 0.0
  %5245 = vmatprep.subr.mxu0 0.0
  %5246 = vmatpush1.msra.mxu0 0.0
  %5247 = vmatprep.subr.mxu0 0.0
  %5248 = vmatpush1.msra.mxu0 0.0
  %5249 = vmatprep.subr.mxu0 0.0
  %5250 = vmatpush1.msra.mxu0 0.0
  %5251 = vmatprep.subr.mxu0 0.0
  %5252 = vmatpush1.msra.mxu0 0.0
  %5253 = vmatprep.subr.mxu0 0.0
  %5254 = vmatpush1.msra.mxu0 0.0
  %5255 = vmatprep.subr.mxu0 0.0
  %5256 = vmatpush1.msra.mxu0 0.0
  %5257 = vmatprep.subr.mxu0 0.0
  %5258 = vmatpush1.msra.mxu0 0.0
  %5259 = vmatprep.subr.mxu0 0.0
  %5260 = vmatpush1.msra.mxu0 0.0
  %5261 = vmatprep.subr.mxu0 0.0
  %5262 = vmatpush1.msra.mxu0 0.0
  %5263 = vmatprep.subr.mxu0 0.0
  %5264 = vmatpush1.msra.mxu0 0.0
  %5265 = vmatprep.subr.mxu0 0.0
  %5266 = vmatpush1.msra.mxu0 0.0
  %5267 = vmatprep.subr.mxu0 0.0
  %5268 = vmatpush1.msra.mxu0 0.0
  %5269 = vmatprep.subr.mxu0 0.0
  %5270 = vmatpush1.msra.mxu0 0.0
  %5271 = vmatprep.subr.mxu0 0.0
  %5272 = vmatpush1.msra.mxu0 0.0
  %5273 = vmatprep.subr.mxu0 0.0
  %5274 = vmatpush1.msra.mxu0 0.0
  %5275 = vmatprep.mubr.f32.mxu0 0.0
  %5276 = vmatmul.mubr.f32.gmra.mrb[0].mxu0 %v5198
  %v5277 = vpop.f32.mrb[0].mxu0
  %v5278 = vadd.f32 %v47, %v5277
  %v5279 = vpop.f32.mrb[0].mxu0
  %5280 = vmatprep.mubr.f32.mxu0 0.0
  %5281 = vmatmul.mubr.f32.gmra.mrb[0].mxu0 %v5201
  %v5282 = vpop.f32.mrb[0].mxu0
  %v5283 = vadd.f32 %v48, %v5282
  %v5284 = vpop.f32.mrb[0].mxu0
  %5285 = vmatprep.mubr.f32.mxu0 0.0
  %5286 = vmatmul.mubr.f32.gmra.mrb[0].mxu0 %v5204
  %v5287 = vpop.f32.mrb[0].mxu0
  %v5288 = vadd.f32 %v49, %v5287
  %v5289 = vpop.f32.mrb[0].mxu0
  %5290 = vmatprep.mubr.f32.mxu0 0.0
  %5291 = vmatmul.mubr.f32.gmra.mrb[0].mxu0 %v5207
  %v5292 = vpop.f32.mrb[0].mxu0
  %v5293 = vadd.f32 %v50, %v5292
  %v5294 = vpop.f32.mrb[0].mxu0
  %5295 = vdwg.mxu0
  %v5296 = vsel %vm604, %v5278, -inf
  %5297 = vmax.xlane.f32.xlu0 %v5296
  %v5298 = vpop.xlane.xlu0 %5297
  %v5299 = vsel %vm604, %v5283, -inf
  %5300 = vmax.xlane.f32.xlu0 %v5299
  %v5301 = vpop.xlane.xlu0 %5300
  %v5302 = vsel %vm604, %v5288, -inf
  %5303 = vmax.xlane.f32.xlu0 %v5302
  %v5304 = vpop.xlane.xlu0 %5303
  %v5305 = vsel %vm604, %v5293, -inf
  %5306 = vmax.xlane.f32.xlu0 %v5305
  %v5307 = vpop.xlane.xlu0 %5306
  %v5308 = vsub.f32 %v5278, %v5298
  %v5309 = vsub.f32 %v5283, %v5301
  %v5310 = vsub.f32 %v5288, %v5304
  %v5311 = vsub.f32 %v5293, %v5307
  %v5312 = vmul.f32 %v5308, 1.442695
  %v5313 = vpow.pop %v5312
  %v5314 = vmul.f32 %v5309, 1.442695
  %v5315 = vpow.pop %v5314
  %v5316 = vmul.f32 %v5310, 1.442695
  %v5317 = vpow.pop %v5316
  %v5318 = vmul.f32 %v5311, 1.442695
  %v5319 = vpow.pop %v5318
  %v5320 = vsel %vm604, %v5313, 0.0
  %5321 = vadd.xlane.f32.xlu0 %v5320
  %v5322 = vpop.xlane.xlu0 %5321
  %v5323 = vsel %vm604, %v5315, 0.0
  %5324 = vadd.xlane.f32.xlu0 %v5323
  %v5325 = vpop.xlane.xlu0 %5324
  %v5326 = vsel %vm604, %v5317, 0.0
  %5327 = vadd.xlane.f32.xlu0 %v5326
  %v5328 = vpop.xlane.xlu0 %5327
  %v5329 = vsel %vm604, %v5319, 0.0
  %5330 = vadd.xlane.f32.xlu0 %v5329
  %v5331 = vpop.xlane.xlu0 %5330
  %v5332 = vrcp.pop %v5322
  %v5333 = vrcp.pop %v5325
  %v5334 = vrcp.pop %v5328
  %v5335 = vrcp.pop %v5331
  %v5336 = vmul.f32 %v5313, %v5332
  %v5337 = vmul.f32 %v5315, %v5333
  %v5338 = vmul.f32 %v5317, %v5334
  %v5339 = vmul.f32 %v5319, %v5335
  %v5340 = vrot.slane %v4897, 2
  %v5341 = vsel %vm604, %v5340, 0
  %v5344 = vsel %vm604, %v5336, 0
  %v5347 = vsel %vm604, %v5337, 0
  %v5350 = vsel %vm604, %v5338, 0
  %v5353 = vsel %vm604, %v5339, 0
  %5355 = vmatprep.subr.mxu0 0.0
  %5356 = vmatpush1.xpose.msra.mxu0 %v5344
  %5357 = vmatprep.subr.mxu0 0.0
  %5358 = vmatpush1.xpose.msra.mxu0 %v5347
  %5359 = vmatprep.subr.mxu0 0.0
  %5360 = vmatpush1.xpose.msra.mxu0 %v5350
  %5361 = vmatprep.subr.mxu0 0.0
  %5362 = vmatpush1.xpose.msra.mxu0 %v5353
  %5363 = vmatprep.subr.mxu0 0.0
  %5364 = vmatpush1.xpose.msra.mxu0 0.0
  %5365 = vmatprep.subr.mxu0 0.0
  %5366 = vmatpush1.xpose.msra.mxu0 0.0
  %5367 = vmatprep.subr.mxu0 0.0
  %5368 = vmatpush1.xpose.msra.mxu0 0.0
  %5369 = vmatprep.subr.mxu0 0.0
  %5370 = vmatpush1.xpose.msra.mxu0 0.0
  %5371 = vmatprep.subr.mxu0 0.0
  %5372 = vmatpush1.xpose.msra.mxu0 0.0
  %5373 = vmatprep.subr.mxu0 0.0
  %5374 = vmatpush1.xpose.msra.mxu0 0.0
  %5375 = vmatprep.subr.mxu0 0.0
  %5376 = vmatpush1.xpose.msra.mxu0 0.0
  %5377 = vmatprep.subr.mxu0 0.0
  %5378 = vmatpush1.xpose.msra.mxu0 0.0
  %5379 = vmatprep.subr.mxu0 0.0
  %5380 = vmatpush1.xpose.msra.mxu0 0.0
  %5381 = vmatprep.subr.mxu0 0.0
  %5382 = vmatpush1.xpose.msra.mxu0 0.0
  %5383 = vmatprep.subr.mxu0 0.0
  %5384 = vmatpush1.xpose.msra.mxu0 0.0
  %5385 = vmatprep.subr.mxu0 0.0
  %5386 = vmatpush1.xpose.msra.mxu0 0.0
  %5387 = vmatprep.subr.mxu0 0.0
  %5388 = vmatpush1.xpose.msra.mxu0 0.0
  %5389 = vmatprep.subr.mxu0 0.0
  %5390 = vmatpush1.xpose.msra.mxu0 0.0
  %5391 = vmatprep.subr.mxu0 0.0
  %5392 = vmatpush1.xpose.msra.mxu0 0.0
  %5393 = vmatprep.subr.mxu0 0.0
  %5394 = vmatpush1.xpose.msra.mxu0 0.0
  %5395 = vmatprep.subr.mxu0 0.0
  %5396 = vmatpush1.xpose.msra.mxu0 0.0
  %5397 = vmatprep.subr.mxu0 0.0
  %5398 = vmatpush1.xpose.msra.mxu0 0.0
  %5399 = vmatprep.subr.mxu0 0.0
  %5400 = vmatpush1.xpose.msra.mxu0 0.0
  %5401 = vmatprep.subr.mxu0 0.0
  %5402 = vmatpush1.xpose.msra.mxu0 0.0
  %5403 = vmatprep.subr.mxu0 0.0
  %5404 = vmatpush1.xpose.msra.mxu0 0.0
  %5405 = vmatprep.subr.mxu0 0.0
  %5406 = vmatpush1.xpose.msra.mxu0 0.0
  %5407 = vmatprep.subr.mxu0 0.0
  %5408 = vmatpush1.xpose.msra.mxu0 0.0
  %5409 = vmatprep.subr.mxu0 0.0
  %5410 = vmatpush1.xpose.msra.mxu0 0.0
  %5411 = vmatprep.subr.mxu0 0.0
  %5412 = vmatpush1.xpose.msra.mxu0 0.0
  %5413 = vmatprep.subr.mxu0 0.0
  %5414 = vmatpush1.xpose.msra.mxu0 0.0
  %5415 = vmatprep.subr.mxu0 0.0
  %5416 = vmatpush1.xpose.msra.mxu0 0.0
  %5417 = vmatprep.subr.mxu0 0.0
  %5418 = vmatpush1.xpose.msra.mxu0 0.0
  %5419 = vmatprep.mubr.f32.mxu0 0.0
  %5420 = vmatmul.mubr.f32.gmra.mrb[0].mxu0 %v5341
  %v5421 = vpop.f32.mrb[0].mxu0
  %v5422 = vadd.f32 0.0, %v5421
  %v5423 = vpop.f32.mrb[0].mxu0
  %5424 = vdwg.mxu0
  %v5425 = vrot.slane %v4887, 4
  %5427 = vxpose.xlu0.b32.start [1/16] %v5425, 128
  %5428 = vxpose.xlu0.b32.cont [2/16] 0.0, 128
  %5429 = vxpose.xlu0.b32.cont [3/16] 0.0, 128
  %5430 = vxpose.xlu0.b32.cont [4/16] 0.0, 128
  %5431 = vxpose.xlu0.b32.cont [5/16] 0.0, 128
  %5432 = vxpose.xlu0.b32.cont [6/16] 0.0, 128
  %5433 = vxpose.xlu0.b32.cont [7/16] 0.0, 128
  %5434 = vxpose.xlu0.b32.cont [8/16] 0.0, 128
  %5435 = vxpose.xlu0.b32.cont [9/16] 0.0, 128
  %5436 = vxpose.xlu0.b32.cont [10/16] 0.0, 128
  %5437 = vxpose.xlu0.b32.cont [11/16] 0.0, 128
  %5438 = vxpose.xlu0.b32.cont [12/16] 0.0, 128
  %5439 = vxpose.xlu0.b32.cont [13/16] 0.0, 128
  %5440 = vxpose.xlu0.b32.cont [14/16] 0.0, 128
  %5441 = vxpose.xlu0.b32.cont [15/16] 0.0, 128
  %5442 = vxpose.xlu0.b32.end [16/16] 0.0, 128
  %v5443 = vpop.trf.xlu0
  %v5444 = vpop.trf.xlu0
  %v5445 = vpop.trf.xlu0
  %v5446 = vpop.trf.xlu0
  %v5447 = vpop.trf.xlu0
  %v5448 = vpop.trf.xlu0
  %v5449 = vpop.trf.xlu0
  %v5450 = vpop.trf.xlu0
  %v5451 = vpop.trf.xlu0
  %v5452 = vpop.trf.xlu0
  %v5453 = vpop.trf.xlu0
  %v5454 = vpop.trf.xlu0
  %v5455 = vpop.trf.xlu0
  %v5456 = vpop.trf.xlu0
  %v5457 = vpop.trf.xlu0
  %v5458 = vpop.trf.xlu0
  %v5459 = vrot.slane %v4892, 4
  %v5461 = vsel %vm502, %v5443, 0
  %v5464 = vsel %vm502, %v5444, 0
  %v5467 = vsel %vm502, %v5445, 0
  %v5470 = vsel %vm502, %v5446, 0
  %v5472 = vsel %vm515, %v5459, 0
  %5474 = vmatprep.subr.mxu0 0.0
  %5475 = vmatpush1.msra.mxu0 %v5472
  %5476 = vmatprep.subr.mxu0 0.0
  %5477 = vmatpush1.msra.mxu0 0.0
  %5478 = vmatprep.subr.mxu0 0.0
  %5479 = vmatpush1.msra.mxu0 0.0
  %5480 = vmatprep.subr.mxu0 0.0
  %5481 = vmatpush1.msra.mxu0 0.0
  %5482 = vmatprep.subr.mxu0 0.0
  %5483 = vmatpush1.msra.mxu0 0.0
  %5484 = vmatprep.subr.mxu0 0.0
  %5485 = vmatpush1.msra.mxu0 0.0
  %5486 = vmatprep.subr.mxu0 0.0
  %5487 = vmatpush1.msra.mxu0 0.0
  %5488 = vmatprep.subr.mxu0 0.0
  %5489 = vmatpush1.msra.mxu0 0.0
  %5490 = vmatprep.subr.mxu0 0.0
  %5491 = vmatpush1.msra.mxu0 0.0
  %5492 = vmatprep.subr.mxu0 0.0
  %5493 = vmatpush1.msra.mxu0 0.0
  %5494 = vmatprep.subr.mxu0 0.0
  %5495 = vmatpush1.msra.mxu0 0.0
  %5496 = vmatprep.subr.mxu0 0.0
  %5497 = vmatpush1.msra.mxu0 0.0
  %5498 = vmatprep.subr.mxu0 0.0
  %5499 = vmatpush1.msra.mxu0 0.0
  %5500 = vmatprep.subr.mxu0 0.0
  %5501 = vmatpush1.msra.mxu0 0.0
  %5502 = vmatprep.subr.mxu0 0.0
  %5503 = vmatpush1.msra.mxu0 0.0
  %5504 = vmatprep.subr.mxu0 0.0
  %5505 = vmatpush1.msra.mxu0 0.0
  %5506 = vmatprep.subr.mxu0 0.0
  %5507 = vmatpush1.msra.mxu0 0.0
  %5508 = vmatprep.subr.mxu0 0.0
  %5509 = vmatpush1.msra.mxu0 0.0
  %5510 = vmatprep.subr.mxu0 0.0
  %5511 = vmatpush1.msra.mxu0 0.0
  %5512 = vmatprep.subr.mxu0 0.0
  %5513 = vmatpush1.msra.mxu0 0.0
  %5514 = vmatprep.subr.mxu0 0.0
  %5515 = vmatpush1.msra.mxu0 0.0
  %5516 = vmatprep.subr.mxu0 0.0
  %5517 = vmatpush1.msra.mxu0 0.0
  %5518 = vmatprep.subr.mxu0 0.0
  %5519 = vmatpush1.msra.mxu0 0.0
  %5520 = vmatprep.subr.mxu0 0.0
  %5521 = vmatpush1.msra.mxu0 0.0
  %5522 = vmatprep.subr.mxu0 0.0
  %5523 = vmatpush1.msra.mxu0 0.0
  %5524 = vmatprep.subr.mxu0 0.0
  %5525 = vmatpush1.msra.mxu0 0.0
  %5526 = vmatprep.subr.mxu0 0.0
  %5527 = vmatpush1.msra.mxu0 0.0
  %5528 = vmatprep.subr.mxu0 0.0
  %5529 = vmatpush1.msra.mxu0 0.0
  %5530 = vmatprep.subr.mxu0 0.0
  %5531 = vmatpush1.msra.mxu0 0.0
  %5532 = vmatprep.subr.mxu0 0.0
  %5533 = vmatpush1.msra.mxu0 0.0
  %5534 = vmatprep.subr.mxu0 0.0
  %5535 = vmatpush1.msra.mxu0 0.0
  %5536 = vmatprep.subr.mxu0 0.0
  %5537 = vmatpush1.msra.mxu0 0.0
  %5538 = vmatprep.mubr.f32.mxu0 0.0
  %5539 = vmatmul.mubr.f32.gmra.mrb[0].mxu0 %v5461
  %v5540 = vpop.f32.mrb[0].mxu0
  %v5541 = vadd.f32 %v47, %v5540
  %v5542 = vpop.f32.mrb[0].mxu0
  %5543 = vmatprep.mubr.f32.mxu0 0.0
  %5544 = vmatmul.mubr.f32.gmra.mrb[0].mxu0 %v5464
  %v5545 = vpop.f32.mrb[0].mxu0
  %v5546 = vadd.f32 %v48, %v5545
  %v5547 = vpop.f32.mrb[0].mxu0
  %5548 = vmatprep.mubr.f32.mxu0 0.0
  %5549 = vmatmul.mubr.f32.gmra.mrb[0].mxu0 %v5467
  %v5550 = vpop.f32.mrb[0].mxu0
  %v5551 = vadd.f32 %v49, %v5550
  %v5552 = vpop.f32.mrb[0].mxu0
  %5553 = vmatprep.mubr.f32.mxu0 0.0
  %5554 = vmatmul.mubr.f32.gmra.mrb[0].mxu0 %v5470
  %v5555 = vpop.f32.mrb[0].mxu0
  %v5556 = vadd.f32 %v50, %v5555
  %v5557 = vpop.f32.mrb[0].mxu0
  %5558 = vdwg.mxu0
  %v5559 = vsel %vm604, %v5541, -inf
  %5560 = vmax.xlane.f32.xlu0 %v5559
  %v5561 = vpop.xlane.xlu0 %5560
  %v5562 = vsel %vm604, %v5546, -inf
  %5563 = vmax.xlane.f32.xlu0 %v5562
  %v5564 = vpop.xlane.xlu0 %5563
  %v5565 = vsel %vm604, %v5551, -inf
  %5566 = vmax.xlane.f32.xlu0 %v5565
  %v5567 = vpop.xlane.xlu0 %5566
  %v5568 = vsel %vm604, %v5556, -inf
  %5569 = vmax.xlane.f32.xlu0 %v5568
  %v5570 = vpop.xlane.xlu0 %5569
  %v5571 = vsub.f32 %v5541, %v5561
  %v5572 = vsub.f32 %v5546, %v5564
  %v5573 = vsub.f32 %v5551, %v5567
  %v5574 = vsub.f32 %v5556, %v5570
  %v5575 = vmul.f32 %v5571, 1.442695
  %v5576 = vpow.pop %v5575
  %v5577 = vmul.f32 %v5572, 1.442695
  %v5578 = vpow.pop %v5577
  %v5579 = vmul.f32 %v5573, 1.442695
  %v5580 = vpow.pop %v5579
  %v5581 = vmul.f32 %v5574, 1.442695
  %v5582 = vpow.pop %v5581
  %v5583 = vsel %vm604, %v5576, 0.0
  %5584 = vadd.xlane.f32.xlu0 %v5583
  %v5585 = vpop.xlane.xlu0 %5584
  %v5586 = vsel %vm604, %v5578, 0.0
  %5587 = vadd.xlane.f32.xlu0 %v5586
  %v5588 = vpop.xlane.xlu0 %5587
  %v5589 = vsel %vm604, %v5580, 0.0
  %5590 = vadd.xlane.f32.xlu0 %v5589
  %v5591 = vpop.xlane.xlu0 %5590
  %v5592 = vsel %vm604, %v5582, 0.0
  %5593 = vadd.xlane.f32.xlu0 %v5592
  %v5594 = vpop.xlane.xlu0 %5593
  %v5595 = vrcp.pop %v5585
  %v5596 = vrcp.pop %v5588
  %v5597 = vrcp.pop %v5591
  %v5598 = vrcp.pop %v5594
  %v5599 = vmul.f32 %v5576, %v5595
  %v5600 = vmul.f32 %v5578, %v5596
  %v5601 = vmul.f32 %v5580, %v5597
  %v5602 = vmul.f32 %v5582, %v5598
  %v5603 = vrot.slane %v4897, 4
  %v5604 = vsel %vm604, %v5603, 0
  %v5607 = vsel %vm604, %v5599, 0
  %v5610 = vsel %vm604, %v5600, 0
  %v5613 = vsel %vm604, %v5601, 0
  %v5616 = vsel %vm604, %v5602, 0
  %5618 = vmatprep.subr.mxu0 0.0
  %5619 = vmatpush1.xpose.msra.mxu0 %v5607
  %5620 = vmatprep.subr.mxu0 0.0
  %5621 = vmatpush1.xpose.msra.mxu0 %v5610
  %5622 = vmatprep.subr.mxu0 0.0
  %5623 = vmatpush1.xpose.msra.mxu0 %v5613
  %5624 = vmatprep.subr.mxu0 0.0
  %5625 = vmatpush1.xpose.msra.mxu0 %v5616
  %5626 = vmatprep.subr.mxu0 0.0
  %5627 = vmatpush1.xpose.msra.mxu0 0.0
  %5628 = vmatprep.subr.mxu0 0.0
  %5629 = vmatpush1.xpose.msra.mxu0 0.0
  %5630 = vmatprep.subr.mxu0 0.0
  %5631 = vmatpush1.xpose.msra.mxu0 0.0
  %5632 = vmatprep.subr.mxu0 0.0
  %5633 = vmatpush1.xpose.msra.mxu0 0.0
  %5634 = vmatprep.subr.mxu0 0.0
  %5635 = vmatpush1.xpose.msra.mxu0 0.0
  %5636 = vmatprep.subr.mxu0 0.0
  %5637 = vmatpush1.xpose.msra.mxu0 0.0
  %5638 = vmatprep.subr.mxu0 0.0
  %5639 = vmatpush1.xpose.msra.mxu0 0.0
  %5640 = vmatprep.subr.mxu0 0.0
  %5641 = vmatpush1.xpose.msra.mxu0 0.0
  %5642 = vmatprep.subr.mxu0 0.0
  %5643 = vmatpush1.xpose.msra.mxu0 0.0
  %5644 = vmatprep.subr.mxu0 0.0
  %5645 = vmatpush1.xpose.msra.mxu0 0.0
  %5646 = vmatprep.subr.mxu0 0.0
  %5647 = vmatpush1.xpose.msra.mxu0 0.0
  %5648 = vmatprep.subr.mxu0 0.0
  %5649 = vmatpush1.xpose.msra.mxu0 0.0
  %5650 = vmatprep.subr.mxu0 0.0
  %5651 = vmatpush1.xpose.msra.mxu0 0.0
  %5652 = vmatprep.subr.mxu0 0.0
  %5653 = vmatpush1.xpose.msra.mxu0 0.0
  %5654 = vmatprep.subr.mxu0 0.0
  %5655 = vmatpush1.xpose.msra.mxu0 0.0
  %5656 = vmatprep.subr.mxu0 0.0
  %5657 = vmatpush1.xpose.msra.mxu0 0.0
  %5658 = vmatprep.subr.mxu0 0.0
  %5659 = vmatpush1.xpose.msra.mxu0 0.0
  %5660 = vmatprep.subr.mxu0 0.0
  %5661 = vmatpush1.xpose.msra.mxu0 0.0
  %5662 = vmatprep.subr.mxu0 0.0
  %5663 = vmatpush1.xpose.msra.mxu0 0.0
  %5664 = vmatprep.subr.mxu0 0.0
  %5665 = vmatpush1.xpose.msra.mxu0 0.0
  %5666 = vmatprep.subr.mxu0 0.0
  %5667 = vmatpush1.xpose.msra.mxu0 0.0
  %5668 = vmatprep.subr.mxu0 0.0
  %5669 = vmatpush1.xpose.msra.mxu0 0.0
  %5670 = vmatprep.subr.mxu0 0.0
  %5671 = vmatpush1.xpose.msra.mxu0 0.0
  %5672 = vmatprep.subr.mxu0 0.0
  %5673 = vmatpush1.xpose.msra.mxu0 0.0
  %5674 = vmatprep.subr.mxu0 0.0
  %5675 = vmatpush1.xpose.msra.mxu0 0.0
  %5676 = vmatprep.subr.mxu0 0.0
  %5677 = vmatpush1.xpose.msra.mxu0 0.0
  %5678 = vmatprep.subr.mxu0 0.0
  %5679 = vmatpush1.xpose.msra.mxu0 0.0
  %5680 = vmatprep.subr.mxu0 0.0
  %5681 = vmatpush1.xpose.msra.mxu0 0.0
  %5682 = vmatprep.mubr.f32.mxu0 0.0
  %5683 = vmatmul.mubr.f32.gmra.mrb[0].mxu0 %v5604
  %v5684 = vpop.f32.mrb[0].mxu0
  %v5685 = vadd.f32 0.0, %v5684
  %v5686 = vpop.f32.mrb[0].mxu0
  %5687 = vdwg.mxu0
  %v5688 = vrot.slane %v4887, 6
  %5690 = vxpose.xlu0.b32.start [1/16] %v5688, 128
  %5691 = vxpose.xlu0.b32.cont [2/16] 0.0, 128
  %5692 = vxpose.xlu0.b32.cont [3/16] 0.0, 128
  %5693 = vxpose.xlu0.b32.cont [4/16] 0.0, 128
  %5694 = vxpose.xlu0.b32.cont [5/16] 0.0, 128
  %5695 = vxpose.xlu0.b32.cont [6/16] 0.0, 128
  %5696 = vxpose.xlu0.b32.cont [7/16] 0.0, 128
  %5697 = vxpose.xlu0.b32.cont [8/16] 0.0, 128
  %5698 = vxpose.xlu0.b32.cont [9/16] 0.0, 128
  %5699 = vxpose.xlu0.b32.cont [10/16] 0.0, 128
  %5700 = vxpose.xlu0.b32.cont [11/16] 0.0, 128
  %5701 = vxpose.xlu0.b32.cont [12/16] 0.0, 128
  %5702 = vxpose.xlu0.b32.cont [13/16] 0.0, 128
  %5703 = vxpose.xlu0.b32.cont [14/16] 0.0, 128
  %5704 = vxpose.xlu0.b32.cont [15/16] 0.0, 128
  %5705 = vxpose.xlu0.b32.end [16/16] 0.0, 128
  %v5706 = vpop.trf.xlu0
  %v5707 = vpop.trf.xlu0
  %v5708 = vpop.trf.xlu0
  %v5709 = vpop.trf.xlu0
  %v5710 = vpop.trf.xlu0
  %v5711 = vpop.trf.xlu0
  %v5712 = vpop.trf.xlu0
  %v5713 = vpop.trf.xlu0
  %v5714 = vpop.trf.xlu0
  %v5715 = vpop.trf.xlu0
  %v5716 = vpop.trf.xlu0
  %v5717 = vpop.trf.xlu0
  %v5718 = vpop.trf.xlu0
  %v5719 = vpop.trf.xlu0
  %v5720 = vpop.trf.xlu0
  %v5721 = vpop.trf.xlu0
  %v5722 = vrot.slane %v4892, 6
  %v5724 = vsel %vm502, %v5706, 0
  %v5727 = vsel %vm502, %v5707, 0
  %v5730 = vsel %vm502, %v5708, 0
  %v5733 = vsel %vm502, %v5709, 0
  %v5735 = vsel %vm515, %v5722, 0
  %5737 = vmatprep.subr.mxu0 0.0
  %5738 = vmatpush1.msra.mxu0 %v5735
  %5739 = vmatprep.subr.mxu0 0.0
  %5740 = vmatpush1.msra.mxu0 0.0
  %5741 = vmatprep.subr.mxu0 0.0
  %5742 = vmatpush1.msra.mxu0 0.0
  %5743 = vmatprep.subr.mxu0 0.0
  %5744 = vmatpush1.msra.mxu0 0.0
  %5745 = vmatprep.subr.mxu0 0.0
  %5746 = vmatpush1.msra.mxu0 0.0
  %5747 = vmatprep.subr.mxu0 0.0
  %5748 = vmatpush1.msra.mxu0 0.0
  %5749 = vmatprep.subr.mxu0 0.0
  %5750 = vmatpush1.msra.mxu0 0.0
  %5751 = vmatprep.subr.mxu0 0.0
  %5752 = vmatpush1.msra.mxu0 0.0
  %5753 = vmatprep.subr.mxu0 0.0
  %5754 = vmatpush1.msra.mxu0 0.0
  %5755 = vmatprep.subr.mxu0 0.0
  %5756 = vmatpush1.msra.mxu0 0.0
  %5757 = vmatprep.subr.mxu0 0.0
  %5758 = vmatpush1.msra.mxu0 0.0
  %5759 = vmatprep.subr.mxu0 0.0
  %5760 = vmatpush1.msra.mxu0 0.0
  %5761 = vmatprep.subr.mxu0 0.0
  %5762 = vmatpush1.msra.mxu0 0.0
  %5763 = vmatprep.subr.mxu0 0.0
  %5764 = vmatpush1.msra.mxu0 0.0
  %5765 = vmatprep.subr.mxu0 0.0
  %5766 = vmatpush1.msra.mxu0 0.0
  %5767 = vmatprep.subr.mxu0 0.0
  %5768 = vmatpush1.msra.mxu0 0.0
  %5769 = vmatprep.subr.mxu0 0.0
  %5770 = vmatpush1.msra.mxu0 0.0
  %5771 = vmatprep.subr.mxu0 0.0
  %5772 = vmatpush1.msra.mxu0 0.0
  %5773 = vmatprep.subr.mxu0 0.0
  %5774 = vmatpush1.msra.mxu0 0.0
  %5775 = vmatprep.subr.mxu0 0.0
  %5776 = vmatpush1.msra.mxu0 0.0
  %5777 = vmatprep.subr.mxu0 0.0
  %5778 = vmatpush1.msra.mxu0 0.0
  %5779 = vmatprep.subr.mxu0 0.0
  %5780 = vmatpush1.msra.mxu0 0.0
  %5781 = vmatprep.subr.mxu0 0.0
  %5782 = vmatpush1.msra.mxu0 0.0
  %5783 = vmatprep.subr.mxu0 0.0
  %5784 = vmatpush1.msra.mxu0 0.0
  %5785 = vmatprep.subr.mxu0 0.0
  %5786 = vmatpush1.msra.mxu0 0.0
  %5787 = vmatprep.subr.mxu0 0.0
  %5788 = vmatpush1.msra.mxu0 0.0
  %5789 = vmatprep.subr.mxu0 0.0
  %5790 = vmatpush1.msra.mxu0 0.0
  %5791 = vmatprep.subr.mxu0 0.0
  %5792 = vmatpush1.msra.mxu0 0.0
  %5793 = vmatprep.subr.mxu0 0.0
  %5794 = vmatpush1.msra.mxu0 0.0
  %5795 = vmatprep.subr.mxu0 0.0
  %5796 = vmatpush1.msra.mxu0 0.0
  %5797 = vmatprep.subr.mxu0 0.0
  %5798 = vmatpush1.msra.mxu0 0.0
  %5799 = vmatprep.subr.mxu0 0.0
  %5800 = vmatpush1.msra.mxu0 0.0
  %5801 = vmatprep.mubr.f32.mxu0 0.0
  %5802 = vmatmul.mubr.f32.gmra.mrb[0].mxu0 %v5724
  %v5803 = vpop.f32.mrb[0].mxu0
  %v5804 = vadd.f32 %v47, %v5803
  %v5805 = vpop.f32.mrb[0].mxu0
  %5806 = vmatprep.mubr.f32.mxu0 0.0
  %5807 = vmatmul.mubr.f32.gmra.mrb[0].mxu0 %v5727
  %v5808 = vpop.f32.mrb[0].mxu0
  %v5809 = vadd.f32 %v48, %v5808
  %v5810 = vpop.f32.mrb[0].mxu0
  %5811 = vmatprep.mubr.f32.mxu0 0.0
  %5812 = vmatmul.mubr.f32.gmra.mrb[0].mxu0 %v5730
  %v5813 = vpop.f32.mrb[0].mxu0
  %v5814 = vadd.f32 %v49, %v5813
  %v5815 = vpop.f32.mrb[0].mxu0
  %5816 = vmatprep.mubr.f32.mxu0 0.0
  %5817 = vmatmul.mubr.f32.gmra.mrb[0].mxu0 %v5733
  %v5818 = vpop.f32.mrb[0].mxu0
  %v5819 = vadd.f32 %v50, %v5818
  %v5820 = vpop.f32.mrb[0].mxu0
  %5821 = vdwg.mxu0
  %v5822 = vsel %vm604, %v5804, -inf
  %5823 = vmax.xlane.f32.xlu0 %v5822
  %v5824 = vpop.xlane.xlu0 %5823
  %v5825 = vsel %vm604, %v5809, -inf
  %5826 = vmax.xlane.f32.xlu0 %v5825
  %v5827 = vpop.xlane.xlu0 %5826
  %v5828 = vsel %vm604, %v5814, -inf
  %5829 = vmax.xlane.f32.xlu0 %v5828
  %v5830 = vpop.xlane.xlu0 %5829
  %v5831 = vsel %vm604, %v5819, -inf
  %5832 = vmax.xlane.f32.xlu0 %v5831
  %v5833 = vpop.xlane.xlu0 %5832
  %v5834 = vsub.f32 %v5804, %v5824
  %v5835 = vsub.f32 %v5809, %v5827
  %v5836 = vsub.f32 %v5814, %v5830
  %v5837 = vsub.f32 %v5819, %v5833
  %v5838 = vmul.f32 %v5834, 1.442695
  %v5839 = vpow.pop %v5838
  %v5840 = vmul.f32 %v5835, 1.442695
  %v5841 = vpow.pop %v5840
  %v5842 = vmul.f32 %v5836, 1.442695
  %v5843 = vpow.pop %v5842
  %v5844 = vmul.f32 %v5837, 1.442695
  %v5845 = vpow.pop %v5844
  %v5846 = vsel %vm604, %v5839, 0.0
  %5847 = vadd.xlane.f32.xlu0 %v5846
  %v5848 = vpop.xlane.xlu0 %5847
  %v5849 = vsel %vm604, %v5841, 0.0
  %5850 = vadd.xlane.f32.xlu0 %v5849
  %v5851 = vpop.xlane.xlu0 %5850
  %v5852 = vsel %vm604, %v5843, 0.0
  %5853 = vadd.xlane.f32.xlu0 %v5852
  %v5854 = vpop.xlane.xlu0 %5853
  %v5855 = vsel %vm604, %v5845, 0.0
  %5856 = vadd.xlane.f32.xlu0 %v5855
  %v5857 = vpop.xlane.xlu0 %5856
  %v5858 = vrcp.pop %v5848
  %v5859 = vrcp.pop %v5851
  %v5860 = vrcp.pop %v5854
  %v5861 = vrcp.pop %v5857
  %v5862 = vmul.f32 %v5839, %v5858
  %v5863 = vmul.f32 %v5841, %v5859
  %v5864 = vmul.f32 %v5843, %v5860
  %v5865 = vmul.f32 %v5845, %v5861
  %v5866 = vrot.slane %v4897, 6
  %v5867 = vsel %vm604, %v5866, 0
  %v5870 = vsel %vm604, %v5862, 0
  %v5873 = vsel %vm604, %v5863, 0
  %v5876 = vsel %vm604, %v5864, 0
  %v5879 = vsel %vm604, %v5865, 0
  %5881 = vmatprep.subr.mxu0 0.0
  %5882 = vmatpush1.xpose.msra.mxu0 %v5870
  %5883 = vmatprep.subr.mxu0 0.0
  %5884 = vmatpush1.xpose.msra.mxu0 %v5873
  %5885 = vmatprep.subr.mxu0 0.0
  %5886 = vmatpush1.xpose.msra.mxu0 %v5876
  %5887 = vmatprep.subr.mxu0 0.0
  %5888 = vmatpush1.xpose.msra.mxu0 %v5879
  %5889 = vmatprep.subr.mxu0 0.0
  %5890 = vmatpush1.xpose.msra.mxu0 0.0
  %5891 = vmatprep.subr.mxu0 0.0
  %5892 = vmatpush1.xpose.msra.mxu0 0.0
  %5893 = vmatprep.subr.mxu0 0.0
  %5894 = vmatpush1.xpose.msra.mxu0 0.0
  %5895 = vmatprep.subr.mxu0 0.0
  %5896 = vmatpush1.xpose.msra.mxu0 0.0
  %5897 = vmatprep.subr.mxu0 0.0
  %5898 = vmatpush1.xpose.msra.mxu0 0.0
  %5899 = vmatprep.subr.mxu0 0.0
  %5900 = vmatpush1.xpose.msra.mxu0 0.0
  %5901 = vmatprep.subr.mxu0 0.0
  %5902 = vmatpush1.xpose.msra.mxu0 0.0
  %5903 = vmatprep.subr.mxu0 0.0
  %5904 = vmatpush1.xpose.msra.mxu0 0.0
  %5905 = vmatprep.subr.mxu0 0.0
  %5906 = vmatpush1.xpose.msra.mxu0 0.0
  %5907 = vmatprep.subr.mxu0 0.0
  %5908 = vmatpush1.xpose.msra.mxu0 0.0
  %5909 = vmatprep.subr.mxu0 0.0
  %5910 = vmatpush1.xpose.msra.mxu0 0.0
  %5911 = vmatprep.subr.mxu0 0.0
  %5912 = vmatpush1.xpose.msra.mxu0 0.0
  %5913 = vmatprep.subr.mxu0 0.0
  %5914 = vmatpush1.xpose.msra.mxu0 0.0
  %5915 = vmatprep.subr.mxu0 0.0
  %5916 = vmatpush1.xpose.msra.mxu0 0.0
  %5917 = vmatprep.subr.mxu0 0.0
  %5918 = vmatpush1.xpose.msra.mxu0 0.0
  %5919 = vmatprep.subr.mxu0 0.0
  %5920 = vmatpush1.xpose.msra.mxu0 0.0
  %5921 = vmatprep.subr.mxu0 0.0
  %5922 = vmatpush1.xpose.msra.mxu0 0.0
  %5923 = vmatprep.subr.mxu0 0.0
  %5924 = vmatpush1.xpose.msra.mxu0 0.0
  %5925 = vmatprep.subr.mxu0 0.0
  %5926 = vmatpush1.xpose.msra.mxu0 0.0
  %5927 = vmatprep.subr.mxu0 0.0
  %5928 = vmatpush1.xpose.msra.mxu0 0.0
  %5929 = vmatprep.subr.mxu0 0.0
  %5930 = vmatpush1.xpose.msra.mxu0 0.0
  %5931 = vmatprep.subr.mxu0 0.0
  %5932 = vmatpush1.xpose.msra.mxu0 0.0
  %5933 = vmatprep.subr.mxu0 0.0
  %5934 = vmatpush1.xpose.msra.mxu0 0.0
  %5935 = vmatprep.subr.mxu0 0.0
  %5936 = vmatpush1.xpose.msra.mxu0 0.0
  %5937 = vmatprep.subr.mxu0 0.0
  %5938 = vmatpush1.xpose.msra.mxu0 0.0
  %5939 = vmatprep.subr.mxu0 0.0
  %5940 = vmatpush1.xpose.msra.mxu0 0.0
  %5941 = vmatprep.subr.mxu0 0.0
  %5942 = vmatpush1.xpose.msra.mxu0 0.0
  %5943 = vmatprep.subr.mxu0 0.0
  %5944 = vmatpush1.xpose.msra.mxu0 0.0
  %5945 = vmatprep.mubr.f32.mxu0 0.0
  %5946 = vmatmul.mubr.f32.gmra.mrb[0].mxu0 %v5867
  %v5947 = vpop.f32.mrb[0].mxu0
  %v5948 = vadd.f32 0.0, %v5947
  %v5949 = vpop.f32.mrb[0].mxu0
  %5950 = vdwg.mxu0
  %v5952 = vrot.slane %v5422, 6
  %v5955 = vrot.slane %v5685, 4
  %v5958 = vrot.slane %v5948, 2
  %v5960 = vsel %vm515, %v5158, %v5952
  %v5961 = vsel %vm1534, %v5960, %v5955
  %v5962 = vsel %vm1536, %v5961, %v5958
  %5964 = vset.pattern.permute.xlu0 0
  %5965 = vperm.xlu0 %5964, %v4795
  %v5966 = vpop.permute.xlu0 %5965
  %v5969 = vsel %vm66, %v4793, 0
  %5971 = vmatprep.subr.mxu0 0.0
  %5972 = vmatpush1.msra.mxu0 %v5962
  %5973 = vmatprep.subr.mxu0 0.0
  %5974 = vmatpush1.msra.mxu0 0.0
  %5975 = vmatprep.subr.mxu0 0.0
  %5976 = vmatpush1.msra.mxu0 0.0
  %5977 = vmatprep.subr.mxu0 0.0
  %5978 = vmatpush1.msra.mxu0 0.0
  %5979 = vmatprep.subr.mxu0 0.0
  %5980 = vmatpush1.msra.mxu0 0.0
  %5981 = vmatprep.subr.mxu0 0.0
  %5982 = vmatpush1.msra.mxu0 0.0
  %5983 = vmatprep.subr.mxu0 0.0
  %5984 = vmatpush1.msra.mxu0 0.0
  %5985 = vmatprep.subr.mxu0 0.0
  %5986 = vmatpush1.msra.mxu0 0.0
  %5987 = vmatprep.subr.mxu0 0.0
  %5988 = vmatpush1.msra.mxu0 0.0
  %5989 = vmatprep.subr.mxu0 0.0
  %5990 = vmatpush1.msra.mxu0 0.0
  %5991 = vmatprep.subr.mxu0 0.0
  %5992 = vmatpush1.msra.mxu0 0.0
  %5993 = vmatprep.subr.mxu0 0.0
  %5994 = vmatpush1.msra.mxu0 0.0
  %5995 = vmatprep.subr.mxu0 0.0
  %5996 = vmatpush1.msra.mxu0 0.0
  %5997 = vmatprep.subr.mxu0 0.0
  %5998 = vmatpush1.msra.mxu0 0.0
  %5999 = vmatprep.subr.mxu0 0.0
  %6000 = vmatpush1.msra.mxu0 0.0
  %6001 = vmatprep.subr.mxu0 0.0
  %6002 = vmatpush1.msra.mxu0 0.0
  %6003 = vmatprep.subr.mxu0 0.0
  %6004 = vmatpush1.msra.mxu0 0.0
  %6005 = vmatprep.subr.mxu0 0.0
  %6006 = vmatpush1.msra.mxu0 0.0
  %6007 = vmatprep.subr.mxu0 0.0
  %6008 = vmatpush1.msra.mxu0 0.0
  %6009 = vmatprep.subr.mxu0 0.0
  %6010 = vmatpush1.msra.mxu0 0.0
  %6011 = vmatprep.subr.mxu0 0.0
  %6012 = vmatpush1.msra.mxu0 0.0
  %6013 = vmatprep.subr.mxu0 0.0
  %6014 = vmatpush1.msra.mxu0 0.0
  %6015 = vmatprep.subr.mxu0 0.0
  %6016 = vmatpush1.msra.mxu0 0.0
  %6017 = vmatprep.subr.mxu0 0.0
  %6018 = vmatpush1.msra.mxu0 0.0
  %6019 = vmatprep.subr.mxu0 0.0
  %6020 = vmatpush1.msra.mxu0 0.0
  %6021 = vmatprep.subr.mxu0 0.0
  %6022 = vmatpush1.msra.mxu0 0.0
  %6023 = vmatprep.subr.mxu0 0.0
  %6024 = vmatpush1.msra.mxu0 0.0
  %6025 = vmatprep.subr.mxu0 0.0
  %6026 = vmatpush1.msra.mxu0 0.0
  %6027 = vmatprep.subr.mxu0 0.0
  %6028 = vmatpush1.msra.mxu0 0.0
  %6029 = vmatprep.subr.mxu0 0.0
  %6030 = vmatpush1.msra.mxu0 0.0
  %6031 = vmatprep.subr.mxu0 0.0
  %6032 = vmatpush1.msra.mxu0 0.0
  %6033 = vmatprep.subr.mxu0 0.0
  %6034 = vmatpush1.msra.mxu0 0.0
  %6035 = vmatprep.mubr.f32.mxu0 0.0
  %6036 = vmatmul.mubr.f32.gmra.mrb[0].mxu0 %v5969
  %v6037 = vpop.f32.mrb[0].mxu0
  %v6038 = vadd.f32 %v5966, %v6037
  %v6039 = vpop.f32.mrb[0].mxu0
  %6040 = vdwg.mxu0
  %v6042 = vsel %vm604, %v6038, 0
  %6044 = vmatprep.subr.mxu0 0.0
  %6045 = vmatpush1.msra.mxu0 %v51
  %6046 = vmatprep.subr.mxu0 0.0
  %6047 = vmatpush1.msra.mxu0 %v52
  %6048 = vmatprep.subr.mxu0 0.0
  %6049 = vmatpush1.msra.mxu0 %v53
  %6050 = vmatprep.subr.mxu0 0.0
  %6051 = vmatpush1.msra.mxu0 %v54
  %6052 = vmatprep.subr.mxu0 0.0
  %6053 = vmatpush1.msra.mxu0 0.0
  %6054 = vmatprep.subr.mxu0 0.0
  %6055 = vmatpush1.msra.mxu0 0.0
  %6056 = vmatprep.subr.mxu0 0.0
  %6057 = vmatpush1.msra.mxu0 0.0
  %6058 = vmatprep.subr.mxu0 0.0
  %6059 = vmatpush1.msra.mxu0 0.0
  %6060 = vmatprep.subr.mxu0 0.0
  %6061 = vmatpush1.msra.mxu0 0.0
  %6062 = vmatprep.subr.mxu0 0.0
  %6063 = vmatpush1.msra.mxu0 0.0
  %6064 = vmatprep.subr.mxu0 0.0
  %6065 = vmatpush1.msra.mxu0 0.0
  %6066 = vmatprep.subr.mxu0 0.0
  %6067 = vmatpush1.msra.mxu0 0.0
  %6068 = vmatprep.subr.mxu0 0.0
  %6069 = vmatpush1.msra.mxu0 0.0
  %6070 = vmatprep.subr.mxu0 0.0
  %6071 = vmatpush1.msra.mxu0 0.0
  %6072 = vmatprep.subr.mxu0 0.0
  %6073 = vmatpush1.msra.mxu0 0.0
  %6074 = vmatprep.subr.mxu0 0.0
  %6075 = vmatpush1.msra.mxu0 0.0
  %6076 = vmatprep.subr.mxu0 0.0
  %6077 = vmatpush1.msra.mxu0 0.0
  %6078 = vmatprep.subr.mxu0 0.0
  %6079 = vmatpush1.msra.mxu0 0.0
  %6080 = vmatprep.subr.mxu0 0.0
  %6081 = vmatpush1.msra.mxu0 0.0
  %6082 = vmatprep.subr.mxu0 0.0
  %6083 = vmatpush1.msra.mxu0 0.0
  %6084 = vmatprep.subr.mxu0 0.0
  %6085 = vmatpush1.msra.mxu0 0.0
  %6086 = vmatprep.subr.mxu0 0.0
  %6087 = vmatpush1.msra.mxu0 0.0
  %6088 = vmatprep.subr.mxu0 0.0
  %6089 = vmatpush1.msra.mxu0 0.0
  %6090 = vmatprep.subr.mxu0 0.0
  %6091 = vmatpush1.msra.mxu0 0.0
  %6092 = vmatprep.subr.mxu0 0.0
  %6093 = vmatpush1.msra.mxu0 0.0
  %6094 = vmatprep.subr.mxu0 0.0
  %6095 = vmatpush1.msra.mxu0 0.0
  %6096 = vmatprep.subr.mxu0 0.0
  %6097 = vmatpush1.msra.mxu0 0.0
  %6098 = vmatprep.subr.mxu0 0.0
  %6099 = vmatpush1.msra.mxu0 0.0
  %6100 = vmatprep.subr.mxu0 0.0
  %6101 = vmatpush1.msra.mxu0 0.0
  %6102 = vmatprep.subr.mxu0 0.0
  %6103 = vmatpush1.msra.mxu0 0.0
  %6104 = vmatprep.subr.mxu0 0.0
  %6105 = vmatpush1.msra.mxu0 0.0
  %6106 = vmatprep.subr.mxu0 0.0
  %6107 = vmatpush1.msra.mxu0 0.0
  %6108 = vmatprep.mubr.f32.mxu0 0.0
  %6109 = vmatmul.mubr.f32.gmra.mrb[0].mxu0 %v6042
  %v6110 = vpop.f32.mrb[0].mxu0
  %v6111 = vadd.f32 0.0, %v6110
  %v6112 = vpop.f32.mrb[0].mxu0
  %6113 = vdwg.mxu0
  %v6114 = vadd.f32 %v4781, %v6111
  %v6115 = vadd.f32 %v4776, %v6114
  %s6116 = scalar_lea.vmem %s5, 48
  %v6117 = vld [vmem:[%s6116] sm:$0xff]
  %v6118 = vld [vmem:[%s6116 + $0x8] sm:$0xff]
  %s6119 = scalar_lea.vmem %s6, 48
  %v6120 = vld [vmem:[%s6119] sm:$0xff]
  %v6121 = vld [vmem:[%s6119 + $0x8] sm:$0xff]
  %6123 = vset.pattern.permute.xlu0 0
  %6124 = vperm.xlu0 %6123, %v6120
  %v6125 = vpop.permute.xlu0 %6124
  %6128 = vset.pattern.permute.xlu0 0
  %6129 = vperm.xlu0 %6128, %v6121
  %v6130 = vpop.permute.xlu0 %6129
  %v6133 = vsel %vm1844, %v6117, 0
  %v6136 = vsel %vm1844, %v6118, 0
  %6138 = vmatprep.subr.mxu0 0.0
  %6139 = vmatpush1.msra.mxu0 %v6115
  %6140 = vmatprep.subr.mxu0 0.0
  %6141 = vmatpush1.msra.mxu0 %v6114
  %6142 = vmatprep.subr.mxu0 0.0
  %6143 = vmatpush1.msra.mxu0 0.0
  %6144 = vmatprep.subr.mxu0 0.0
  %6145 = vmatpush1.msra.mxu0 0.0
  %6146 = vmatprep.subr.mxu0 0.0
  %6147 = vmatpush1.msra.mxu0 0.0
  %6148 = vmatprep.subr.mxu0 0.0
  %6149 = vmatpush1.msra.mxu0 0.0
  %6150 = vmatprep.subr.mxu0 0.0
  %6151 = vmatpush1.msra.mxu0 0.0
  %6152 = vmatprep.subr.mxu0 0.0
  %6153 = vmatpush1.msra.mxu0 0.0
  %6154 = vmatprep.subr.mxu0 0.0
  %6155 = vmatpush1.msra.mxu0 0.0
  %6156 = vmatprep.subr.mxu0 0.0
  %6157 = vmatpush1.msra.mxu0 0.0
  %6158 = vmatprep.subr.mxu0 0.0
  %6159 = vmatpush1.msra.mxu0 0.0
  %6160 = vmatprep.subr.mxu0 0.0
  %6161 = vmatpush1.msra.mxu0 0.0
  %6162 = vmatprep.subr.mxu0 0.0
  %6163 = vmatpush1.msra.mxu0 0.0
  %6164 = vmatprep.subr.mxu0 0.0
  %6165 = vmatpush1.msra.mxu0 0.0
  %6166 = vmatprep.subr.mxu0 0.0
  %6167 = vmatpush1.msra.mxu0 0.0
  %6168 = vmatprep.subr.mxu0 0.0
  %6169 = vmatpush1.msra.mxu0 0.0
  %6170 = vmatprep.subr.mxu0 0.0
  %6171 = vmatpush1.msra.mxu0 0.0
  %6172 = vmatprep.subr.mxu0 0.0
  %6173 = vmatpush1.msra.mxu0 0.0
  %6174 = vmatprep.subr.mxu0 0.0
  %6175 = vmatpush1.msra.mxu0 0.0
  %6176 = vmatprep.subr.mxu0 0.0
  %6177 = vmatpush1.msra.mxu0 0.0
  %6178 = vmatprep.subr.mxu0 0.0
  %6179 = vmatpush1.msra.mxu0 0.0
  %6180 = vmatprep.subr.mxu0 0.0
  %6181 = vmatpush1.msra.mxu0 0.0
  %6182 = vmatprep.subr.mxu0 0.0
  %6183 = vmatpush1.msra.mxu0 0.0
  %6184 = vmatprep.subr.mxu0 0.0
  %6185 = vmatpush1.msra.mxu0 0.0
  %6186 = vmatprep.subr.mxu0 0.0
  %6187 = vmatpush1.msra.mxu0 0.0
  %6188 = vmatprep.subr.mxu0 0.0
  %6189 = vmatpush1.msra.mxu0 0.0
  %6190 = vmatprep.subr.mxu0 0.0
  %6191 = vmatpush1.msra.mxu0 0.0
  %6192 = vmatprep.subr.mxu0 0.0
  %6193 = vmatpush1.msra.mxu0 0.0
  %6194 = vmatprep.subr.mxu0 0.0
  %6195 = vmatpush1.msra.mxu0 0.0
  %6196 = vmatprep.subr.mxu0 0.0
  %6197 = vmatpush1.msra.mxu0 0.0
  %6198 = vmatprep.subr.mxu0 0.0
  %6199 = vmatpush1.msra.mxu0 0.0
  %6200 = vmatprep.subr.mxu0 0.0
  %6201 = vmatpush1.msra.mxu0 0.0
  %6202 = vmatprep.mubr.f32.mxu0 0.0
  %6203 = vmatmul.mubr.f32.gmra.mrb[0].mxu0 %v6133
  %v6204 = vpop.f32.mrb[0].mxu0
  %v6205 = vadd.f32 %v6125, %v6204
  %v6206 = vpop.f32.mrb[0].mxu0
  %6207 = vmatprep.mubr.f32.mxu0 0.0
  %6208 = vmatmul.mubr.f32.gmra.mrb[0].mxu0 %v6136
  %v6209 = vpop.f32.mrb[0].mxu0
  %v6210 = vadd.f32 %v6130, %v6209
  %v6211 = vpop.f32.mrb[0].mxu0
  %6212 = vdwg.mxu0
  %s6213 = scalar_lea.vmem %s7, 96
  %v6214 = vld [vmem:[%s6213] sm:$0xff]
  %v6215 = vld [vmem:[%s6213 + $0x8] sm:$0xff]
  %v6216 = vld [vmem:[%s6213 + $0x10] sm:$0xff]
  %s6217 = scalar_lea.vmem %s8, 96
  %v6218 = vld [vmem:[%s6217] sm:$0xff]
  %v6219 = vld [vmem:[%s6217 + $0x8] sm:$0xff]
  %v6220 = vld [vmem:[%s6217 + $0x10] sm:$0xff]
  %s6221 = scalar_lea.vmem %s9, 32
  %v6222 = vld [vmem:[%s6221] sm:$0xff]
  %s6223 = scalar_lea.vmem %s10, 32
  %v6224 = vld [vmem:[%s6223] sm:$0xff]
  %6226 = vset.pattern.permute.xlu0 0
  %6227 = vperm.xlu0 %6226, %v6218
  %v6228 = vpop.permute.xlu0 %6227
  %6231 = vset.pattern.permute.xlu0 0
  %6232 = vperm.xlu0 %6231, %v6219
  %v6233 = vpop.permute.xlu0 %6232
  %6236 = vset.pattern.permute.xlu0 0
  %6237 = vperm.xlu0 %6236, %v6220
  %v6238 = vpop.permute.xlu0 %6237
  %v6241 = vsel %vm66, %v6214, 0
  %v6244 = vsel %vm66, %v6215, 0
  %v6247 = vsel %vm66, %v6216, 0
  %6249 = vmatprep.subr.mxu0 0.0
  %6250 = vmatpush1.msra.mxu0 %v6038
  %6251 = vmatprep.subr.mxu0 0.0
  %6252 = vmatpush1.msra.mxu0 0.0
  %6253 = vmatprep.subr.mxu0 0.0
  %6254 = vmatpush1.msra.mxu0 0.0
  %6255 = vmatprep.subr.mxu0 0.0
  %6256 = vmatpush1.msra.mxu0 0.0
  %6257 = vmatprep.subr.mxu0 0.0
  %6258 = vmatpush1.msra.mxu0 0.0
  %6259 = vmatprep.subr.mxu0 0.0
  %6260 = vmatpush1.msra.mxu0 0.0
  %6261 = vmatprep.subr.mxu0 0.0
  %6262 = vmatpush1.msra.mxu0 0.0
  %6263 = vmatprep.subr.mxu0 0.0
  %6264 = vmatpush1.msra.mxu0 0.0
  %6265 = vmatprep.subr.mxu0 0.0
  %6266 = vmatpush1.msra.mxu0 0.0
  %6267 = vmatprep.subr.mxu0 0.0
  %6268 = vmatpush1.msra.mxu0 0.0
  %6269 = vmatprep.subr.mxu0 0.0
  %6270 = vmatpush1.msra.mxu0 0.0
  %6271 = vmatprep.subr.mxu0 0.0
  %6272 = vmatpush1.msra.mxu0 0.0
  %6273 = vmatprep.subr.mxu0 0.0
  %6274 = vmatpush1.msra.mxu0 0.0
  %6275 = vmatprep.subr.mxu0 0.0
  %6276 = vmatpush1.msra.mxu0 0.0
  %6277 = vmatprep.subr.mxu0 0.0
  %6278 = vmatpush1.msra.mxu0 0.0
  %6279 = vmatprep.subr.mxu0 0.0
  %6280 = vmatpush1.msra.mxu0 0.0
  %6281 = vmatprep.subr.mxu0 0.0
  %6282 = vmatpush1.msra.mxu0 0.0
  %6283 = vmatprep.subr.mxu0 0.0
  %6284 = vmatpush1.msra.mxu0 0.0
  %6285 = vmatprep.subr.mxu0 0.0
  %6286 = vmatpush1.msra.mxu0 0.0
  %6287 = vmatprep.subr.mxu0 0.0
  %6288 = vmatpush1.msra.mxu0 0.0
  %6289 = vmatprep.subr.mxu0 0.0
  %6290 = vmatpush1.msra.mxu0 0.0
  %6291 = vmatprep.subr.mxu0 0.0
  %6292 = vmatpush1.msra.mxu0 0.0
  %6293 = vmatprep.subr.mxu0 0.0
  %6294 = vmatpush1.msra.mxu0 0.0
  %6295 = vmatprep.subr.mxu0 0.0
  %6296 = vmatpush1.msra.mxu0 0.0
  %6297 = vmatprep.subr.mxu0 0.0
  %6298 = vmatpush1.msra.mxu0 0.0
  %6299 = vmatprep.subr.mxu0 0.0
  %6300 = vmatpush1.msra.mxu0 0.0
  %6301 = vmatprep.subr.mxu0 0.0
  %6302 = vmatpush1.msra.mxu0 0.0
  %6303 = vmatprep.subr.mxu0 0.0
  %6304 = vmatpush1.msra.mxu0 0.0
  %6305 = vmatprep.subr.mxu0 0.0
  %6306 = vmatpush1.msra.mxu0 0.0
  %6307 = vmatprep.subr.mxu0 0.0
  %6308 = vmatpush1.msra.mxu0 0.0
  %6309 = vmatprep.subr.mxu0 0.0
  %6310 = vmatpush1.msra.mxu0 0.0
  %6311 = vmatprep.subr.mxu0 0.0
  %6312 = vmatpush1.msra.mxu0 0.0
  %6313 = vmatprep.mubr.f32.mxu0 0.0
  %6314 = vmatmul.mubr.f32.gmra.mrb[0].mxu0 %v6241
  %v6315 = vpop.f32.mrb[0].mxu0
  %v6316 = vadd.f32 %v6228, %v6315
  %v6317 = vpop.f32.mrb[0].mxu0
  %6318 = vmatprep.mubr.f32.mxu0 0.0
  %6319 = vmatmul.mubr.f32.gmra.mrb[0].mxu0 %v6244
  %v6320 = vpop.f32.mrb[0].mxu0
  %v6321 = vadd.f32 %v6233, %v6320
  %v6322 = vpop.f32.mrb[0].mxu0
  %6323 = vmatprep.mubr.f32.mxu0 0.0
  %6324 = vmatmul.mubr.f32.gmra.mrb[0].mxu0 %v6247
  %v6325 = vpop.f32.mrb[0].mxu0
  %v6326 = vadd.f32 %v6238, %v6325
  %v6327 = vpop.f32.mrb[0].mxu0
  %6328 = vdwg.mxu0
  %6329 = vxpose.xlu0.b32.start [1/16] %v6316, 128
  %6330 = vxpose.xlu0.b32.cont [2/16] 0.0, 128
  %6331 = vxpose.xlu0.b32.cont [3/16] 0.0, 128
  %6332 = vxpose.xlu0.b32.cont [4/16] 0.0, 128
  %6333 = vxpose.xlu0.b32.cont [5/16] 0.0, 128
  %6334 = vxpose.xlu0.b32.cont [6/16] 0.0, 128
  %6335 = vxpose.xlu0.b32.cont [7/16] 0.0, 128
  %6336 = vxpose.xlu0.b32.cont [8/16] 0.0, 128
  %6337 = vxpose.xlu0.b32.cont [9/16] 0.0, 128
  %6338 = vxpose.xlu0.b32.cont [10/16] 0.0, 128
  %6339 = vxpose.xlu0.b32.cont [11/16] 0.0, 128
  %6340 = vxpose.xlu0.b32.cont [12/16] 0.0, 128
  %6341 = vxpose.xlu0.b32.cont [13/16] 0.0, 128
  %6342 = vxpose.xlu0.b32.cont [14/16] 0.0, 128
  %6343 = vxpose.xlu0.b32.cont [15/16] 0.0, 128
  %6344 = vxpose.xlu0.b32.end [16/16] 0.0, 128
  %v6345 = vpop.trf.xlu0
  %v6346 = vpop.trf.xlu0
  %v6347 = vpop.trf.xlu0
  %v6348 = vpop.trf.xlu0
  %v6349 = vpop.trf.xlu0
  %v6350 = vpop.trf.xlu0
  %v6351 = vpop.trf.xlu0
  %v6352 = vpop.trf.xlu0
  %v6353 = vpop.trf.xlu0
  %v6354 = vpop.trf.xlu0
  %v6355 = vpop.trf.xlu0
  %v6356 = vpop.trf.xlu0
  %v6357 = vpop.trf.xlu0
  %v6358 = vpop.trf.xlu0
  %v6359 = vpop.trf.xlu0
  %v6360 = vpop.trf.xlu0
  %v6362 = vsel %vm502, %v6345, 0
  %v6365 = vsel %vm502, %v6346, 0
  %v6368 = vsel %vm502, %v6347, 0
  %v6371 = vsel %vm502, %v6348, 0
  %v6374 = vsel %vm515, %v6321, 0
  %6376 = vmatprep.subr.mxu0 0.0
  %6377 = vmatpush1.msra.mxu0 %v6374
  %6378 = vmatprep.subr.mxu0 0.0
  %6379 = vmatpush1.msra.mxu0 0.0
  %6380 = vmatprep.subr.mxu0 0.0
  %6381 = vmatpush1.msra.mxu0 0.0
  %6382 = vmatprep.subr.mxu0 0.0
  %6383 = vmatpush1.msra.mxu0 0.0
  %6384 = vmatprep.subr.mxu0 0.0
  %6385 = vmatpush1.msra.mxu0 0.0
  %6386 = vmatprep.subr.mxu0 0.0
  %6387 = vmatpush1.msra.mxu0 0.0
  %6388 = vmatprep.subr.mxu0 0.0
  %6389 = vmatpush1.msra.mxu0 0.0
  %6390 = vmatprep.subr.mxu0 0.0
  %6391 = vmatpush1.msra.mxu0 0.0
  %6392 = vmatprep.subr.mxu0 0.0
  %6393 = vmatpush1.msra.mxu0 0.0
  %6394 = vmatprep.subr.mxu0 0.0
  %6395 = vmatpush1.msra.mxu0 0.0
  %6396 = vmatprep.subr.mxu0 0.0
  %6397 = vmatpush1.msra.mxu0 0.0
  %6398 = vmatprep.subr.mxu0 0.0
  %6399 = vmatpush1.msra.mxu0 0.0
  %6400 = vmatprep.subr.mxu0 0.0
  %6401 = vmatpush1.msra.mxu0 0.0
  %6402 = vmatprep.subr.mxu0 0.0
  %6403 = vmatpush1.msra.mxu0 0.0
  %6404 = vmatprep.subr.mxu0 0.0
  %6405 = vmatpush1.msra.mxu0 0.0
  %6406 = vmatprep.subr.mxu0 0.0
  %6407 = vmatpush1.msra.mxu0 0.0
  %6408 = vmatprep.subr.mxu0 0.0
  %6409 = vmatpush1.msra.mxu0 0.0
  %6410 = vmatprep.subr.mxu0 0.0
  %6411 = vmatpush1.msra.mxu0 0.0
  %6412 = vmatprep.subr.mxu0 0.0
  %6413 = vmatpush1.msra.mxu0 0.0
  %6414 = vmatprep.subr.mxu0 0.0
  %6415 = vmatpush1.msra.mxu0 0.0
  %6416 = vmatprep.subr.mxu0 0.0
  %6417 = vmatpush1.msra.mxu0 0.0
  %6418 = vmatprep.subr.mxu0 0.0
  %6419 = vmatpush1.msra.mxu0 0.0
  %6420 = vmatprep.subr.mxu0 0.0
  %6421 = vmatpush1.msra.mxu0 0.0
  %6422 = vmatprep.subr.mxu0 0.0
  %6423 = vmatpush1.msra.mxu0 0.0
  %6424 = vmatprep.subr.mxu0 0.0
  %6425 = vmatpush1.msra.mxu0 0.0
  %6426 = vmatprep.subr.mxu0 0.0
  %6427 = vmatpush1.msra.mxu0 0.0
  %6428 = vmatprep.subr.mxu0 0.0
  %6429 = vmatpush1.msra.mxu0 0.0
  %6430 = vmatprep.subr.mxu0 0.0
  %6431 = vmatpush1.msra.mxu0 0.0
  %6432 = vmatprep.subr.mxu0 0.0
  %6433 = vmatpush1.msra.mxu0 0.0
  %6434 = vmatprep.subr.mxu0 0.0
  %6435 = vmatpush1.msra.mxu0 0.0
  %6436 = vmatprep.subr.mxu0 0.0
  %6437 = vmatpush1.msra.mxu0 0.0
  %6438 = vmatprep.subr.mxu0 0.0
  %6439 = vmatpush1.msra.mxu0 0.0
  %6440 = vmatprep.mubr.f32.mxu0 0.0
  %6441 = vmatmul.mubr.f32.gmra.mrb[0].mxu0 %v6362
  %v6442 = vpop.f32.mrb[0].mxu0
  %v6443 = vadd.f32 %v47, %v6442
  %v6444 = vpop.f32.mrb[0].mxu0
  %6445 = vmatprep.mubr.f32.mxu0 0.0
  %6446 = vmatmul.mubr.f32.gmra.mrb[0].mxu0 %v6365
  %v6447 = vpop.f32.mrb[0].mxu0
  %v6448 = vadd.f32 %v48, %v6447
  %v6449 = vpop.f32.mrb[0].mxu0
  %6450 = vmatprep.mubr.f32.mxu0 0.0
  %6451 = vmatmul.mubr.f32.gmra.mrb[0].mxu0 %v6368
  %v6452 = vpop.f32.mrb[0].mxu0
  %v6453 = vadd.f32 %v49, %v6452
  %v6454 = vpop.f32.mrb[0].mxu0
  %6455 = vmatprep.mubr.f32.mxu0 0.0
  %6456 = vmatmul.mubr.f32.gmra.mrb[0].mxu0 %v6371
  %v6457 = vpop.f32.mrb[0].mxu0
  %v6458 = vadd.f32 %v50, %v6457
  %v6459 = vpop.f32.mrb[0].mxu0
  %6460 = vdwg.mxu0
  %v6461 = vsel %vm604, %v6443, -inf
  %6462 = vmax.xlane.f32.xlu0 %v6461
  %v6463 = vpop.xlane.xlu0 %6462
  %v6464 = vsel %vm604, %v6448, -inf
  %6465 = vmax.xlane.f32.xlu0 %v6464
  %v6466 = vpop.xlane.xlu0 %6465
  %v6467 = vsel %vm604, %v6453, -inf
  %6468 = vmax.xlane.f32.xlu0 %v6467
  %v6469 = vpop.xlane.xlu0 %6468
  %v6470 = vsel %vm604, %v6458, -inf
  %6471 = vmax.xlane.f32.xlu0 %v6470
  %v6472 = vpop.xlane.xlu0 %6471
  %v6473 = vsub.f32 %v6443, %v6463
  %v6474 = vsub.f32 %v6448, %v6466
  %v6475 = vsub.f32 %v6453, %v6469
  %v6476 = vsub.f32 %v6458, %v6472
  %v6477 = vmul.f32 %v6473, 1.442695
  %v6478 = vpow.pop %v6477
  %v6479 = vmul.f32 %v6474, 1.442695
  %v6480 = vpow.pop %v6479
  %v6481 = vmul.f32 %v6475, 1.442695
  %v6482 = vpow.pop %v6481
  %v6483 = vmul.f32 %v6476, 1.442695
  %v6484 = vpow.pop %v6483
  %v6485 = vsel %vm604, %v6478, 0.0
  %6486 = vadd.xlane.f32.xlu0 %v6485
  %v6487 = vpop.xlane.xlu0 %6486
  %v6488 = vsel %vm604, %v6480, 0.0
  %6489 = vadd.xlane.f32.xlu0 %v6488
  %v6490 = vpop.xlane.xlu0 %6489
  %v6491 = vsel %vm604, %v6482, 0.0
  %6492 = vadd.xlane.f32.xlu0 %v6491
  %v6493 = vpop.xlane.xlu0 %6492
  %v6494 = vsel %vm604, %v6484, 0.0
  %6495 = vadd.xlane.f32.xlu0 %v6494
  %v6496 = vpop.xlane.xlu0 %6495
  %v6497 = vrcp.pop %v6487
  %v6498 = vrcp.pop %v6490
  %v6499 = vrcp.pop %v6493
  %v6500 = vrcp.pop %v6496
  %v6501 = vmul.f32 %v6478, %v6497
  %v6502 = vmul.f32 %v6480, %v6498
  %v6503 = vmul.f32 %v6482, %v6499
  %v6504 = vmul.f32 %v6484, %v6500
  %v6506 = vsel %vm604, %v6326, 0
  %v6509 = vsel %vm604, %v6501, 0
  %v6512 = vsel %vm604, %v6502, 0
  %v6515 = vsel %vm604, %v6503, 0
  %v6518 = vsel %vm604, %v6504, 0
  %6520 = vmatprep.subr.mxu0 0.0
  %6521 = vmatpush1.xpose.msra.mxu0 %v6509
  %6522 = vmatprep.subr.mxu0 0.0
  %6523 = vmatpush1.xpose.msra.mxu0 %v6512
  %6524 = vmatprep.subr.mxu0 0.0
  %6525 = vmatpush1.xpose.msra.mxu0 %v6515
  %6526 = vmatprep.subr.mxu0 0.0
  %6527 = vmatpush1.xpose.msra.mxu0 %v6518
  %6528 = vmatprep.subr.mxu0 0.0
  %6529 = vmatpush1.xpose.msra.mxu0 0.0
  %6530 = vmatprep.subr.mxu0 0.0
  %6531 = vmatpush1.xpose.msra.mxu0 0.0
  %6532 = vmatprep.subr.mxu0 0.0
  %6533 = vmatpush1.xpose.msra.mxu0 0.0
  %6534 = vmatprep.subr.mxu0 0.0
  %6535 = vmatpush1.xpose.msra.mxu0 0.0
  %6536 = vmatprep.subr.mxu0 0.0
  %6537 = vmatpush1.xpose.msra.mxu0 0.0
  %6538 = vmatprep.subr.mxu0 0.0
  %6539 = vmatpush1.xpose.msra.mxu0 0.0
  %6540 = vmatprep.subr.mxu0 0.0
  %6541 = vmatpush1.xpose.msra.mxu0 0.0
  %6542 = vmatprep.subr.mxu0 0.0
  %6543 = vmatpush1.xpose.msra.mxu0 0.0
  %6544 = vmatprep.subr.mxu0 0.0
  %6545 = vmatpush1.xpose.msra.mxu0 0.0
  %6546 = vmatprep.subr.mxu0 0.0
  %6547 = vmatpush1.xpose.msra.mxu0 0.0
  %6548 = vmatprep.subr.mxu0 0.0
  %6549 = vmatpush1.xpose.msra.mxu0 0.0
  %6550 = vmatprep.subr.mxu0 0.0
  %6551 = vmatpush1.xpose.msra.mxu0 0.0
  %6552 = vmatprep.subr.mxu0 0.0
  %6553 = vmatpush1.xpose.msra.mxu0 0.0
  %6554 = vmatprep.subr.mxu0 0.0
  %6555 = vmatpush1.xpose.msra.mxu0 0.0
  %6556 = vmatprep.subr.mxu0 0.0
  %6557 = vmatpush1.xpose.msra.mxu0 0.0
  %6558 = vmatprep.subr.mxu0 0.0
  %6559 = vmatpush1.xpose.msra.mxu0 0.0
  %6560 = vmatprep.subr.mxu0 0.0
  %6561 = vmatpush1.xpose.msra.mxu0 0.0
  %6562 = vmatprep.subr.mxu0 0.0
  %6563 = vmatpush1.xpose.msra.mxu0 0.0
  %6564 = vmatprep.subr.mxu0 0.0
  %6565 = vmatpush1.xpose.msra.mxu0 0.0
  %6566 = vmatprep.subr.mxu0 0.0
  %6567 = vmatpush1.xpose.msra.mxu0 0.0
  %6568 = vmatprep.subr.mxu0 0.0
  %6569 = vmatpush1.xpose.msra.mxu0 0.0
  %6570 = vmatprep.subr.mxu0 0.0
  %6571 = vmatpush1.xpose.msra.mxu0 0.0
  %6572 = vmatprep.subr.mxu0 0.0
  %6573 = vmatpush1.xpose.msra.mxu0 0.0
  %6574 = vmatprep.subr.mxu0 0.0
  %6575 = vmatpush1.xpose.msra.mxu0 0.0
  %6576 = vmatprep.subr.mxu0 0.0
  %6577 = vmatpush1.xpose.msra.mxu0 0.0
  %6578 = vmatprep.subr.mxu0 0.0
  %6579 = vmatpush1.xpose.msra.mxu0 0.0
  %6580 = vmatprep.subr.mxu0 0.0
  %6581 = vmatpush1.xpose.msra.mxu0 0.0
  %6582 = vmatprep.subr.mxu0 0.0
  %6583 = vmatpush1.xpose.msra.mxu0 0.0
  %6584 = vmatprep.mubr.f32.mxu0 0.0
  %6585 = vmatmul.mubr.f32.gmra.mrb[0].mxu0 %v6506
  %v6586 = vpop.f32.mrb[0].mxu0
  %v6587 = vadd.f32 0.0, %v6586
  %v6588 = vpop.f32.mrb[0].mxu0
  %6589 = vdwg.mxu0
  %v6591 = vrot.slane %v6316, 2
  %6593 = vxpose.xlu0.b32.start [1/16] %v6591, 128
  %6594 = vxpose.xlu0.b32.cont [2/16] 0.0, 128
  %6595 = vxpose.xlu0.b32.cont [3/16] 0.0, 128
  %6596 = vxpose.xlu0.b32.cont [4/16] 0.0, 128
  %6597 = vxpose.xlu0.b32.cont [5/16] 0.0, 128
  %6598 = vxpose.xlu0.b32.cont [6/16] 0.0, 128
  %6599 = vxpose.xlu0.b32.cont [7/16] 0.0, 128
  %6600 = vxpose.xlu0.b32.cont [8/16] 0.0, 128
  %6601 = vxpose.xlu0.b32.cont [9/16] 0.0, 128
  %6602 = vxpose.xlu0.b32.cont [10/16] 0.0, 128
  %6603 = vxpose.xlu0.b32.cont [11/16] 0.0, 128
  %6604 = vxpose.xlu0.b32.cont [12/16] 0.0, 128
  %6605 = vxpose.xlu0.b32.cont [13/16] 0.0, 128
  %6606 = vxpose.xlu0.b32.cont [14/16] 0.0, 128
  %6607 = vxpose.xlu0.b32.cont [15/16] 0.0, 128
  %6608 = vxpose.xlu0.b32.end [16/16] 0.0, 128
  %v6609 = vpop.trf.xlu0
  %v6610 = vpop.trf.xlu0
  %v6611 = vpop.trf.xlu0
  %v6612 = vpop.trf.xlu0
  %v6613 = vpop.trf.xlu0
  %v6614 = vpop.trf.xlu0
  %v6615 = vpop.trf.xlu0
  %v6616 = vpop.trf.xlu0
  %v6617 = vpop.trf.xlu0
  %v6618 = vpop.trf.xlu0
  %v6619 = vpop.trf.xlu0
  %v6620 = vpop.trf.xlu0
  %v6621 = vpop.trf.xlu0
  %v6622 = vpop.trf.xlu0
  %v6623 = vpop.trf.xlu0
  %v6624 = vpop.trf.xlu0
  %v6625 = vrot.slane %v6321, 2
  %v6627 = vsel %vm502, %v6609, 0
  %v6630 = vsel %vm502, %v6610, 0
  %v6633 = vsel %vm502, %v6611, 0
  %v6636 = vsel %vm502, %v6612, 0
  %v6638 = vsel %vm515, %v6625, 0
  %6640 = vmatprep.subr.mxu0 0.0
  %6641 = vmatpush1.msra.mxu0 %v6638
  %6642 = vmatprep.subr.mxu0 0.0
  %6643 = vmatpush1.msra.mxu0 0.0
  %6644 = vmatprep.subr.mxu0 0.0
  %6645 = vmatpush1.msra.mxu0 0.0
  %6646 = vmatprep.subr.mxu0 0.0
  %6647 = vmatpush1.msra.mxu0 0.0
  %6648 = vmatprep.subr.mxu0 0.0
  %6649 = vmatpush1.msra.mxu0 0.0
  %6650 = vmatprep.subr.mxu0 0.0
  %6651 = vmatpush1.msra.mxu0 0.0
  %6652 = vmatprep.subr.mxu0 0.0
  %6653 = vmatpush1.msra.mxu0 0.0
  %6654 = vmatprep.subr.mxu0 0.0
  %6655 = vmatpush1.msra.mxu0 0.0
  %6656 = vmatprep.subr.mxu0 0.0
  %6657 = vmatpush1.msra.mxu0 0.0
  %6658 = vmatprep.subr.mxu0 0.0
  %6659 = vmatpush1.msra.mxu0 0.0
  %6660 = vmatprep.subr.mxu0 0.0
  %6661 = vmatpush1.msra.mxu0 0.0
  %6662 = vmatprep.subr.mxu0 0.0
  %6663 = vmatpush1.msra.mxu0 0.0
  %6664 = vmatprep.subr.mxu0 0.0
  %6665 = vmatpush1.msra.mxu0 0.0
  %6666 = vmatprep.subr.mxu0 0.0
  %6667 = vmatpush1.msra.mxu0 0.0
  %6668 = vmatprep.subr.mxu0 0.0
  %6669 = vmatpush1.msra.mxu0 0.0
  %6670 = vmatprep.subr.mxu0 0.0
  %6671 = vmatpush1.msra.mxu0 0.0
  %6672 = vmatprep.subr.mxu0 0.0
  %6673 = vmatpush1.msra.mxu0 0.0
  %6674 = vmatprep.subr.mxu0 0.0
  %6675 = vmatpush1.msra.mxu0 0.0
  %6676 = vmatprep.subr.mxu0 0.0
  %6677 = vmatpush1.msra.mxu0 0.0
  %6678 = vmatprep.subr.mxu0 0.0
  %6679 = vmatpush1.msra.mxu0 0.0
  %6680 = vmatprep.subr.mxu0 0.0
  %6681 = vmatpush1.msra.mxu0 0.0
  %6682 = vmatprep.subr.mxu0 0.0
  %6683 = vmatpush1.msra.mxu0 0.0
  %6684 = vmatprep.subr.mxu0 0.0
  %6685 = vmatpush1.msra.mxu0 0.0
  %6686 = vmatprep.subr.mxu0 0.0
  %6687 = vmatpush1.msra.mxu0 0.0
  %6688 = vmatprep.subr.mxu0 0.0
  %6689 = vmatpush1.msra.mxu0 0.0
  %6690 = vmatprep.subr.mxu0 0.0
  %6691 = vmatpush1.msra.mxu0 0.0
  %6692 = vmatprep.subr.mxu0 0.0
  %6693 = vmatpush1.msra.mxu0 0.0
  %6694 = vmatprep.subr.mxu0 0.0
  %6695 = vmatpush1.msra.mxu0 0.0
  %6696 = vmatprep.subr.mxu0 0.0
  %6697 = vmatpush1.msra.mxu0 0.0
  %6698 = vmatprep.subr.mxu0 0.0
  %6699 = vmatpush1.msra.mxu0 0.0
  %6700 = vmatprep.subr.mxu0 0.0
  %6701 = vmatpush1.msra.mxu0 0.0
  %6702 = vmatprep.subr.mxu0 0.0
  %6703 = vmatpush1.msra.mxu0 0.0
  %6704 = vmatprep.mubr.f32.mxu0 0.0
  %6705 = vmatmul.mubr.f32.gmra.mrb[0].mxu0 %v6627
  %v6706 = vpop.f32.mrb[0].mxu0
  %v6707 = vadd.f32 %v47, %v6706
  %v6708 = vpop.f32.mrb[0].mxu0
  %6709 = vmatprep.mubr.f32.mxu0 0.0
  %6710 = vmatmul.mubr.f32.gmra.mrb[0].mxu0 %v6630
  %v6711 = vpop.f32.mrb[0].mxu0
  %v6712 = vadd.f32 %v48, %v6711
  %v6713 = vpop.f32.mrb[0].mxu0
  %6714 = vmatprep.mubr.f32.mxu0 0.0
  %6715 = vmatmul.mubr.f32.gmra.mrb[0].mxu0 %v6633
  %v6716 = vpop.f32.mrb[0].mxu0
  %v6717 = vadd.f32 %v49, %v6716
  %v6718 = vpop.f32.mrb[0].mxu0
  %6719 = vmatprep.mubr.f32.mxu0 0.0
  %6720 = vmatmul.mubr.f32.gmra.mrb[0].mxu0 %v6636
  %v6721 = vpop.f32.mrb[0].mxu0
  %v6722 = vadd.f32 %v50, %v6721
  %v6723 = vpop.f32.mrb[0].mxu0
  %6724 = vdwg.mxu0
  %v6725 = vsel %vm604, %v6707, -inf
  %6726 = vmax.xlane.f32.xlu0 %v6725
  %v6727 = vpop.xlane.xlu0 %6726
  %v6728 = vsel %vm604, %v6712, -inf
  %6729 = vmax.xlane.f32.xlu0 %v6728
  %v6730 = vpop.xlane.xlu0 %6729
  %v6731 = vsel %vm604, %v6717, -inf
  %6732 = vmax.xlane.f32.xlu0 %v6731
  %v6733 = vpop.xlane.xlu0 %6732
  %v6734 = vsel %vm604, %v6722, -inf
  %6735 = vmax.xlane.f32.xlu0 %v6734
  %v6736 = vpop.xlane.xlu0 %6735
  %v6737 = vsub.f32 %v6707, %v6727
  %v6738 = vsub.f32 %v6712, %v6730
  %v6739 = vsub.f32 %v6717, %v6733
  %v6740 = vsub.f32 %v6722, %v6736
  %v6741 = vmul.f32 %v6737, 1.442695
  %v6742 = vpow.pop %v6741
  %v6743 = vmul.f32 %v6738, 1.442695
  %v6744 = vpow.pop %v6743
  %v6745 = vmul.f32 %v6739, 1.442695
  %v6746 = vpow.pop %v6745
  %v6747 = vmul.f32 %v6740, 1.442695
  %v6748 = vpow.pop %v6747
  %v6749 = vsel %vm604, %v6742, 0.0
  %6750 = vadd.xlane.f32.xlu0 %v6749
  %v6751 = vpop.xlane.xlu0 %6750
  %v6752 = vsel %vm604, %v6744, 0.0
  %6753 = vadd.xlane.f32.xlu0 %v6752
  %v6754 = vpop.xlane.xlu0 %6753
  %v6755 = vsel %vm604, %v6746, 0.0
  %6756 = vadd.xlane.f32.xlu0 %v6755
  %v6757 = vpop.xlane.xlu0 %6756
  %v6758 = vsel %vm604, %v6748, 0.0
  %6759 = vadd.xlane.f32.xlu0 %v6758
  %v6760 = vpop.xlane.xlu0 %6759
  %v6761 = vrcp.pop %v6751
  %v6762 = vrcp.pop %v6754
  %v6763 = vrcp.pop %v6757
  %v6764 = vrcp.pop %v6760
  %v6765 = vmul.f32 %v6742, %v6761
  %v6766 = vmul.f32 %v6744, %v6762
  %v6767 = vmul.f32 %v6746, %v6763
  %v6768 = vmul.f32 %v6748, %v6764
  %v6769 = vrot.slane %v6326, 2
  %v6770 = vsel %vm604, %v6769, 0
  %v6773 = vsel %vm604, %v6765, 0
  %v6776 = vsel %vm604, %v6766, 0
  %v6779 = vsel %vm604, %v6767, 0
  %v6782 = vsel %vm604, %v6768, 0
  %6784 = vmatprep.subr.mxu0 0.0
  %6785 = vmatpush1.xpose.msra.mxu0 %v6773
  %6786 = vmatprep.subr.mxu0 0.0
  %6787 = vmatpush1.xpose.msra.mxu0 %v6776
  %6788 = vmatprep.subr.mxu0 0.0
  %6789 = vmatpush1.xpose.msra.mxu0 %v6779
  %6790 = vmatprep.subr.mxu0 0.0
  %6791 = vmatpush1.xpose.msra.mxu0 %v6782
  %6792 = vmatprep.subr.mxu0 0.0
  %6793 = vmatpush1.xpose.msra.mxu0 0.0
  %6794 = vmatprep.subr.mxu0 0.0
  %6795 = vmatpush1.xpose.msra.mxu0 0.0
  %6796 = vmatprep.subr.mxu0 0.0
  %6797 = vmatpush1.xpose.msra.mxu0 0.0
  %6798 = vmatprep.subr.mxu0 0.0
  %6799 = vmatpush1.xpose.msra.mxu0 0.0
  %6800 = vmatprep.subr.mxu0 0.0
  %6801 = vmatpush1.xpose.msra.mxu0 0.0
  %6802 = vmatprep.subr.mxu0 0.0
  %6803 = vmatpush1.xpose.msra.mxu0 0.0
  %6804 = vmatprep.subr.mxu0 0.0
  %6805 = vmatpush1.xpose.msra.mxu0 0.0
  %6806 = vmatprep.subr.mxu0 0.0
  %6807 = vmatpush1.xpose.msra.mxu0 0.0
  %6808 = vmatprep.subr.mxu0 0.0
  %6809 = vmatpush1.xpose.msra.mxu0 0.0
  %6810 = vmatprep.subr.mxu0 0.0
  %6811 = vmatpush1.xpose.msra.mxu0 0.0
  %6812 = vmatprep.subr.mxu0 0.0
  %6813 = vmatpush1.xpose.msra.mxu0 0.0
  %6814 = vmatprep.subr.mxu0 0.0
  %6815 = vmatpush1.xpose.msra.mxu0 0.0
  %6816 = vmatprep.subr.mxu0 0.0
  %6817 = vmatpush1.xpose.msra.mxu0 0.0
  %6818 = vmatprep.subr.mxu0 0.0
  %6819 = vmatpush1.xpose.msra.mxu0 0.0
  %6820 = vmatprep.subr.mxu0 0.0
  %6821 = vmatpush1.xpose.msra.mxu0 0.0
  %6822 = vmatprep.subr.mxu0 0.0
  %6823 = vmatpush1.xpose.msra.mxu0 0.0
  %6824 = vmatprep.subr.mxu0 0.0
  %6825 = vmatpush1.xpose.msra.mxu0 0.0
  %6826 = vmatprep.subr.mxu0 0.0
  %6827 = vmatpush1.xpose.msra.mxu0 0.0
  %6828 = vmatprep.subr.mxu0 0.0
  %6829 = vmatpush1.xpose.msra.mxu0 0.0
  %6830 = vmatprep.subr.mxu0 0.0
  %6831 = vmatpush1.xpose.msra.mxu0 0.0
  %6832 = vmatprep.subr.mxu0 0.0
  %6833 = vmatpush1.xpose.msra.mxu0 0.0
  %6834 = vmatprep.subr.mxu0 0.0
  %6835 = vmatpush1.xpose.msra.mxu0 0.0
  %6836 = vmatprep.subr.mxu0 0.0
  %6837 = vmatpush1.xpose.msra.mxu0 0.0
  %6838 = vmatprep.subr.mxu0 0.0
  %6839 = vmatpush1.xpose.msra.mxu0 0.0
  %6840 = vmatprep.subr.mxu0 0.0
  %6841 = vmatpush1.xpose.msra.mxu0 0.0
  %6842 = vmatprep.subr.mxu0 0.0
  %6843 = vmatpush1.xpose.msra.mxu0 0.0
  %6844 = vmatprep.subr.mxu0 0.0
  %6845 = vmatpush1.xpose.msra.mxu0 0.0
  %6846 = vmatprep.subr.mxu0 0.0
  %6847 = vmatpush1.xpose.msra.mxu0 0.0
  %6848 = vmatprep.mubr.f32.mxu0 0.0
  %6849 = vmatmul.mubr.f32.gmra.mrb[0].mxu0 %v6770
  %v6850 = vpop.f32.mrb[0].mxu0
  %v6851 = vadd.f32 0.0, %v6850
  %v6852 = vpop.f32.mrb[0].mxu0
  %6853 = vdwg.mxu0
  %v6854 = vrot.slane %v6316, 4
  %6856 = vxpose.xlu0.b32.start [1/16] %v6854, 128
  %6857 = vxpose.xlu0.b32.cont [2/16] 0.0, 128
  %6858 = vxpose.xlu0.b32.cont [3/16] 0.0, 128
  %6859 = vxpose.xlu0.b32.cont [4/16] 0.0, 128
  %6860 = vxpose.xlu0.b32.cont [5/16] 0.0, 128
  %6861 = vxpose.xlu0.b32.cont [6/16] 0.0, 128
  %6862 = vxpose.xlu0.b32.cont [7/16] 0.0, 128
  %6863 = vxpose.xlu0.b32.cont [8/16] 0.0, 128
  %6864 = vxpose.xlu0.b32.cont [9/16] 0.0, 128
  %6865 = vxpose.xlu0.b32.cont [10/16] 0.0, 128
  %6866 = vxpose.xlu0.b32.cont [11/16] 0.0, 128
  %6867 = vxpose.xlu0.b32.cont [12/16] 0.0, 128
  %6868 = vxpose.xlu0.b32.cont [13/16] 0.0, 128
  %6869 = vxpose.xlu0.b32.cont [14/16] 0.0, 128
  %6870 = vxpose.xlu0.b32.cont [15/16] 0.0, 128
  %6871 = vxpose.xlu0.b32.end [16/16] 0.0, 128
  %v6872 = vpop.trf.xlu0
  %v6873 = vpop.trf.xlu0
  %v6874 = vpop.trf.xlu0
  %v6875 = vpop.trf.xlu0
  %v6876 = vpop.trf.xlu0
  %v6877 = vpop.trf.xlu0
  %v6878 = vpop.trf.xlu0
  %v6879 = vpop.trf.xlu0
  %v6880 = vpop.trf.xlu0
  %v6881 = vpop.trf.xlu0
  %v6882 = vpop.trf.xlu0
  %v6883 = vpop.trf.xlu0
  %v6884 = vpop.trf.xlu0
  %v6885 = vpop.trf.xlu0
  %v6886 = vpop.trf.xlu0
  %v6887 = vpop.trf.xlu0
  %v6888 = vrot.slane %v6321, 4
  %v6890 = vsel %vm502, %v6872, 0
  %v6893 = vsel %vm502, %v6873, 0
  %v6896 = vsel %vm502, %v6874, 0
  %v6899 = vsel %vm502, %v6875, 0
  %v6901 = vsel %vm515, %v6888, 0
  %6903 = vmatprep.subr.mxu0 0.0
  %6904 = vmatpush1.msra.mxu0 %v6901
  %6905 = vmatprep.subr.mxu0 0.0
  %6906 = vmatpush1.msra.mxu0 0.0
  %6907 = vmatprep.subr.mxu0 0.0
  %6908 = vmatpush1.msra.mxu0 0.0
  %6909 = vmatprep.subr.mxu0 0.0
  %6910 = vmatpush1.msra.mxu0 0.0
  %6911 = vmatprep.subr.mxu0 0.0
  %6912 = vmatpush1.msra.mxu0 0.0
  %6913 = vmatprep.subr.mxu0 0.0
  %6914 = vmatpush1.msra.mxu0 0.0
  %6915 = vmatprep.subr.mxu0 0.0
  %6916 = vmatpush1.msra.mxu0 0.0
  %6917 = vmatprep.subr.mxu0 0.0
  %6918 = vmatpush1.msra.mxu0 0.0
  %6919 = vmatprep.subr.mxu0 0.0
  %6920 = vmatpush1.msra.mxu0 0.0
  %6921 = vmatprep.subr.mxu0 0.0
  %6922 = vmatpush1.msra.mxu0 0.0
  %6923 = vmatprep.subr.mxu0 0.0
  %6924 = vmatpush1.msra.mxu0 0.0
  %6925 = vmatprep.subr.mxu0 0.0
  %6926 = vmatpush1.msra.mxu0 0.0
  %6927 = vmatprep.subr.mxu0 0.0
  %6928 = vmatpush1.msra.mxu0 0.0
  %6929 = vmatprep.subr.mxu0 0.0
  %6930 = vmatpush1.msra.mxu0 0.0
  %6931 = vmatprep.subr.mxu0 0.0
  %6932 = vmatpush1.msra.mxu0 0.0
  %6933 = vmatprep.subr.mxu0 0.0
  %6934 = vmatpush1.msra.mxu0 0.0
  %6935 = vmatprep.subr.mxu0 0.0
  %6936 = vmatpush1.msra.mxu0 0.0
  %6937 = vmatprep.subr.mxu0 0.0
  %6938 = vmatpush1.msra.mxu0 0.0
  %6939 = vmatprep.subr.mxu0 0.0
  %6940 = vmatpush1.msra.mxu0 0.0
  %6941 = vmatprep.subr.mxu0 0.0
  %6942 = vmatpush1.msra.mxu0 0.0
  %6943 = vmatprep.subr.mxu0 0.0
  %6944 = vmatpush1.msra.mxu0 0.0
  %6945 = vmatprep.subr.mxu0 0.0
  %6946 = vmatpush1.msra.mxu0 0.0
  %6947 = vmatprep.subr.mxu0 0.0
  %6948 = vmatpush1.msra.mxu0 0.0
  %6949 = vmatprep.subr.mxu0 0.0
  %6950 = vmatpush1.msra.mxu0 0.0
  %6951 = vmatprep.subr.mxu0 0.0
  %6952 = vmatpush1.msra.mxu0 0.0
  %6953 = vmatprep.subr.mxu0 0.0
  %6954 = vmatpush1.msra.mxu0 0.0
  %6955 = vmatprep.subr.mxu0 0.0
  %6956 = vmatpush1.msra.mxu0 0.0
  %6957 = vmatprep.subr.mxu0 0.0
  %6958 = vmatpush1.msra.mxu0 0.0
  %6959 = vmatprep.subr.mxu0 0.0
  %6960 = vmatpush1.msra.mxu0 0.0
  %6961 = vmatprep.subr.mxu0 0.0
  %6962 = vmatpush1.msra.mxu0 0.0
  %6963 = vmatprep.subr.mxu0 0.0
  %6964 = vmatpush1.msra.mxu0 0.0
  %6965 = vmatprep.subr.mxu0 0.0
  %6966 = vmatpush1.msra.mxu0 0.0
  %6967 = vmatprep.mubr.f32.mxu0 0.0
  %6968 = vmatmul.mubr.f32.gmra.mrb[0].mxu0 %v6890
  %v6969 = vpop.f32.mrb[0].mxu0
  %v6970 = vadd.f32 %v47, %v6969
  %v6971 = vpop.f32.mrb[0].mxu0
  %6972 = vmatprep.mubr.f32.mxu0 0.0
  %6973 = vmatmul.mubr.f32.gmra.mrb[0].mxu0 %v6893
  %v6974 = vpop.f32.mrb[0].mxu0
  %v6975 = vadd.f32 %v48, %v6974
  %v6976 = vpop.f32.mrb[0].mxu0
  %6977 = vmatprep.mubr.f32.mxu0 0.0
  %6978 = vmatmul.mubr.f32.gmra.mrb[0].mxu0 %v6896
  %v6979 = vpop.f32.mrb[0].mxu0
  %v6980 = vadd.f32 %v49, %v6979
  %v6981 = vpop.f32.mrb[0].mxu0
  %6982 = vmatprep.mubr.f32.mxu0 0.0
  %6983 = vmatmul.mubr.f32.gmra.mrb[0].mxu0 %v6899
  %v6984 = vpop.f32.mrb[0].mxu0
  %v6985 = vadd.f32 %v50, %v6984
  %v6986 = vpop.f32.mrb[0].mxu0
  %6987 = vdwg.mxu0
  %v6988 = vsel %vm604, %v6970, -inf
  %6989 = vmax.xlane.f32.xlu0 %v6988
  %v6990 = vpop.xlane.xlu0 %6989
  %v6991 = vsel %vm604, %v6975, -inf
  %6992 = vmax.xlane.f32.xlu0 %v6991
  %v6993 = vpop.xlane.xlu0 %6992
  %v6994 = vsel %vm604, %v6980, -inf
  %6995 = vmax.xlane.f32.xlu0 %v6994
  %v6996 = vpop.xlane.xlu0 %6995
  %v6997 = vsel %vm604, %v6985, -inf
  %6998 = vmax.xlane.f32.xlu0 %v6997
  %v6999 = vpop.xlane.xlu0 %6998
  %v7000 = vsub.f32 %v6970, %v6990
  %v7001 = vsub.f32 %v6975, %v6993
  %v7002 = vsub.f32 %v6980, %v6996
  %v7003 = vsub.f32 %v6985, %v6999
  %v7004 = vmul.f32 %v7000, 1.442695
  %v7005 = vpow.pop %v7004
  %v7006 = vmul.f32 %v7001, 1.442695
  %v7007 = vpow.pop %v7006
  %v7008 = vmul.f32 %v7002, 1.442695
  %v7009 = vpow.pop %v7008
  %v7010 = vmul.f32 %v7003, 1.442695
  %v7011 = vpow.pop %v7010
  %v7012 = vsel %vm604, %v7005, 0.0
  %7013 = vadd.xlane.f32.xlu0 %v7012
  %v7014 = vpop.xlane.xlu0 %7013
  %v7015 = vsel %vm604, %v7007, 0.0
  %7016 = vadd.xlane.f32.xlu0 %v7015
  %v7017 = vpop.xlane.xlu0 %7016
  %v7018 = vsel %vm604, %v7009, 0.0
  %7019 = vadd.xlane.f32.xlu0 %v7018
  %v7020 = vpop.xlane.xlu0 %7019
  %v7021 = vsel %vm604, %v7011, 0.0
  %7022 = vadd.xlane.f32.xlu0 %v7021
  %v7023 = vpop.xlane.xlu0 %7022
  %v7024 = vrcp.pop %v7014
  %v7025 = vrcp.pop %v7017
  %v7026 = vrcp.pop %v7020
  %v7027 = vrcp.pop %v7023
  %v7028 = vmul.f32 %v7005, %v7024
  %v7029 = vmul.f32 %v7007, %v7025
  %v7030 = vmul.f32 %v7009, %v7026
  %v7031 = vmul.f32 %v7011, %v7027
  %v7032 = vrot.slane %v6326, 4
  %v7033 = vsel %vm604, %v7032, 0
  %v7036 = vsel %vm604, %v7028, 0
  %v7039 = vsel %vm604, %v7029, 0
  %v7042 = vsel %vm604, %v7030, 0
  %v7045 = vsel %vm604, %v7031, 0
  %7047 = vmatprep.subr.mxu0 0.0
  %7048 = vmatpush1.xpose.msra.mxu0 %v7036
  %7049 = vmatprep.subr.mxu0 0.0
  %7050 = vmatpush1.xpose.msra.mxu0 %v7039
  %7051 = vmatprep.subr.mxu0 0.0
  %7052 = vmatpush1.xpose.msra.mxu0 %v7042
  %7053 = vmatprep.subr.mxu0 0.0
  %7054 = vmatpush1.xpose.msra.mxu0 %v7045
  %7055 = vmatprep.subr.mxu0 0.0
  %7056 = vmatpush1.xpose.msra.mxu0 0.0
  %7057 = vmatprep.subr.mxu0 0.0
  %7058 = vmatpush1.xpose.msra.mxu0 0.0
  %7059 = vmatprep.subr.mxu0 0.0
  %7060 = vmatpush1.xpose.msra.mxu0 0.0
  %7061 = vmatprep.subr.mxu0 0.0
  %7062 = vmatpush1.xpose.msra.mxu0 0.0
  %7063 = vmatprep.subr.mxu0 0.0
  %7064 = vmatpush1.xpose.msra.mxu0 0.0
  %7065 = vmatprep.subr.mxu0 0.0
  %7066 = vmatpush1.xpose.msra.mxu0 0.0
  %7067 = vmatprep.subr.mxu0 0.0
  %7068 = vmatpush1.xpose.msra.mxu0 0.0
  %7069 = vmatprep.subr.mxu0 0.0
  %7070 = vmatpush1.xpose.msra.mxu0 0.0
  %7071 = vmatprep.subr.mxu0 0.0
  %7072 = vmatpush1.xpose.msra.mxu0 0.0
  %7073 = vmatprep.subr.mxu0 0.0
  %7074 = vmatpush1.xpose.msra.mxu0 0.0
  %7075 = vmatprep.subr.mxu0 0.0
  %7076 = vmatpush1.xpose.msra.mxu0 0.0
  %7077 = vmatprep.subr.mxu0 0.0
  %7078 = vmatpush1.xpose.msra.mxu0 0.0
  %7079 = vmatprep.subr.mxu0 0.0
  %7080 = vmatpush1.xpose.msra.mxu0 0.0
  %7081 = vmatprep.subr.mxu0 0.0
  %7082 = vmatpush1.xpose.msra.mxu0 0.0
  %7083 = vmatprep.subr.mxu0 0.0
  %7084 = vmatpush1.xpose.msra.mxu0 0.0
  %7085 = vmatprep.subr.mxu0 0.0
  %7086 = vmatpush1.xpose.msra.mxu0 0.0
  %7087 = vmatprep.subr.mxu0 0.0
  %7088 = vmatpush1.xpose.msra.mxu0 0.0
  %7089 = vmatprep.subr.mxu0 0.0
  %7090 = vmatpush1.xpose.msra.mxu0 0.0
  %7091 = vmatprep.subr.mxu0 0.0
  %7092 = vmatpush1.xpose.msra.mxu0 0.0
  %7093 = vmatprep.subr.mxu0 0.0
  %7094 = vmatpush1.xpose.msra.mxu0 0.0
  %7095 = vmatprep.subr.mxu0 0.0
  %7096 = vmatpush1.xpose.msra.mxu0 0.0
  %7097 = vmatprep.subr.mxu0 0.0
  %7098 = vmatpush1.xpose.msra.mxu0 0.0
  %7099 = vmatprep.subr.mxu0 0.0
  %7100 = vmatpush1.xpose.msra.mxu0 0.0
  %7101 = vmatprep.subr.mxu0 0.0
  %7102 = vmatpush1.xpose.msra.mxu0 0.0
  %7103 = vmatprep.subr.mxu0 0.0
  %7104 = vmatpush1.xpose.msra.mxu0 0.0
  %7105 = vmatprep.subr.mxu0 0.0
  %7106 = vmatpush1.xpose.msra.mxu0 0.0
  %7107 = vmatprep.subr.mxu0 0.0
  %7108 = vmatpush1.xpose.msra.mxu0 0.0
  %7109 = vmatprep.subr.mxu0 0.0
  %7110 = vmatpush1.xpose.msra.mxu0 0.0
  %7111 = vmatprep.mubr.f32.mxu0 0.0
  %7112 = vmatmul.mubr.f32.gmra.mrb[0].mxu0 %v7033
  %v7113 = vpop.f32.mrb[0].mxu0
  %v7114 = vadd.f32 0.0, %v7113
  %v7115 = vpop.f32.mrb[0].mxu0
  %7116 = vdwg.mxu0
  %v7117 = vrot.slane %v6316, 6
  %7119 = vxpose.xlu0.b32.start [1/16] %v7117, 128
  %7120 = vxpose.xlu0.b32.cont [2/16] 0.0, 128
  %7121 = vxpose.xlu0.b32.cont [3/16] 0.0, 128
  %7122 = vxpose.xlu0.b32.cont [4/16] 0.0, 128
  %7123 = vxpose.xlu0.b32.cont [5/16] 0.0, 128
  %7124 = vxpose.xlu0.b32.cont [6/16] 0.0, 128
  %7125 = vxpose.xlu0.b32.cont [7/16] 0.0, 128
  %7126 = vxpose.xlu0.b32.cont [8/16] 0.0, 128
  %7127 = vxpose.xlu0.b32.cont [9/16] 0.0, 128
  %7128 = vxpose.xlu0.b32.cont [10/16] 0.0, 128
  %7129 = vxpose.xlu0.b32.cont [11/16] 0.0, 128
  %7130 = vxpose.xlu0.b32.cont [12/16] 0.0, 128
  %7131 = vxpose.xlu0.b32.cont [13/16] 0.0, 128
  %7132 = vxpose.xlu0.b32.cont [14/16] 0.0, 128
  %7133 = vxpose.xlu0.b32.cont [15/16] 0.0, 128
  %7134 = vxpose.xlu0.b32.end [16/16] 0.0, 128
  %v7135 = vpop.trf.xlu0
  %v7136 = vpop.trf.xlu0
  %v7137 = vpop.trf.xlu0
  %v7138 = vpop.trf.xlu0
  %v7139 = vpop.trf.xlu0
  %v7140 = vpop.trf.xlu0
  %v7141 = vpop.trf.xlu0
  %v7142 = vpop.trf.xlu0
  %v7143 = vpop.trf.xlu0
  %v7144 = vpop.trf.xlu0
  %v7145 = vpop.trf.xlu0
  %v7146 = vpop.trf.xlu0
  %v7147 = vpop.trf.xlu0
  %v7148 = vpop.trf.xlu0
  %v7149 = vpop.trf.xlu0
  %v7150 = vpop.trf.xlu0
  %v7151 = vrot.slane %v6321, 6
  %v7153 = vsel %vm502, %v7135, 0
  %v7156 = vsel %vm502, %v7136, 0
  %v7159 = vsel %vm502, %v7137, 0
  %v7162 = vsel %vm502, %v7138, 0
  %v7164 = vsel %vm515, %v7151, 0
  %7166 = vmatprep.subr.mxu0 0.0
  %7167 = vmatpush1.msra.mxu0 %v7164
  %7168 = vmatprep.subr.mxu0 0.0
  %7169 = vmatpush1.msra.mxu0 0.0
  %7170 = vmatprep.subr.mxu0 0.0
  %7171 = vmatpush1.msra.mxu0 0.0
  %7172 = vmatprep.subr.mxu0 0.0
  %7173 = vmatpush1.msra.mxu0 0.0
  %7174 = vmatprep.subr.mxu0 0.0
  %7175 = vmatpush1.msra.mxu0 0.0
  %7176 = vmatprep.subr.mxu0 0.0
  %7177 = vmatpush1.msra.mxu0 0.0
  %7178 = vmatprep.subr.mxu0 0.0
  %7179 = vmatpush1.msra.mxu0 0.0
  %7180 = vmatprep.subr.mxu0 0.0
  %7181 = vmatpush1.msra.mxu0 0.0
  %7182 = vmatprep.subr.mxu0 0.0
  %7183 = vmatpush1.msra.mxu0 0.0
  %7184 = vmatprep.subr.mxu0 0.0
  %7185 = vmatpush1.msra.mxu0 0.0
  %7186 = vmatprep.subr.mxu0 0.0
  %7187 = vmatpush1.msra.mxu0 0.0
  %7188 = vmatprep.subr.mxu0 0.0
  %7189 = vmatpush1.msra.mxu0 0.0
  %7190 = vmatprep.subr.mxu0 0.0
  %7191 = vmatpush1.msra.mxu0 0.0
  %7192 = vmatprep.subr.mxu0 0.0
  %7193 = vmatpush1.msra.mxu0 0.0
  %7194 = vmatprep.subr.mxu0 0.0
  %7195 = vmatpush1.msra.mxu0 0.0
  %7196 = vmatprep.subr.mxu0 0.0
  %7197 = vmatpush1.msra.mxu0 0.0
  %7198 = vmatprep.subr.mxu0 0.0
  %7199 = vmatpush1.msra.mxu0 0.0
  %7200 = vmatprep.subr.mxu0 0.0
  %7201 = vmatpush1.msra.mxu0 0.0
  %7202 = vmatprep.subr.mxu0 0.0
  %7203 = vmatpush1.msra.mxu0 0.0
  %7204 = vmatprep.subr.mxu0 0.0
  %7205 = vmatpush1.msra.mxu0 0.0
  %7206 = vmatprep.subr.mxu0 0.0
  %7207 = vmatpush1.msra.mxu0 0.0
  %7208 = vmatprep.subr.mxu0 0.0
  %7209 = vmatpush1.msra.mxu0 0.0
  %7210 = vmatprep.subr.mxu0 0.0
  %7211 = vmatpush1.msra.mxu0 0.0
  %7212 = vmatprep.subr.mxu0 0.0
  %7213 = vmatpush1.msra.mxu0 0.0
  %7214 = vmatprep.subr.mxu0 0.0
  %7215 = vmatpush1.msra.mxu0 0.0
  %7216 = vmatprep.subr.mxu0 0.0
  %7217 = vmatpush1.msra.mxu0 0.0
  %7218 = vmatprep.subr.mxu0 0.0
  %7219 = vmatpush1.msra.mxu0 0.0
  %7220 = vmatprep.subr.mxu0 0.0
  %7221 = vmatpush1.msra.mxu0 0.0
  %7222 = vmatprep.subr.mxu0 0.0
  %7223 = vmatpush1.msra.mxu0 0.0
  %7224 = vmatprep.subr.mxu0 0.0
  %7225 = vmatpush1.msra.mxu0 0.0
  %7226 = vmatprep.subr.mxu0 0.0
  %7227 = vmatpush1.msra.mxu0 0.0
  %7228 = vmatprep.subr.mxu0 0.0
  %7229 = vmatpush1.msra.mxu0 0.0
  %7230 = vmatprep.mubr.f32.mxu0 0.0
  %7231 = vmatmul.mubr.f32.gmra.mrb[0].mxu0 %v7153
  %v7232 = vpop.f32.mrb[0].mxu0
  %v7233 = vadd.f32 %v47, %v7232
  %v7234 = vpop.f32.mrb[0].mxu0
  %7235 = vmatprep.mubr.f32.mxu0 0.0
  %7236 = vmatmul.mubr.f32.gmra.mrb[0].mxu0 %v7156
  %v7237 = vpop.f32.mrb[0].mxu0
  %v7238 = vadd.f32 %v48, %v7237
  %v7239 = vpop.f32.mrb[0].mxu0
  %7240 = vmatprep.mubr.f32.mxu0 0.0
  %7241 = vmatmul.mubr.f32.gmra.mrb[0].mxu0 %v7159
  %v7242 = vpop.f32.mrb[0].mxu0
  %v7243 = vadd.f32 %v49, %v7242
  %v7244 = vpop.f32.mrb[0].mxu0
  %7245 = vmatprep.mubr.f32.mxu0 0.0
  %7246 = vmatmul.mubr.f32.gmra.mrb[0].mxu0 %v7162
  %v7247 = vpop.f32.mrb[0].mxu0
  %v7248 = vadd.f32 %v50, %v7247
  %v7249 = vpop.f32.mrb[0].mxu0
  %7250 = vdwg.mxu0
  %v7251 = vsel %vm604, %v7233, -inf
  %7252 = vmax.xlane.f32.xlu0 %v7251
  %v7253 = vpop.xlane.xlu0 %7252
  %v7254 = vsel %vm604, %v7238, -inf
  %7255 = vmax.xlane.f32.xlu0 %v7254
  %v7256 = vpop.xlane.xlu0 %7255
  %v7257 = vsel %vm604, %v7243, -inf
  %7258 = vmax.xlane.f32.xlu0 %v7257
  %v7259 = vpop.xlane.xlu0 %7258
  %v7260 = vsel %vm604, %v7248, -inf
  %7261 = vmax.xlane.f32.xlu0 %v7260
  %v7262 = vpop.xlane.xlu0 %7261
  %v7263 = vsub.f32 %v7233, %v7253
  %v7264 = vsub.f32 %v7238, %v7256
  %v7265 = vsub.f32 %v7243, %v7259
  %v7266 = vsub.f32 %v7248, %v7262
  %v7267 = vmul.f32 %v7263, 1.442695
  %v7268 = vpow.pop %v7267
  %v7269 = vmul.f32 %v7264, 1.442695
  %v7270 = vpow.pop %v7269
  %v7271 = vmul.f32 %v7265, 1.442695
  %v7272 = vpow.pop %v7271
  %v7273 = vmul.f32 %v7266, 1.442695
  %v7274 = vpow.pop %v7273
  %v7275 = vsel %vm604, %v7268, 0.0
  %7276 = vadd.xlane.f32.xlu0 %v7275
  %v7277 = vpop.xlane.xlu0 %7276
  %v7278 = vsel %vm604, %v7270, 0.0
  %7279 = vadd.xlane.f32.xlu0 %v7278
  %v7280 = vpop.xlane.xlu0 %7279
  %v7281 = vsel %vm604, %v7272, 0.0
  %7282 = vadd.xlane.f32.xlu0 %v7281
  %v7283 = vpop.xlane.xlu0 %7282
  %v7284 = vsel %vm604, %v7274, 0.0
  %7285 = vadd.xlane.f32.xlu0 %v7284
  %v7286 = vpop.xlane.xlu0 %7285
  %v7287 = vrcp.pop %v7277
  %v7288 = vrcp.pop %v7280
  %v7289 = vrcp.pop %v7283
  %v7290 = vrcp.pop %v7286
  %v7291 = vmul.f32 %v7268, %v7287
  %v7292 = vmul.f32 %v7270, %v7288
  %v7293 = vmul.f32 %v7272, %v7289
  %v7294 = vmul.f32 %v7274, %v7290
  %v7295 = vrot.slane %v6326, 6
  %v7296 = vsel %vm604, %v7295, 0
  %v7299 = vsel %vm604, %v7291, 0
  %v7302 = vsel %vm604, %v7292, 0
  %v7305 = vsel %vm604, %v7293, 0
  %v7308 = vsel %vm604, %v7294, 0
  %7310 = vmatprep.subr.mxu0 0.0
  %7311 = vmatpush1.xpose.msra.mxu0 %v7299
  %7312 = vmatprep.subr.mxu0 0.0
  %7313 = vmatpush1.xpose.msra.mxu0 %v7302
  %7314 = vmatprep.subr.mxu0 0.0
  %7315 = vmatpush1.xpose.msra.mxu0 %v7305
  %7316 = vmatprep.subr.mxu0 0.0
  %7317 = vmatpush1.xpose.msra.mxu0 %v7308
  %7318 = vmatprep.subr.mxu0 0.0
  %7319 = vmatpush1.xpose.msra.mxu0 0.0
  %7320 = vmatprep.subr.mxu0 0.0
  %7321 = vmatpush1.xpose.msra.mxu0 0.0
  %7322 = vmatprep.subr.mxu0 0.0
  %7323 = vmatpush1.xpose.msra.mxu0 0.0
  %7324 = vmatprep.subr.mxu0 0.0
  %7325 = vmatpush1.xpose.msra.mxu0 0.0
  %7326 = vmatprep.subr.mxu0 0.0
  %7327 = vmatpush1.xpose.msra.mxu0 0.0
  %7328 = vmatprep.subr.mxu0 0.0
  %7329 = vmatpush1.xpose.msra.mxu0 0.0
  %7330 = vmatprep.subr.mxu0 0.0
  %7331 = vmatpush1.xpose.msra.mxu0 0.0
  %7332 = vmatprep.subr.mxu0 0.0
  %7333 = vmatpush1.xpose.msra.mxu0 0.0
  %7334 = vmatprep.subr.mxu0 0.0
  %7335 = vmatpush1.xpose.msra.mxu0 0.0
  %7336 = vmatprep.subr.mxu0 0.0
  %7337 = vmatpush1.xpose.msra.mxu0 0.0
  %7338 = vmatprep.subr.mxu0 0.0
  %7339 = vmatpush1.xpose.msra.mxu0 0.0
  %7340 = vmatprep.subr.mxu0 0.0
  %7341 = vmatpush1.xpose.msra.mxu0 0.0
  %7342 = vmatprep.subr.mxu0 0.0
  %7343 = vmatpush1.xpose.msra.mxu0 0.0
  %7344 = vmatprep.subr.mxu0 0.0
  %7345 = vmatpush1.xpose.msra.mxu0 0.0
  %7346 = vmatprep.subr.mxu0 0.0
  %7347 = vmatpush1.xpose.msra.mxu0 0.0
  %7348 = vmatprep.subr.mxu0 0.0
  %7349 = vmatpush1.xpose.msra.mxu0 0.0
  %7350 = vmatprep.subr.mxu0 0.0
  %7351 = vmatpush1.xpose.msra.mxu0 0.0
  %7352 = vmatprep.subr.mxu0 0.0
  %7353 = vmatpush1.xpose.msra.mxu0 0.0
  %7354 = vmatprep.subr.mxu0 0.0
  %7355 = vmatpush1.xpose.msra.mxu0 0.0
  %7356 = vmatprep.subr.mxu0 0.0
  %7357 = vmatpush1.xpose.msra.mxu0 0.0
  %7358 = vmatprep.subr.mxu0 0.0
  %7359 = vmatpush1.xpose.msra.mxu0 0.0
  %7360 = vmatprep.subr.mxu0 0.0
  %7361 = vmatpush1.xpose.msra.mxu0 0.0
  %7362 = vmatprep.subr.mxu0 0.0
  %7363 = vmatpush1.xpose.msra.mxu0 0.0
  %7364 = vmatprep.subr.mxu0 0.0
  %7365 = vmatpush1.xpose.msra.mxu0 0.0
  %7366 = vmatprep.subr.mxu0 0.0
  %7367 = vmatpush1.xpose.msra.mxu0 0.0
  %7368 = vmatprep.subr.mxu0 0.0
  %7369 = vmatpush1.xpose.msra.mxu0 0.0
  %7370 = vmatprep.subr.mxu0 0.0
  %7371 = vmatpush1.xpose.msra.mxu0 0.0
  %7372 = vmatprep.subr.mxu0 0.0
  %7373 = vmatpush1.xpose.msra.mxu0 0.0
  %7374 = vmatprep.mubr.f32.mxu0 0.0
  %7375 = vmatmul.mubr.f32.gmra.mrb[0].mxu0 %v7296
  %v7376 = vpop.f32.mrb[0].mxu0
  %v7377 = vadd.f32 0.0, %v7376
  %v7378 = vpop.f32.mrb[0].mxu0
  %7379 = vdwg.mxu0
  %v7381 = vrot.slane %v6851, 6
  %v7384 = vrot.slane %v7114, 4
  %v7387 = vrot.slane %v7377, 2
  %v7389 = vsel %vm515, %v6587, %v7381
  %v7390 = vsel %vm1534, %v7389, %v7384
  %v7391 = vsel %vm1536, %v7390, %v7387
  %7393 = vset.pattern.permute.xlu0 0
  %7394 = vperm.xlu0 %7393, %v6224
  %v7395 = vpop.permute.xlu0 %7394
  %v7398 = vsel %vm66, %v6222, 0
  %7400 = vmatprep.subr.mxu0 0.0
  %7401 = vmatpush1.msra.mxu0 %v7391
  %7402 = vmatprep.subr.mxu0 0.0
  %7403 = vmatpush1.msra.mxu0 0.0
  %7404 = vmatprep.subr.mxu0 0.0
  %7405 = vmatpush1.msra.mxu0 0.0
  %7406 = vmatprep.subr.mxu0 0.0
  %7407 = vmatpush1.msra.mxu0 0.0
  %7408 = vmatprep.subr.mxu0 0.0
  %7409 = vmatpush1.msra.mxu0 0.0
  %7410 = vmatprep.subr.mxu0 0.0
  %7411 = vmatpush1.msra.mxu0 0.0
  %7412 = vmatprep.subr.mxu0 0.0
  %7413 = vmatpush1.msra.mxu0 0.0
  %7414 = vmatprep.subr.mxu0 0.0
  %7415 = vmatpush1.msra.mxu0 0.0
  %7416 = vmatprep.subr.mxu0 0.0
  %7417 = vmatpush1.msra.mxu0 0.0
  %7418 = vmatprep.subr.mxu0 0.0
  %7419 = vmatpush1.msra.mxu0 0.0
  %7420 = vmatprep.subr.mxu0 0.0
  %7421 = vmatpush1.msra.mxu0 0.0
  %7422 = vmatprep.subr.mxu0 0.0
  %7423 = vmatpush1.msra.mxu0 0.0
  %7424 = vmatprep.subr.mxu0 0.0
  %7425 = vmatpush1.msra.mxu0 0.0
  %7426 = vmatprep.subr.mxu0 0.0
  %7427 = vmatpush1.msra.mxu0 0.0
  %7428 = vmatprep.subr.mxu0 0.0
  %7429 = vmatpush1.msra.mxu0 0.0
  %7430 = vmatprep.subr.mxu0 0.0
  %7431 = vmatpush1.msra.mxu0 0.0
  %7432 = vmatprep.subr.mxu0 0.0
  %7433 = vmatpush1.msra.mxu0 0.0
  %7434 = vmatprep.subr.mxu0 0.0
  %7435 = vmatpush1.msra.mxu0 0.0
  %7436 = vmatprep.subr.mxu0 0.0
  %7437 = vmatpush1.msra.mxu0 0.0
  %7438 = vmatprep.subr.mxu0 0.0
  %7439 = vmatpush1.msra.mxu0 0.0
  %7440 = vmatprep.subr.mxu0 0.0
  %7441 = vmatpush1.msra.mxu0 0.0
  %7442 = vmatprep.subr.mxu0 0.0
  %7443 = vmatpush1.msra.mxu0 0.0
  %7444 = vmatprep.subr.mxu0 0.0
  %7445 = vmatpush1.msra.mxu0 0.0
  %7446 = vmatprep.subr.mxu0 0.0
  %7447 = vmatpush1.msra.mxu0 0.0
  %7448 = vmatprep.subr.mxu0 0.0
  %7449 = vmatpush1.msra.mxu0 0.0
  %7450 = vmatprep.subr.mxu0 0.0
  %7451 = vmatpush1.msra.mxu0 0.0
  %7452 = vmatprep.subr.mxu0 0.0
  %7453 = vmatpush1.msra.mxu0 0.0
  %7454 = vmatprep.subr.mxu0 0.0
  %7455 = vmatpush1.msra.mxu0 0.0
  %7456 = vmatprep.subr.mxu0 0.0
  %7457 = vmatpush1.msra.mxu0 0.0
  %7458 = vmatprep.subr.mxu0 0.0
  %7459 = vmatpush1.msra.mxu0 0.0
  %7460 = vmatprep.subr.mxu0 0.0
  %7461 = vmatpush1.msra.mxu0 0.0
  %7462 = vmatprep.subr.mxu0 0.0
  %7463 = vmatpush1.msra.mxu0 0.0
  %7464 = vmatprep.mubr.f32.mxu0 0.0
  %7465 = vmatmul.mubr.f32.gmra.mrb[0].mxu0 %v7398
  %v7466 = vpop.f32.mrb[0].mxu0
  %v7467 = vadd.f32 %v7395, %v7466
  %v7468 = vpop.f32.mrb[0].mxu0
  %7469 = vdwg.mxu0
  %v7471 = vsel %vm604, %v7467, 0
  %7473 = vmatprep.subr.mxu0 0.0
  %7474 = vmatpush1.msra.mxu0 %v51
  %7475 = vmatprep.subr.mxu0 0.0
  %7476 = vmatpush1.msra.mxu0 %v52
  %7477 = vmatprep.subr.mxu0 0.0
  %7478 = vmatpush1.msra.mxu0 %v53
  %7479 = vmatprep.subr.mxu0 0.0
  %7480 = vmatpush1.msra.mxu0 %v54
  %7481 = vmatprep.subr.mxu0 0.0
  %7482 = vmatpush1.msra.mxu0 0.0
  %7483 = vmatprep.subr.mxu0 0.0
  %7484 = vmatpush1.msra.mxu0 0.0
  %7485 = vmatprep.subr.mxu0 0.0
  %7486 = vmatpush1.msra.mxu0 0.0
  %7487 = vmatprep.subr.mxu0 0.0
  %7488 = vmatpush1.msra.mxu0 0.0
  %7489 = vmatprep.subr.mxu0 0.0
  %7490 = vmatpush1.msra.mxu0 0.0
  %7491 = vmatprep.subr.mxu0 0.0
  %7492 = vmatpush1.msra.mxu0 0.0
  %7493 = vmatprep.subr.mxu0 0.0
  %7494 = vmatpush1.msra.mxu0 0.0
  %7495 = vmatprep.subr.mxu0 0.0
  %7496 = vmatpush1.msra.mxu0 0.0
  %7497 = vmatprep.subr.mxu0 0.0
  %7498 = vmatpush1.msra.mxu0 0.0
  %7499 = vmatprep.subr.mxu0 0.0
  %7500 = vmatpush1.msra.mxu0 0.0
  %7501 = vmatprep.subr.mxu0 0.0
  %7502 = vmatpush1.msra.mxu0 0.0
  %7503 = vmatprep.subr.mxu0 0.0
  %7504 = vmatpush1.msra.mxu0 0.0
  %7505 = vmatprep.subr.mxu0 0.0
  %7506 = vmatpush1.msra.mxu0 0.0
  %7507 = vmatprep.subr.mxu0 0.0
  %7508 = vmatpush1.msra.mxu0 0.0
  %7509 = vmatprep.subr.mxu0 0.0
  %7510 = vmatpush1.msra.mxu0 0.0
  %7511 = vmatprep.subr.mxu0 0.0
  %7512 = vmatpush1.msra.mxu0 0.0
  %7513 = vmatprep.subr.mxu0 0.0
  %7514 = vmatpush1.msra.mxu0 0.0
  %7515 = vmatprep.subr.mxu0 0.0
  %7516 = vmatpush1.msra.mxu0 0.0
  %7517 = vmatprep.subr.mxu0 0.0
  %7518 = vmatpush1.msra.mxu0 0.0
  %7519 = vmatprep.subr.mxu0 0.0
  %7520 = vmatpush1.msra.mxu0 0.0
  %7521 = vmatprep.subr.mxu0 0.0
  %7522 = vmatpush1.msra.mxu0 0.0
  %7523 = vmatprep.subr.mxu0 0.0
  %7524 = vmatpush1.msra.mxu0 0.0
  %7525 = vmatprep.subr.mxu0 0.0
  %7526 = vmatpush1.msra.mxu0 0.0
  %7527 = vmatprep.subr.mxu0 0.0
  %7528 = vmatpush1.msra.mxu0 0.0
  %7529 = vmatprep.subr.mxu0 0.0
  %7530 = vmatpush1.msra.mxu0 0.0
  %7531 = vmatprep.subr.mxu0 0.0
  %7532 = vmatpush1.msra.mxu0 0.0
  %7533 = vmatprep.subr.mxu0 0.0
  %7534 = vmatpush1.msra.mxu0 0.0
  %7535 = vmatprep.subr.mxu0 0.0
  %7536 = vmatpush1.msra.mxu0 0.0
  %7537 = vmatprep.mubr.f32.mxu0 0.0
  %7538 = vmatmul.mubr.f32.gmra.mrb[0].mxu0 %v7471
  %v7539 = vpop.f32.mrb[0].mxu0
  %v7540 = vadd.f32 0.0, %v7539
  %v7541 = vpop.f32.mrb[0].mxu0
  %7542 = vdwg.mxu0
  %v7543 = vadd.f32 %v6210, %v7540
  %v7544 = vadd.f32 %v6205, %v7543
  %s7545 = scalar_lea.vmem %s5, 64
  %v7546 = vld [vmem:[%s7545] sm:$0xff]
  %v7547 = vld [vmem:[%s7545 + $0x8] sm:$0xff]
  %s7548 = scalar_lea.vmem %s6, 64
  %v7549 = vld [vmem:[%s7548] sm:$0xff]
  %v7550 = vld [vmem:[%s7548 + $0x8] sm:$0xff]
  %7552 = vset.pattern.permute.xlu0 0
  %7553 = vperm.xlu0 %7552, %v7549
  %v7554 = vpop.permute.xlu0 %7553
  %7557 = vset.pattern.permute.xlu0 0
  %7558 = vperm.xlu0 %7557, %v7550
  %v7559 = vpop.permute.xlu0 %7558
  %v7562 = vsel %vm1844, %v7546, 0
  %v7565 = vsel %vm1844, %v7547, 0
  %7567 = vmatprep.subr.mxu0 0.0
  %7568 = vmatpush1.msra.mxu0 %v7544
  %7569 = vmatprep.subr.mxu0 0.0
  %7570 = vmatpush1.msra.mxu0 %v7543
  %7571 = vmatprep.subr.mxu0 0.0
  %7572 = vmatpush1.msra.mxu0 0.0
  %7573 = vmatprep.subr.mxu0 0.0
  %7574 = vmatpush1.msra.mxu0 0.0
  %7575 = vmatprep.subr.mxu0 0.0
  %7576 = vmatpush1.msra.mxu0 0.0
  %7577 = vmatprep.subr.mxu0 0.0
  %7578 = vmatpush1.msra.mxu0 0.0
  %7579 = vmatprep.subr.mxu0 0.0
  %7580 = vmatpush1.msra.mxu0 0.0
  %7581 = vmatprep.subr.mxu0 0.0
  %7582 = vmatpush1.msra.mxu0 0.0
  %7583 = vmatprep.subr.mxu0 0.0
  %7584 = vmatpush1.msra.mxu0 0.0
  %7585 = vmatprep.subr.mxu0 0.0
  %7586 = vmatpush1.msra.mxu0 0.0
  %7587 = vmatprep.subr.mxu0 0.0
  %7588 = vmatpush1.msra.mxu0 0.0
  %7589 = vmatprep.subr.mxu0 0.0
  %7590 = vmatpush1.msra.mxu0 0.0
  %7591 = vmatprep.subr.mxu0 0.0
  %7592 = vmatpush1.msra.mxu0 0.0
  %7593 = vmatprep.subr.mxu0 0.0
  %7594 = vmatpush1.msra.mxu0 0.0
  %7595 = vmatprep.subr.mxu0 0.0
  %7596 = vmatpush1.msra.mxu0 0.0
  %7597 = vmatprep.subr.mxu0 0.0
  %7598 = vmatpush1.msra.mxu0 0.0
  %7599 = vmatprep.subr.mxu0 0.0
  %7600 = vmatpush1.msra.mxu0 0.0
  %7601 = vmatprep.subr.mxu0 0.0
  %7602 = vmatpush1.msra.mxu0 0.0
  %7603 = vmatprep.subr.mxu0 0.0
  %7604 = vmatpush1.msra.mxu0 0.0
  %7605 = vmatprep.subr.mxu0 0.0
  %7606 = vmatpush1.msra.mxu0 0.0
  %7607 = vmatprep.subr.mxu0 0.0
  %7608 = vmatpush1.msra.mxu0 0.0
  %7609 = vmatprep.subr.mxu0 0.0
  %7610 = vmatpush1.msra.mxu0 0.0
  %7611 = vmatprep.subr.mxu0 0.0
  %7612 = vmatpush1.msra.mxu0 0.0
  %7613 = vmatprep.subr.mxu0 0.0
  %7614 = vmatpush1.msra.mxu0 0.0
  %7615 = vmatprep.subr.mxu0 0.0
  %7616 = vmatpush1.msra.mxu0 0.0
  %7617 = vmatprep.subr.mxu0 0.0
  %7618 = vmatpush1.msra.mxu0 0.0
  %7619 = vmatprep.subr.mxu0 0.0
  %7620 = vmatpush1.msra.mxu0 0.0
  %7621 = vmatprep.subr.mxu0 0.0
  %7622 = vmatpush1.msra.mxu0 0.0
  %7623 = vmatprep.subr.mxu0 0.0
  %7624 = vmatpush1.msra.mxu0 0.0
  %7625 = vmatprep.subr.mxu0 0.0
  %7626 = vmatpush1.msra.mxu0 0.0
  %7627 = vmatprep.subr.mxu0 0.0
  %7628 = vmatpush1.msra.mxu0 0.0
  %7629 = vmatprep.subr.mxu0 0.0
  %7630 = vmatpush1.msra.mxu0 0.0
  %7631 = vmatprep.mubr.f32.mxu0 0.0
  %7632 = vmatmul.mubr.f32.gmra.mrb[0].mxu0 %v7562
  %v7633 = vpop.f32.mrb[0].mxu0
  %v7634 = vadd.f32 %v7554, %v7633
  %v7635 = vpop.f32.mrb[0].mxu0
  %7636 = vmatprep.mubr.f32.mxu0 0.0
  %7637 = vmatmul.mubr.f32.gmra.mrb[0].mxu0 %v7565
  %v7638 = vpop.f32.mrb[0].mxu0
  %v7639 = vadd.f32 %v7559, %v7638
  %v7640 = vpop.f32.mrb[0].mxu0
  %7641 = vdwg.mxu0
  %s7642 = scalar_lea.vmem %s7, 120
  %v7643 = vld [vmem:[%s7642] sm:$0xff]
  %v7644 = vld [vmem:[%s7642 + $0x8] sm:$0xff]
  %v7645 = vld [vmem:[%s7642 + $0x10] sm:$0xff]
  %s7646 = scalar_lea.vmem %s8, 120
  %v7647 = vld [vmem:[%s7646] sm:$0xff]
  %v7648 = vld [vmem:[%s7646 + $0x8] sm:$0xff]
  %v7649 = vld [vmem:[%s7646 + $0x10] sm:$0xff]
  %s7650 = scalar_lea.vmem %s9, 40
  %v7651 = vld [vmem:[%s7650] sm:$0xff]
  %s7652 = scalar_lea.vmem %s10, 40
  %v7653 = vld [vmem:[%s7652] sm:$0xff]
  %7655 = vset.pattern.permute.xlu0 0
  %7656 = vperm.xlu0 %7655, %v7647
  %v7657 = vpop.permute.xlu0 %7656
  %7660 = vset.pattern.permute.xlu0 0
  %7661 = vperm.xlu0 %7660, %v7648
  %v7662 = vpop.permute.xlu0 %7661
  %7665 = vset.pattern.permute.xlu0 0
  %7666 = vperm.xlu0 %7665, %v7649
  %v7667 = vpop.permute.xlu0 %7666
  %v7670 = vsel %vm66, %v7643, 0
  %v7673 = vsel %vm66, %v7644, 0
  %v7676 = vsel %vm66, %v7645, 0
  %7678 = vmatprep.subr.mxu0 0.0
  %7679 = vmatpush1.msra.mxu0 %v7467
  %7680 = vmatprep.subr.mxu0 0.0
  %7681 = vmatpush1.msra.mxu0 0.0
  %7682 = vmatprep.subr.mxu0 0.0
  %7683 = vmatpush1.msra.mxu0 0.0
  %7684 = vmatprep.subr.mxu0 0.0
  %7685 = vmatpush1.msra.mxu0 0.0
  %7686 = vmatprep.subr.mxu0 0.0
  %7687 = vmatpush1.msra.mxu0 0.0
  %7688 = vmatprep.subr.mxu0 0.0
  %7689 = vmatpush1.msra.mxu0 0.0
  %7690 = vmatprep.subr.mxu0 0.0
  %7691 = vmatpush1.msra.mxu0 0.0
  %7692 = vmatprep.subr.mxu0 0.0
  %7693 = vmatpush1.msra.mxu0 0.0
  %7694 = vmatprep.subr.mxu0 0.0
  %7695 = vmatpush1.msra.mxu0 0.0
  %7696 = vmatprep.subr.mxu0 0.0
  %7697 = vmatpush1.msra.mxu0 0.0
  %7698 = vmatprep.subr.mxu0 0.0
  %7699 = vmatpush1.msra.mxu0 0.0
  %7700 = vmatprep.subr.mxu0 0.0
  %7701 = vmatpush1.msra.mxu0 0.0
  %7702 = vmatprep.subr.mxu0 0.0
  %7703 = vmatpush1.msra.mxu0 0.0
  %7704 = vmatprep.subr.mxu0 0.0
  %7705 = vmatpush1.msra.mxu0 0.0
  %7706 = vmatprep.subr.mxu0 0.0
  %7707 = vmatpush1.msra.mxu0 0.0
  %7708 = vmatprep.subr.mxu0 0.0
  %7709 = vmatpush1.msra.mxu0 0.0
  %7710 = vmatprep.subr.mxu0 0.0
  %7711 = vmatpush1.msra.mxu0 0.0
  %7712 = vmatprep.subr.mxu0 0.0
  %7713 = vmatpush1.msra.mxu0 0.0
  %7714 = vmatprep.subr.mxu0 0.0
  %7715 = vmatpush1.msra.mxu0 0.0
  %7716 = vmatprep.subr.mxu0 0.0
  %7717 = vmatpush1.msra.mxu0 0.0
  %7718 = vmatprep.subr.mxu0 0.0
  %7719 = vmatpush1.msra.mxu0 0.0
  %7720 = vmatprep.subr.mxu0 0.0
  %7721 = vmatpush1.msra.mxu0 0.0
  %7722 = vmatprep.subr.mxu0 0.0
  %7723 = vmatpush1.msra.mxu0 0.0
  %7724 = vmatprep.subr.mxu0 0.0
  %7725 = vmatpush1.msra.mxu0 0.0
  %7726 = vmatprep.subr.mxu0 0.0
  %7727 = vmatpush1.msra.mxu0 0.0
  %7728 = vmatprep.subr.mxu0 0.0
  %7729 = vmatpush1.msra.mxu0 0.0
  %7730 = vmatprep.subr.mxu0 0.0
  %7731 = vmatpush1.msra.mxu0 0.0
  %7732 = vmatprep.subr.mxu0 0.0
  %7733 = vmatpush1.msra.mxu0 0.0
  %7734 = vmatprep.subr.mxu0 0.0
  %7735 = vmatpush1.msra.mxu0 0.0
  %7736 = vmatprep.subr.mxu0 0.0
  %7737 = vmatpush1.msra.mxu0 0.0
  %7738 = vmatprep.subr.mxu0 0.0
  %7739 = vmatpush1.msra.mxu0 0.0
  %7740 = vmatprep.subr.mxu0 0.0
  %7741 = vmatpush1.msra.mxu0 0.0
  %7742 = vmatprep.mubr.f32.mxu0 0.0
  %7743 = vmatmul.mubr.f32.gmra.mrb[0].mxu0 %v7670
  %v7744 = vpop.f32.mrb[0].mxu0
  %v7745 = vadd.f32 %v7657, %v7744
  %v7746 = vpop.f32.mrb[0].mxu0
  %7747 = vmatprep.mubr.f32.mxu0 0.0
  %7748 = vmatmul.mubr.f32.gmra.mrb[0].mxu0 %v7673
  %v7749 = vpop.f32.mrb[0].mxu0
  %v7750 = vadd.f32 %v7662, %v7749
  %v7751 = vpop.f32.mrb[0].mxu0
  %7752 = vmatprep.mubr.f32.mxu0 0.0
  %7753 = vmatmul.mubr.f32.gmra.mrb[0].mxu0 %v7676
  %v7754 = vpop.f32.mrb[0].mxu0
  %v7755 = vadd.f32 %v7667, %v7754
  %v7756 = vpop.f32.mrb[0].mxu0
  %7757 = vdwg.mxu0
  %7758 = vxpose.xlu0.b32.start [1/16] %v7745, 128
  %7759 = vxpose.xlu0.b32.cont [2/16] 0.0, 128
  %7760 = vxpose.xlu0.b32.cont [3/16] 0.0, 128
  %7761 = vxpose.xlu0.b32.cont [4/16] 0.0, 128
  %7762 = vxpose.xlu0.b32.cont [5/16] 0.0, 128
  %7763 = vxpose.xlu0.b32.cont [6/16] 0.0, 128
  %7764 = vxpose.xlu0.b32.cont [7/16] 0.0, 128
  %7765 = vxpose.xlu0.b32.cont [8/16] 0.0, 128
  %7766 = vxpose.xlu0.b32.cont [9/16] 0.0, 128
  %7767 = vxpose.xlu0.b32.cont [10/16] 0.0, 128
  %7768 = vxpose.xlu0.b32.cont [11/16] 0.0, 128
  %7769 = vxpose.xlu0.b32.cont [12/16] 0.0, 128
  %7770 = vxpose.xlu0.b32.cont [13/16] 0.0, 128
  %7771 = vxpose.xlu0.b32.cont [14/16] 0.0, 128
  %7772 = vxpose.xlu0.b32.cont [15/16] 0.0, 128
  %7773 = vxpose.xlu0.b32.end [16/16] 0.0, 128
  %v7774 = vpop.trf.xlu0
  %v7775 = vpop.trf.xlu0
  %v7776 = vpop.trf.xlu0
  %v7777 = vpop.trf.xlu0
  %v7778 = vpop.trf.xlu0
  %v7779 = vpop.trf.xlu0
  %v7780 = vpop.trf.xlu0
  %v7781 = vpop.trf.xlu0
  %v7782 = vpop.trf.xlu0
  %v7783 = vpop.trf.xlu0
  %v7784 = vpop.trf.xlu0
  %v7785 = vpop.trf.xlu0
  %v7786 = vpop.trf.xlu0
  %v7787 = vpop.trf.xlu0
  %v7788 = vpop.trf.xlu0
  %v7789 = vpop.trf.xlu0
  %v7791 = vsel %vm502, %v7774, 0
  %v7794 = vsel %vm502, %v7775, 0
  %v7797 = vsel %vm502, %v7776, 0
  %v7800 = vsel %vm502, %v7777, 0
  %v7803 = vsel %vm515, %v7750, 0
  %7805 = vmatprep.subr.mxu0 0.0
  %7806 = vmatpush1.msra.mxu0 %v7803
  %7807 = vmatprep.subr.mxu0 0.0
  %7808 = vmatpush1.msra.mxu0 0.0
  %7809 = vmatprep.subr.mxu0 0.0
  %7810 = vmatpush1.msra.mxu0 0.0
  %7811 = vmatprep.subr.mxu0 0.0
  %7812 = vmatpush1.msra.mxu0 0.0
  %7813 = vmatprep.subr.mxu0 0.0
  %7814 = vmatpush1.msra.mxu0 0.0
  %7815 = vmatprep.subr.mxu0 0.0
  %7816 = vmatpush1.msra.mxu0 0.0
  %7817 = vmatprep.subr.mxu0 0.0
  %7818 = vmatpush1.msra.mxu0 0.0
  %7819 = vmatprep.subr.mxu0 0.0
  %7820 = vmatpush1.msra.mxu0 0.0
  %7821 = vmatprep.subr.mxu0 0.0
  %7822 = vmatpush1.msra.mxu0 0.0
  %7823 = vmatprep.subr.mxu0 0.0
  %7824 = vmatpush1.msra.mxu0 0.0
  %7825 = vmatprep.subr.mxu0 0.0
  %7826 = vmatpush1.msra.mxu0 0.0
  %7827 = vmatprep.subr.mxu0 0.0
  %7828 = vmatpush1.msra.mxu0 0.0
  %7829 = vmatprep.subr.mxu0 0.0
  %7830 = vmatpush1.msra.mxu0 0.0
  %7831 = vmatprep.subr.mxu0 0.0
  %7832 = vmatpush1.msra.mxu0 0.0
  %7833 = vmatprep.subr.mxu0 0.0
  %7834 = vmatpush1.msra.mxu0 0.0
  %7835 = vmatprep.subr.mxu0 0.0
  %7836 = vmatpush1.msra.mxu0 0.0
  %7837 = vmatprep.subr.mxu0 0.0
  %7838 = vmatpush1.msra.mxu0 0.0
  %7839 = vmatprep.subr.mxu0 0.0
  %7840 = vmatpush1.msra.mxu0 0.0
  %7841 = vmatprep.subr.mxu0 0.0
  %7842 = vmatpush1.msra.mxu0 0.0
  %7843 = vmatprep.subr.mxu0 0.0
  %7844 = vmatpush1.msra.mxu0 0.0
  %7845 = vmatprep.subr.mxu0 0.0
  %7846 = vmatpush1.msra.mxu0 0.0
  %7847 = vmatprep.subr.mxu0 0.0
  %7848 = vmatpush1.msra.mxu0 0.0
  %7849 = vmatprep.subr.mxu0 0.0
  %7850 = vmatpush1.msra.mxu0 0.0
  %7851 = vmatprep.subr.mxu0 0.0
  %7852 = vmatpush1.msra.mxu0 0.0
  %7853 = vmatprep.subr.mxu0 0.0
  %7854 = vmatpush1.msra.mxu0 0.0
  %7855 = vmatprep.subr.mxu0 0.0
  %7856 = vmatpush1.msra.mxu0 0.0
  %7857 = vmatprep.subr.mxu0 0.0
  %7858 = vmatpush1.msra.mxu0 0.0
  %7859 = vmatprep.subr.mxu0 0.0
  %7860 = vmatpush1.msra.mxu0 0.0
  %7861 = vmatprep.subr.mxu0 0.0
  %7862 = vmatpush1.msra.mxu0 0.0
  %7863 = vmatprep.subr.mxu0 0.0
  %7864 = vmatpush1.msra.mxu0 0.0
  %7865 = vmatprep.subr.mxu0 0.0
  %7866 = vmatpush1.msra.mxu0 0.0
  %7867 = vmatprep.subr.mxu0 0.0
  %7868 = vmatpush1.msra.mxu0 0.0
  %7869 = vmatprep.mubr.f32.mxu0 0.0
  %7870 = vmatmul.mubr.f32.gmra.mrb[0].mxu0 %v7791
  %v7871 = vpop.f32.mrb[0].mxu0
  %v7872 = vadd.f32 %v47, %v7871
  %v7873 = vpop.f32.mrb[0].mxu0
  %7874 = vmatprep.mubr.f32.mxu0 0.0
  %7875 = vmatmul.mubr.f32.gmra.mrb[0].mxu0 %v7794
  %v7876 = vpop.f32.mrb[0].mxu0
  %v7877 = vadd.f32 %v48, %v7876
  %v7878 = vpop.f32.mrb[0].mxu0
  %7879 = vmatprep.mubr.f32.mxu0 0.0
  %7880 = vmatmul.mubr.f32.gmra.mrb[0].mxu0 %v7797
  %v7881 = vpop.f32.mrb[0].mxu0
  %v7882 = vadd.f32 %v49, %v7881
  %v7883 = vpop.f32.mrb[0].mxu0
  %7884 = vmatprep.mubr.f32.mxu0 0.0
  %7885 = vmatmul.mubr.f32.gmra.mrb[0].mxu0 %v7800
  %v7886 = vpop.f32.mrb[0].mxu0
  %v7887 = vadd.f32 %v50, %v7886
  %v7888 = vpop.f32.mrb[0].mxu0
  %7889 = vdwg.mxu0
  %v7890 = vsel %vm604, %v7872, -inf
  %7891 = vmax.xlane.f32.xlu0 %v7890
  %v7892 = vpop.xlane.xlu0 %7891
  %v7893 = vsel %vm604, %v7877, -inf
  %7894 = vmax.xlane.f32.xlu0 %v7893
  %v7895 = vpop.xlane.xlu0 %7894
  %v7896 = vsel %vm604, %v7882, -inf
  %7897 = vmax.xlane.f32.xlu0 %v7896
  %v7898 = vpop.xlane.xlu0 %7897
  %v7899 = vsel %vm604, %v7887, -inf
  %7900 = vmax.xlane.f32.xlu0 %v7899
  %v7901 = vpop.xlane.xlu0 %7900
  %v7902 = vsub.f32 %v7872, %v7892
  %v7903 = vsub.f32 %v7877, %v7895
  %v7904 = vsub.f32 %v7882, %v7898
  %v7905 = vsub.f32 %v7887, %v7901
  %v7906 = vmul.f32 %v7902, 1.442695
  %v7907 = vpow.pop %v7906
  %v7908 = vmul.f32 %v7903, 1.442695
  %v7909 = vpow.pop %v7908
  %v7910 = vmul.f32 %v7904, 1.442695
  %v7911 = vpow.pop %v7910
  %v7912 = vmul.f32 %v7905, 1.442695
  %v7913 = vpow.pop %v7912
  %v7914 = vsel %vm604, %v7907, 0.0
  %7915 = vadd.xlane.f32.xlu0 %v7914
  %v7916 = vpop.xlane.xlu0 %7915
  %v7917 = vsel %vm604, %v7909, 0.0
  %7918 = vadd.xlane.f32.xlu0 %v7917
  %v7919 = vpop.xlane.xlu0 %7918
  %v7920 = vsel %vm604, %v7911, 0.0
  %7921 = vadd.xlane.f32.xlu0 %v7920
  %v7922 = vpop.xlane.xlu0 %7921
  %v7923 = vsel %vm604, %v7913, 0.0
  %7924 = vadd.xlane.f32.xlu0 %v7923
  %v7925 = vpop.xlane.xlu0 %7924
  %v7926 = vrcp.pop %v7916
  %v7927 = vrcp.pop %v7919
  %v7928 = vrcp.pop %v7922
  %v7929 = vrcp.pop %v7925
  %v7930 = vmul.f32 %v7907, %v7926
  %v7931 = vmul.f32 %v7909, %v7927
  %v7932 = vmul.f32 %v7911, %v7928
  %v7933 = vmul.f32 %v7913, %v7929
  %v7935 = vsel %vm604, %v7755, 0
  %v7938 = vsel %vm604, %v7930, 0
  %v7941 = vsel %vm604, %v7931, 0
  %v7944 = vsel %vm604, %v7932, 0
  %v7947 = vsel %vm604, %v7933, 0
  %7949 = vmatprep.subr.mxu0 0.0
  %7950 = vmatpush1.xpose.msra.mxu0 %v7938
  %7951 = vmatprep.subr.mxu0 0.0
  %7952 = vmatpush1.xpose.msra.mxu0 %v7941
  %7953 = vmatprep.subr.mxu0 0.0
  %7954 = vmatpush1.xpose.msra.mxu0 %v7944
  %7955 = vmatprep.subr.mxu0 0.0
  %7956 = vmatpush1.xpose.msra.mxu0 %v7947
  %7957 = vmatprep.subr.mxu0 0.0
  %7958 = vmatpush1.xpose.msra.mxu0 0.0
  %7959 = vmatprep.subr.mxu0 0.0
  %7960 = vmatpush1.xpose.msra.mxu0 0.0
  %7961 = vmatprep.subr.mxu0 0.0
  %7962 = vmatpush1.xpose.msra.mxu0 0.0
  %7963 = vmatprep.subr.mxu0 0.0
  %7964 = vmatpush1.xpose.msra.mxu0 0.0
  %7965 = vmatprep.subr.mxu0 0.0
  %7966 = vmatpush1.xpose.msra.mxu0 0.0
  %7967 = vmatprep.subr.mxu0 0.0
  %7968 = vmatpush1.xpose.msra.mxu0 0.0
  %7969 = vmatprep.subr.mxu0 0.0
  %7970 = vmatpush1.xpose.msra.mxu0 0.0
  %7971 = vmatprep.subr.mxu0 0.0
  %7972 = vmatpush1.xpose.msra.mxu0 0.0
  %7973 = vmatprep.subr.mxu0 0.0
  %7974 = vmatpush1.xpose.msra.mxu0 0.0
  %7975 = vmatprep.subr.mxu0 0.0
  %7976 = vmatpush1.xpose.msra.mxu0 0.0
  %7977 = vmatprep.subr.mxu0 0.0
  %7978 = vmatpush1.xpose.msra.mxu0 0.0
  %7979 = vmatprep.subr.mxu0 0.0
  %7980 = vmatpush1.xpose.msra.mxu0 0.0
  %7981 = vmatprep.subr.mxu0 0.0
  %7982 = vmatpush1.xpose.msra.mxu0 0.0
  %7983 = vmatprep.subr.mxu0 0.0
  %7984 = vmatpush1.xpose.msra.mxu0 0.0
  %7985 = vmatprep.subr.mxu0 0.0
  %7986 = vmatpush1.xpose.msra.mxu0 0.0
  %7987 = vmatprep.subr.mxu0 0.0
  %7988 = vmatpush1.xpose.msra.mxu0 0.0
  %7989 = vmatprep.subr.mxu0 0.0
  %7990 = vmatpush1.xpose.msra.mxu0 0.0
  %7991 = vmatprep.subr.mxu0 0.0
  %7992 = vmatpush1.xpose.msra.mxu0 0.0
  %7993 = vmatprep.subr.mxu0 0.0
  %7994 = vmatpush1.xpose.msra.mxu0 0.0
  %7995 = vmatprep.subr.mxu0 0.0
  %7996 = vmatpush1.xpose.msra.mxu0 0.0
  %7997 = vmatprep.subr.mxu0 0.0
  %7998 = vmatpush1.xpose.msra.mxu0 0.0
  %7999 = vmatprep.subr.mxu0 0.0
  %8000 = vmatpush1.xpose.msra.mxu0 0.0
  %8001 = vmatprep.subr.mxu0 0.0
  %8002 = vmatpush1.xpose.msra.mxu0 0.0
  %8003 = vmatprep.subr.mxu0 0.0
  %8004 = vmatpush1.xpose.msra.mxu0 0.0
  %8005 = vmatprep.subr.mxu0 0.0
  %8006 = vmatpush1.xpose.msra.mxu0 0.0
  %8007 = vmatprep.subr.mxu0 0.0
  %8008 = vmatpush1.xpose.msra.mxu0 0.0
  %8009 = vmatprep.subr.mxu0 0.0
  %8010 = vmatpush1.xpose.msra.mxu0 0.0
  %8011 = vmatprep.subr.mxu0 0.0
  %8012 = vmatpush1.xpose.msra.mxu0 0.0
  %8013 = vmatprep.mubr.f32.mxu0 0.0
  %8014 = vmatmul.mubr.f32.gmra.mrb[0].mxu0 %v7935
  %v8015 = vpop.f32.mrb[0].mxu0
  %v8016 = vadd.f32 0.0, %v8015
  %v8017 = vpop.f32.mrb[0].mxu0
  %8018 = vdwg.mxu0
  %v8020 = vrot.slane %v7745, 2
  %8022 = vxpose.xlu0.b32.start [1/16] %v8020, 128
  %8023 = vxpose.xlu0.b32.cont [2/16] 0.0, 128
  %8024 = vxpose.xlu0.b32.cont [3/16] 0.0, 128
  %8025 = vxpose.xlu0.b32.cont [4/16] 0.0, 128
  %8026 = vxpose.xlu0.b32.cont [5/16] 0.0, 128
  %8027 = vxpose.xlu0.b32.cont [6/16] 0.0, 128
  %8028 = vxpose.xlu0.b32.cont [7/16] 0.0, 128
  %8029 = vxpose.xlu0.b32.cont [8/16] 0.0, 128
  %8030 = vxpose.xlu0.b32.cont [9/16] 0.0, 128
  %8031 = vxpose.xlu0.b32.cont [10/16] 0.0, 128
  %8032 = vxpose.xlu0.b32.cont [11/16] 0.0, 128
  %8033 = vxpose.xlu0.b32.cont [12/16] 0.0, 128
  %8034 = vxpose.xlu0.b32.cont [13/16] 0.0, 128
  %8035 = vxpose.xlu0.b32.cont [14/16] 0.0, 128
  %8036 = vxpose.xlu0.b32.cont [15/16] 0.0, 128
  %8037 = vxpose.xlu0.b32.end [16/16] 0.0, 128
  %v8038 = vpop.trf.xlu0
  %v8039 = vpop.trf.xlu0
  %v8040 = vpop.trf.xlu0
  %v8041 = vpop.trf.xlu0
  %v8042 = vpop.trf.xlu0
  %v8043 = vpop.trf.xlu0
  %v8044 = vpop.trf.xlu0
  %v8045 = vpop.trf.xlu0
  %v8046 = vpop.trf.xlu0
  %v8047 = vpop.trf.xlu0
  %v8048 = vpop.trf.xlu0
  %v8049 = vpop.trf.xlu0
  %v8050 = vpop.trf.xlu0
  %v8051 = vpop.trf.xlu0
  %v8052 = vpop.trf.xlu0
  %v8053 = vpop.trf.xlu0
  %v8054 = vrot.slane %v7750, 2
  %v8056 = vsel %vm502, %v8038, 0
  %v8059 = vsel %vm502, %v8039, 0
  %v8062 = vsel %vm502, %v8040, 0
  %v8065 = vsel %vm502, %v8041, 0
  %v8067 = vsel %vm515, %v8054, 0
  %8069 = vmatprep.subr.mxu0 0.0
  %8070 = vmatpush1.msra.mxu0 %v8067
  %8071 = vmatprep.subr.mxu0 0.0
  %8072 = vmatpush1.msra.mxu0 0.0
  %8073 = vmatprep.subr.mxu0 0.0
  %8074 = vmatpush1.msra.mxu0 0.0
  %8075 = vmatprep.subr.mxu0 0.0
  %8076 = vmatpush1.msra.mxu0 0.0
  %8077 = vmatprep.subr.mxu0 0.0
  %8078 = vmatpush1.msra.mxu0 0.0
  %8079 = vmatprep.subr.mxu0 0.0
  %8080 = vmatpush1.msra.mxu0 0.0
  %8081 = vmatprep.subr.mxu0 0.0
  %8082 = vmatpush1.msra.mxu0 0.0
  %8083 = vmatprep.subr.mxu0 0.0
  %8084 = vmatpush1.msra.mxu0 0.0
  %8085 = vmatprep.subr.mxu0 0.0
  %8086 = vmatpush1.msra.mxu0 0.0
  %8087 = vmatprep.subr.mxu0 0.0
  %8088 = vmatpush1.msra.mxu0 0.0
  %8089 = vmatprep.subr.mxu0 0.0
  %8090 = vmatpush1.msra.mxu0 0.0
  %8091 = vmatprep.subr.mxu0 0.0
  %8092 = vmatpush1.msra.mxu0 0.0
  %8093 = vmatprep.subr.mxu0 0.0
  %8094 = vmatpush1.msra.mxu0 0.0
  %8095 = vmatprep.subr.mxu0 0.0
  %8096 = vmatpush1.msra.mxu0 0.0
  %8097 = vmatprep.subr.mxu0 0.0
  %8098 = vmatpush1.msra.mxu0 0.0
  %8099 = vmatprep.subr.mxu0 0.0
  %8100 = vmatpush1.msra.mxu0 0.0
  %8101 = vmatprep.subr.mxu0 0.0
  %8102 = vmatpush1.msra.mxu0 0.0
  %8103 = vmatprep.subr.mxu0 0.0
  %8104 = vmatpush1.msra.mxu0 0.0
  %8105 = vmatprep.subr.mxu0 0.0
  %8106 = vmatpush1.msra.mxu0 0.0
  %8107 = vmatprep.subr.mxu0 0.0
  %8108 = vmatpush1.msra.mxu0 0.0
  %8109 = vmatprep.subr.mxu0 0.0
  %8110 = vmatpush1.msra.mxu0 0.0
  %8111 = vmatprep.subr.mxu0 0.0
  %8112 = vmatpush1.msra.mxu0 0.0
  %8113 = vmatprep.subr.mxu0 0.0
  %8114 = vmatpush1.msra.mxu0 0.0
  %8115 = vmatprep.subr.mxu0 0.0
  %8116 = vmatpush1.msra.mxu0 0.0
  %8117 = vmatprep.subr.mxu0 0.0
  %8118 = vmatpush1.msra.mxu0 0.0
  %8119 = vmatprep.subr.mxu0 0.0
  %8120 = vmatpush1.msra.mxu0 0.0
  %8121 = vmatprep.subr.mxu0 0.0
  %8122 = vmatpush1.msra.mxu0 0.0
  %8123 = vmatprep.subr.mxu0 0.0
  %8124 = vmatpush1.msra.mxu0 0.0
  %8125 = vmatprep.subr.mxu0 0.0
  %8126 = vmatpush1.msra.mxu0 0.0
  %8127 = vmatprep.subr.mxu0 0.0
  %8128 = vmatpush1.msra.mxu0 0.0
  %8129 = vmatprep.subr.mxu0 0.0
  %8130 = vmatpush1.msra.mxu0 0.0
  %8131 = vmatprep.subr.mxu0 0.0
  %8132 = vmatpush1.msra.mxu0 0.0
  %8133 = vmatprep.mubr.f32.mxu0 0.0
  %8134 = vmatmul.mubr.f32.gmra.mrb[0].mxu0 %v8056
  %v8135 = vpop.f32.mrb[0].mxu0
  %v8136 = vadd.f32 %v47, %v8135
  %v8137 = vpop.f32.mrb[0].mxu0
  %8138 = vmatprep.mubr.f32.mxu0 0.0
  %8139 = vmatmul.mubr.f32.gmra.mrb[0].mxu0 %v8059
  %v8140 = vpop.f32.mrb[0].mxu0
  %v8141 = vadd.f32 %v48, %v8140
  %v8142 = vpop.f32.mrb[0].mxu0
  %8143 = vmatprep.mubr.f32.mxu0 0.0
  %8144 = vmatmul.mubr.f32.gmra.mrb[0].mxu0 %v8062
  %v8145 = vpop.f32.mrb[0].mxu0
  %v8146 = vadd.f32 %v49, %v8145
  %v8147 = vpop.f32.mrb[0].mxu0
  %8148 = vmatprep.mubr.f32.mxu0 0.0
  %8149 = vmatmul.mubr.f32.gmra.mrb[0].mxu0 %v8065
  %v8150 = vpop.f32.mrb[0].mxu0
  %v8151 = vadd.f32 %v50, %v8150
  %v8152 = vpop.f32.mrb[0].mxu0
  %8153 = vdwg.mxu0
  %v8154 = vsel %vm604, %v8136, -inf
  %8155 = vmax.xlane.f32.xlu0 %v8154
  %v8156 = vpop.xlane.xlu0 %8155
  %v8157 = vsel %vm604, %v8141, -inf
  %8158 = vmax.xlane.f32.xlu0 %v8157
  %v8159 = vpop.xlane.xlu0 %8158
  %v8160 = vsel %vm604, %v8146, -inf
  %8161 = vmax.xlane.f32.xlu0 %v8160
  %v8162 = vpop.xlane.xlu0 %8161
  %v8163 = vsel %vm604, %v8151, -inf
  %8164 = vmax.xlane.f32.xlu0 %v8163
  %v8165 = vpop.xlane.xlu0 %8164
  %v8166 = vsub.f32 %v8136, %v8156
  %v8167 = vsub.f32 %v8141, %v8159
  %v8168 = vsub.f32 %v8146, %v8162
  %v8169 = vsub.f32 %v8151, %v8165
  %v8170 = vmul.f32 %v8166, 1.442695
  %v8171 = vpow.pop %v8170
  %v8172 = vmul.f32 %v8167, 1.442695
  %v8173 = vpow.pop %v8172
  %v8174 = vmul.f32 %v8168, 1.442695
  %v8175 = vpow.pop %v8174
  %v8176 = vmul.f32 %v8169, 1.442695
  %v8177 = vpow.pop %v8176
  %v8178 = vsel %vm604, %v8171, 0.0
  %8179 = vadd.xlane.f32.xlu0 %v8178
  %v8180 = vpop.xlane.xlu0 %8179
  %v8181 = vsel %vm604, %v8173, 0.0
  %8182 = vadd.xlane.f32.xlu0 %v8181
  %v8183 = vpop.xlane.xlu0 %8182
  %v8184 = vsel %vm604, %v8175, 0.0
  %8185 = vadd.xlane.f32.xlu0 %v8184
  %v8186 = vpop.xlane.xlu0 %8185
  %v8187 = vsel %vm604, %v8177, 0.0
  %8188 = vadd.xlane.f32.xlu0 %v8187
  %v8189 = vpop.xlane.xlu0 %8188
  %v8190 = vrcp.pop %v8180
  %v8191 = vrcp.pop %v8183
  %v8192 = vrcp.pop %v8186
  %v8193 = vrcp.pop %v8189
  %v8194 = vmul.f32 %v8171, %v8190
  %v8195 = vmul.f32 %v8173, %v8191
  %v8196 = vmul.f32 %v8175, %v8192
  %v8197 = vmul.f32 %v8177, %v8193
  %v8198 = vrot.slane %v7755, 2
  %v8199 = vsel %vm604, %v8198, 0
  %v8202 = vsel %vm604, %v8194, 0
  %v8205 = vsel %vm604, %v8195, 0
  %v8208 = vsel %vm604, %v8196, 0
  %v8211 = vsel %vm604, %v8197, 0
  %8213 = vmatprep.subr.mxu0 0.0
  %8214 = vmatpush1.xpose.msra.mxu0 %v8202
  %8215 = vmatprep.subr.mxu0 0.0
  %8216 = vmatpush1.xpose.msra.mxu0 %v8205
  %8217 = vmatprep.subr.mxu0 0.0
  %8218 = vmatpush1.xpose.msra.mxu0 %v8208
  %8219 = vmatprep.subr.mxu0 0.0
  %8220 = vmatpush1.xpose.msra.mxu0 %v8211
  %8221 = vmatprep.subr.mxu0 0.0
  %8222 = vmatpush1.xpose.msra.mxu0 0.0
  %8223 = vmatprep.subr.mxu0 0.0
  %8224 = vmatpush1.xpose.msra.mxu0 0.0
  %8225 = vmatprep.subr.mxu0 0.0
  %8226 = vmatpush1.xpose.msra.mxu0 0.0
  %8227 = vmatprep.subr.mxu0 0.0
  %8228 = vmatpush1.xpose.msra.mxu0 0.0
  %8229 = vmatprep.subr.mxu0 0.0
  %8230 = vmatpush1.xpose.msra.mxu0 0.0
  %8231 = vmatprep.subr.mxu0 0.0
  %8232 = vmatpush1.xpose.msra.mxu0 0.0
  %8233 = vmatprep.subr.mxu0 0.0
  %8234 = vmatpush1.xpose.msra.mxu0 0.0
  %8235 = vmatprep.subr.mxu0 0.0
  %8236 = vmatpush1.xpose.msra.mxu0 0.0
  %8237 = vmatprep.subr.mxu0 0.0
  %8238 = vmatpush1.xpose.msra.mxu0 0.0
  %8239 = vmatprep.subr.mxu0 0.0
  %8240 = vmatpush1.xpose.msra.mxu0 0.0
  %8241 = vmatprep.subr.mxu0 0.0
  %8242 = vmatpush1.xpose.msra.mxu0 0.0
  %8243 = vmatprep.subr.mxu0 0.0
  %8244 = vmatpush1.xpose.msra.mxu0 0.0
  %8245 = vmatprep.subr.mxu0 0.0
  %8246 = vmatpush1.xpose.msra.mxu0 0.0
  %8247 = vmatprep.subr.mxu0 0.0
  %8248 = vmatpush1.xpose.msra.mxu0 0.0
  %8249 = vmatprep.subr.mxu0 0.0
  %8250 = vmatpush1.xpose.msra.mxu0 0.0
  %8251 = vmatprep.subr.mxu0 0.0
  %8252 = vmatpush1.xpose.msra.mxu0 0.0
  %8253 = vmatprep.subr.mxu0 0.0
  %8254 = vmatpush1.xpose.msra.mxu0 0.0
  %8255 = vmatprep.subr.mxu0 0.0
  %8256 = vmatpush1.xpose.msra.mxu0 0.0
  %8257 = vmatprep.subr.mxu0 0.0
  %8258 = vmatpush1.xpose.msra.mxu0 0.0
  %8259 = vmatprep.subr.mxu0 0.0
  %8260 = vmatpush1.xpose.msra.mxu0 0.0
  %8261 = vmatprep.subr.mxu0 0.0
  %8262 = vmatpush1.xpose.msra.mxu0 0.0
  %8263 = vmatprep.subr.mxu0 0.0
  %8264 = vmatpush1.xpose.msra.mxu0 0.0
  %8265 = vmatprep.subr.mxu0 0.0
  %8266 = vmatpush1.xpose.msra.mxu0 0.0
  %8267 = vmatprep.subr.mxu0 0.0
  %8268 = vmatpush1.xpose.msra.mxu0 0.0
  %8269 = vmatprep.subr.mxu0 0.0
  %8270 = vmatpush1.xpose.msra.mxu0 0.0
  %8271 = vmatprep.subr.mxu0 0.0
  %8272 = vmatpush1.xpose.msra.mxu0 0.0
  %8273 = vmatprep.subr.mxu0 0.0
  %8274 = vmatpush1.xpose.msra.mxu0 0.0
  %8275 = vmatprep.subr.mxu0 0.0
  %8276 = vmatpush1.xpose.msra.mxu0 0.0
  %8277 = vmatprep.mubr.f32.mxu0 0.0
  %8278 = vmatmul.mubr.f32.gmra.mrb[0].mxu0 %v8199
  %v8279 = vpop.f32.mrb[0].mxu0
  %v8280 = vadd.f32 0.0, %v8279
  %v8281 = vpop.f32.mrb[0].mxu0
  %8282 = vdwg.mxu0
  %v8283 = vrot.slane %v7745, 4
  %8285 = vxpose.xlu0.b32.start [1/16] %v8283, 128
  %8286 = vxpose.xlu0.b32.cont [2/16] 0.0, 128
  %8287 = vxpose.xlu0.b32.cont [3/16] 0.0, 128
  %8288 = vxpose.xlu0.b32.cont [4/16] 0.0, 128
  %8289 = vxpose.xlu0.b32.cont [5/16] 0.0, 128
  %8290 = vxpose.xlu0.b32.cont [6/16] 0.0, 128
  %8291 = vxpose.xlu0.b32.cont [7/16] 0.0, 128
  %8292 = vxpose.xlu0.b32.cont [8/16] 0.0, 128
  %8293 = vxpose.xlu0.b32.cont [9/16] 0.0, 128
  %8294 = vxpose.xlu0.b32.cont [10/16] 0.0, 128
  %8295 = vxpose.xlu0.b32.cont [11/16] 0.0, 128
  %8296 = vxpose.xlu0.b32.cont [12/16] 0.0, 128
  %8297 = vxpose.xlu0.b32.cont [13/16] 0.0, 128
  %8298 = vxpose.xlu0.b32.cont [14/16] 0.0, 128
  %8299 = vxpose.xlu0.b32.cont [15/16] 0.0, 128
  %8300 = vxpose.xlu0.b32.end [16/16] 0.0, 128
  %v8301 = vpop.trf.xlu0
  %v8302 = vpop.trf.xlu0
  %v8303 = vpop.trf.xlu0
  %v8304 = vpop.trf.xlu0
  %v8305 = vpop.trf.xlu0
  %v8306 = vpop.trf.xlu0
  %v8307 = vpop.trf.xlu0
  %v8308 = vpop.trf.xlu0
  %v8309 = vpop.trf.xlu0
  %v8310 = vpop.trf.xlu0
  %v8311 = vpop.trf.xlu0
  %v8312 = vpop.trf.xlu0
  %v8313 = vpop.trf.xlu0
  %v8314 = vpop.trf.xlu0
  %v8315 = vpop.trf.xlu0
  %v8316 = vpop.trf.xlu0
  %v8317 = vrot.slane %v7750, 4
  %v8319 = vsel %vm502, %v8301, 0
  %v8322 = vsel %vm502, %v8302, 0
  %v8325 = vsel %vm502, %v8303, 0
  %v8328 = vsel %vm502, %v8304, 0
  %v8330 = vsel %vm515, %v8317, 0
  %8332 = vmatprep.subr.mxu0 0.0
  %8333 = vmatpush1.msra.mxu0 %v8330
  %8334 = vmatprep.subr.mxu0 0.0
  %8335 = vmatpush1.msra.mxu0 0.0
  %8336 = vmatprep.subr.mxu0 0.0
  %8337 = vmatpush1.msra.mxu0 0.0
  %8338 = vmatprep.subr.mxu0 0.0
  %8339 = vmatpush1.msra.mxu0 0.0
  %8340 = vmatprep.subr.mxu0 0.0
  %8341 = vmatpush1.msra.mxu0 0.0
  %8342 = vmatprep.subr.mxu0 0.0
  %8343 = vmatpush1.msra.mxu0 0.0
  %8344 = vmatprep.subr.mxu0 0.0
  %8345 = vmatpush1.msra.mxu0 0.0
  %8346 = vmatprep.subr.mxu0 0.0
  %8347 = vmatpush1.msra.mxu0 0.0
  %8348 = vmatprep.subr.mxu0 0.0
  %8349 = vmatpush1.msra.mxu0 0.0
  %8350 = vmatprep.subr.mxu0 0.0
  %8351 = vmatpush1.msra.mxu0 0.0
  %8352 = vmatprep.subr.mxu0 0.0
  %8353 = vmatpush1.msra.mxu0 0.0
  %8354 = vmatprep.subr.mxu0 0.0
  %8355 = vmatpush1.msra.mxu0 0.0
  %8356 = vmatprep.subr.mxu0 0.0
  %8357 = vmatpush1.msra.mxu0 0.0
  %8358 = vmatprep.subr.mxu0 0.0
  %8359 = vmatpush1.msra.mxu0 0.0
  %8360 = vmatprep.subr.mxu0 0.0
  %8361 = vmatpush1.msra.mxu0 0.0
  %8362 = vmatprep.subr.mxu0 0.0
  %8363 = vmatpush1.msra.mxu0 0.0
  %8364 = vmatprep.subr.mxu0 0.0
  %8365 = vmatpush1.msra.mxu0 0.0
  %8366 = vmatprep.subr.mxu0 0.0
  %8367 = vmatpush1.msra.mxu0 0.0
  %8368 = vmatprep.subr.mxu0 0.0
  %8369 = vmatpush1.msra.mxu0 0.0
  %8370 = vmatprep.subr.mxu0 0.0
  %8371 = vmatpush1.msra.mxu0 0.0
  %8372 = vmatprep.subr.mxu0 0.0
  %8373 = vmatpush1.msra.mxu0 0.0
  %8374 = vmatprep.subr.mxu0 0.0
  %8375 = vmatpush1.msra.mxu0 0.0
  %8376 = vmatprep.subr.mxu0 0.0
  %8377 = vmatpush1.msra.mxu0 0.0
  %8378 = vmatprep.subr.mxu0 0.0
  %8379 = vmatpush1.msra.mxu0 0.0
  %8380 = vmatprep.subr.mxu0 0.0
  %8381 = vmatpush1.msra.mxu0 0.0
  %8382 = vmatprep.subr.mxu0 0.0
  %8383 = vmatpush1.msra.mxu0 0.0
  %8384 = vmatprep.subr.mxu0 0.0
  %8385 = vmatpush1.msra.mxu0 0.0
  %8386 = vmatprep.subr.mxu0 0.0
  %8387 = vmatpush1.msra.mxu0 0.0
  %8388 = vmatprep.subr.mxu0 0.0
  %8389 = vmatpush1.msra.mxu0 0.0
  %8390 = vmatprep.subr.mxu0 0.0
  %8391 = vmatpush1.msra.mxu0 0.0
  %8392 = vmatprep.subr.mxu0 0.0
  %8393 = vmatpush1.msra.mxu0 0.0
  %8394 = vmatprep.subr.mxu0 0.0
  %8395 = vmatpush1.msra.mxu0 0.0
  %8396 = vmatprep.mubr.f32.mxu0 0.0
  %8397 = vmatmul.mubr.f32.gmra.mrb[0].mxu0 %v8319
  %v8398 = vpop.f32.mrb[0].mxu0
  %v8399 = vadd.f32 %v47, %v8398
  %v8400 = vpop.f32.mrb[0].mxu0
  %8401 = vmatprep.mubr.f32.mxu0 0.0
  %8402 = vmatmul.mubr.f32.gmra.mrb[0].mxu0 %v8322
  %v8403 = vpop.f32.mrb[0].mxu0
  %v8404 = vadd.f32 %v48, %v8403
  %v8405 = vpop.f32.mrb[0].mxu0
  %8406 = vmatprep.mubr.f32.mxu0 0.0
  %8407 = vmatmul.mubr.f32.gmra.mrb[0].mxu0 %v8325
  %v8408 = vpop.f32.mrb[0].mxu0
  %v8409 = vadd.f32 %v49, %v8408
  %v8410 = vpop.f32.mrb[0].mxu0
  %8411 = vmatprep.mubr.f32.mxu0 0.0
  %8412 = vmatmul.mubr.f32.gmra.mrb[0].mxu0 %v8328
  %v8413 = vpop.f32.mrb[0].mxu0
  %v8414 = vadd.f32 %v50, %v8413
  %v8415 = vpop.f32.mrb[0].mxu0
  %8416 = vdwg.mxu0
  %v8417 = vsel %vm604, %v8399, -inf
  %8418 = vmax.xlane.f32.xlu0 %v8417
  %v8419 = vpop.xlane.xlu0 %8418
  %v8420 = vsel %vm604, %v8404, -inf
  %8421 = vmax.xlane.f32.xlu0 %v8420
  %v8422 = vpop.xlane.xlu0 %8421
  %v8423 = vsel %vm604, %v8409, -inf
  %8424 = vmax.xlane.f32.xlu0 %v8423
  %v8425 = vpop.xlane.xlu0 %8424
  %v8426 = vsel %vm604, %v8414, -inf
  %8427 = vmax.xlane.f32.xlu0 %v8426
  %v8428 = vpop.xlane.xlu0 %8427
  %v8429 = vsub.f32 %v8399, %v8419
  %v8430 = vsub.f32 %v8404, %v8422
  %v8431 = vsub.f32 %v8409, %v8425
  %v8432 = vsub.f32 %v8414, %v8428
  %v8433 = vmul.f32 %v8429, 1.442695
  %v8434 = vpow.pop %v8433
  %v8435 = vmul.f32 %v8430, 1.442695
  %v8436 = vpow.pop %v8435
  %v8437 = vmul.f32 %v8431, 1.442695
  %v8438 = vpow.pop %v8437
  %v8439 = vmul.f32 %v8432, 1.442695
  %v8440 = vpow.pop %v8439
  %v8441 = vsel %vm604, %v8434, 0.0
  %8442 = vadd.xlane.f32.xlu0 %v8441
  %v8443 = vpop.xlane.xlu0 %8442
  %v8444 = vsel %vm604, %v8436, 0.0
  %8445 = vadd.xlane.f32.xlu0 %v8444
  %v8446 = vpop.xlane.xlu0 %8445
  %v8447 = vsel %vm604, %v8438, 0.0
  %8448 = vadd.xlane.f32.xlu0 %v8447
  %v8449 = vpop.xlane.xlu0 %8448
  %v8450 = vsel %vm604, %v8440, 0.0
  %8451 = vadd.xlane.f32.xlu0 %v8450
  %v8452 = vpop.xlane.xlu0 %8451
  %v8453 = vrcp.pop %v8443
  %v8454 = vrcp.pop %v8446
  %v8455 = vrcp.pop %v8449
  %v8456 = vrcp.pop %v8452
  %v8457 = vmul.f32 %v8434, %v8453
  %v8458 = vmul.f32 %v8436, %v8454
  %v8459 = vmul.f32 %v8438, %v8455
  %v8460 = vmul.f32 %v8440, %v8456
  %v8461 = vrot.slane %v7755, 4
  %v8462 = vsel %vm604, %v8461, 0
  %v8465 = vsel %vm604, %v8457, 0
  %v8468 = vsel %vm604, %v8458, 0
  %v8471 = vsel %vm604, %v8459, 0
  %v8474 = vsel %vm604, %v8460, 0
  %8476 = vmatprep.subr.mxu0 0.0
  %8477 = vmatpush1.xpose.msra.mxu0 %v8465
  %8478 = vmatprep.subr.mxu0 0.0
  %8479 = vmatpush1.xpose.msra.mxu0 %v8468
  %8480 = vmatprep.subr.mxu0 0.0
  %8481 = vmatpush1.xpose.msra.mxu0 %v8471
  %8482 = vmatprep.subr.mxu0 0.0
  %8483 = vmatpush1.xpose.msra.mxu0 %v8474
  %8484 = vmatprep.subr.mxu0 0.0
  %8485 = vmatpush1.xpose.msra.mxu0 0.0
  %8486 = vmatprep.subr.mxu0 0.0
  %8487 = vmatpush1.xpose.msra.mxu0 0.0
  %8488 = vmatprep.subr.mxu0 0.0
  %8489 = vmatpush1.xpose.msra.mxu0 0.0
  %8490 = vmatprep.subr.mxu0 0.0
  %8491 = vmatpush1.xpose.msra.mxu0 0.0
  %8492 = vmatprep.subr.mxu0 0.0
  %8493 = vmatpush1.xpose.msra.mxu0 0.0
  %8494 = vmatprep.subr.mxu0 0.0
  %8495 = vmatpush1.xpose.msra.mxu0 0.0
  %8496 = vmatprep.subr.mxu0 0.0
  %8497 = vmatpush1.xpose.msra.mxu0 0.0
  %8498 = vmatprep.subr.mxu0 0.0
  %8499 = vmatpush1.xpose.msra.mxu0 0.0
  %8500 = vmatprep.subr.mxu0 0.0
  %8501 = vmatpush1.xpose.msra.mxu0 0.0
  %8502 = vmatprep.subr.mxu0 0.0
  %8503 = vmatpush1.xpose.msra.mxu0 0.0
  %8504 = vmatprep.subr.mxu0 0.0
  %8505 = vmatpush1.xpose.msra.mxu0 0.0
  %8506 = vmatprep.subr.mxu0 0.0
  %8507 = vmatpush1.xpose.msra.mxu0 0.0
  %8508 = vmatprep.subr.mxu0 0.0
  %8509 = vmatpush1.xpose.msra.mxu0 0.0
  %8510 = vmatprep.subr.mxu0 0.0
  %8511 = vmatpush1.xpose.msra.mxu0 0.0
  %8512 = vmatprep.subr.mxu0 0.0
  %8513 = vmatpush1.xpose.msra.mxu0 0.0
  %8514 = vmatprep.subr.mxu0 0.0
  %8515 = vmatpush1.xpose.msra.mxu0 0.0
  %8516 = vmatprep.subr.mxu0 0.0
  %8517 = vmatpush1.xpose.msra.mxu0 0.0
  %8518 = vmatprep.subr.mxu0 0.0
  %8519 = vmatpush1.xpose.msra.mxu0 0.0
  %8520 = vmatprep.subr.mxu0 0.0
  %8521 = vmatpush1.xpose.msra.mxu0 0.0
  %8522 = vmatprep.subr.mxu0 0.0
  %8523 = vmatpush1.xpose.msra.mxu0 0.0
  %8524 = vmatprep.subr.mxu0 0.0
  %8525 = vmatpush1.xpose.msra.mxu0 0.0
  %8526 = vmatprep.subr.mxu0 0.0
  %8527 = vmatpush1.xpose.msra.mxu0 0.0
  %8528 = vmatprep.subr.mxu0 0.0
  %8529 = vmatpush1.xpose.msra.mxu0 0.0
  %8530 = vmatprep.subr.mxu0 0.0
  %8531 = vmatpush1.xpose.msra.mxu0 0.0
  %8532 = vmatprep.subr.mxu0 0.0
  %8533 = vmatpush1.xpose.msra.mxu0 0.0
  %8534 = vmatprep.subr.mxu0 0.0
  %8535 = vmatpush1.xpose.msra.mxu0 0.0
  %8536 = vmatprep.subr.mxu0 0.0
  %8537 = vmatpush1.xpose.msra.mxu0 0.0
  %8538 = vmatprep.subr.mxu0 0.0
  %8539 = vmatpush1.xpose.msra.mxu0 0.0
  %8540 = vmatprep.mubr.f32.mxu0 0.0
  %8541 = vmatmul.mubr.f32.gmra.mrb[0].mxu0 %v8462
  %v8542 = vpop.f32.mrb[0].mxu0
  %v8543 = vadd.f32 0.0, %v8542
  %v8544 = vpop.f32.mrb[0].mxu0
  %8545 = vdwg.mxu0
  %v8546 = vrot.slane %v7745, 6
  %8548 = vxpose.xlu0.b32.start [1/16] %v8546, 128
  %8549 = vxpose.xlu0.b32.cont [2/16] 0.0, 128
  %8550 = vxpose.xlu0.b32.cont [3/16] 0.0, 128
  %8551 = vxpose.xlu0.b32.cont [4/16] 0.0, 128
  %8552 = vxpose.xlu0.b32.cont [5/16] 0.0, 128
  %8553 = vxpose.xlu0.b32.cont [6/16] 0.0, 128
  %8554 = vxpose.xlu0.b32.cont [7/16] 0.0, 128
  %8555 = vxpose.xlu0.b32.cont [8/16] 0.0, 128
  %8556 = vxpose.xlu0.b32.cont [9/16] 0.0, 128
  %8557 = vxpose.xlu0.b32.cont [10/16] 0.0, 128
  %8558 = vxpose.xlu0.b32.cont [11/16] 0.0, 128
  %8559 = vxpose.xlu0.b32.cont [12/16] 0.0, 128
  %8560 = vxpose.xlu0.b32.cont [13/16] 0.0, 128
  %8561 = vxpose.xlu0.b32.cont [14/16] 0.0, 128
  %8562 = vxpose.xlu0.b32.cont [15/16] 0.0, 128
  %8563 = vxpose.xlu0.b32.end [16/16] 0.0, 128
  %v8564 = vpop.trf.xlu0
  %v8565 = vpop.trf.xlu0
  %v8566 = vpop.trf.xlu0
  %v8567 = vpop.trf.xlu0
  %v8568 = vpop.trf.xlu0
  %v8569 = vpop.trf.xlu0
  %v8570 = vpop.trf.xlu0
  %v8571 = vpop.trf.xlu0
  %v8572 = vpop.trf.xlu0
  %v8573 = vpop.trf.xlu0
  %v8574 = vpop.trf.xlu0
  %v8575 = vpop.trf.xlu0
  %v8576 = vpop.trf.xlu0
  %v8577 = vpop.trf.xlu0
  %v8578 = vpop.trf.xlu0
  %v8579 = vpop.trf.xlu0
  %v8580 = vrot.slane %v7750, 6
  %v8582 = vsel %vm502, %v8564, 0
  %v8585 = vsel %vm502, %v8565, 0
  %v8588 = vsel %vm502, %v8566, 0
  %v8591 = vsel %vm502, %v8567, 0
  %v8593 = vsel %vm515, %v8580, 0
  %8595 = vmatprep.subr.mxu0 0.0
  %8596 = vmatpush1.msra.mxu0 %v8593
  %8597 = vmatprep.subr.mxu0 0.0
  %8598 = vmatpush1.msra.mxu0 0.0
  %8599 = vmatprep.subr.mxu0 0.0
  %8600 = vmatpush1.msra.mxu0 0.0
  %8601 = vmatprep.subr.mxu0 0.0
  %8602 = vmatpush1.msra.mxu0 0.0
  %8603 = vmatprep.subr.mxu0 0.0
  %8604 = vmatpush1.msra.mxu0 0.0
  %8605 = vmatprep.subr.mxu0 0.0
  %8606 = vmatpush1.msra.mxu0 0.0
  %8607 = vmatprep.subr.mxu0 0.0
  %8608 = vmatpush1.msra.mxu0 0.0
  %8609 = vmatprep.subr.mxu0 0.0
  %8610 = vmatpush1.msra.mxu0 0.0
  %8611 = vmatprep.subr.mxu0 0.0
  %8612 = vmatpush1.msra.mxu0 0.0
  %8613 = vmatprep.subr.mxu0 0.0
  %8614 = vmatpush1.msra.mxu0 0.0
  %8615 = vmatprep.subr.mxu0 0.0
  %8616 = vmatpush1.msra.mxu0 0.0
  %8617 = vmatprep.subr.mxu0 0.0
  %8618 = vmatpush1.msra.mxu0 0.0
  %8619 = vmatprep.subr.mxu0 0.0
  %8620 = vmatpush1.msra.mxu0 0.0
  %8621 = vmatprep.subr.mxu0 0.0
  %8622 = vmatpush1.msra.mxu0 0.0
  %8623 = vmatprep.subr.mxu0 0.0
  %8624 = vmatpush1.msra.mxu0 0.0
  %8625 = vmatprep.subr.mxu0 0.0
  %8626 = vmatpush1.msra.mxu0 0.0
  %8627 = vmatprep.subr.mxu0 0.0
  %8628 = vmatpush1.msra.mxu0 0.0
  %8629 = vmatprep.subr.mxu0 0.0
  %8630 = vmatpush1.msra.mxu0 0.0
  %8631 = vmatprep.subr.mxu0 0.0
  %8632 = vmatpush1.msra.mxu0 0.0
  %8633 = vmatprep.subr.mxu0 0.0
  %8634 = vmatpush1.msra.mxu0 0.0
  %8635 = vmatprep.subr.mxu0 0.0
  %8636 = vmatpush1.msra.mxu0 0.0
  %8637 = vmatprep.subr.mxu0 0.0
  %8638 = vmatpush1.msra.mxu0 0.0
  %8639 = vmatprep.subr.mxu0 0.0
  %8640 = vmatpush1.msra.mxu0 0.0
  %8641 = vmatprep.subr.mxu0 0.0
  %8642 = vmatpush1.msra.mxu0 0.0
  %8643 = vmatprep.subr.mxu0 0.0
  %8644 = vmatpush1.msra.mxu0 0.0
  %8645 = vmatprep.subr.mxu0 0.0
  %8646 = vmatpush1.msra.mxu0 0.0
  %8647 = vmatprep.subr.mxu0 0.0
  %8648 = vmatpush1.msra.mxu0 0.0
  %8649 = vmatprep.subr.mxu0 0.0
  %8650 = vmatpush1.msra.mxu0 0.0
  %8651 = vmatprep.subr.mxu0 0.0
  %8652 = vmatpush1.msra.mxu0 0.0
  %8653 = vmatprep.subr.mxu0 0.0
  %8654 = vmatpush1.msra.mxu0 0.0
  %8655 = vmatprep.subr.mxu0 0.0
  %8656 = vmatpush1.msra.mxu0 0.0
  %8657 = vmatprep.subr.mxu0 0.0
  %8658 = vmatpush1.msra.mxu0 0.0
  %8659 = vmatprep.mubr.f32.mxu0 0.0
  %8660 = vmatmul.mubr.f32.gmra.mrb[0].mxu0 %v8582
  %v8661 = vpop.f32.mrb[0].mxu0
  %v8662 = vadd.f32 %v47, %v8661
  %v8663 = vpop.f32.mrb[0].mxu0
  %8664 = vmatprep.mubr.f32.mxu0 0.0
  %8665 = vmatmul.mubr.f32.gmra.mrb[0].mxu0 %v8585
  %v8666 = vpop.f32.mrb[0].mxu0
  %v8667 = vadd.f32 %v48, %v8666
  %v8668 = vpop.f32.mrb[0].mxu0
  %8669 = vmatprep.mubr.f32.mxu0 0.0
  %8670 = vmatmul.mubr.f32.gmra.mrb[0].mxu0 %v8588
  %v8671 = vpop.f32.mrb[0].mxu0
  %v8672 = vadd.f32 %v49, %v8671
  %v8673 = vpop.f32.mrb[0].mxu0
  %8674 = vmatprep.mubr.f32.mxu0 0.0
  %8675 = vmatmul.mubr.f32.gmra.mrb[0].mxu0 %v8591
  %v8676 = vpop.f32.mrb[0].mxu0
  %v8677 = vadd.f32 %v50, %v8676
  %v8678 = vpop.f32.mrb[0].mxu0
  %8679 = vdwg.mxu0
  %v8680 = vsel %vm604, %v8662, -inf
  %8681 = vmax.xlane.f32.xlu0 %v8680
  %v8682 = vpop.xlane.xlu0 %8681
  %v8683 = vsel %vm604, %v8667, -inf
  %8684 = vmax.xlane.f32.xlu0 %v8683
  %v8685 = vpop.xlane.xlu0 %8684
  %v8686 = vsel %vm604, %v8672, -inf
  %8687 = vmax.xlane.f32.xlu0 %v8686
  %v8688 = vpop.xlane.xlu0 %8687
  %v8689 = vsel %vm604, %v8677, -inf
  %8690 = vmax.xlane.f32.xlu0 %v8689
  %v8691 = vpop.xlane.xlu0 %8690
  %v8692 = vsub.f32 %v8662, %v8682
  %v8693 = vsub.f32 %v8667, %v8685
  %v8694 = vsub.f32 %v8672, %v8688
  %v8695 = vsub.f32 %v8677, %v8691
  %v8696 = vmul.f32 %v8692, 1.442695
  %v8697 = vpow.pop %v8696
  %v8698 = vmul.f32 %v8693, 1.442695
  %v8699 = vpow.pop %v8698
  %v8700 = vmul.f32 %v8694, 1.442695
  %v8701 = vpow.pop %v8700
  %v8702 = vmul.f32 %v8695, 1.442695
  %v8703 = vpow.pop %v8702
  %v8704 = vsel %vm604, %v8697, 0.0
  %8705 = vadd.xlane.f32.xlu0 %v8704
  %v8706 = vpop.xlane.xlu0 %8705
  %v8707 = vsel %vm604, %v8699, 0.0
  %8708 = vadd.xlane.f32.xlu0 %v8707
  %v8709 = vpop.xlane.xlu0 %8708
  %v8710 = vsel %vm604, %v8701, 0.0
  %8711 = vadd.xlane.f32.xlu0 %v8710
  %v8712 = vpop.xlane.xlu0 %8711
  %v8713 = vsel %vm604, %v8703, 0.0
  %8714 = vadd.xlane.f32.xlu0 %v8713
  %v8715 = vpop.xlane.xlu0 %8714
  %v8716 = vrcp.pop %v8706
  %v8717 = vrcp.pop %v8709
  %v8718 = vrcp.pop %v8712
  %v8719 = vrcp.pop %v8715
  %v8720 = vmul.f32 %v8697, %v8716
  %v8721 = vmul.f32 %v8699, %v8717
  %v8722 = vmul.f32 %v8701, %v8718
  %v8723 = vmul.f32 %v8703, %v8719
  %v8724 = vrot.slane %v7755, 6
  %v8725 = vsel %vm604, %v8724, 0
  %v8728 = vsel %vm604, %v8720, 0
  %v8731 = vsel %vm604, %v8721, 0
  %v8734 = vsel %vm604, %v8722, 0
  %v8737 = vsel %vm604, %v8723, 0
  %8739 = vmatprep.subr.mxu0 0.0
  %8740 = vmatpush1.xpose.msra.mxu0 %v8728
  %8741 = vmatprep.subr.mxu0 0.0
  %8742 = vmatpush1.xpose.msra.mxu0 %v8731
  %8743 = vmatprep.subr.mxu0 0.0
  %8744 = vmatpush1.xpose.msra.mxu0 %v8734
  %8745 = vmatprep.subr.mxu0 0.0
  %8746 = vmatpush1.xpose.msra.mxu0 %v8737
  %8747 = vmatprep.subr.mxu0 0.0
  %8748 = vmatpush1.xpose.msra.mxu0 0.0
  %8749 = vmatprep.subr.mxu0 0.0
  %8750 = vmatpush1.xpose.msra.mxu0 0.0
  %8751 = vmatprep.subr.mxu0 0.0
  %8752 = vmatpush1.xpose.msra.mxu0 0.0
  %8753 = vmatprep.subr.mxu0 0.0
  %8754 = vmatpush1.xpose.msra.mxu0 0.0
  %8755 = vmatprep.subr.mxu0 0.0
  %8756 = vmatpush1.xpose.msra.mxu0 0.0
  %8757 = vmatprep.subr.mxu0 0.0
  %8758 = vmatpush1.xpose.msra.mxu0 0.0
  %8759 = vmatprep.subr.mxu0 0.0
  %8760 = vmatpush1.xpose.msra.mxu0 0.0
  %8761 = vmatprep.subr.mxu0 0.0
  %8762 = vmatpush1.xpose.msra.mxu0 0.0
  %8763 = vmatprep.subr.mxu0 0.0
  %8764 = vmatpush1.xpose.msra.mxu0 0.0
  %8765 = vmatprep.subr.mxu0 0.0
  %8766 = vmatpush1.xpose.msra.mxu0 0.0
  %8767 = vmatprep.subr.mxu0 0.0
  %8768 = vmatpush1.xpose.msra.mxu0 0.0
  %8769 = vmatprep.subr.mxu0 0.0
  %8770 = vmatpush1.xpose.msra.mxu0 0.0
  %8771 = vmatprep.subr.mxu0 0.0
  %8772 = vmatpush1.xpose.msra.mxu0 0.0
  %8773 = vmatprep.subr.mxu0 0.0
  %8774 = vmatpush1.xpose.msra.mxu0 0.0
  %8775 = vmatprep.subr.mxu0 0.0
  %8776 = vmatpush1.xpose.msra.mxu0 0.0
  %8777 = vmatprep.subr.mxu0 0.0
  %8778 = vmatpush1.xpose.msra.mxu0 0.0
  %8779 = vmatprep.subr.mxu0 0.0
  %8780 = vmatpush1.xpose.msra.mxu0 0.0
  %8781 = vmatprep.subr.mxu0 0.0
  %8782 = vmatpush1.xpose.msra.mxu0 0.0
  %8783 = vmatprep.subr.mxu0 0.0
  %8784 = vmatpush1.xpose.msra.mxu0 0.0
  %8785 = vmatprep.subr.mxu0 0.0
  %8786 = vmatpush1.xpose.msra.mxu0 0.0
  %8787 = vmatprep.subr.mxu0 0.0
  %8788 = vmatpush1.xpose.msra.mxu0 0.0
  %8789 = vmatprep.subr.mxu0 0.0
  %8790 = vmatpush1.xpose.msra.mxu0 0.0
  %8791 = vmatprep.subr.mxu0 0.0
  %8792 = vmatpush1.xpose.msra.mxu0 0.0
  %8793 = vmatprep.subr.mxu0 0.0
  %8794 = vmatpush1.xpose.msra.mxu0 0.0
  %8795 = vmatprep.subr.mxu0 0.0
  %8796 = vmatpush1.xpose.msra.mxu0 0.0
  %8797 = vmatprep.subr.mxu0 0.0
  %8798 = vmatpush1.xpose.msra.mxu0 0.0
  %8799 = vmatprep.subr.mxu0 0.0
  %8800 = vmatpush1.xpose.msra.mxu0 0.0
  %8801 = vmatprep.subr.mxu0 0.0
  %8802 = vmatpush1.xpose.msra.mxu0 0.0
  %8803 = vmatprep.mubr.f32.mxu0 0.0
  %8804 = vmatmul.mubr.f32.gmra.mrb[0].mxu0 %v8725
  %v8805 = vpop.f32.mrb[0].mxu0
  %v8806 = vadd.f32 0.0, %v8805
  %v8807 = vpop.f32.mrb[0].mxu0
  %8808 = vdwg.mxu0
  %v8810 = vrot.slane %v8280, 6
  %v8813 = vrot.slane %v8543, 4
  %v8816 = vrot.slane %v8806, 2
  %v8818 = vsel %vm515, %v8016, %v8810
  %v8819 = vsel %vm1534, %v8818, %v8813
  %v8820 = vsel %vm1536, %v8819, %v8816
  %8822 = vset.pattern.permute.xlu0 0
  %8823 = vperm.xlu0 %8822, %v7653
  %v8824 = vpop.permute.xlu0 %8823
  %v8827 = vsel %vm66, %v7651, 0
  %8829 = vmatprep.subr.mxu0 0.0
  %8830 = vmatpush1.msra.mxu0 %v8820
  %8831 = vmatprep.subr.mxu0 0.0
  %8832 = vmatpush1.msra.mxu0 0.0
  %8833 = vmatprep.subr.mxu0 0.0
  %8834 = vmatpush1.msra.mxu0 0.0
  %8835 = vmatprep.subr.mxu0 0.0
  %8836 = vmatpush1.msra.mxu0 0.0
  %8837 = vmatprep.subr.mxu0 0.0
  %8838 = vmatpush1.msra.mxu0 0.0
  %8839 = vmatprep.subr.mxu0 0.0
  %8840 = vmatpush1.msra.mxu0 0.0
  %8841 = vmatprep.subr.mxu0 0.0
  %8842 = vmatpush1.msra.mxu0 0.0
  %8843 = vmatprep.subr.mxu0 0.0
  %8844 = vmatpush1.msra.mxu0 0.0
  %8845 = vmatprep.subr.mxu0 0.0
  %8846 = vmatpush1.msra.mxu0 0.0
  %8847 = vmatprep.subr.mxu0 0.0
  %8848 = vmatpush1.msra.mxu0 0.0
  %8849 = vmatprep.subr.mxu0 0.0
  %8850 = vmatpush1.msra.mxu0 0.0
  %8851 = vmatprep.subr.mxu0 0.0
  %8852 = vmatpush1.msra.mxu0 0.0
  %8853 = vmatprep.subr.mxu0 0.0
  %8854 = vmatpush1.msra.mxu0 0.0
  %8855 = vmatprep.subr.mxu0 0.0
  %8856 = vmatpush1.msra.mxu0 0.0
  %8857 = vmatprep.subr.mxu0 0.0
  %8858 = vmatpush1.msra.mxu0 0.0
  %8859 = vmatprep.subr.mxu0 0.0
  %8860 = vmatpush1.msra.mxu0 0.0
  %8861 = vmatprep.subr.mxu0 0.0
  %8862 = vmatpush1.msra.mxu0 0.0
  %8863 = vmatprep.subr.mxu0 0.0
  %8864 = vmatpush1.msra.mxu0 0.0
  %8865 = vmatprep.subr.mxu0 0.0
  %8866 = vmatpush1.msra.mxu0 0.0
  %8867 = vmatprep.subr.mxu0 0.0
  %8868 = vmatpush1.msra.mxu0 0.0
  %8869 = vmatprep.subr.mxu0 0.0
  %8870 = vmatpush1.msra.mxu0 0.0
  %8871 = vmatprep.subr.mxu0 0.0
  %8872 = vmatpush1.msra.mxu0 0.0
  %8873 = vmatprep.subr.mxu0 0.0
  %8874 = vmatpush1.msra.mxu0 0.0
  %8875 = vmatprep.subr.mxu0 0.0
  %8876 = vmatpush1.msra.mxu0 0.0
  %8877 = vmatprep.subr.mxu0 0.0
  %8878 = vmatpush1.msra.mxu0 0.0
  %8879 = vmatprep.subr.mxu0 0.0
  %8880 = vmatpush1.msra.mxu0 0.0
  %8881 = vmatprep.subr.mxu0 0.0
  %8882 = vmatpush1.msra.mxu0 0.0
  %8883 = vmatprep.subr.mxu0 0.0
  %8884 = vmatpush1.msra.mxu0 0.0
  %8885 = vmatprep.subr.mxu0 0.0
  %8886 = vmatpush1.msra.mxu0 0.0
  %8887 = vmatprep.subr.mxu0 0.0
  %8888 = vmatpush1.msra.mxu0 0.0
  %8889 = vmatprep.subr.mxu0 0.0
  %8890 = vmatpush1.msra.mxu0 0.0
  %8891 = vmatprep.subr.mxu0 0.0
  %8892 = vmatpush1.msra.mxu0 0.0
  %8893 = vmatprep.mubr.f32.mxu0 0.0
  %8894 = vmatmul.mubr.f32.gmra.mrb[0].mxu0 %v8827
  %v8895 = vpop.f32.mrb[0].mxu0
  %v8896 = vadd.f32 %v8824, %v8895
  %v8897 = vpop.f32.mrb[0].mxu0
  %8898 = vdwg.mxu0
  %v8900 = vsel %vm604, %v8896, 0
  %8902 = vmatprep.subr.mxu0 0.0
  %8903 = vmatpush1.msra.mxu0 %v51
  %8904 = vmatprep.subr.mxu0 0.0
  %8905 = vmatpush1.msra.mxu0 %v52
  %8906 = vmatprep.subr.mxu0 0.0
  %8907 = vmatpush1.msra.mxu0 %v53
  %8908 = vmatprep.subr.mxu0 0.0
  %8909 = vmatpush1.msra.mxu0 %v54
  %8910 = vmatprep.subr.mxu0 0.0
  %8911 = vmatpush1.msra.mxu0 0.0
  %8912 = vmatprep.subr.mxu0 0.0
  %8913 = vmatpush1.msra.mxu0 0.0
  %8914 = vmatprep.subr.mxu0 0.0
  %8915 = vmatpush1.msra.mxu0 0.0
  %8916 = vmatprep.subr.mxu0 0.0
  %8917 = vmatpush1.msra.mxu0 0.0
  %8918 = vmatprep.subr.mxu0 0.0
  %8919 = vmatpush1.msra.mxu0 0.0
  %8920 = vmatprep.subr.mxu0 0.0
  %8921 = vmatpush1.msra.mxu0 0.0
  %8922 = vmatprep.subr.mxu0 0.0
  %8923 = vmatpush1.msra.mxu0 0.0
  %8924 = vmatprep.subr.mxu0 0.0
  %8925 = vmatpush1.msra.mxu0 0.0
  %8926 = vmatprep.subr.mxu0 0.0
  %8927 = vmatpush1.msra.mxu0 0.0
  %8928 = vmatprep.subr.mxu0 0.0
  %8929 = vmatpush1.msra.mxu0 0.0
  %8930 = vmatprep.subr.mxu0 0.0
  %8931 = vmatpush1.msra.mxu0 0.0
  %8932 = vmatprep.subr.mxu0 0.0
  %8933 = vmatpush1.msra.mxu0 0.0
  %8934 = vmatprep.subr.mxu0 0.0
  %8935 = vmatpush1.msra.mxu0 0.0
  %8936 = vmatprep.subr.mxu0 0.0
  %8937 = vmatpush1.msra.mxu0 0.0
  %8938 = vmatprep.subr.mxu0 0.0
  %8939 = vmatpush1.msra.mxu0 0.0
  %8940 = vmatprep.subr.mxu0 0.0
  %8941 = vmatpush1.msra.mxu0 0.0
  %8942 = vmatprep.subr.mxu0 0.0
  %8943 = vmatpush1.msra.mxu0 0.0
  %8944 = vmatprep.subr.mxu0 0.0
  %8945 = vmatpush1.msra.mxu0 0.0
  %8946 = vmatprep.subr.mxu0 0.0
  %8947 = vmatpush1.msra.mxu0 0.0
  %8948 = vmatprep.subr.mxu0 0.0
  %8949 = vmatpush1.msra.mxu0 0.0
  %8950 = vmatprep.subr.mxu0 0.0
  %8951 = vmatpush1.msra.mxu0 0.0
  %8952 = vmatprep.subr.mxu0 0.0
  %8953 = vmatpush1.msra.mxu0 0.0
  %8954 = vmatprep.subr.mxu0 0.0
  %8955 = vmatpush1.msra.mxu0 0.0
  %8956 = vmatprep.subr.mxu0 0.0
  %8957 = vmatpush1.msra.mxu0 0.0
  %8958 = vmatprep.subr.mxu0 0.0
  %8959 = vmatpush1.msra.mxu0 0.0
  %8960 = vmatprep.subr.mxu0 0.0
  %8961 = vmatpush1.msra.mxu0 0.0
  %8962 = vmatprep.subr.mxu0 0.0
  %8963 = vmatpush1.msra.mxu0 0.0
  %8964 = vmatprep.subr.mxu0 0.0
  %8965 = vmatpush1.msra.mxu0 0.0
  %8966 = vmatprep.mubr.f32.mxu0 0.0
  %8967 = vmatmul.mubr.f32.gmra.mrb[0].mxu0 %v8900
  %v8968 = vpop.f32.mrb[0].mxu0
  %v8969 = vadd.f32 0.0, %v8968
  %v8970 = vpop.f32.mrb[0].mxu0
  %8971 = vdwg.mxu0
  %v8972 = vadd.f32 %v7639, %v8969
  %v8973 = vadd.f32 %v7634, %v8972
  %s8974 = scalar_lea.vmem %s5, 80
  %v8975 = vld [vmem:[%s8974] sm:$0xff]
  %v8976 = vld [vmem:[%s8974 + $0x8] sm:$0xff]
  %s8977 = scalar_lea.vmem %s6, 80
  %v8978 = vld [vmem:[%s8977] sm:$0xff]
  %v8979 = vld [vmem:[%s8977 + $0x8] sm:$0xff]
  %8981 = vset.pattern.permute.xlu0 0
  %8982 = vperm.xlu0 %8981, %v8978
  %v8983 = vpop.permute.xlu0 %8982
  %8986 = vset.pattern.permute.xlu0 0
  %8987 = vperm.xlu0 %8986, %v8979
  %v8988 = vpop.permute.xlu0 %8987
  %v8991 = vsel %vm1844, %v8975, 0
  %v8994 = vsel %vm1844, %v8976, 0
  %8996 = vmatprep.subr.mxu0 0.0
  %8997 = vmatpush1.msra.mxu0 %v8973
  %8998 = vmatprep.subr.mxu0 0.0
  %8999 = vmatpush1.msra.mxu0 %v8972
  %9000 = vmatprep.subr.mxu0 0.0
  %9001 = vmatpush1.msra.mxu0 0.0
  %9002 = vmatprep.subr.mxu0 0.0
  %9003 = vmatpush1.msra.mxu0 0.0
  %9004 = vmatprep.subr.mxu0 0.0
  %9005 = vmatpush1.msra.mxu0 0.0
  %9006 = vmatprep.subr.mxu0 0.0
  %9007 = vmatpush1.msra.mxu0 0.0
  %9008 = vmatprep.subr.mxu0 0.0
  %9009 = vmatpush1.msra.mxu0 0.0
  %9010 = vmatprep.subr.mxu0 0.0
  %9011 = vmatpush1.msra.mxu0 0.0
  %9012 = vmatprep.subr.mxu0 0.0
  %9013 = vmatpush1.msra.mxu0 0.0
  %9014 = vmatprep.subr.mxu0 0.0
  %9015 = vmatpush1.msra.mxu0 0.0
  %9016 = vmatprep.subr.mxu0 0.0
  %9017 = vmatpush1.msra.mxu0 0.0
  %9018 = vmatprep.subr.mxu0 0.0
  %9019 = vmatpush1.msra.mxu0 0.0
  %9020 = vmatprep.subr.mxu0 0.0
  %9021 = vmatpush1.msra.mxu0 0.0
  %9022 = vmatprep.subr.mxu0 0.0
  %9023 = vmatpush1.msra.mxu0 0.0
  %9024 = vmatprep.subr.mxu0 0.0
  %9025 = vmatpush1.msra.mxu0 0.0
  %9026 = vmatprep.subr.mxu0 0.0
  %9027 = vmatpush1.msra.mxu0 0.0
  %9028 = vmatprep.subr.mxu0 0.0
  %9029 = vmatpush1.msra.mxu0 0.0
  %9030 = vmatprep.subr.mxu0 0.0
  %9031 = vmatpush1.msra.mxu0 0.0
  %9032 = vmatprep.subr.mxu0 0.0
  %9033 = vmatpush1.msra.mxu0 0.0
  %9034 = vmatprep.subr.mxu0 0.0
  %9035 = vmatpush1.msra.mxu0 0.0
  %9036 = vmatprep.subr.mxu0 0.0
  %9037 = vmatpush1.msra.mxu0 0.0
  %9038 = vmatprep.subr.mxu0 0.0
  %9039 = vmatpush1.msra.mxu0 0.0
  %9040 = vmatprep.subr.mxu0 0.0
  %9041 = vmatpush1.msra.mxu0 0.0
  %9042 = vmatprep.subr.mxu0 0.0
  %9043 = vmatpush1.msra.mxu0 0.0
  %9044 = vmatprep.subr.mxu0 0.0
  %9045 = vmatpush1.msra.mxu0 0.0
  %9046 = vmatprep.subr.mxu0 0.0
  %9047 = vmatpush1.msra.mxu0 0.0
  %9048 = vmatprep.subr.mxu0 0.0
  %9049 = vmatpush1.msra.mxu0 0.0
  %9050 = vmatprep.subr.mxu0 0.0
  %9051 = vmatpush1.msra.mxu0 0.0
  %9052 = vmatprep.subr.mxu0 0.0
  %9053 = vmatpush1.msra.mxu0 0.0
  %9054 = vmatprep.subr.mxu0 0.0
  %9055 = vmatpush1.msra.mxu0 0.0
  %9056 = vmatprep.subr.mxu0 0.0
  %9057 = vmatpush1.msra.mxu0 0.0
  %9058 = vmatprep.subr.mxu0 0.0
  %9059 = vmatpush1.msra.mxu0 0.0
  %9060 = vmatprep.mubr.f32.mxu0 0.0
  %9061 = vmatmul.mubr.f32.gmra.mrb[0].mxu0 %v8991
  %v9062 = vpop.f32.mrb[0].mxu0
  %v9063 = vadd.f32 %v8983, %v9062
  %v9064 = vpop.f32.mrb[0].mxu0
  %9065 = vmatprep.mubr.f32.mxu0 0.0
  %9066 = vmatmul.mubr.f32.gmra.mrb[0].mxu0 %v8994
  %v9067 = vpop.f32.mrb[0].mxu0
  %v9068 = vadd.f32 %v8988, %v9067
  %v9069 = vpop.f32.mrb[0].mxu0
  %9070 = vdwg.mxu0
  %s9071 = scalar_lea.vmem %s7, 144
  %v9072 = vld [vmem:[%s9071] sm:$0xff]
  %v9073 = vld [vmem:[%s9071 + $0x8] sm:$0xff]
  %v9074 = vld [vmem:[%s9071 + $0x10] sm:$0xff]
  %s9075 = scalar_lea.vmem %s8, 144
  %v9076 = vld [vmem:[%s9075] sm:$0xff]
  %v9077 = vld [vmem:[%s9075 + $0x8] sm:$0xff]
  %v9078 = vld [vmem:[%s9075 + $0x10] sm:$0xff]
  %s9079 = scalar_lea.vmem %s9, 48
  %v9080 = vld [vmem:[%s9079] sm:$0xff]
  %s9081 = scalar_lea.vmem %s10, 48
  %v9082 = vld [vmem:[%s9081] sm:$0xff]
  %9084 = vset.pattern.permute.xlu0 0
  %9085 = vperm.xlu0 %9084, %v9076
  %v9086 = vpop.permute.xlu0 %9085
  %9089 = vset.pattern.permute.xlu0 0
  %9090 = vperm.xlu0 %9089, %v9077
  %v9091 = vpop.permute.xlu0 %9090
  %9094 = vset.pattern.permute.xlu0 0
  %9095 = vperm.xlu0 %9094, %v9078
  %v9096 = vpop.permute.xlu0 %9095
  %v9099 = vsel %vm66, %v9072, 0
  %v9102 = vsel %vm66, %v9073, 0
  %v9105 = vsel %vm66, %v9074, 0
  %9107 = vmatprep.subr.mxu0 0.0
  %9108 = vmatpush1.msra.mxu0 %v8896
  %9109 = vmatprep.subr.mxu0 0.0
  %9110 = vmatpush1.msra.mxu0 0.0
  %9111 = vmatprep.subr.mxu0 0.0
  %9112 = vmatpush1.msra.mxu0 0.0
  %9113 = vmatprep.subr.mxu0 0.0
  %9114 = vmatpush1.msra.mxu0 0.0
  %9115 = vmatprep.subr.mxu0 0.0
  %9116 = vmatpush1.msra.mxu0 0.0
  %9117 = vmatprep.subr.mxu0 0.0
  %9118 = vmatpush1.msra.mxu0 0.0
  %9119 = vmatprep.subr.mxu0 0.0
  %9120 = vmatpush1.msra.mxu0 0.0
  %9121 = vmatprep.subr.mxu0 0.0
  %9122 = vmatpush1.msra.mxu0 0.0
  %9123 = vmatprep.subr.mxu0 0.0
  %9124 = vmatpush1.msra.mxu0 0.0
  %9125 = vmatprep.subr.mxu0 0.0
  %9126 = vmatpush1.msra.mxu0 0.0
  %9127 = vmatprep.subr.mxu0 0.0
  %9128 = vmatpush1.msra.mxu0 0.0
  %9129 = vmatprep.subr.mxu0 0.0
  %9130 = vmatpush1.msra.mxu0 0.0
  %9131 = vmatprep.subr.mxu0 0.0
  %9132 = vmatpush1.msra.mxu0 0.0
  %9133 = vmatprep.subr.mxu0 0.0
  %9134 = vmatpush1.msra.mxu0 0.0
  %9135 = vmatprep.subr.mxu0 0.0
  %9136 = vmatpush1.msra.mxu0 0.0
  %9137 = vmatprep.subr.mxu0 0.0
  %9138 = vmatpush1.msra.mxu0 0.0
  %9139 = vmatprep.subr.mxu0 0.0
  %9140 = vmatpush1.msra.mxu0 0.0
  %9141 = vmatprep.subr.mxu0 0.0
  %9142 = vmatpush1.msra.mxu0 0.0
  %9143 = vmatprep.subr.mxu0 0.0
  %9144 = vmatpush1.msra.mxu0 0.0
  %9145 = vmatprep.subr.mxu0 0.0
  %9146 = vmatpush1.msra.mxu0 0.0
  %9147 = vmatprep.subr.mxu0 0.0
  %9148 = vmatpush1.msra.mxu0 0.0
  %9149 = vmatprep.subr.mxu0 0.0
  %9150 = vmatpush1.msra.mxu0 0.0
  %9151 = vmatprep.subr.mxu0 0.0
  %9152 = vmatpush1.msra.mxu0 0.0
  %9153 = vmatprep.subr.mxu0 0.0
  %9154 = vmatpush1.msra.mxu0 0.0
  %9155 = vmatprep.subr.mxu0 0.0
  %9156 = vmatpush1.msra.mxu0 0.0
  %9157 = vmatprep.subr.mxu0 0.0
  %9158 = vmatpush1.msra.mxu0 0.0
  %9159 = vmatprep.subr.mxu0 0.0
  %9160 = vmatpush1.msra.mxu0 0.0
  %9161 = vmatprep.subr.mxu0 0.0
  %9162 = vmatpush1.msra.mxu0 0.0
  %9163 = vmatprep.subr.mxu0 0.0
  %9164 = vmatpush1.msra.mxu0 0.0
  %9165 = vmatprep.subr.mxu0 0.0
  %9166 = vmatpush1.msra.mxu0 0.0
  %9167 = vmatprep.subr.mxu0 0.0
  %9168 = vmatpush1.msra.mxu0 0.0
  %9169 = vmatprep.subr.mxu0 0.0
  %9170 = vmatpush1.msra.mxu0 0.0
  %9171 = vmatprep.mubr.f32.mxu0 0.0
  %9172 = vmatmul.mubr.f32.gmra.mrb[0].mxu0 %v9099
  %v9173 = vpop.f32.mrb[0].mxu0
  %v9174 = vadd.f32 %v9086, %v9173
  %v9175 = vpop.f32.mrb[0].mxu0
  %9176 = vmatprep.mubr.f32.mxu0 0.0
  %9177 = vmatmul.mubr.f32.gmra.mrb[0].mxu0 %v9102
  %v9178 = vpop.f32.mrb[0].mxu0
  %v9179 = vadd.f32 %v9091, %v9178
  %v9180 = vpop.f32.mrb[0].mxu0
  %9181 = vmatprep.mubr.f32.mxu0 0.0
  %9182 = vmatmul.mubr.f32.gmra.mrb[0].mxu0 %v9105
  %v9183 = vpop.f32.mrb[0].mxu0
  %v9184 = vadd.f32 %v9096, %v9183
  %v9185 = vpop.f32.mrb[0].mxu0
  %9186 = vdwg.mxu0
  %9187 = vxpose.xlu0.b32.start [1/16] %v9174, 128
  %9188 = vxpose.xlu0.b32.cont [2/16] 0.0, 128
  %9189 = vxpose.xlu0.b32.cont [3/16] 0.0, 128
  %9190 = vxpose.xlu0.b32.cont [4/16] 0.0, 128
  %9191 = vxpose.xlu0.b32.cont [5/16] 0.0, 128
  %9192 = vxpose.xlu0.b32.cont [6/16] 0.0, 128
  %9193 = vxpose.xlu0.b32.cont [7/16] 0.0, 128
  %9194 = vxpose.xlu0.b32.cont [8/16] 0.0, 128
  %9195 = vxpose.xlu0.b32.cont [9/16] 0.0, 128
  %9196 = vxpose.xlu0.b32.cont [10/16] 0.0, 128
  %9197 = vxpose.xlu0.b32.cont [11/16] 0.0, 128
  %9198 = vxpose.xlu0.b32.cont [12/16] 0.0, 128
  %9199 = vxpose.xlu0.b32.cont [13/16] 0.0, 128
  %9200 = vxpose.xlu0.b32.cont [14/16] 0.0, 128
  %9201 = vxpose.xlu0.b32.cont [15/16] 0.0, 128
  %9202 = vxpose.xlu0.b32.end [16/16] 0.0, 128
  %v9203 = vpop.trf.xlu0
  %v9204 = vpop.trf.xlu0
  %v9205 = vpop.trf.xlu0
  %v9206 = vpop.trf.xlu0
  %v9207 = vpop.trf.xlu0
  %v9208 = vpop.trf.xlu0
  %v9209 = vpop.trf.xlu0
  %v9210 = vpop.trf.xlu0
  %v9211 = vpop.trf.xlu0
  %v9212 = vpop.trf.xlu0
  %v9213 = vpop.trf.xlu0
  %v9214 = vpop.trf.xlu0
  %v9215 = vpop.trf.xlu0
  %v9216 = vpop.trf.xlu0
  %v9217 = vpop.trf.xlu0
  %v9218 = vpop.trf.xlu0
  %v9220 = vsel %vm502, %v9203, 0
  %v9223 = vsel %vm502, %v9204, 0
  %v9226 = vsel %vm502, %v9205, 0
  %v9229 = vsel %vm502, %v9206, 0
  %v9232 = vsel %vm515, %v9179, 0
  %9234 = vmatprep.subr.mxu0 0.0
  %9235 = vmatpush1.msra.mxu0 %v9232
  %9236 = vmatprep.subr.mxu0 0.0
  %9237 = vmatpush1.msra.mxu0 0.0
  %9238 = vmatprep.subr.mxu0 0.0
  %9239 = vmatpush1.msra.mxu0 0.0
  %9240 = vmatprep.subr.mxu0 0.0
  %9241 = vmatpush1.msra.mxu0 0.0
  %9242 = vmatprep.subr.mxu0 0.0
  %9243 = vmatpush1.msra.mxu0 0.0
  %9244 = vmatprep.subr.mxu0 0.0
  %9245 = vmatpush1.msra.mxu0 0.0
  %9246 = vmatprep.subr.mxu0 0.0
  %9247 = vmatpush1.msra.mxu0 0.0
  %9248 = vmatprep.subr.mxu0 0.0
  %9249 = vmatpush1.msra.mxu0 0.0
  %9250 = vmatprep.subr.mxu0 0.0
  %9251 = vmatpush1.msra.mxu0 0.0
  %9252 = vmatprep.subr.mxu0 0.0
  %9253 = vmatpush1.msra.mxu0 0.0
  %9254 = vmatprep.subr.mxu0 0.0
  %9255 = vmatpush1.msra.mxu0 0.0
  %9256 = vmatprep.subr.mxu0 0.0
  %9257 = vmatpush1.msra.mxu0 0.0
  %9258 = vmatprep.subr.mxu0 0.0
  %9259 = vmatpush1.msra.mxu0 0.0
  %9260 = vmatprep.subr.mxu0 0.0
  %9261 = vmatpush1.msra.mxu0 0.0
  %9262 = vmatprep.subr.mxu0 0.0
  %9263 = vmatpush1.msra.mxu0 0.0
  %9264 = vmatprep.subr.mxu0 0.0
  %9265 = vmatpush1.msra.mxu0 0.0
  %9266 = vmatprep.subr.mxu0 0.0
  %9267 = vmatpush1.msra.mxu0 0.0
  %9268 = vmatprep.subr.mxu0 0.0
  %9269 = vmatpush1.msra.mxu0 0.0
  %9270 = vmatprep.subr.mxu0 0.0
  %9271 = vmatpush1.msra.mxu0 0.0
  %9272 = vmatprep.subr.mxu0 0.0
  %9273 = vmatpush1.msra.mxu0 0.0
  %9274 = vmatprep.subr.mxu0 0.0
  %9275 = vmatpush1.msra.mxu0 0.0
  %9276 = vmatprep.subr.mxu0 0.0
  %9277 = vmatpush1.msra.mxu0 0.0
  %9278 = vmatprep.subr.mxu0 0.0
  %9279 = vmatpush1.msra.mxu0 0.0
  %9280 = vmatprep.subr.mxu0 0.0
  %9281 = vmatpush1.msra.mxu0 0.0
  %9282 = vmatprep.subr.mxu0 0.0
  %9283 = vmatpush1.msra.mxu0 0.0
  %9284 = vmatprep.subr.mxu0 0.0
  %9285 = vmatpush1.msra.mxu0 0.0
  %9286 = vmatprep.subr.mxu0 0.0
  %9287 = vmatpush1.msra.mxu0 0.0
  %9288 = vmatprep.subr.mxu0 0.0
  %9289 = vmatpush1.msra.mxu0 0.0
  %9290 = vmatprep.subr.mxu0 0.0
  %9291 = vmatpush1.msra.mxu0 0.0
  %9292 = vmatprep.subr.mxu0 0.0
  %9293 = vmatpush1.msra.mxu0 0.0
  %9294 = vmatprep.subr.mxu0 0.0
  %9295 = vmatpush1.msra.mxu0 0.0
  %9296 = vmatprep.subr.mxu0 0.0
  %9297 = vmatpush1.msra.mxu0 0.0
  %9298 = vmatprep.mubr.f32.mxu0 0.0
  %9299 = vmatmul.mubr.f32.gmra.mrb[0].mxu0 %v9220
  %v9300 = vpop.f32.mrb[0].mxu0
  %v9301 = vadd.f32 %v47, %v9300
  %v9302 = vpop.f32.mrb[0].mxu0
  %9303 = vmatprep.mubr.f32.mxu0 0.0
  %9304 = vmatmul.mubr.f32.gmra.mrb[0].mxu0 %v9223
  %v9305 = vpop.f32.mrb[0].mxu0
  %v9306 = vadd.f32 %v48, %v9305
  %v9307 = vpop.f32.mrb[0].mxu0
  %9308 = vmatprep.mubr.f32.mxu0 0.0
  %9309 = vmatmul.mubr.f32.gmra.mrb[0].mxu0 %v9226
  %v9310 = vpop.f32.mrb[0].mxu0
  %v9311 = vadd.f32 %v49, %v9310
  %v9312 = vpop.f32.mrb[0].mxu0
  %9313 = vmatprep.mubr.f32.mxu0 0.0
  %9314 = vmatmul.mubr.f32.gmra.mrb[0].mxu0 %v9229
  %v9315 = vpop.f32.mrb[0].mxu0
  %v9316 = vadd.f32 %v50, %v9315
  %v9317 = vpop.f32.mrb[0].mxu0
  %9318 = vdwg.mxu0
  %v9319 = vsel %vm604, %v9301, -inf
  %9320 = vmax.xlane.f32.xlu0 %v9319
  %v9321 = vpop.xlane.xlu0 %9320
  %v9322 = vsel %vm604, %v9306, -inf
  %9323 = vmax.xlane.f32.xlu0 %v9322
  %v9324 = vpop.xlane.xlu0 %9323
  %v9325 = vsel %vm604, %v9311, -inf
  %9326 = vmax.xlane.f32.xlu0 %v9325
  %v9327 = vpop.xlane.xlu0 %9326
  %v9328 = vsel %vm604, %v9316, -inf
  %9329 = vmax.xlane.f32.xlu0 %v9328
  %v9330 = vpop.xlane.xlu0 %9329
  %v9331 = vsub.f32 %v9301, %v9321
  %v9332 = vsub.f32 %v9306, %v9324
  %v9333 = vsub.f32 %v9311, %v9327
  %v9334 = vsub.f32 %v9316, %v9330
  %v9335 = vmul.f32 %v9331, 1.442695
  %v9336 = vpow.pop %v9335
  %v9337 = vmul.f32 %v9332, 1.442695
  %v9338 = vpow.pop %v9337
  %v9339 = vmul.f32 %v9333, 1.442695
  %v9340 = vpow.pop %v9339
  %v9341 = vmul.f32 %v9334, 1.442695
  %v9342 = vpow.pop %v9341
  %v9343 = vsel %vm604, %v9336, 0.0
  %9344 = vadd.xlane.f32.xlu0 %v9343
  %v9345 = vpop.xlane.xlu0 %9344
  %v9346 = vsel %vm604, %v9338, 0.0
  %9347 = vadd.xlane.f32.xlu0 %v9346
  %v9348 = vpop.xlane.xlu0 %9347
  %v9349 = vsel %vm604, %v9340, 0.0
  %9350 = vadd.xlane.f32.xlu0 %v9349
  %v9351 = vpop.xlane.xlu0 %9350
  %v9352 = vsel %vm604, %v9342, 0.0
  %9353 = vadd.xlane.f32.xlu0 %v9352
  %v9354 = vpop.xlane.xlu0 %9353
  %v9355 = vrcp.pop %v9345
  %v9356 = vrcp.pop %v9348
  %v9357 = vrcp.pop %v9351
  %v9358 = vrcp.pop %v9354
  %v9359 = vmul.f32 %v9336, %v9355
  %v9360 = vmul.f32 %v9338, %v9356
  %v9361 = vmul.f32 %v9340, %v9357
  %v9362 = vmul.f32 %v9342, %v9358
  %v9364 = vsel %vm604, %v9184, 0
  %v9367 = vsel %vm604, %v9359, 0
  %v9370 = vsel %vm604, %v9360, 0
  %v9373 = vsel %vm604, %v9361, 0
  %v9376 = vsel %vm604, %v9362, 0
  %9378 = vmatprep.subr.mxu0 0.0
  %9379 = vmatpush1.xpose.msra.mxu0 %v9367
  %9380 = vmatprep.subr.mxu0 0.0
  %9381 = vmatpush1.xpose.msra.mxu0 %v9370
  %9382 = vmatprep.subr.mxu0 0.0
  %9383 = vmatpush1.xpose.msra.mxu0 %v9373
  %9384 = vmatprep.subr.mxu0 0.0
  %9385 = vmatpush1.xpose.msra.mxu0 %v9376
  %9386 = vmatprep.subr.mxu0 0.0
  %9387 = vmatpush1.xpose.msra.mxu0 0.0
  %9388 = vmatprep.subr.mxu0 0.0
  %9389 = vmatpush1.xpose.msra.mxu0 0.0
  %9390 = vmatprep.subr.mxu0 0.0
  %9391 = vmatpush1.xpose.msra.mxu0 0.0
  %9392 = vmatprep.subr.mxu0 0.0
  %9393 = vmatpush1.xpose.msra.mxu0 0.0
  %9394 = vmatprep.subr.mxu0 0.0
  %9395 = vmatpush1.xpose.msra.mxu0 0.0
  %9396 = vmatprep.subr.mxu0 0.0
  %9397 = vmatpush1.xpose.msra.mxu0 0.0
  %9398 = vmatprep.subr.mxu0 0.0
  %9399 = vmatpush1.xpose.msra.mxu0 0.0
  %9400 = vmatprep.subr.mxu0 0.0
  %9401 = vmatpush1.xpose.msra.mxu0 0.0
  %9402 = vmatprep.subr.mxu0 0.0
  %9403 = vmatpush1.xpose.msra.mxu0 0.0
  %9404 = vmatprep.subr.mxu0 0.0
  %9405 = vmatpush1.xpose.msra.mxu0 0.0
  %9406 = vmatprep.subr.mxu0 0.0
  %9407 = vmatpush1.xpose.msra.mxu0 0.0
  %9408 = vmatprep.subr.mxu0 0.0
  %9409 = vmatpush1.xpose.msra.mxu0 0.0
  %9410 = vmatprep.subr.mxu0 0.0
  %9411 = vmatpush1.xpose.msra.mxu0 0.0
  %9412 = vmatprep.subr.mxu0 0.0
  %9413 = vmatpush1.xpose.msra.mxu0 0.0
  %9414 = vmatprep.subr.mxu0 0.0
  %9415 = vmatpush1.xpose.msra.mxu0 0.0
  %9416 = vmatprep.subr.mxu0 0.0
  %9417 = vmatpush1.xpose.msra.mxu0 0.0
  %9418 = vmatprep.subr.mxu0 0.0
  %9419 = vmatpush1.xpose.msra.mxu0 0.0
  %9420 = vmatprep.subr.mxu0 0.0
  %9421 = vmatpush1.xpose.msra.mxu0 0.0
  %9422 = vmatprep.subr.mxu0 0.0
  %9423 = vmatpush1.xpose.msra.mxu0 0.0
  %9424 = vmatprep.subr.mxu0 0.0
  %9425 = vmatpush1.xpose.msra.mxu0 0.0
  %9426 = vmatprep.subr.mxu0 0.0
  %9427 = vmatpush1.xpose.msra.mxu0 0.0
  %9428 = vmatprep.subr.mxu0 0.0
  %9429 = vmatpush1.xpose.msra.mxu0 0.0
  %9430 = vmatprep.subr.mxu0 0.0
  %9431 = vmatpush1.xpose.msra.mxu0 0.0
  %9432 = vmatprep.subr.mxu0 0.0
  %9433 = vmatpush1.xpose.msra.mxu0 0.0
  %9434 = vmatprep.subr.mxu0 0.0
  %9435 = vmatpush1.xpose.msra.mxu0 0.0
  %9436 = vmatprep.subr.mxu0 0.0
  %9437 = vmatpush1.xpose.msra.mxu0 0.0
  %9438 = vmatprep.subr.mxu0 0.0
  %9439 = vmatpush1.xpose.msra.mxu0 0.0
  %9440 = vmatprep.subr.mxu0 0.0
  %9441 = vmatpush1.xpose.msra.mxu0 0.0
  %9442 = vmatprep.mubr.f32.mxu0 0.0
  %9443 = vmatmul.mubr.f32.gmra.mrb[0].mxu0 %v9364
  %v9444 = vpop.f32.mrb[0].mxu0
  %v9445 = vadd.f32 0.0, %v9444
  %v9446 = vpop.f32.mrb[0].mxu0
  %9447 = vdwg.mxu0
  %v9449 = vrot.slane %v9174, 2
  %9451 = vxpose.xlu0.b32.start [1/16] %v9449, 128
  %9452 = vxpose.xlu0.b32.cont [2/16] 0.0, 128
  %9453 = vxpose.xlu0.b32.cont [3/16] 0.0, 128
  %9454 = vxpose.xlu0.b32.cont [4/16] 0.0, 128
  %9455 = vxpose.xlu0.b32.cont [5/16] 0.0, 128
  %9456 = vxpose.xlu0.b32.cont [6/16] 0.0, 128
  %9457 = vxpose.xlu0.b32.cont [7/16] 0.0, 128
  %9458 = vxpose.xlu0.b32.cont [8/16] 0.0, 128
  %9459 = vxpose.xlu0.b32.cont [9/16] 0.0, 128
  %9460 = vxpose.xlu0.b32.cont [10/16] 0.0, 128
  %9461 = vxpose.xlu0.b32.cont [11/16] 0.0, 128
  %9462 = vxpose.xlu0.b32.cont [12/16] 0.0, 128
  %9463 = vxpose.xlu0.b32.cont [13/16] 0.0, 128
  %9464 = vxpose.xlu0.b32.cont [14/16] 0.0, 128
  %9465 = vxpose.xlu0.b32.cont [15/16] 0.0, 128
  %9466 = vxpose.xlu0.b32.end [16/16] 0.0, 128
  %v9467 = vpop.trf.xlu0
  %v9468 = vpop.trf.xlu0
  %v9469 = vpop.trf.xlu0
  %v9470 = vpop.trf.xlu0
  %v9471 = vpop.trf.xlu0
  %v9472 = vpop.trf.xlu0
  %v9473 = vpop.trf.xlu0
  %v9474 = vpop.trf.xlu0
  %v9475 = vpop.trf.xlu0
  %v9476 = vpop.trf.xlu0
  %v9477 = vpop.trf.xlu0
  %v9478 = vpop.trf.xlu0
  %v9479 = vpop.trf.xlu0
  %v9480 = vpop.trf.xlu0
  %v9481 = vpop.trf.xlu0
  %v9482 = vpop.trf.xlu0
  %v9483 = vrot.slane %v9179, 2
  %v9485 = vsel %vm502, %v9467, 0
  %v9488 = vsel %vm502, %v9468, 0
  %v9491 = vsel %vm502, %v9469, 0
  %v9494 = vsel %vm502, %v9470, 0
  %v9496 = vsel %vm515, %v9483, 0
  %9498 = vmatprep.subr.mxu0 0.0
  %9499 = vmatpush1.msra.mxu0 %v9496
  %9500 = vmatprep.subr.mxu0 0.0
  %9501 = vmatpush1.msra.mxu0 0.0
  %9502 = vmatprep.subr.mxu0 0.0
  %9503 = vmatpush1.msra.mxu0 0.0
  %9504 = vmatprep.subr.mxu0 0.0
  %9505 = vmatpush1.msra.mxu0 0.0
  %9506 = vmatprep.subr.mxu0 0.0
  %9507 = vmatpush1.msra.mxu0 0.0
  %9508 = vmatprep.subr.mxu0 0.0
  %9509 = vmatpush1.msra.mxu0 0.0
  %9510 = vmatprep.subr.mxu0 0.0
  %9511 = vmatpush1.msra.mxu0 0.0
  %9512 = vmatprep.subr.mxu0 0.0
  %9513 = vmatpush1.msra.mxu0 0.0
  %9514 = vmatprep.subr.mxu0 0.0
  %9515 = vmatpush1.msra.mxu0 0.0
  %9516 = vmatprep.subr.mxu0 0.0
  %9517 = vmatpush1.msra.mxu0 0.0
  %9518 = vmatprep.subr.mxu0 0.0
  %9519 = vmatpush1.msra.mxu0 0.0
  %9520 = vmatprep.subr.mxu0 0.0
  %9521 = vmatpush1.msra.mxu0 0.0
  %9522 = vmatprep.subr.mxu0 0.0
  %9523 = vmatpush1.msra.mxu0 0.0
  %9524 = vmatprep.subr.mxu0 0.0
  %9525 = vmatpush1.msra.mxu0 0.0
  %9526 = vmatprep.subr.mxu0 0.0
  %9527 = vmatpush1.msra.mxu0 0.0
  %9528 = vmatprep.subr.mxu0 0.0
  %9529 = vmatpush1.msra.mxu0 0.0
  %9530 = vmatprep.subr.mxu0 0.0
  %9531 = vmatpush1.msra.mxu0 0.0
  %9532 = vmatprep.subr.mxu0 0.0
  %9533 = vmatpush1.msra.mxu0 0.0
  %9534 = vmatprep.subr.mxu0 0.0
  %9535 = vmatpush1.msra.mxu0 0.0
  %9536 = vmatprep.subr.mxu0 0.0
  %9537 = vmatpush1.msra.mxu0 0.0
  %9538 = vmatprep.subr.mxu0 0.0
  %9539 = vmatpush1.msra.mxu0 0.0
  %9540 = vmatprep.subr.mxu0 0.0
  %9541 = vmatpush1.msra.mxu0 0.0
  %9542 = vmatprep.subr.mxu0 0.0
  %9543 = vmatpush1.msra.mxu0 0.0
  %9544 = vmatprep.subr.mxu0 0.0
  %9545 = vmatpush1.msra.mxu0 0.0
  %9546 = vmatprep.subr.mxu0 0.0
  %9547 = vmatpush1.msra.mxu0 0.0
  %9548 = vmatprep.subr.mxu0 0.0
  %9549 = vmatpush1.msra.mxu0 0.0
  %9550 = vmatprep.subr.mxu0 0.0
  %9551 = vmatpush1.msra.mxu0 0.0
  %9552 = vmatprep.subr.mxu0 0.0
  %9553 = vmatpush1.msra.mxu0 0.0
  %9554 = vmatprep.subr.mxu0 0.0
  %9555 = vmatpush1.msra.mxu0 0.0
  %9556 = vmatprep.subr.mxu0 0.0
  %9557 = vmatpush1.msra.mxu0 0.0
  %9558 = vmatprep.subr.mxu0 0.0
  %9559 = vmatpush1.msra.mxu0 0.0
  %9560 = vmatprep.subr.mxu0 0.0
  %9561 = vmatpush1.msra.mxu0 0.0
  %9562 = vmatprep.mubr.f32.mxu0 0.0
  %9563 = vmatmul.mubr.f32.gmra.mrb[0].mxu0 %v9485
  %v9564 = vpop.f32.mrb[0].mxu0
  %v9565 = vadd.f32 %v47, %v9564
  %v9566 = vpop.f32.mrb[0].mxu0
  %9567 = vmatprep.mubr.f32.mxu0 0.0
  %9568 = vmatmul.mubr.f32.gmra.mrb[0].mxu0 %v9488
  %v9569 = vpop.f32.mrb[0].mxu0
  %v9570 = vadd.f32 %v48, %v9569
  %v9571 = vpop.f32.mrb[0].mxu0
  %9572 = vmatprep.mubr.f32.mxu0 0.0
  %9573 = vmatmul.mubr.f32.gmra.mrb[0].mxu0 %v9491
  %v9574 = vpop.f32.mrb[0].mxu0
  %v9575 = vadd.f32 %v49, %v9574
  %v9576 = vpop.f32.mrb[0].mxu0
  %9577 = vmatprep.mubr.f32.mxu0 0.0
  %9578 = vmatmul.mubr.f32.gmra.mrb[0].mxu0 %v9494
  %v9579 = vpop.f32.mrb[0].mxu0
  %v9580 = vadd.f32 %v50, %v9579
  %v9581 = vpop.f32.mrb[0].mxu0
  %9582 = vdwg.mxu0
  %v9583 = vsel %vm604, %v9565, -inf
  %9584 = vmax.xlane.f32.xlu0 %v9583
  %v9585 = vpop.xlane.xlu0 %9584
  %v9586 = vsel %vm604, %v9570, -inf
  %9587 = vmax.xlane.f32.xlu0 %v9586
  %v9588 = vpop.xlane.xlu0 %9587
  %v9589 = vsel %vm604, %v9575, -inf
  %9590 = vmax.xlane.f32.xlu0 %v9589
  %v9591 = vpop.xlane.xlu0 %9590
  %v9592 = vsel %vm604, %v9580, -inf
  %9593 = vmax.xlane.f32.xlu0 %v9592
  %v9594 = vpop.xlane.xlu0 %9593
  %v9595 = vsub.f32 %v9565, %v9585
  %v9596 = vsub.f32 %v9570, %v9588
  %v9597 = vsub.f32 %v9575, %v9591
  %v9598 = vsub.f32 %v9580, %v9594
  %v9599 = vmul.f32 %v9595, 1.442695
  %v9600 = vpow.pop %v9599
  %v9601 = vmul.f32 %v9596, 1.442695
  %v9602 = vpow.pop %v9601
  %v9603 = vmul.f32 %v9597, 1.442695
  %v9604 = vpow.pop %v9603
  %v9605 = vmul.f32 %v9598, 1.442695
  %v9606 = vpow.pop %v9605
  %v9607 = vsel %vm604, %v9600, 0.0
  %9608 = vadd.xlane.f32.xlu0 %v9607
  %v9609 = vpop.xlane.xlu0 %9608
  %v9610 = vsel %vm604, %v9602, 0.0
  %9611 = vadd.xlane.f32.xlu0 %v9610
  %v9612 = vpop.xlane.xlu0 %9611
  %v9613 = vsel %vm604, %v9604, 0.0
  %9614 = vadd.xlane.f32.xlu0 %v9613
  %v9615 = vpop.xlane.xlu0 %9614
  %v9616 = vsel %vm604, %v9606, 0.0
  %9617 = vadd.xlane.f32.xlu0 %v9616
  %v9618 = vpop.xlane.xlu0 %9617
  %v9619 = vrcp.pop %v9609
  %v9620 = vrcp.pop %v9612
  %v9621 = vrcp.pop %v9615
  %v9622 = vrcp.pop %v9618
  %v9623 = vmul.f32 %v9600, %v9619
  %v9624 = vmul.f32 %v9602, %v9620
  %v9625 = vmul.f32 %v9604, %v9621
  %v9626 = vmul.f32 %v9606, %v9622
  %v9627 = vrot.slane %v9184, 2
  %v9628 = vsel %vm604, %v9627, 0
  %v9631 = vsel %vm604, %v9623, 0
  %v9634 = vsel %vm604, %v9624, 0
  %v9637 = vsel %vm604, %v9625, 0
  %v9640 = vsel %vm604, %v9626, 0
  %9642 = vmatprep.subr.mxu0 0.0
  %9643 = vmatpush1.xpose.msra.mxu0 %v9631
  %9644 = vmatprep.subr.mxu0 0.0
  %9645 = vmatpush1.xpose.msra.mxu0 %v9634
  %9646 = vmatprep.subr.mxu0 0.0
  %9647 = vmatpush1.xpose.msra.mxu0 %v9637
  %9648 = vmatprep.subr.mxu0 0.0
  %9649 = vmatpush1.xpose.msra.mxu0 %v9640
  %9650 = vmatprep.subr.mxu0 0.0
  %9651 = vmatpush1.xpose.msra.mxu0 0.0
  %9652 = vmatprep.subr.mxu0 0.0
  %9653 = vmatpush1.xpose.msra.mxu0 0.0
  %9654 = vmatprep.subr.mxu0 0.0
  %9655 = vmatpush1.xpose.msra.mxu0 0.0
  %9656 = vmatprep.subr.mxu0 0.0
  %9657 = vmatpush1.xpose.msra.mxu0 0.0
  %9658 = vmatprep.subr.mxu0 0.0
  %9659 = vmatpush1.xpose.msra.mxu0 0.0
  %9660 = vmatprep.subr.mxu0 0.0
  %9661 = vmatpush1.xpose.msra.mxu0 0.0
  %9662 = vmatprep.subr.mxu0 0.0
  %9663 = vmatpush1.xpose.msra.mxu0 0.0
  %9664 = vmatprep.subr.mxu0 0.0
  %9665 = vmatpush1.xpose.msra.mxu0 0.0
  %9666 = vmatprep.subr.mxu0 0.0
  %9667 = vmatpush1.xpose.msra.mxu0 0.0
  %9668 = vmatprep.subr.mxu0 0.0
  %9669 = vmatpush1.xpose.msra.mxu0 0.0
  %9670 = vmatprep.subr.mxu0 0.0
  %9671 = vmatpush1.xpose.msra.mxu0 0.0
  %9672 = vmatprep.subr.mxu0 0.0
  %9673 = vmatpush1.xpose.msra.mxu0 0.0
  %9674 = vmatprep.subr.mxu0 0.0
  %9675 = vmatpush1.xpose.msra.mxu0 0.0
  %9676 = vmatprep.subr.mxu0 0.0
  %9677 = vmatpush1.xpose.msra.mxu0 0.0
  %9678 = vmatprep.subr.mxu0 0.0
  %9679 = vmatpush1.xpose.msra.mxu0 0.0
  %9680 = vmatprep.subr.mxu0 0.0
  %9681 = vmatpush1.xpose.msra.mxu0 0.0
  %9682 = vmatprep.subr.mxu0 0.0
  %9683 = vmatpush1.xpose.msra.mxu0 0.0
  %9684 = vmatprep.subr.mxu0 0.0
  %9685 = vmatpush1.xpose.msra.mxu0 0.0
  %9686 = vmatprep.subr.mxu0 0.0
  %9687 = vmatpush1.xpose.msra.mxu0 0.0
  %9688 = vmatprep.subr.mxu0 0.0
  %9689 = vmatpush1.xpose.msra.mxu0 0.0
  %9690 = vmatprep.subr.mxu0 0.0
  %9691 = vmatpush1.xpose.msra.mxu0 0.0
  %9692 = vmatprep.subr.mxu0 0.0
  %9693 = vmatpush1.xpose.msra.mxu0 0.0
  %9694 = vmatprep.subr.mxu0 0.0
  %9695 = vmatpush1.xpose.msra.mxu0 0.0
  %9696 = vmatprep.subr.mxu0 0.0
  %9697 = vmatpush1.xpose.msra.mxu0 0.0
  %9698 = vmatprep.subr.mxu0 0.0
  %9699 = vmatpush1.xpose.msra.mxu0 0.0
  %9700 = vmatprep.subr.mxu0 0.0
  %9701 = vmatpush1.xpose.msra.mxu0 0.0
  %9702 = vmatprep.subr.mxu0 0.0
  %9703 = vmatpush1.xpose.msra.mxu0 0.0
  %9704 = vmatprep.subr.mxu0 0.0
  %9705 = vmatpush1.xpose.msra.mxu0 0.0
  %9706 = vmatprep.mubr.f32.mxu0 0.0
  %9707 = vmatmul.mubr.f32.gmra.mrb[0].mxu0 %v9628
  %v9708 = vpop.f32.mrb[0].mxu0
  %v9709 = vadd.f32 0.0, %v9708
  %v9710 = vpop.f32.mrb[0].mxu0
  %9711 = vdwg.mxu0
  %v9712 = vrot.slane %v9174, 4
  %9714 = vxpose.xlu0.b32.start [1/16] %v9712, 128
  %9715 = vxpose.xlu0.b32.cont [2/16] 0.0, 128
  %9716 = vxpose.xlu0.b32.cont [3/16] 0.0, 128
  %9717 = vxpose.xlu0.b32.cont [4/16] 0.0, 128
  %9718 = vxpose.xlu0.b32.cont [5/16] 0.0, 128
  %9719 = vxpose.xlu0.b32.cont [6/16] 0.0, 128
  %9720 = vxpose.xlu0.b32.cont [7/16] 0.0, 128
  %9721 = vxpose.xlu0.b32.cont [8/16] 0.0, 128
  %9722 = vxpose.xlu0.b32.cont [9/16] 0.0, 128
  %9723 = vxpose.xlu0.b32.cont [10/16] 0.0, 128
  %9724 = vxpose.xlu0.b32.cont [11/16] 0.0, 128
  %9725 = vxpose.xlu0.b32.cont [12/16] 0.0, 128
  %9726 = vxpose.xlu0.b32.cont [13/16] 0.0, 128
  %9727 = vxpose.xlu0.b32.cont [14/16] 0.0, 128
  %9728 = vxpose.xlu0.b32.cont [15/16] 0.0, 128
  %9729 = vxpose.xlu0.b32.end [16/16] 0.0, 128
  %v9730 = vpop.trf.xlu0
  %v9731 = vpop.trf.xlu0
  %v9732 = vpop.trf.xlu0
  %v9733 = vpop.trf.xlu0
  %v9734 = vpop.trf.xlu0
  %v9735 = vpop.trf.xlu0
  %v9736 = vpop.trf.xlu0
  %v9737 = vpop.trf.xlu0
  %v9738 = vpop.trf.xlu0
  %v9739 = vpop.trf.xlu0
  %v9740 = vpop.trf.xlu0
  %v9741 = vpop.trf.xlu0
  %v9742 = vpop.trf.xlu0
  %v9743 = vpop.trf.xlu0
  %v9744 = vpop.trf.xlu0
  %v9745 = vpop.trf.xlu0
  %v9746 = vrot.slane %v9179, 4
  %v9748 = vsel %vm502, %v9730, 0
  %v9751 = vsel %vm502, %v9731, 0
  %v9754 = vsel %vm502, %v9732, 0
  %v9757 = vsel %vm502, %v9733, 0
  %v9759 = vsel %vm515, %v9746, 0
  %9761 = vmatprep.subr.mxu0 0.0
  %9762 = vmatpush1.msra.mxu0 %v9759
  %9763 = vmatprep.subr.mxu0 0.0
  %9764 = vmatpush1.msra.mxu0 0.0
  %9765 = vmatprep.subr.mxu0 0.0
  %9766 = vmatpush1.msra.mxu0 0.0
  %9767 = vmatprep.subr.mxu0 0.0
  %9768 = vmatpush1.msra.mxu0 0.0
  %9769 = vmatprep.subr.mxu0 0.0
  %9770 = vmatpush1.msra.mxu0 0.0
  %9771 = vmatprep.subr.mxu0 0.0
  %9772 = vmatpush1.msra.mxu0 0.0
  %9773 = vmatprep.subr.mxu0 0.0
  %9774 = vmatpush1.msra.mxu0 0.0
  %9775 = vmatprep.subr.mxu0 0.0
  %9776 = vmatpush1.msra.mxu0 0.0
  %9777 = vmatprep.subr.mxu0 0.0
  %9778 = vmatpush1.msra.mxu0 0.0
  %9779 = vmatprep.subr.mxu0 0.0
  %9780 = vmatpush1.msra.mxu0 0.0
  %9781 = vmatprep.subr.mxu0 0.0
  %9782 = vmatpush1.msra.mxu0 0.0
  %9783 = vmatprep.subr.mxu0 0.0
  %9784 = vmatpush1.msra.mxu0 0.0
  %9785 = vmatprep.subr.mxu0 0.0
  %9786 = vmatpush1.msra.mxu0 0.0
  %9787 = vmatprep.subr.mxu0 0.0
  %9788 = vmatpush1.msra.mxu0 0.0
  %9789 = vmatprep.subr.mxu0 0.0
  %9790 = vmatpush1.msra.mxu0 0.0
  %9791 = vmatprep.subr.mxu0 0.0
  %9792 = vmatpush1.msra.mxu0 0.0
  %9793 = vmatprep.subr.mxu0 0.0
  %9794 = vmatpush1.msra.mxu0 0.0
  %9795 = vmatprep.subr.mxu0 0.0
  %9796 = vmatpush1.msra.mxu0 0.0
  %9797 = vmatprep.subr.mxu0 0.0
  %9798 = vmatpush1.msra.mxu0 0.0
  %9799 = vmatprep.subr.mxu0 0.0
  %9800 = vmatpush1.msra.mxu0 0.0
  %9801 = vmatprep.subr.mxu0 0.0
  %9802 = vmatpush1.msra.mxu0 0.0
  %9803 = vmatprep.subr.mxu0 0.0
  %9804 = vmatpush1.msra.mxu0 0.0
  %9805 = vmatprep.subr.mxu0 0.0
  %9806 = vmatpush1.msra.mxu0 0.0
  %9807 = vmatprep.subr.mxu0 0.0
  %9808 = vmatpush1.msra.mxu0 0.0
  %9809 = vmatprep.subr.mxu0 0.0
  %9810 = vmatpush1.msra.mxu0 0.0
  %9811 = vmatprep.subr.mxu0 0.0
  %9812 = vmatpush1.msra.mxu0 0.0
  %9813 = vmatprep.subr.mxu0 0.0
  %9814 = vmatpush1.msra.mxu0 0.0
  %9815 = vmatprep.subr.mxu0 0.0
  %9816 = vmatpush1.msra.mxu0 0.0
  %9817 = vmatprep.subr.mxu0 0.0
  %9818 = vmatpush1.msra.mxu0 0.0
  %9819 = vmatprep.subr.mxu0 0.0
  %9820 = vmatpush1.msra.mxu0 0.0
  %9821 = vmatprep.subr.mxu0 0.0
  %9822 = vmatpush1.msra.mxu0 0.0
  %9823 = vmatprep.subr.mxu0 0.0
  %9824 = vmatpush1.msra.mxu0 0.0
  %9825 = vmatprep.mubr.f32.mxu0 0.0
  %9826 = vmatmul.mubr.f32.gmra.mrb[0].mxu0 %v9748
  %v9827 = vpop.f32.mrb[0].mxu0
  %v9828 = vadd.f32 %v47, %v9827
  %v9829 = vpop.f32.mrb[0].mxu0
  %9830 = vmatprep.mubr.f32.mxu0 0.0
  %9831 = vmatmul.mubr.f32.gmra.mrb[0].mxu0 %v9751
  %v9832 = vpop.f32.mrb[0].mxu0
  %v9833 = vadd.f32 %v48, %v9832
  %v9834 = vpop.f32.mrb[0].mxu0
  %9835 = vmatprep.mubr.f32.mxu0 0.0
  %9836 = vmatmul.mubr.f32.gmra.mrb[0].mxu0 %v9754
  %v9837 = vpop.f32.mrb[0].mxu0
  %v9838 = vadd.f32 %v49, %v9837
  %v9839 = vpop.f32.mrb[0].mxu0
  %9840 = vmatprep.mubr.f32.mxu0 0.0
  %9841 = vmatmul.mubr.f32.gmra.mrb[0].mxu0 %v9757
  %v9842 = vpop.f32.mrb[0].mxu0
  %v9843 = vadd.f32 %v50, %v9842
  %v9844 = vpop.f32.mrb[0].mxu0
  %9845 = vdwg.mxu0
  %v9846 = vsel %vm604, %v9828, -inf
  %9847 = vmax.xlane.f32.xlu0 %v9846
  %v9848 = vpop.xlane.xlu0 %9847
  %v9849 = vsel %vm604, %v9833, -inf
  %9850 = vmax.xlane.f32.xlu0 %v9849
  %v9851 = vpop.xlane.xlu0 %9850
  %v9852 = vsel %vm604, %v9838, -inf
  %9853 = vmax.xlane.f32.xlu0 %v9852
  %v9854 = vpop.xlane.xlu0 %9853
  %v9855 = vsel %vm604, %v9843, -inf
  %9856 = vmax.xlane.f32.xlu0 %v9855
  %v9857 = vpop.xlane.xlu0 %9856
  %v9858 = vsub.f32 %v9828, %v9848
  %v9859 = vsub.f32 %v9833, %v9851
  %v9860 = vsub.f32 %v9838, %v9854
  %v9861 = vsub.f32 %v9843, %v9857
  %v9862 = vmul.f32 %v9858, 1.442695
  %v9863 = vpow.pop %v9862
  %v9864 = vmul.f32 %v9859, 1.442695
  %v9865 = vpow.pop %v9864
  %v9866 = vmul.f32 %v9860, 1.442695
  %v9867 = vpow.pop %v9866
  %v9868 = vmul.f32 %v9861, 1.442695
  %v9869 = vpow.pop %v9868
  %v9870 = vsel %vm604, %v9863, 0.0
  %9871 = vadd.xlane.f32.xlu0 %v9870
  %v9872 = vpop.xlane.xlu0 %9871
  %v9873 = vsel %vm604, %v9865, 0.0
  %9874 = vadd.xlane.f32.xlu0 %v9873
  %v9875 = vpop.xlane.xlu0 %9874
  %v9876 = vsel %vm604, %v9867, 0.0
  %9877 = vadd.xlane.f32.xlu0 %v9876
  %v9878 = vpop.xlane.xlu0 %9877
  %v9879 = vsel %vm604, %v9869, 0.0
  %9880 = vadd.xlane.f32.xlu0 %v9879
  %v9881 = vpop.xlane.xlu0 %9880
  %v9882 = vrcp.pop %v9872
  %v9883 = vrcp.pop %v9875
  %v9884 = vrcp.pop %v9878
  %v9885 = vrcp.pop %v9881
  %v9886 = vmul.f32 %v9863, %v9882
  %v9887 = vmul.f32 %v9865, %v9883
  %v9888 = vmul.f32 %v9867, %v9884
  %v9889 = vmul.f32 %v9869, %v9885
  %v9890 = vrot.slane %v9184, 4
  %v9891 = vsel %vm604, %v9890, 0
  %v9894 = vsel %vm604, %v9886, 0
  %v9897 = vsel %vm604, %v9887, 0
  %v9900 = vsel %vm604, %v9888, 0
  %v9903 = vsel %vm604, %v9889, 0
  %9905 = vmatprep.subr.mxu0 0.0
  %9906 = vmatpush1.xpose.msra.mxu0 %v9894
  %9907 = vmatprep.subr.mxu0 0.0
  %9908 = vmatpush1.xpose.msra.mxu0 %v9897
  %9909 = vmatprep.subr.mxu0 0.0
  %9910 = vmatpush1.xpose.msra.mxu0 %v9900
  %9911 = vmatprep.subr.mxu0 0.0
  %9912 = vmatpush1.xpose.msra.mxu0 %v9903
  %9913 = vmatprep.subr.mxu0 0.0
  %9914 = vmatpush1.xpose.msra.mxu0 0.0
  %9915 = vmatprep.subr.mxu0 0.0
  %9916 = vmatpush1.xpose.msra.mxu0 0.0
  %9917 = vmatprep.subr.mxu0 0.0
  %9918 = vmatpush1.xpose.msra.mxu0 0.0
  %9919 = vmatprep.subr.mxu0 0.0
  %9920 = vmatpush1.xpose.msra.mxu0 0.0
  %9921 = vmatprep.subr.mxu0 0.0
  %9922 = vmatpush1.xpose.msra.mxu0 0.0
  %9923 = vmatprep.subr.mxu0 0.0
  %9924 = vmatpush1.xpose.msra.mxu0 0.0
  %9925 = vmatprep.subr.mxu0 0.0
  %9926 = vmatpush1.xpose.msra.mxu0 0.0
  %9927 = vmatprep.subr.mxu0 0.0
  %9928 = vmatpush1.xpose.msra.mxu0 0.0
  %9929 = vmatprep.subr.mxu0 0.0
  %9930 = vmatpush1.xpose.msra.mxu0 0.0
  %9931 = vmatprep.subr.mxu0 0.0
  %9932 = vmatpush1.xpose.msra.mxu0 0.0
  %9933 = vmatprep.subr.mxu0 0.0
  %9934 = vmatpush1.xpose.msra.mxu0 0.0
  %9935 = vmatprep.subr.mxu0 0.0
  %9936 = vmatpush1.xpose.msra.mxu0 0.0
  %9937 = vmatprep.subr.mxu0 0.0
  %9938 = vmatpush1.xpose.msra.mxu0 0.0
  %9939 = vmatprep.subr.mxu0 0.0
  %9940 = vmatpush1.xpose.msra.mxu0 0.0
  %9941 = vmatprep.subr.mxu0 0.0
  %9942 = vmatpush1.xpose.msra.mxu0 0.0
  %9943 = vmatprep.subr.mxu0 0.0
  %9944 = vmatpush1.xpose.msra.mxu0 0.0
  %9945 = vmatprep.subr.mxu0 0.0
  %9946 = vmatpush1.xpose.msra.mxu0 0.0
  %9947 = vmatprep.subr.mxu0 0.0
  %9948 = vmatpush1.xpose.msra.mxu0 0.0
  %9949 = vmatprep.subr.mxu0 0.0
  %9950 = vmatpush1.xpose.msra.mxu0 0.0
  %9951 = vmatprep.subr.mxu0 0.0
  %9952 = vmatpush1.xpose.msra.mxu0 0.0
  %9953 = vmatprep.subr.mxu0 0.0
  %9954 = vmatpush1.xpose.msra.mxu0 0.0
  %9955 = vmatprep.subr.mxu0 0.0
  %9956 = vmatpush1.xpose.msra.mxu0 0.0
  %9957 = vmatprep.subr.mxu0 0.0
  %9958 = vmatpush1.xpose.msra.mxu0 0.0
  %9959 = vmatprep.subr.mxu0 0.0
  %9960 = vmatpush1.xpose.msra.mxu0 0.0
  %9961 = vmatprep.subr.mxu0 0.0
  %9962 = vmatpush1.xpose.msra.mxu0 0.0
  %9963 = vmatprep.subr.mxu0 0.0
  %9964 = vmatpush1.xpose.msra.mxu0 0.0
  %9965 = vmatprep.subr.mxu0 0.0
  %9966 = vmatpush1.xpose.msra.mxu0 0.0
  %9967 = vmatprep.subr.mxu0 0.0
  %9968 = vmatpush1.xpose.msra.mxu0 0.0
  %9969 = vmatprep.mubr.f32.mxu0 0.0
  %9970 = vmatmul.mubr.f32.gmra.mrb[0].mxu0 %v9891
  %v9971 = vpop.f32.mrb[0].mxu0
  %v9972 = vadd.f32 0.0, %v9971
  %v9973 = vpop.f32.mrb[0].mxu0
  %9974 = vdwg.mxu0
  %v9975 = vrot.slane %v9174, 6
  %9977 = vxpose.xlu0.b32.start [1/16] %v9975, 128
  %9978 = vxpose.xlu0.b32.cont [2/16] 0.0, 128
  %9979 = vxpose.xlu0.b32.cont [3/16] 0.0, 128
  %9980 = vxpose.xlu0.b32.cont [4/16] 0.0, 128
  %9981 = vxpose.xlu0.b32.cont [5/16] 0.0, 128
  %9982 = vxpose.xlu0.b32.cont [6/16] 0.0, 128
  %9983 = vxpose.xlu0.b32.cont [7/16] 0.0, 128
  %9984 = vxpose.xlu0.b32.cont [8/16] 0.0, 128
  %9985 = vxpose.xlu0.b32.cont [9/16] 0.0, 128
  %9986 = vxpose.xlu0.b32.cont [10/16] 0.0, 128
  %9987 = vxpose.xlu0.b32.cont [11/16] 0.0, 128
  %9988 = vxpose.xlu0.b32.cont [12/16] 0.0, 128
  %9989 = vxpose.xlu0.b32.cont [13/16] 0.0, 128
  %9990 = vxpose.xlu0.b32.cont [14/16] 0.0, 128
  %9991 = vxpose.xlu0.b32.cont [15/16] 0.0, 128
  %9992 = vxpose.xlu0.b32.end [16/16] 0.0, 128
  %v9993 = vpop.trf.xlu0
  %v9994 = vpop.trf.xlu0
  %v9995 = vpop.trf.xlu0
  %v9996 = vpop.trf.xlu0
  %v9997 = vpop.trf.xlu0
  %v9998 = vpop.trf.xlu0
  %v9999 = vpop.trf.xlu0
  %v10000 = vpop.trf.xlu0
  %v10001 = vpop.trf.xlu0
  %v10002 = vpop.trf.xlu0
  %v10003 = vpop.trf.xlu0
  %v10004 = vpop.trf.xlu0
  %v10005 = vpop.trf.xlu0
  %v10006 = vpop.trf.xlu0
  %v10007 = vpop.trf.xlu0
  %v10008 = vpop.trf.xlu0
  %v10009 = vrot.slane %v9179, 6
  %v10011 = vsel %vm502, %v9993, 0
  %v10014 = vsel %vm502, %v9994, 0
  %v10017 = vsel %vm502, %v9995, 0
  %v10020 = vsel %vm502, %v9996, 0
  %v10022 = vsel %vm515, %v10009, 0
  %10024 = vmatprep.subr.mxu0 0.0
  %10025 = vmatpush1.msra.mxu0 %v10022
  %10026 = vmatprep.subr.mxu0 0.0
  %10027 = vmatpush1.msra.mxu0 0.0
  %10028 = vmatprep.subr.mxu0 0.0
  %10029 = vmatpush1.msra.mxu0 0.0
  %10030 = vmatprep.subr.mxu0 0.0
  %10031 = vmatpush1.msra.mxu0 0.0
  %10032 = vmatprep.subr.mxu0 0.0
  %10033 = vmatpush1.msra.mxu0 0.0
  %10034 = vmatprep.subr.mxu0 0.0
  %10035 = vmatpush1.msra.mxu0 0.0
  %10036 = vmatprep.subr.mxu0 0.0
  %10037 = vmatpush1.msra.mxu0 0.0
  %10038 = vmatprep.subr.mxu0 0.0
  %10039 = vmatpush1.msra.mxu0 0.0
  %10040 = vmatprep.subr.mxu0 0.0
  %10041 = vmatpush1.msra.mxu0 0.0
  %10042 = vmatprep.subr.mxu0 0.0
  %10043 = vmatpush1.msra.mxu0 0.0
  %10044 = vmatprep.subr.mxu0 0.0
  %10045 = vmatpush1.msra.mxu0 0.0
  %10046 = vmatprep.subr.mxu0 0.0
  %10047 = vmatpush1.msra.mxu0 0.0
  %10048 = vmatprep.subr.mxu0 0.0
  %10049 = vmatpush1.msra.mxu0 0.0
  %10050 = vmatprep.subr.mxu0 0.0
  %10051 = vmatpush1.msra.mxu0 0.0
  %10052 = vmatprep.subr.mxu0 0.0
  %10053 = vmatpush1.msra.mxu0 0.0
  %10054 = vmatprep.subr.mxu0 0.0
  %10055 = vmatpush1.msra.mxu0 0.0
  %10056 = vmatprep.subr.mxu0 0.0
  %10057 = vmatpush1.msra.mxu0 0.0
  %10058 = vmatprep.subr.mxu0 0.0
  %10059 = vmatpush1.msra.mxu0 0.0
  %10060 = vmatprep.subr.mxu0 0.0
  %10061 = vmatpush1.msra.mxu0 0.0
  %10062 = vmatprep.subr.mxu0 0.0
  %10063 = vmatpush1.msra.mxu0 0.0
  %10064 = vmatprep.subr.mxu0 0.0
  %10065 = vmatpush1.msra.mxu0 0.0
  %10066 = vmatprep.subr.mxu0 0.0
  %10067 = vmatpush1.msra.mxu0 0.0
  %10068 = vmatprep.subr.mxu0 0.0
  %10069 = vmatpush1.msra.mxu0 0.0
  %10070 = vmatprep.subr.mxu0 0.0
  %10071 = vmatpush1.msra.mxu0 0.0
  %10072 = vmatprep.subr.mxu0 0.0
  %10073 = vmatpush1.msra.mxu0 0.0
  %10074 = vmatprep.subr.mxu0 0.0
  %10075 = vmatpush1.msra.mxu0 0.0
  %10076 = vmatprep.subr.mxu0 0.0
  %10077 = vmatpush1.msra.mxu0 0.0
  %10078 = vmatprep.subr.mxu0 0.0
  %10079 = vmatpush1.msra.mxu0 0.0
  %10080 = vmatprep.subr.mxu0 0.0
  %10081 = vmatpush1.msra.mxu0 0.0
  %10082 = vmatprep.subr.mxu0 0.0
  %10083 = vmatpush1.msra.mxu0 0.0
  %10084 = vmatprep.subr.mxu0 0.0
  %10085 = vmatpush1.msra.mxu0 0.0
  %10086 = vmatprep.subr.mxu0 0.0
  %10087 = vmatpush1.msra.mxu0 0.0
  %10088 = vmatprep.mubr.f32.mxu0 0.0
  %10089 = vmatmul.mubr.f32.gmra.mrb[0].mxu0 %v10011
  %v10090 = vpop.f32.mrb[0].mxu0
  %v10091 = vadd.f32 %v47, %v10090
  %v10092 = vpop.f32.mrb[0].mxu0
  %10093 = vmatprep.mubr.f32.mxu0 0.0
  %10094 = vmatmul.mubr.f32.gmra.mrb[0].mxu0 %v10014
  %v10095 = vpop.f32.mrb[0].mxu0
  %v10096 = vadd.f32 %v48, %v10095
  %v10097 = vpop.f32.mrb[0].mxu0
  %10098 = vmatprep.mubr.f32.mxu0 0.0
  %10099 = vmatmul.mubr.f32.gmra.mrb[0].mxu0 %v10017
  %v10100 = vpop.f32.mrb[0].mxu0
  %v10101 = vadd.f32 %v49, %v10100
  %v10102 = vpop.f32.mrb[0].mxu0
  %10103 = vmatprep.mubr.f32.mxu0 0.0
  %10104 = vmatmul.mubr.f32.gmra.mrb[0].mxu0 %v10020
  %v10105 = vpop.f32.mrb[0].mxu0
  %v10106 = vadd.f32 %v50, %v10105
  %v10107 = vpop.f32.mrb[0].mxu0
  %10108 = vdwg.mxu0
  %v10109 = vsel %vm604, %v10091, -inf
  %10110 = vmax.xlane.f32.xlu0 %v10109
  %v10111 = vpop.xlane.xlu0 %10110
  %v10112 = vsel %vm604, %v10096, -inf
  %10113 = vmax.xlane.f32.xlu0 %v10112
  %v10114 = vpop.xlane.xlu0 %10113
  %v10115 = vsel %vm604, %v10101, -inf
  %10116 = vmax.xlane.f32.xlu0 %v10115
  %v10117 = vpop.xlane.xlu0 %10116
  %v10118 = vsel %vm604, %v10106, -inf
  %10119 = vmax.xlane.f32.xlu0 %v10118
  %v10120 = vpop.xlane.xlu0 %10119
  %v10121 = vsub.f32 %v10091, %v10111
  %v10122 = vsub.f32 %v10096, %v10114
  %v10123 = vsub.f32 %v10101, %v10117
  %v10124 = vsub.f32 %v10106, %v10120
  %v10125 = vmul.f32 %v10121, 1.442695
  %v10126 = vpow.pop %v10125
  %v10127 = vmul.f32 %v10122, 1.442695
  %v10128 = vpow.pop %v10127
  %v10129 = vmul.f32 %v10123, 1.442695
  %v10130 = vpow.pop %v10129
  %v10131 = vmul.f32 %v10124, 1.442695
  %v10132 = vpow.pop %v10131
  %v10133 = vsel %vm604, %v10126, 0.0
  %10134 = vadd.xlane.f32.xlu0 %v10133
  %v10135 = vpop.xlane.xlu0 %10134
  %v10136 = vsel %vm604, %v10128, 0.0
  %10137 = vadd.xlane.f32.xlu0 %v10136
  %v10138 = vpop.xlane.xlu0 %10137
  %v10139 = vsel %vm604, %v10130, 0.0
  %10140 = vadd.xlane.f32.xlu0 %v10139
  %v10141 = vpop.xlane.xlu0 %10140
  %v10142 = vsel %vm604, %v10132, 0.0
  %10143 = vadd.xlane.f32.xlu0 %v10142
  %v10144 = vpop.xlane.xlu0 %10143
  %v10145 = vrcp.pop %v10135
  %v10146 = vrcp.pop %v10138
  %v10147 = vrcp.pop %v10141
  %v10148 = vrcp.pop %v10144
  %v10149 = vmul.f32 %v10126, %v10145
  %v10150 = vmul.f32 %v10128, %v10146
  %v10151 = vmul.f32 %v10130, %v10147
  %v10152 = vmul.f32 %v10132, %v10148
  %v10153 = vrot.slane %v9184, 6
  %v10154 = vsel %vm604, %v10153, 0
  %v10157 = vsel %vm604, %v10149, 0
  %v10160 = vsel %vm604, %v10150, 0
  %v10163 = vsel %vm604, %v10151, 0
  %v10166 = vsel %vm604, %v10152, 0
  %10168 = vmatprep.subr.mxu0 0.0
  %10169 = vmatpush1.xpose.msra.mxu0 %v10157
  %10170 = vmatprep.subr.mxu0 0.0
  %10171 = vmatpush1.xpose.msra.mxu0 %v10160
  %10172 = vmatprep.subr.mxu0 0.0
  %10173 = vmatpush1.xpose.msra.mxu0 %v10163
  %10174 = vmatprep.subr.mxu0 0.0
  %10175 = vmatpush1.xpose.msra.mxu0 %v10166
  %10176 = vmatprep.subr.mxu0 0.0
  %10177 = vmatpush1.xpose.msra.mxu0 0.0
  %10178 = vmatprep.subr.mxu0 0.0
  %10179 = vmatpush1.xpose.msra.mxu0 0.0
  %10180 = vmatprep.subr.mxu0 0.0
  %10181 = vmatpush1.xpose.msra.mxu0 0.0
  %10182 = vmatprep.subr.mxu0 0.0
  %10183 = vmatpush1.xpose.msra.mxu0 0.0
  %10184 = vmatprep.subr.mxu0 0.0
  %10185 = vmatpush1.xpose.msra.mxu0 0.0
  %10186 = vmatprep.subr.mxu0 0.0
  %10187 = vmatpush1.xpose.msra.mxu0 0.0
  %10188 = vmatprep.subr.mxu0 0.0
  %10189 = vmatpush1.xpose.msra.mxu0 0.0
  %10190 = vmatprep.subr.mxu0 0.0
  %10191 = vmatpush1.xpose.msra.mxu0 0.0
  %10192 = vmatprep.subr.mxu0 0.0
  %10193 = vmatpush1.xpose.msra.mxu0 0.0
  %10194 = vmatprep.subr.mxu0 0.0
  %10195 = vmatpush1.xpose.msra.mxu0 0.0
  %10196 = vmatprep.subr.mxu0 0.0
  %10197 = vmatpush1.xpose.msra.mxu0 0.0
  %10198 = vmatprep.subr.mxu0 0.0
  %10199 = vmatpush1.xpose.msra.mxu0 0.0
  %10200 = vmatprep.subr.mxu0 0.0
  %10201 = vmatpush1.xpose.msra.mxu0 0.0
  %10202 = vmatprep.subr.mxu0 0.0
  %10203 = vmatpush1.xpose.msra.mxu0 0.0
  %10204 = vmatprep.subr.mxu0 0.0
  %10205 = vmatpush1.xpose.msra.mxu0 0.0
  %10206 = vmatprep.subr.mxu0 0.0
  %10207 = vmatpush1.xpose.msra.mxu0 0.0
  %10208 = vmatprep.subr.mxu0 0.0
  %10209 = vmatpush1.xpose.msra.mxu0 0.0
  %10210 = vmatprep.subr.mxu0 0.0
  %10211 = vmatpush1.xpose.msra.mxu0 0.0
  %10212 = vmatprep.subr.mxu0 0.0
  %10213 = vmatpush1.xpose.msra.mxu0 0.0
  %10214 = vmatprep.subr.mxu0 0.0
  %10215 = vmatpush1.xpose.msra.mxu0 0.0
  %10216 = vmatprep.subr.mxu0 0.0
  %10217 = vmatpush1.xpose.msra.mxu0 0.0
  %10218 = vmatprep.subr.mxu0 0.0
  %10219 = vmatpush1.xpose.msra.mxu0 0.0
  %10220 = vmatprep.subr.mxu0 0.0
  %10221 = vmatpush1.xpose.msra.mxu0 0.0
  %10222 = vmatprep.subr.mxu0 0.0
  %10223 = vmatpush1.xpose.msra.mxu0 0.0
  %10224 = vmatprep.subr.mxu0 0.0
  %10225 = vmatpush1.xpose.msra.mxu0 0.0
  %10226 = vmatprep.subr.mxu0 0.0
  %10227 = vmatpush1.xpose.msra.mxu0 0.0
  %10228 = vmatprep.subr.mxu0 0.0
  %10229 = vmatpush1.xpose.msra.mxu0 0.0
  %10230 = vmatprep.subr.mxu0 0.0
  %10231 = vmatpush1.xpose.msra.mxu0 0.0
  %10232 = vmatprep.mubr.f32.mxu0 0.0
  %10233 = vmatmul.mubr.f32.gmra.mrb[0].mxu0 %v10154
  %v10234 = vpop.f32.mrb[0].mxu0
  %v10235 = vadd.f32 0.0, %v10234
  %v10236 = vpop.f32.mrb[0].mxu0
  %10237 = vdwg.mxu0
  %v10239 = vrot.slane %v9709, 6
  %v10242 = vrot.slane %v9972, 4
  %v10245 = vrot.slane %v10235, 2
  %v10247 = vsel %vm515, %v9445, %v10239
  %v10248 = vsel %vm1534, %v10247, %v10242
  %v10249 = vsel %vm1536, %v10248, %v10245
  %10251 = vset.pattern.permute.xlu0 0
  %10252 = vperm.xlu0 %10251, %v9082
  %v10253 = vpop.permute.xlu0 %10252
  %v10256 = vsel %vm66, %v9080, 0
  %10258 = vmatprep.subr.mxu0 0.0
  %10259 = vmatpush1.msra.mxu0 %v10249
  %10260 = vmatprep.subr.mxu0 0.0
  %10261 = vmatpush1.msra.mxu0 0.0
  %10262 = vmatprep.subr.mxu0 0.0
  %10263 = vmatpush1.msra.mxu0 0.0
  %10264 = vmatprep.subr.mxu0 0.0
  %10265 = vmatpush1.msra.mxu0 0.0
  %10266 = vmatprep.subr.mxu0 0.0
  %10267 = vmatpush1.msra.mxu0 0.0
  %10268 = vmatprep.subr.mxu0 0.0
  %10269 = vmatpush1.msra.mxu0 0.0
  %10270 = vmatprep.subr.mxu0 0.0
  %10271 = vmatpush1.msra.mxu0 0.0
  %10272 = vmatprep.subr.mxu0 0.0
  %10273 = vmatpush1.msra.mxu0 0.0
  %10274 = vmatprep.subr.mxu0 0.0
  %10275 = vmatpush1.msra.mxu0 0.0
  %10276 = vmatprep.subr.mxu0 0.0
  %10277 = vmatpush1.msra.mxu0 0.0
  %10278 = vmatprep.subr.mxu0 0.0
  %10279 = vmatpush1.msra.mxu0 0.0
  %10280 = vmatprep.subr.mxu0 0.0
  %10281 = vmatpush1.msra.mxu0 0.0
  %10282 = vmatprep.subr.mxu0 0.0
  %10283 = vmatpush1.msra.mxu0 0.0
  %10284 = vmatprep.subr.mxu0 0.0
  %10285 = vmatpush1.msra.mxu0 0.0
  %10286 = vmatprep.subr.mxu0 0.0
  %10287 = vmatpush1.msra.mxu0 0.0
  %10288 = vmatprep.subr.mxu0 0.0
  %10289 = vmatpush1.msra.mxu0 0.0
  %10290 = vmatprep.subr.mxu0 0.0
  %10291 = vmatpush1.msra.mxu0 0.0
  %10292 = vmatprep.subr.mxu0 0.0
  %10293 = vmatpush1.msra.mxu0 0.0
  %10294 = vmatprep.subr.mxu0 0.0
  %10295 = vmatpush1.msra.mxu0 0.0
  %10296 = vmatprep.subr.mxu0 0.0
  %10297 = vmatpush1.msra.mxu0 0.0
  %10298 = vmatprep.subr.mxu0 0.0
  %10299 = vmatpush1.msra.mxu0 0.0
  %10300 = vmatprep.subr.mxu0 0.0
  %10301 = vmatpush1.msra.mxu0 0.0
  %10302 = vmatprep.subr.mxu0 0.0
  %10303 = vmatpush1.msra.mxu0 0.0
  %10304 = vmatprep.subr.mxu0 0.0
  %10305 = vmatpush1.msra.mxu0 0.0
  %10306 = vmatprep.subr.mxu0 0.0
  %10307 = vmatpush1.msra.mxu0 0.0
  %10308 = vmatprep.subr.mxu0 0.0
  %10309 = vmatpush1.msra.mxu0 0.0
  %10310 = vmatprep.subr.mxu0 0.0
  %10311 = vmatpush1.msra.mxu0 0.0
  %10312 = vmatprep.subr.mxu0 0.0
  %10313 = vmatpush1.msra.mxu0 0.0
  %10314 = vmatprep.subr.mxu0 0.0
  %10315 = vmatpush1.msra.mxu0 0.0
  %10316 = vmatprep.subr.mxu0 0.0
  %10317 = vmatpush1.msra.mxu0 0.0
  %10318 = vmatprep.subr.mxu0 0.0
  %10319 = vmatpush1.msra.mxu0 0.0
  %10320 = vmatprep.subr.mxu0 0.0
  %10321 = vmatpush1.msra.mxu0 0.0
  %10322 = vmatprep.mubr.f32.mxu0 0.0
  %10323 = vmatmul.mubr.f32.gmra.mrb[0].mxu0 %v10256
  %v10324 = vpop.f32.mrb[0].mxu0
  %v10325 = vadd.f32 %v10253, %v10324
  %v10326 = vpop.f32.mrb[0].mxu0
  %10327 = vdwg.mxu0
  %v10329 = vsel %vm604, %v10325, 0
  %10331 = vmatprep.subr.mxu0 0.0
  %10332 = vmatpush1.msra.mxu0 %v51
  %10333 = vmatprep.subr.mxu0 0.0
  %10334 = vmatpush1.msra.mxu0 %v52
  %10335 = vmatprep.subr.mxu0 0.0
  %10336 = vmatpush1.msra.mxu0 %v53
  %10337 = vmatprep.subr.mxu0 0.0
  %10338 = vmatpush1.msra.mxu0 %v54
  %10339 = vmatprep.subr.mxu0 0.0
  %10340 = vmatpush1.msra.mxu0 0.0
  %10341 = vmatprep.subr.mxu0 0.0
  %10342 = vmatpush1.msra.mxu0 0.0
  %10343 = vmatprep.subr.mxu0 0.0
  %10344 = vmatpush1.msra.mxu0 0.0
  %10345 = vmatprep.subr.mxu0 0.0
  %10346 = vmatpush1.msra.mxu0 0.0
  %10347 = vmatprep.subr.mxu0 0.0
  %10348 = vmatpush1.msra.mxu0 0.0
  %10349 = vmatprep.subr.mxu0 0.0
  %10350 = vmatpush1.msra.mxu0 0.0
  %10351 = vmatprep.subr.mxu0 0.0
  %10352 = vmatpush1.msra.mxu0 0.0
  %10353 = vmatprep.subr.mxu0 0.0
  %10354 = vmatpush1.msra.mxu0 0.0
  %10355 = vmatprep.subr.mxu0 0.0
  %10356 = vmatpush1.msra.mxu0 0.0
  %10357 = vmatprep.subr.mxu0 0.0
  %10358 = vmatpush1.msra.mxu0 0.0
  %10359 = vmatprep.subr.mxu0 0.0
  %10360 = vmatpush1.msra.mxu0 0.0
  %10361 = vmatprep.subr.mxu0 0.0
  %10362 = vmatpush1.msra.mxu0 0.0
  %10363 = vmatprep.subr.mxu0 0.0
  %10364 = vmatpush1.msra.mxu0 0.0
  %10365 = vmatprep.subr.mxu0 0.0
  %10366 = vmatpush1.msra.mxu0 0.0
  %10367 = vmatprep.subr.mxu0 0.0
  %10368 = vmatpush1.msra.mxu0 0.0
  %10369 = vmatprep.subr.mxu0 0.0
  %10370 = vmatpush1.msra.mxu0 0.0
  %10371 = vmatprep.subr.mxu0 0.0
  %10372 = vmatpush1.msra.mxu0 0.0
  %10373 = vmatprep.subr.mxu0 0.0
  %10374 = vmatpush1.msra.mxu0 0.0
  %10375 = vmatprep.subr.mxu0 0.0
  %10376 = vmatpush1.msra.mxu0 0.0
  %10377 = vmatprep.subr.mxu0 0.0
  %10378 = vmatpush1.msra.mxu0 0.0
  %10379 = vmatprep.subr.mxu0 0.0
  %10380 = vmatpush1.msra.mxu0 0.0
  %10381 = vmatprep.subr.mxu0 0.0
  %10382 = vmatpush1.msra.mxu0 0.0
  %10383 = vmatprep.subr.mxu0 0.0
  %10384 = vmatpush1.msra.mxu0 0.0
  %10385 = vmatprep.subr.mxu0 0.0
  %10386 = vmatpush1.msra.mxu0 0.0
  %10387 = vmatprep.subr.mxu0 0.0
  %10388 = vmatpush1.msra.mxu0 0.0
  %10389 = vmatprep.subr.mxu0 0.0
  %10390 = vmatpush1.msra.mxu0 0.0
  %10391 = vmatprep.subr.mxu0 0.0
  %10392 = vmatpush1.msra.mxu0 0.0
  %10393 = vmatprep.subr.mxu0 0.0
  %10394 = vmatpush1.msra.mxu0 0.0
  %10395 = vmatprep.mubr.f32.mxu0 0.0
  %10396 = vmatmul.mubr.f32.gmra.mrb[0].mxu0 %v10329
  %v10397 = vpop.f32.mrb[0].mxu0
  %v10398 = vadd.f32 0.0, %v10397
  %v10399 = vpop.f32.mrb[0].mxu0
  %10400 = vdwg.mxu0
  %v10401 = vadd.f32 %v9068, %v10398
  %v10402 = vadd.f32 %v9063, %v10401
  %v10403 = vsel %vm604, %v10325, 0.0
  %10404 = vst [vmem:[%s14] sm:$0xff] %v10402
  %10405 = vst [vmem:[%s14 + $0x8] sm:$0xff] %v10401
  %10406 = vst [vmem:[%s14 + $0x10] sm:$0xff] %v10403
  // Predicated region
  $region58: #{stacked_bifpn.1} parent=0 // pred_check
    _
  $region59: #{stacked_bifpn.1} parent=0 // pred_check_branch
    %10408 = sbr.rel (0) target = $region61
  $region60: #{stacked_bifpn.1} parent=0 // pred_region
    _
  $region61: #{stacked_bifpn.1} parent=0 // pred_fallthru
    _
  // Predicated region
  $region62: #{stacked_bifpn.1} parent=0 // pred_check
    _
  $region63: #{stacked_bifpn.1} parent=0 // pred_check_branch
    %10410 = sbr.rel (0) target = $region65
  $region64: #{stacked_bifpn.1} parent=0 // pred_region
    _
  $region65: #{stacked_bifpn.1} parent=0 // pred_fallthru
    _

</llo_original>
